<compile_context>
chip_gen: v5e
topology: v5e:2x2
jax: 0.10.0
libtpu: 0.0.40
codegen_flags: <defaults>
</compile_context>

<pallas_src>
import functools

import jax
import jax.numpy as jnp
from jax import lax
from jax.experimental import pallas as pl
from jax.experimental.pallas import tpu as pltpu


def _round_up(x, m):
    return ((x + m - 1) // m) * m


def _decoder_kernel(T, B, Hp,
                    x_ref, feat_ref,
                    w_attn_ref, w_init_ref, b_init_ref,
                    w_ih_ctx_ref, w_ih_x_ref, w_hh_ref, b_gate_ref,
                    w_h2_ref, w_c2_ref, b_head_ref,
                    w_out_ref, b_out_ref,
                    o_ref,
                    xg_sc, h_sc, ctx_sc):
    feats = feat_ref[...]                     # (B, L, F)
    x_all = x_ref[...]                        # (T*B, F)  time-major word embeddings

    # ---- time-invariant hoists: single M = T*B matmuls, run once ----
    # word-input contribution to the LSTM gates, with b_ih + b_hh pre-added
    xg_sc[...] = (jnp.dot(x_all, w_ih_x_ref[...],
                          preferred_element_type=jnp.float32)
                  + b_gate_ref[...])                                   # (T*B, 4*Hp)
    # pre-projected features for Luong 'general' attention: P[b, l, :] = W_a f_{b,l}
    proj = lax.dot_general(feats, w_attn_ref[...],
                           (((2,), (0,)), ((), ())),
                           preferred_element_type=jnp.float32)         # (B, L, Hp)

    # ---- init_lstm: h = c = tanh(Linear(mean over locations)) ----
    mean_feat = jnp.mean(feats, axis=1)                                # (B, F)
    h0 = jnp.tanh(jnp.dot(mean_feat, w_init_ref[...],
                          preferred_element_type=jnp.float32) + b_init_ref[...])

    def step(t, carry):
        h, c = carry                                                   # (B, Hp) each
        row = pl.multiple_of(t * B, B)

        # Luong 'general' attention: score_l = h . P[:, l, :], softmax over L
        scores = jnp.einsum('bqh,blh->bql', h[:, None, :], proj,
                            preferred_element_type=jnp.float32)        # (B, 1, L)
        scores = scores - jnp.max(scores, axis=-1, keepdims=True)
        e = jnp.exp(scores)
        alpha = e * pl.reciprocal(jnp.sum(e, axis=-1, keepdims=True), approx=True)
        ctx = jnp.einsum('bql,blf->bqf', alpha, feats,
                         preferred_element_type=jnp.float32)           # (B, 1, F)
        ctx = jnp.squeeze(ctx, axis=1)                                 # (B, F)

        # one LSTM cell step on input [context, x_t]; gate order i, f, g, o.
        # Gate blocks are laid out on 128-lane boundaries (Hp-wide, zero-padded).
        gates = (jnp.dot(ctx, w_ih_ctx_ref[...],
                         preferred_element_type=jnp.float32)
                 + jnp.dot(h, w_hh_ref[...],
                           preferred_element_type=jnp.float32)
                 + xg_sc[pl.ds(row, B), :])                            # (B, 4*Hp)
        i_g = jax.nn.sigmoid(gates[:, 0 * Hp:1 * Hp])
        f_g = jax.nn.sigmoid(gates[:, 1 * Hp:2 * Hp])
        g_g = jnp.tanh(gates[:, 2 * Hp:3 * Hp])
        o_g = jax.nn.sigmoid(gates[:, 3 * Hp:4 * Hp])
        c_new = f_g * c + i_g * g_g
        h_new = o_g * jnp.tanh(c_new)

        # stash per-step hidden / context; the decode head runs batched after the loop
        h_sc[pl.ds(row, B), :] = h_new
        ctx_sc[pl.ds(row, B), :] = ctx
        return h_new, c_new

    lax.fori_loop(0, T, step, (h0, h0), unroll=True)

    # ---- decode head, batched over all T*B rows (off the recurrent path) ----
    pre = (jnp.dot(h_sc[...], w_h2_ref[...], preferred_element_type=jnp.float32)
           + jnp.dot(ctx_sc[...], w_c2_ref[...], preferred_element_type=jnp.float32)
           + x_all + b_head_ref[...])                                  # (T*B, F)
    o_ref[...] = (jnp.dot(jnp.tanh(pre), w_out_ref[...],
                          preferred_element_type=jnp.float32)
                  + b_out_ref[...])                                    # (T*B, Vp)


def prepare_params(params):
    """One-time layout prep: transposes, 128-lane gate/vocab padding, bias fusion."""
    H = params["w_hh"].shape[1]
    F = params["w_ctx2out"].shape[0]
    V = params["w_out"].shape[0]
    Hp = _round_up(H, 128)
    Vp = _round_up(V, 128)

    def pad_cols(w, n_to):                    # (K, n) -> (K, n_to), zero-padded cols
        return jnp.pad(w, ((0, 0), (0, n_to - w.shape[1])))

    def pad_rows(w, n_to):                    # (n, K) -> (n_to, K), zero-padded rows
        return jnp.pad(w, ((0, n_to - w.shape[0]), (0, 0)))

    def pad_gate_cols(w):                     # (K, 4H) -> (K, 4Hp); gate g at g*Hp..g*Hp+H
        return jnp.concatenate(
            [pad_cols(w[:, g * H:(g + 1) * H], Hp) for g in range(4)], axis=1)

    w_ih, w_hh = params["w_ih"], params["w_hh"]          # (4H, H), (4H, H); H == 2F
    b_gate = (params["b_ih"] + params["b_hh"])[None, :]  # (1, 4H)
    return {
        "H": H, "Hp": Hp, "F": F, "V": V, "Vp": Vp,
        "w_embed":    params["w_embed"],
        "w_attn_t":   pad_cols(params["w_attn"].T, Hp),                  # (F, Hp)
        "w_init_t":   pad_cols(params["w_init"].T, Hp),                  # (F, Hp)
        "b_init":     pad_cols(params["b_init"][None, :], Hp),           # (1, Hp)
        "w_ih_ctx_t": pad_gate_cols(w_ih[:, :F].T),                      # (F, 4Hp)
        "w_ih_x_t":   pad_gate_cols(w_ih[:, F:].T),                      # (F, 4Hp)
        "w_hh_t":     pad_rows(pad_gate_cols(w_hh.T), Hp),               # (Hp, 4Hp)
        "b_gate":     pad_gate_cols(b_gate),                             # (1, 4Hp)
        "w_h2out_t":  pad_rows(params["w_h2out"].T, Hp),                 # (Hp, F)
        "w_ctx2out_t": params["w_ctx2out"].T,                            # (F, F)
        "b_head":     (params["b_h2out"] + params["b_ctx2out"])[None, :],  # (1, F)
        "w_out_t":    pad_cols(params["w_out"].T, Vp),                   # (F, Vp)
        "b_out":      pad_cols(params["b_out"][None, :], Vp),            # (1, Vp)
    }


def attn_decoder_forward(prep, features_bfl, captions, lengths):
    """Pallas implementation of AttnDecoderRnn.forward."""
    B, F, L = features_bfl.shape
    T = int(max(lengths))
    Hp, V, Vp = prep["Hp"], prep["V"], prep["Vp"]

    feats = jnp.transpose(features_bfl, (0, 2, 1)).astype(jnp.float32)   # (B, L, F)
    embed = jnp.take(prep["w_embed"], captions, axis=0)                  # glue (gather)
    # step 0 input word is zeros; step i>0 uses embed[:, i-1]
    x_btf = jnp.concatenate(
        [jnp.zeros((B, 1, F), jnp.float32), embed[:, :T - 1]], axis=1)   # (B, T, F)
    x_2d = jnp.transpose(x_btf, (1, 0, 2)).reshape(T * B, F)             # time-major rows

    kernel = functools.partial(_decoder_kernel, T, B, Hp)
    out2d = pl.pallas_call(
        kernel,
        out_shape=jax.ShapeDtypeStruct((T * B, Vp), jnp.float32),        # lane-dense slab
        scratch_shapes=[
            pltpu.VMEM((T * B, 4 * Hp), jnp.float32),   # hoisted x @ W_ih_x + fused bias
            pltpu.VMEM((T * B, Hp), jnp.float32),       # per-step hidden states
            pltpu.VMEM((T * B, F), jnp.float32),        # per-step attention contexts
        ],
    )(x_2d, feats,
      prep["w_attn_t"], prep["w_init_t"], prep["b_init"],
      prep["w_ih_ctx_t"], prep["w_ih_x_t"], prep["w_hh_t"], prep["b_gate"],
      prep["w_h2out_t"], prep["w_ctx2out_t"], prep["b_head"],
      prep["w_out_t"], prep["b_out"])

    out = out2d.reshape(T, B, Vp)[:, :, :V]
    return jnp.transpose(out, (1, 0, 2))                                 # (B, T, V)


def reference_forward(params, features_bfl, captions, lengths):
    """Pure-JAX replica of the PyTorch forward (for verification)."""
    B, F, _ = features_bfl.shape
    H = params["w_hh"].shape[1]
    T = int(max(lengths))
    feats = jnp.transpose(features_bfl, (0, 2, 1)).astype(jnp.float32)
    embed = params["w_embed"][captions]
    mean_feat = jnp.mean(feats, axis=1)
    h = jnp.tanh(mean_feat @ params["w_init"].T + params["b_init"])
    c = h
    outs = []
    for i in range(T):
        x = jnp.zeros((B, F), jnp.float32) if i == 0 else embed[:, i - 1]
        ph = h @ params["w_attn"]
        scores = jnp.sum(ph[:, None, :] * feats, axis=-1)
        alpha = jax.nn.softmax(scores, axis=-1)
        ctx = jnp.sum(alpha[:, :, None] * feats, axis=1)
        lstm_in = jnp.concatenate([ctx, x], axis=-1)
        gates = (lstm_in @ params["w_ih"].T + h @ params["w_hh"].T
                 + params["b_ih"] + params["b_hh"])
        i_g = jax.nn.sigmoid(gates[:, :H])
        f_g = jax.nn.sigmoid(gates[:, H:2 * H])
        g_g = jnp.tanh(gates[:, 2 * H:3 * H])
        o_g = jax.nn.sigmoid(gates[:, 3 * H:])
        c = f_g * c + i_g * g_g
        h = o_g * jnp.tanh(c)
        pre = (h @ params["w_h2out"].T + params["b_h2out"]
               + ctx @ params["w_ctx2out"].T + params["b_ctx2out"] + x)
        logits = jnp.tanh(pre) @ params["w_out"].T + params["b_out"]
        outs.append(logits[:, None, :])
    return jnp.concatenate(outs, axis=1)


def init_params(key, feature_size, hidden_size, vocab_size):
    F, H, V = feature_size, hidden_size, vocab_size
    ks = jax.random.split(key, 14)

    def w(k, *shape):
        return (jax.random.normal(k, shape, jnp.float32) * 0.1).astype(jnp.float32)

    return {
        "w_embed":   w(ks[0], V, F),             # nn.Embedding(V, F)
        "w_init":    w(ks[1], H, F),             # init_layer: Linear(F, H)
        "b_init":    w(ks[2], H),
        "w_attn":    w(ks[3], H, F),             # Attn 'general': Linear(F, H), no bias
        "w_ih":      w(ks[4], 4 * H, H),         # LSTM weight_ih_l0 (input_size = H)
        "b_ih":      w(ks[5], 4 * H),
        "w_hh":      w(ks[6], 4 * H, H),         # LSTM weight_hh_l0
        "b_hh":      w(ks[7], 4 * H),
        "w_h2out":   w(ks[8], F, H),             # h2out: Linear(H, F)
        "b_h2out":   w(ks[9], F),
        "w_ctx2out": w(ks[10], F, F),            # ctx2out: Linear(F, F)
        "b_ctx2out": w(ks[11], F),
        "w_out":     w(ks[12], V, F),            # out: Linear(F, V)
        "b_out":     w(ks[13], V),
        # TODO(synk): out_cat (Linear(3F, V)) and pack_padded_sequence are unused
        # by forward() and therefore not materialized.
    }


if __name__ == "__main__":
    feature_size, hidden_size, vocab_size, num_layers = 32, 64, 50, 1
    # hidden_size must equal 2*feature_size: LSTM input is [context, word_embed].
    B, L, T = 8, 16, 8

    key = jax.random.PRNGKey(0)
    kp, kf, kc = jax.random.split(key, 3)
    params = init_params(kp, feature_size, hidden_size, vocab_size)
    prep = prepare_params(params)                                        # one-time layout prep

    features = jax.random.normal(kf, (B, feature_size, L), jnp.float32)  # (B, F, L)
    captions = jax.random.randint(kc, (B, T), 0, vocab_size, jnp.int32)  # (B, T)
    lengths = [T, T - 1, T, T - 3, T, T - 2, T, T]

    out = attn_decoder_forward(prep, features, captions, lengths)
    out = jax.block_until_ready(out)

    ref = reference_forward(params, features, captions, lengths)
    assert out.shape == (B, max(lengths), vocab_size), out.shape
    max_err = float(jnp.max(jnp.abs(out - ref)))
    # approx EUP reciprocal in the in-kernel softmax gives ~1e-3-level differences
    assert max_err < 2e-2, f"mismatch vs reference: max abs err {max_err}"

    print("KERNEL_OK")
</pallas_src>

<mosaic_0001>
module attributes {stable_mosaic.version = 11 : i64} {
  func.func @_decoder_kernel(%arg0: memref<64x32xf32, #tpu.memory_space<vmem>>, %arg1: memref<8x16x32xf32, #tpu.memory_space<vmem>>, %arg2: memref<32x128xf32, #tpu.memory_space<vmem>>, %arg3: memref<32x128xf32, #tpu.memory_space<vmem>>, %arg4: memref<1x128xf32, #tpu.memory_space<vmem>>, %arg5: memref<32x512xf32, #tpu.memory_space<vmem>>, %arg6: memref<32x512xf32, #tpu.memory_space<vmem>>, %arg7: memref<128x512xf32, #tpu.memory_space<vmem>>, %arg8: memref<1x512xf32, #tpu.memory_space<vmem>>, %arg9: memref<128x32xf32, #tpu.memory_space<vmem>>, %arg10: memref<32x32xf32, #tpu.memory_space<vmem>>, %arg11: memref<1x32xf32, #tpu.memory_space<vmem>>, %arg12: memref<32x128xf32, #tpu.memory_space<vmem>>, %arg13: memref<1x128xf32, #tpu.memory_space<vmem>>, %arg14: memref<64x128xf32, #tpu.memory_space<vmem>>, %arg15: memref<64x512xf32, #tpu.memory_space<vmem>>, %arg16: memref<64x128xf32, #tpu.memory_space<vmem>>, %arg17: memref<64x32xf32, #tpu.memory_space<vmem>>) attributes {dimension_semantics = [], scalar_prefetch = 0 : i64, scratch_operands = 3 : i64, tpu.core_type = #tpu.core_type<tc>} {
    %c0 = arith.constant 0 : index
    %c0_0 = arith.constant 0 : index
    %c0_1 = arith.constant 0 : index
    %0 = vector.load %arg1[%c0, %c0_0, %c0_1] : memref<8x16x32xf32, #tpu.memory_space<vmem>>, vector<8x16x32xf32>
    %c0_2 = arith.constant 0 : index
    %c0_3 = arith.constant 0 : index
    %1 = vector.load %arg0[%c0_2, %c0_3] : memref<64x32xf32, #tpu.memory_space<vmem>>, vector<64x32xf32>
    %c0_4 = arith.constant 0 : index
    %c0_5 = arith.constant 0 : index
    %2 = vector.load %arg6[%c0_4, %c0_5] : memref<32x512xf32, #tpu.memory_space<vmem>>, vector<32x512xf32>
    %cst = arith.constant dense<0.000000e+00> : vector<64x512xf32>
    %3 = tpu.matmul %1, %2, %cst {dimension_numbers = #tpu.dot_dimension_numbers<[1], [0], [0], [1], [0, 0, 1, 1], [], []>} : vector<64x32xf32>, vector<32x512xf32>, vector<64x512xf32> -> vector<64x512xf32>
    %c0_6 = arith.constant 0 : index
    %c0_7 = arith.constant 0 : index
    %4 = vector.load %arg8[%c0_6, %c0_7] : memref<1x512xf32, #tpu.memory_space<vmem>>, vector<1x512xf32>
    %5 = vector.broadcast %4 : vector<1x512xf32> to vector<64x512xf32>
    %6 = arith.addf %3, %5 : vector<64x512xf32>
    %c0_8 = arith.constant 0 : index
    %c0_9 = arith.constant 0 : index
    %7 = vector.load %arg15[%c0_8, %c0_9] : memref<64x512xf32, #tpu.memory_space<vmem>>, vector<64x512xf32>
    tpu.vector_store %arg15[%c0_8, %c0_9], %6 {strides = array<i32>} : memref<64x512xf32, #tpu.memory_space<vmem>>, vector<64x512xf32>,
    %c0_10 = arith.constant 0 : index
    %c0_11 = arith.constant 0 : index
    %8 = vector.load %arg2[%c0_10, %c0_11] : memref<32x128xf32, #tpu.memory_space<vmem>>, vector<32x128xf32>
    %cst_12 = arith.constant dense<0.000000e+00> : vector<8x16x128xf32>
    %9 = tpu.matmul %0, %8, %cst_12 {dimension_numbers = #tpu.dot_dimension_numbers<[2], [0], [0, 1], [1], [0, 0, 0, 1, 1, 1], [], []>} : vector<8x16x32xf32>, vector<32x128xf32>, vector<8x16x128xf32> -> vector<8x16x128xf32>
    %cst_13 = arith.constant dense<0.000000e+00> : vector<8x32xf32>
    %10 = vector.multi_reduction <add>, %0, %cst_13 [1] : vector<8x16x32xf32> to vector<8x32xf32>
    %cst_14 = arith.constant 1.600000e+01 : f32
    %11 = vector.broadcast %cst_14 : f32 to vector<8x32xf32>
    %12 = arith.divf %10, %11 : vector<8x32xf32>
    %c0_15 = arith.constant 0 : index
    %c0_16 = arith.constant 0 : index
    %13 = vector.load %arg3[%c0_15, %c0_16] : memref<32x128xf32, #tpu.memory_space<vmem>>, vector<32x128xf32>
    %cst_17 = arith.constant dense<0.000000e+00> : vector<8x128xf32>
    %14 = tpu.matmul %12, %13, %cst_17 {dimension_numbers = #tpu.dot_dimension_numbers<[1], [0], [0], [1], [0, 0, 1, 1], [], []>} : vector<8x32xf32>, vector<32x128xf32>, vector<8x128xf32> -> vector<8x128xf32>
    %c0_18 = arith.constant 0 : index
    %c0_19 = arith.constant 0 : index
    %15 = vector.load %arg4[%c0_18, %c0_19] : memref<1x128xf32, #tpu.memory_space<vmem>>, vector<1x128xf32>
    %16 = vector.broadcast %15 : vector<1x128xf32> to vector<8x128xf32>
    %17 = arith.addf %14, %16 : vector<8x128xf32>
    %18 = math.tanh %17 : vector<8x128xf32>
    %c0_i32 = arith.constant 0 : i32
    %c8_i32 = arith.constant 8 : i32
    %19 = arith.muli %c0_i32, %c8_i32 : i32
    %20 = tpu.assume_multiple %19, 8 : i32
    %21 = vector.shape_cast %18 : vector<8x128xf32> to vector<8x1x128xf32>
    "tpu.trace_start"() <{level = 10 : i32, message = "bqh,blh->bql"}> : () -> ()
    %cst_20 = arith.constant dense<0.000000e+00> : vector<8x1x16xf32>
    %22 = tpu.matmul %21, %9, %cst_20 {dimension_numbers = #tpu.dot_dimension_numbers<[2], [2], [1], [1], [0, 0, 0, 1, 1, 1], [0], [0]>} : vector<8x1x128xf32>, vector<8x16x128xf32>, vector<8x1x16xf32> -> vector<8x1x16xf32>
    "tpu.trace_stop"() : () -> ()
    %cst_21 = arith.constant dense<0xFF800000> : vector<8x1xf32>
    %23 = vector.multi_reduction <maximumf>, %22, %cst_21 [2] : vector<8x1x16xf32> to vector<8x1xf32>
    %24 = vector.shape_cast %23 : vector<8x1xf32> to vector<8x1x1xf32>
    %25 = vector.broadcast %24 : vector<8x1x1xf32> to vector<8x1x16xf32>
    %26 = arith.subf %22, %25 : vector<8x1x16xf32>
    %27 = math.exp %26 : vector<8x1x16xf32>
    %cst_22 = arith.constant dense<0.000000e+00> : vector<8x1xf32>
    %28 = vector.multi_reduction <add>, %27, %cst_22 [2] : vector<8x1x16xf32> to vector<8x1xf32>
    %29 = vector.shape_cast %28 : vector<8x1xf32> to vector<8x1x1xf32>
    %30 = tpu.reciprocal %29 {approx = true} : vector<8x1x1xf32> -> vector<8x1x1xf32>
    %31 = vector.broadcast %30 : vector<8x1x1xf32> to vector<8x1x16xf32>
    %32 = arith.mulf %27, %31 : vector<8x1x16xf32>
    "tpu.trace_start"() <{level = 10 : i32, message = "bql,blf->bqf"}> : () -> ()
    %cst_23 = arith.constant dense<0.000000e+00> : vector<8x1x32xf32>
    %33 = tpu.matmul %32, %0, %cst_23 {dimension_numbers = #tpu.dot_dimension_numbers<[2], [1], [1], [2], [0, 0, 0, 1, 1, 2], [0], [0]>} : vector<8x1x16xf32>, vector<8x16x32xf32>, vector<8x1x32xf32> -> vector<8x1x32xf32>
    "tpu.trace_stop"() : () -> ()
    %34 = vector.shape_cast %33 : vector<8x1x32xf32> to vector<8x32xf32>
    %c0_24 = arith.constant 0 : index
    %c0_25 = arith.constant 0 : index
    %35 = vector.load %arg5[%c0_24, %c0_25] : memref<32x512xf32, #tpu.memory_space<vmem>>, vector<32x512xf32>
    %cst_26 = arith.constant dense<0.000000e+00> : vector<8x512xf32>
    %36 = tpu.matmul %34, %35, %cst_26 {dimension_numbers = #tpu.dot_dimension_numbers<[1], [0], [0], [1], [0, 0, 1, 1], [], []>} : vector<8x32xf32>, vector<32x512xf32>, vector<8x512xf32> -> vector<8x512xf32>
    %c0_27 = arith.constant 0 : index
    %c0_28 = arith.constant 0 : index
    %37 = vector.load %arg7[%c0_27, %c0_28] : memref<128x512xf32, #tpu.memory_space<vmem>>, vector<128x512xf32>
    %cst_29 = arith.constant dense<0.000000e+00> : vector<8x512xf32>
    %38 = tpu.matmul %18, %37, %cst_29 {dimension_numbers = #tpu.dot_dimension_numbers<[1], [0], [0], [1], [0, 0, 1, 1], [], []>} : vector<8x128xf32>, vector<128x512xf32>, vector<8x512xf32> -> vector<8x512xf32>
    %39 = arith.addf %36, %38 : vector<8x512xf32>
    %40 = arith.index_cast %20 : i32 to index
    %c0_30 = arith.constant 0 : index
    %41 = vector.load %arg15[%40, %c0_30] : memref<64x512xf32, #tpu.memory_space<vmem>>, vector<8x512xf32>
    %42 = arith.addf %39, %41 : vector<8x512xf32>
    %43 = vector.extract_strided_slice %42 {offsets = [0, 0], sizes = [8, 128], strides = [1, 1]} : vector<8x512xf32> to vector<8x128xf32>
    %44 = arith.negf %43 : vector<8x128xf32>
    %45 = math.exp %44 : vector<8x128xf32>
    %cst_31 = arith.constant 1.000000e+00 : f32
    %46 = vector.broadcast %cst_31 : f32 to vector<8x128xf32>
    %47 = arith.addf %46, %45 : vector<8x128xf32>
    %48 = arith.divf %46, %47 : vector<8x128xf32>
    %49 = vector.extract_strided_slice %42 {offsets = [0, 128], sizes = [8, 128], strides = [1, 1]} : vector<8x512xf32> to vector<8x128xf32>
    %50 = arith.negf %49 : vector<8x128xf32>
    %51 = math.exp %50 : vector<8x128xf32>
    %cst_32 = arith.constant 1.000000e+00 : f32
    %52 = vector.broadcast %cst_32 : f32 to vector<8x128xf32>
    %53 = arith.addf %52, %51 : vector<8x128xf32>
    %54 = arith.divf %52, %53 : vector<8x128xf32>
    %55 = vector.extract_strided_slice %42 {offsets = [0, 256], sizes = [8, 128], strides = [1, 1]} : vector<8x512xf32> to vector<8x128xf32>
    %56 = math.tanh %55 : vector<8x128xf32>
    %57 = vector.extract_strided_slice %42 {offsets = [0, 384], sizes = [8, 128], strides = [1, 1]} : vector<8x512xf32> to vector<8x128xf32>
    %58 = arith.negf %57 : vector<8x128xf32>
    %59 = math.exp %58 : vector<8x128xf32>
    %cst_33 = arith.constant 1.000000e+00 : f32
    %60 = vector.broadcast %cst_33 : f32 to vector<8x128xf32>
    %61 = arith.addf %60, %59 : vector<8x128xf32>
    %62 = arith.divf %60, %61 : vector<8x128xf32>
    %63 = arith.mulf %54, %18 : vector<8x128xf32>
    %64 = arith.mulf %48, %56 : vector<8x128xf32>
    %65 = arith.addf %63, %64 : vector<8x128xf32>
    %66 = math.tanh %65 : vector<8x128xf32>
    %67 = arith.mulf %62, %66 : vector<8x128xf32>
    %68 = arith.index_cast %20 : i32 to index
    %c0_34 = arith.constant 0 : index
    %69 = vector.load %arg16[%68, %c0_34] : memref<64x128xf32, #tpu.memory_space<vmem>>, vector<8x128xf32>
    tpu.vector_store %arg16[%68, %c0_34], %67 {strides = array<i32>} : memref<64x128xf32, #tpu.memory_space<vmem>>, vector<8x128xf32>,
    %70 = arith.index_cast %20 : i32 to index
    %c0_35 = arith.constant 0 : index
    %71 = vector.load %arg17[%70, %c0_35] : memref<64x32xf32, #tpu.memory_space<vmem>>, vector<8x32xf32>
    tpu.vector_store %arg17[%70, %c0_35], %34 {strides = array<i32>} : memref<64x32xf32, #tpu.memory_space<vmem>>, vector<8x32xf32>,
    %c1_i32 = arith.constant 1 : i32
    %c8_i32_36 = arith.constant 8 : i32
    %72 = arith.muli %c1_i32, %c8_i32_36 : i32
    %73 = tpu.assume_multiple %72, 8 : i32
    %74 = vector.shape_cast %67 : vector<8x128xf32> to vector<8x1x128xf32>
    "tpu.trace_start"() <{level = 10 : i32, message = "bqh,blh->bql"}> : () -> ()
    %cst_37 = arith.constant dense<0.000000e+00> : vector<8x1x16xf32>
    %75 = tpu.matmul %74, %9, %cst_37 {dimension_numbers = #tpu.dot_dimension_numbers<[2], [2], [1], [1], [0, 0, 0, 1, 1, 1], [0], [0]>} : vector<8x1x128xf32>, vector<8x16x128xf32>, vector<8x1x16xf32> -> vector<8x1x16xf32>
    "tpu.trace_stop"() : () -> ()
    %cst_38 = arith.constant dense<0xFF800000> : vector<8x1xf32>
    %76 = vector.multi_reduction <maximumf>, %75, %cst_38 [2] : vector<8x1x16xf32> to vector<8x1xf32>
    %77 = vector.shape_cast %76 : vector<8x1xf32> to vector<8x1x1xf32>
    %78 = vector.broadcast %77 : vector<8x1x1xf32> to vector<8x1x16xf32>
    %79 = arith.subf %75, %78 : vector<8x1x16xf32>
    %80 = math.exp %79 : vector<8x1x16xf32>
    %cst_39 = arith.constant dense<0.000000e+00> : vector<8x1xf32>
    %81 = vector.multi_reduction <add>, %80, %cst_39 [2] : vector<8x1x16xf32> to vector<8x1xf32>
    %82 = vector.shape_cast %81 : vector<8x1xf32> to vector<8x1x1xf32>
    %83 = tpu.reciprocal %82 {approx = true} : vector<8x1x1xf32> -> vector<8x1x1xf32>
    %84 = vector.broadcast %83 : vector<8x1x1xf32> to vector<8x1x16xf32>
    %85 = arith.mulf %80, %84 : vector<8x1x16xf32>
    "tpu.trace_start"() <{level = 10 : i32, message = "bql,blf->bqf"}> : () -> ()
    %cst_40 = arith.constant dense<0.000000e+00> : vector<8x1x32xf32>
    %86 = tpu.matmul %85, %0, %cst_40 {dimension_numbers = #tpu.dot_dimension_numbers<[2], [1], [1], [2], [0, 0, 0, 1, 1, 2], [0], [0]>} : vector<8x1x16xf32>, vector<8x16x32xf32>, vector<8x1x32xf32> -> vector<8x1x32xf32>
    "tpu.trace_stop"() : () -> ()
    %87 = vector.shape_cast %86 : vector<8x1x32xf32> to vector<8x32xf32>
    %c0_41 = arith.constant 0 : index
    %c0_42 = arith.constant 0 : index
    %88 = vector.load %arg5[%c0_41, %c0_42] : memref<32x512xf32, #tpu.memory_space<vmem>>, vector<32x512xf32>
    %cst_43 = arith.constant dense<0.000000e+00> : vector<8x512xf32>
    %89 = tpu.matmul %87, %88, %cst_43 {dimension_numbers = #tpu.dot_dimension_numbers<[1], [0], [0], [1], [0, 0, 1, 1], [], []>} : vector<8x32xf32>, vector<32x512xf32>, vector<8x512xf32> -> vector<8x512xf32>
    %c0_44 = arith.constant 0 : index
    %c0_45 = arith.constant 0 : index
    %90 = vector.load %arg7[%c0_44, %c0_45] : memref<128x512xf32, #tpu.memory_space<vmem>>, vector<128x512xf32>
    %cst_46 = arith.constant dense<0.000000e+00> : vector<8x512xf32>
    %91 = tpu.matmul %67, %90, %cst_46 {dimension_numbers = #tpu.dot_dimension_numbers<[1], [0], [0], [1], [0, 0, 1, 1], [], []>} : vector<8x128xf32>, vector<128x512xf32>, vector<8x512xf32> -> vector<8x512xf32>
    %92 = arith.addf %89, %91 : vector<8x512xf32>
    %93 = arith.index_cast %73 : i32 to index
    %c0_47 = arith.constant 0 : index
    %94 = vector.load %arg15[%93, %c0_47] : memref<64x512xf32, #tpu.memory_space<vmem>>, vector<8x512xf32>
    %95 = arith.addf %92, %94 : vector<8x512xf32>
    %96 = vector.extract_strided_slice %95 {offsets = [0, 0], sizes = [8, 128], strides = [1, 1]} : vector<8x512xf32> to vector<8x128xf32>
    %97 = arith.negf %96 : vector<8x128xf32>
    %98 = math.exp %97 : vector<8x128xf32>
    %cst_48 = arith.constant 1.000000e+00 : f32
    %99 = vector.broadcast %cst_48 : f32 to vector<8x128xf32>
    %100 = arith.addf %99, %98 : vector<8x128xf32>
    %101 = arith.divf %99, %100 : vector<8x128xf32>
    %102 = vector.extract_strided_slice %95 {offsets = [0, 128], sizes = [8, 128], strides = [1, 1]} : vector<8x512xf32> to vector<8x128xf32>
    %103 = arith.negf %102 : vector<8x128xf32>
    %104 = math.exp %103 : vector<8x128xf32>
    %cst_49 = arith.constant 1.000000e+00 : f32
    %105 = vector.broadcast %cst_49 : f32 to vector<8x128xf32>
    %106 = arith.addf %105, %104 : vector<8x128xf32>
    %107 = arith.divf %105, %106 : vector<8x128xf32>
    %108 = vector.extract_strided_slice %95 {offsets = [0, 256], sizes = [8, 128], strides = [1, 1]} : vector<8x512xf32> to vector<8x128xf32>
    %109 = math.tanh %108 : vector<8x128xf32>
    %110 = vector.extract_strided_slice %95 {offsets = [0, 384], sizes = [8, 128], strides = [1, 1]} : vector<8x512xf32> to vector<8x128xf32>
    %111 = arith.negf %110 : vector<8x128xf32>
    %112 = math.exp %111 : vector<8x128xf32>
    %cst_50 = arith.constant 1.000000e+00 : f32
    %113 = vector.broadcast %cst_50 : f32 to vector<8x128xf32>
    %114 = arith.addf %113, %112 : vector<8x128xf32>
    %115 = arith.divf %113, %114 : vector<8x128xf32>
    %116 = arith.mulf %107, %65 : vector<8x128xf32>
    %117 = arith.mulf %101, %109 : vector<8x128xf32>
    %118 = arith.addf %116, %117 : vector<8x128xf32>
    %119 = math.tanh %118 : vector<8x128xf32>
    %120 = arith.mulf %115, %119 : vector<8x128xf32>
    %121 = arith.index_cast %73 : i32 to index
    %c0_51 = arith.constant 0 : index
    %122 = vector.load %arg16[%121, %c0_51] : memref<64x128xf32, #tpu.memory_space<vmem>>, vector<8x128xf32>
    tpu.vector_store %arg16[%121, %c0_51], %120 {strides = array<i32>} : memref<64x128xf32, #tpu.memory_space<vmem>>, vector<8x128xf32>,
    %123 = arith.index_cast %73 : i32 to index
    %c0_52 = arith.constant 0 : index
    %124 = vector.load %arg17[%123, %c0_52] : memref<64x32xf32, #tpu.memory_space<vmem>>, vector<8x32xf32>
    tpu.vector_store %arg17[%123, %c0_52], %87 {strides = array<i32>} : memref<64x32xf32, #tpu.memory_space<vmem>>, vector<8x32xf32>,
    %c2_i32 = arith.constant 2 : i32
    %c8_i32_53 = arith.constant 8 : i32
    %125 = arith.muli %c2_i32, %c8_i32_53 : i32
    %126 = tpu.assume_multiple %125, 8 : i32
    %127 = vector.shape_cast %120 : vector<8x128xf32> to vector<8x1x128xf32>
    "tpu.trace_start"() <{level = 10 : i32, message = "bqh,blh->bql"}> : () -> ()
    %cst_54 = arith.constant dense<0.000000e+00> : vector<8x1x16xf32>
    %128 = tpu.matmul %127, %9, %cst_54 {dimension_numbers = #tpu.dot_dimension_numbers<[2], [2], [1], [1], [0, 0, 0, 1, 1, 1], [0], [0]>} : vector<8x1x128xf32>, vector<8x16x128xf32>, vector<8x1x16xf32> -> vector<8x1x16xf32>
    "tpu.trace_stop"() : () -> ()
    %cst_55 = arith.constant dense<0xFF800000> : vector<8x1xf32>
    %129 = vector.multi_reduction <maximumf>, %128, %cst_55 [2] : vector<8x1x16xf32> to vector<8x1xf32>
    %130 = vector.shape_cast %129 : vector<8x1xf32> to vector<8x1x1xf32>
    %131 = vector.broadcast %130 : vector<8x1x1xf32> to vector<8x1x16xf32>
    %132 = arith.subf %128, %131 : vector<8x1x16xf32>
    %133 = math.exp %132 : vector<8x1x16xf32>
    %cst_56 = arith.constant dense<0.000000e+00> : vector<8x1xf32>
    %134 = vector.multi_reduction <add>, %133, %cst_56 [2] : vector<8x1x16xf32> to vector<8x1xf32>
    %135 = vector.shape_cast %134 : vector<8x1xf32> to vector<8x1x1xf32>
    %136 = tpu.reciprocal %135 {approx = true} : vector<8x1x1xf32> -> vector<8x1x1xf32>
    %137 = vector.broadcast %136 : vector<8x1x1xf32> to vector<8x1x16xf32>
    %138 = arith.mulf %133, %137 : vector<8x1x16xf32>
    "tpu.trace_start"() <{level = 10 : i32, message = "bql,blf->bqf"}> : () -> ()
    %cst_57 = arith.constant dense<0.000000e+00> : vector<8x1x32xf32>
    %139 = tpu.matmul %138, %0, %cst_57 {dimension_numbers = #tpu.dot_dimension_numbers<[2], [1], [1], [2], [0, 0, 0, 1, 1, 2], [0], [0]>} : vector<8x1x16xf32>, vector<8x16x32xf32>, vector<8x1x32xf32> -> vector<8x1x32xf32>
    "tpu.trace_stop"() : () -> ()
    %140 = vector.shape_cast %139 : vector<8x1x32xf32> to vector<8x32xf32>
    %c0_58 = arith.constant 0 : index
    %c0_59 = arith.constant 0 : index
    %141 = vector.load %arg5[%c0_58, %c0_59] : memref<32x512xf32, #tpu.memory_space<vmem>>, vector<32x512xf32>
    %cst_60 = arith.constant dense<0.000000e+00> : vector<8x512xf32>
    %142 = tpu.matmul %140, %141, %cst_60 {dimension_numbers = #tpu.dot_dimension_numbers<[1], [0], [0], [1], [0, 0, 1, 1], [], []>} : vector<8x32xf32>, vector<32x512xf32>, vector<8x512xf32> -> vector<8x512xf32>
    %c0_61 = arith.constant 0 : index
    %c0_62 = arith.constant 0 : index
    %143 = vector.load %arg7[%c0_61, %c0_62] : memref<128x512xf32, #tpu.memory_space<vmem>>, vector<128x512xf32>
    %cst_63 = arith.constant dense<0.000000e+00> : vector<8x512xf32>
    %144 = tpu.matmul %120, %143, %cst_63 {dimension_numbers = #tpu.dot_dimension_numbers<[1], [0], [0], [1], [0, 0, 1, 1], [], []>} : vector<8x128xf32>, vector<128x512xf32>, vector<8x512xf32> -> vector<8x512xf32>
    %145 = arith.addf %142, %144 : vector<8x512xf32>
    %146 = arith.index_cast %126 : i32 to index
    %c0_64 = arith.constant 0 : index
    %147 = vector.load %arg15[%146, %c0_64] : memref<64x512xf32, #tpu.memory_space<vmem>>, vector<8x512xf32>
    %148 = arith.addf %145, %147 : vector<8x512xf32>
    %149 = vector.extract_strided_slice %148 {offsets = [0, 0], sizes = [8, 128], strides = [1, 1]} : vector<8x512xf32> to vector<8x128xf32>
    %150 = arith.negf %149 : vector<8x128xf32>
    %151 = math.exp %150 : vector<8x128xf32>
    %cst_65 = arith.constant 1.000000e+00 : f32
    %152 = vector.broadcast %cst_65 : f32 to vector<8x128xf32>
    %153 = arith.addf %152, %151 : vector<8x128xf32>
    %154 = arith.divf %152, %153 : vector<8x128xf32>
    %155 = vector.extract_strided_slice %148 {offsets = [0, 128], sizes = [8, 128], strides = [1, 1]} : vector<8x512xf32> to vector<8x128xf32>
    %156 = arith.negf %155 : vector<8x128xf32>
    %157 = math.exp %156 : vector<8x128xf32>
    %cst_66 = arith.constant 1.000000e+00 : f32
    %158 = vector.broadcast %cst_66 : f32 to vector<8x128xf32>
    %159 = arith.addf %158, %157 : vector<8x128xf32>
    %160 = arith.divf %158, %159 : vector<8x128xf32>
    %161 = vector.extract_strided_slice %148 {offsets = [0, 256], sizes = [8, 128], strides = [1, 1]} : vector<8x512xf32> to vector<8x128xf32>
    %162 = math.tanh %161 : vector<8x128xf32>
    %163 = vector.extract_strided_slice %148 {offsets = [0, 384], sizes = [8, 128], strides = [1, 1]} : vector<8x512xf32> to vector<8x128xf32>
    %164 = arith.negf %163 : vector<8x128xf32>
    %165 = math.exp %164 : vector<8x128xf32>
    %cst_67 = arith.constant 1.000000e+00 : f32
    %166 = vector.broadcast %cst_67 : f32 to vector<8x128xf32>
    %167 = arith.addf %166, %165 : vector<8x128xf32>
    %168 = arith.divf %166, %167 : vector<8x128xf32>
    %169 = arith.mulf %160, %118 : vector<8x128xf32>
    %170 = arith.mulf %154, %162 : vector<8x128xf32>
    %171 = arith.addf %169, %170 : vector<8x128xf32>
    %172 = math.tanh %171 : vector<8x128xf32>
    %173 = arith.mulf %168, %172 : vector<8x128xf32>
    %174 = arith.index_cast %126 : i32 to index
    %c0_68 = arith.constant 0 : index
    %175 = vector.load %arg16[%174, %c0_68] : memref<64x128xf32, #tpu.memory_space<vmem>>, vector<8x128xf32>
    tpu.vector_store %arg16[%174, %c0_68], %173 {strides = array<i32>} : memref<64x128xf32, #tpu.memory_space<vmem>>, vector<8x128xf32>,
    %176 = arith.index_cast %126 : i32 to index
    %c0_69 = arith.constant 0 : index
    %177 = vector.load %arg17[%176, %c0_69] : memref<64x32xf32, #tpu.memory_space<vmem>>, vector<8x32xf32>
    tpu.vector_store %arg17[%176, %c0_69], %140 {strides = array<i32>} : memref<64x32xf32, #tpu.memory_space<vmem>>, vector<8x32xf32>,
    %c3_i32 = arith.constant 3 : i32
    %c8_i32_70 = arith.constant 8 : i32
    %178 = arith.muli %c3_i32, %c8_i32_70 : i32
    %179 = tpu.assume_multiple %178, 8 : i32
    %180 = vector.shape_cast %173 : vector<8x128xf32> to vector<8x1x128xf32>
    "tpu.trace_start"() <{level = 10 : i32, message = "bqh,blh->bql"}> : () -> ()
    %cst_71 = arith.constant dense<0.000000e+00> : vector<8x1x16xf32>
    %181 = tpu.matmul %180, %9, %cst_71 {dimension_numbers = #tpu.dot_dimension_numbers<[2], [2], [1], [1], [0, 0, 0, 1, 1, 1], [0], [0]>} : vector<8x1x128xf32>, vector<8x16x128xf32>, vector<8x1x16xf32> -> vector<8x1x16xf32>
    "tpu.trace_stop"() : () -> ()
    %cst_72 = arith.constant dense<0xFF800000> : vector<8x1xf32>
    %182 = vector.multi_reduction <maximumf>, %181, %cst_72 [2] : vector<8x1x16xf32> to vector<8x1xf32>
    %183 = vector.shape_cast %182 : vector<8x1xf32> to vector<8x1x1xf32>
    %184 = vector.broadcast %183 : vector<8x1x1xf32> to vector<8x1x16xf32>
    %185 = arith.subf %181, %184 : vector<8x1x16xf32>
    %186 = math.exp %185 : vector<8x1x16xf32>
    %cst_73 = arith.constant dense<0.000000e+00> : vector<8x1xf32>
    %187 = vector.multi_reduction <add>, %186, %cst_73 [2] : vector<8x1x16xf32> to vector<8x1xf32>
    %188 = vector.shape_cast %187 : vector<8x1xf32> to vector<8x1x1xf32>
    %189 = tpu.reciprocal %188 {approx = true} : vector<8x1x1xf32> -> vector<8x1x1xf32>
    %190 = vector.broadcast %189 : vector<8x1x1xf32> to vector<8x1x16xf32>
    %191 = arith.mulf %186, %190 : vector<8x1x16xf32>
    "tpu.trace_start"() <{level = 10 : i32, message = "bql,blf->bqf"}> : () -> ()
    %cst_74 = arith.constant dense<0.000000e+00> : vector<8x1x32xf32>
    %192 = tpu.matmul %191, %0, %cst_74 {dimension_numbers = #tpu.dot_dimension_numbers<[2], [1], [1], [2], [0, 0, 0, 1, 1, 2], [0], [0]>} : vector<8x1x16xf32>, vector<8x16x32xf32>, vector<8x1x32xf32> -> vector<8x1x32xf32>
    "tpu.trace_stop"() : () -> ()
    %193 = vector.shape_cast %192 : vector<8x1x32xf32> to vector<8x32xf32>
    %c0_75 = arith.constant 0 : index
    %c0_76 = arith.constant 0 : index
    %194 = vector.load %arg5[%c0_75, %c0_76] : memref<32x512xf32, #tpu.memory_space<vmem>>, vector<32x512xf32>
    %cst_77 = arith.constant dense<0.000000e+00> : vector<8x512xf32>
    %195 = tpu.matmul %193, %194, %cst_77 {dimension_numbers = #tpu.dot_dimension_numbers<[1], [0], [0], [1], [0, 0, 1, 1], [], []>} : vector<8x32xf32>, vector<32x512xf32>, vector<8x512xf32> -> vector<8x512xf32>
    %c0_78 = arith.constant 0 : index
    %c0_79 = arith.constant 0 : index
    %196 = vector.load %arg7[%c0_78, %c0_79] : memref<128x512xf32, #tpu.memory_space<vmem>>, vector<128x512xf32>
    %cst_80 = arith.constant dense<0.000000e+00> : vector<8x512xf32>
    %197 = tpu.matmul %173, %196, %cst_80 {dimension_numbers = #tpu.dot_dimension_numbers<[1], [0], [0], [1], [0, 0, 1, 1], [], []>} : vector<8x128xf32>, vector<128x512xf32>, vector<8x512xf32> -> vector<8x512xf32>
    %198 = arith.addf %195, %197 : vector<8x512xf32>
    %199 = arith.index_cast %179 : i32 to index
    %c0_81 = arith.constant 0 : index
    %200 = vector.load %arg15[%199, %c0_81] : memref<64x512xf32, #tpu.memory_space<vmem>>, vector<8x512xf32>
    %201 = arith.addf %198, %200 : vector<8x512xf32>
    %202 = vector.extract_strided_slice %201 {offsets = [0, 0], sizes = [8, 128], strides = [1, 1]} : vector<8x512xf32> to vector<8x128xf32>
    %203 = arith.negf %202 : vector<8x128xf32>
    %204 = math.exp %203 : vector<8x128xf32>
    %cst_82 = arith.constant 1.000000e+00 : f32
    %205 = vector.broadcast %cst_82 : f32 to vector<8x128xf32>
    %206 = arith.addf %205, %204 : vector<8x128xf32>
    %207 = arith.divf %205, %206 : vector<8x128xf32>
    %208 = vector.extract_strided_slice %201 {offsets = [0, 128], sizes = [8, 128], strides = [1, 1]} : vector<8x512xf32> to vector<8x128xf32>
    %209 = arith.negf %208 : vector<8x128xf32>
    %210 = math.exp %209 : vector<8x128xf32>
    %cst_83 = arith.constant 1.000000e+00 : f32
    %211 = vector.broadcast %cst_83 : f32 to vector<8x128xf32>
    %212 = arith.addf %211, %210 : vector<8x128xf32>
    %213 = arith.divf %211, %212 : vector<8x128xf32>
    %214 = vector.extract_strided_slice %201 {offsets = [0, 256], sizes = [8, 128], strides = [1, 1]} : vector<8x512xf32> to vector<8x128xf32>
    %215 = math.tanh %214 : vector<8x128xf32>
    %216 = vector.extract_strided_slice %201 {offsets = [0, 384], sizes = [8, 128], strides = [1, 1]} : vector<8x512xf32> to vector<8x128xf32>
    %217 = arith.negf %216 : vector<8x128xf32>
    %218 = math.exp %217 : vector<8x128xf32>
    %cst_84 = arith.constant 1.000000e+00 : f32
    %219 = vector.broadcast %cst_84 : f32 to vector<8x128xf32>
    %220 = arith.addf %219, %218 : vector<8x128xf32>
    %221 = arith.divf %219, %220 : vector<8x128xf32>
    %222 = arith.mulf %213, %171 : vector<8x128xf32>
    %223 = arith.mulf %207, %215 : vector<8x128xf32>
    %224 = arith.addf %222, %223 : vector<8x128xf32>
    %225 = math.tanh %224 : vector<8x128xf32>
    %226 = arith.mulf %221, %225 : vector<8x128xf32>
    %227 = arith.index_cast %179 : i32 to index
    %c0_85 = arith.constant 0 : index
    %228 = vector.load %arg16[%227, %c0_85] : memref<64x128xf32, #tpu.memory_space<vmem>>, vector<8x128xf32>
    tpu.vector_store %arg16[%227, %c0_85], %226 {strides = array<i32>} : memref<64x128xf32, #tpu.memory_space<vmem>>, vector<8x128xf32>,
    %229 = arith.index_cast %179 : i32 to index
    %c0_86 = arith.constant 0 : index
    %230 = vector.load %arg17[%229, %c0_86] : memref<64x32xf32, #tpu.memory_space<vmem>>, vector<8x32xf32>
    tpu.vector_store %arg17[%229, %c0_86], %193 {strides = array<i32>} : memref<64x32xf32, #tpu.memory_space<vmem>>, vector<8x32xf32>,
    %c4_i32 = arith.constant 4 : i32
    %c8_i32_87 = arith.constant 8 : i32
    %231 = arith.muli %c4_i32, %c8_i32_87 : i32
    %232 = tpu.assume_multiple %231, 8 : i32
    %233 = vector.shape_cast %226 : vector<8x128xf32> to vector<8x1x128xf32>
    "tpu.trace_start"() <{level = 10 : i32, message = "bqh,blh->bql"}> : () -> ()
    %cst_88 = arith.constant dense<0.000000e+00> : vector<8x1x16xf32>
    %234 = tpu.matmul %233, %9, %cst_88 {dimension_numbers = #tpu.dot_dimension_numbers<[2], [2], [1], [1], [0, 0, 0, 1, 1, 1], [0], [0]>} : vector<8x1x128xf32>, vector<8x16x128xf32>, vector<8x1x16xf32> -> vector<8x1x16xf32>
    "tpu.trace_stop"() : () -> ()
    %cst_89 = arith.constant dense<0xFF800000> : vector<8x1xf32>
    %235 = vector.multi_reduction <maximumf>, %234, %cst_89 [2] : vector<8x1x16xf32> to vector<8x1xf32>
    %236 = vector.shape_cast %235 : vector<8x1xf32> to vector<8x1x1xf32>
    %237 = vector.broadcast %236 : vector<8x1x1xf32> to vector<8x1x16xf32>
    %238 = arith.subf %234, %237 : vector<8x1x16xf32>
    %239 = math.exp %238 : vector<8x1x16xf32>
    %cst_90 = arith.constant dense<0.000000e+00> : vector<8x1xf32>
    %240 = vector.multi_reduction <add>, %239, %cst_90 [2] : vector<8x1x16xf32> to vector<8x1xf32>
    %241 = vector.shape_cast %240 : vector<8x1xf32> to vector<8x1x1xf32>
    %242 = tpu.reciprocal %241 {approx = true} : vector<8x1x1xf32> -> vector<8x1x1xf32>
    %243 = vector.broadcast %242 : vector<8x1x1xf32> to vector<8x1x16xf32>
    %244 = arith.mulf %239, %243 : vector<8x1x16xf32>
    "tpu.trace_start"() <{level = 10 : i32, message = "bql,blf->bqf"}> : () -> ()
    %cst_91 = arith.constant dense<0.000000e+00> : vector<8x1x32xf32>
    %245 = tpu.matmul %244, %0, %cst_91 {dimension_numbers = #tpu.dot_dimension_numbers<[2], [1], [1], [2], [0, 0, 0, 1, 1, 2], [0], [0]>} : vector<8x1x16xf32>, vector<8x16x32xf32>, vector<8x1x32xf32> -> vector<8x1x32xf32>
    "tpu.trace_stop"() : () -> ()
    %246 = vector.shape_cast %245 : vector<8x1x32xf32> to vector<8x32xf32>
    %c0_92 = arith.constant 0 : index
    %c0_93 = arith.constant 0 : index
    %247 = vector.load %arg5[%c0_92, %c0_93] : memref<32x512xf32, #tpu.memory_space<vmem>>, vector<32x512xf32>
    %cst_94 = arith.constant dense<0.000000e+00> : vector<8x512xf32>
    %248 = tpu.matmul %246, %247, %cst_94 {dimension_numbers = #tpu.dot_dimension_numbers<[1], [0], [0], [1], [0, 0, 1, 1], [], []>} : vector<8x32xf32>, vector<32x512xf32>, vector<8x512xf32> -> vector<8x512xf32>
    %c0_95 = arith.constant 0 : index
    %c0_96 = arith.constant 0 : index
    %249 = vector.load %arg7[%c0_95, %c0_96] : memref<128x512xf32, #tpu.memory_space<vmem>>, vector<128x512xf32>
    %cst_97 = arith.constant dense<0.000000e+00> : vector<8x512xf32>
    %250 = tpu.matmul %226, %249, %cst_97 {dimension_numbers = #tpu.dot_dimension_numbers<[1], [0], [0], [1], [0, 0, 1, 1], [], []>} : vector<8x128xf32>, vector<128x512xf32>, vector<8x512xf32> -> vector<8x512xf32>
    %251 = arith.addf %248, %250 : vector<8x512xf32>
    %252 = arith.index_cast %232 : i32 to index
    %c0_98 = arith.constant 0 : index
    %253 = vector.load %arg15[%252, %c0_98] : memref<64x512xf32, #tpu.memory_space<vmem>>, vector<8x512xf32>
    %254 = arith.addf %251, %253 : vector<8x512xf32>
    %255 = vector.extract_strided_slice %254 {offsets = [0, 0], sizes = [8, 128], strides = [1, 1]} : vector<8x512xf32> to vector<8x128xf32>
    %256 = arith.negf %255 : vector<8x128xf32>
    %257 = math.exp %256 : vector<8x128xf32>
    %cst_99 = arith.constant 1.000000e+00 : f32
    %258 = vector.broadcast %cst_99 : f32 to vector<8x128xf32>
    %259 = arith.addf %258, %257 : vector<8x128xf32>
    %260 = arith.divf %258, %259 : vector<8x128xf32>
    %261 = vector.extract_strided_slice %254 {offsets = [0, 128], sizes = [8, 128], strides = [1, 1]} : vector<8x512xf32> to vector<8x128xf32>
    %262 = arith.negf %261 : vector<8x128xf32>
    %263 = math.exp %262 : vector<8x128xf32>
    %cst_100 = arith.constant 1.000000e+00 : f32
    %264 = vector.broadcast %cst_100 : f32 to vector<8x128xf32>
    %265 = arith.addf %264, %263 : vector<8x128xf32>
    %266 = arith.divf %264, %265 : vector<8x128xf32>
    %267 = vector.extract_strided_slice %254 {offsets = [0, 256], sizes = [8, 128], strides = [1, 1]} : vector<8x512xf32> to vector<8x128xf32>
    %268 = math.tanh %267 : vector<8x128xf32>
    %269 = vector.extract_strided_slice %254 {offsets = [0, 384], sizes = [8, 128], strides = [1, 1]} : vector<8x512xf32> to vector<8x128xf32>
    %270 = arith.negf %269 : vector<8x128xf32>
    %271 = math.exp %270 : vector<8x128xf32>
    %cst_101 = arith.constant 1.000000e+00 : f32
    %272 = vector.broadcast %cst_101 : f32 to vector<8x128xf32>
    %273 = arith.addf %272, %271 : vector<8x128xf32>
    %274 = arith.divf %272, %273 : vector<8x128xf32>
    %275 = arith.mulf %266, %224 : vector<8x128xf32>
    %276 = arith.mulf %260, %268 : vector<8x128xf32>
    %277 = arith.addf %275, %276 : vector<8x128xf32>
    %278 = math.tanh %277 : vector<8x128xf32>
    %279 = arith.mulf %274, %278 : vector<8x128xf32>
    %280 = arith.index_cast %232 : i32 to index
    %c0_102 = arith.constant 0 : index
    %281 = vector.load %arg16[%280, %c0_102] : memref<64x128xf32, #tpu.memory_space<vmem>>, vector<8x128xf32>
    tpu.vector_store %arg16[%280, %c0_102], %279 {strides = array<i32>} : memref<64x128xf32, #tpu.memory_space<vmem>>, vector<8x128xf32>,
    %282 = arith.index_cast %232 : i32 to index
    %c0_103 = arith.constant 0 : index
    %283 = vector.load %arg17[%282, %c0_103] : memref<64x32xf32, #tpu.memory_space<vmem>>, vector<8x32xf32>
    tpu.vector_store %arg17[%282, %c0_103], %246 {strides = array<i32>} : memref<64x32xf32, #tpu.memory_space<vmem>>, vector<8x32xf32>,
    %c5_i32 = arith.constant 5 : i32
    %c8_i32_104 = arith.constant 8 : i32
    %284 = arith.muli %c5_i32, %c8_i32_104 : i32
    %285 = tpu.assume_multiple %284, 8 : i32
    %286 = vector.shape_cast %279 : vector<8x128xf32> to vector<8x1x128xf32>
    "tpu.trace_start"() <{level = 10 : i32, message = "bqh,blh->bql"}> : () -> ()
    %cst_105 = arith.constant dense<0.000000e+00> : vector<8x1x16xf32>
    %287 = tpu.matmul %286, %9, %cst_105 {dimension_numbers = #tpu.dot_dimension_numbers<[2], [2], [1], [1], [0, 0, 0, 1, 1, 1], [0], [0]>} : vector<8x1x128xf32>, vector<8x16x128xf32>, vector<8x1x16xf32> -> vector<8x1x16xf32>
    "tpu.trace_stop"() : () -> ()
    %cst_106 = arith.constant dense<0xFF800000> : vector<8x1xf32>
    %288 = vector.multi_reduction <maximumf>, %287, %cst_106 [2] : vector<8x1x16xf32> to vector<8x1xf32>
    %289 = vector.shape_cast %288 : vector<8x1xf32> to vector<8x1x1xf32>
    %290 = vector.broadcast %289 : vector<8x1x1xf32> to vector<8x1x16xf32>
    %291 = arith.subf %287, %290 : vector<8x1x16xf32>
    %292 = math.exp %291 : vector<8x1x16xf32>
    %cst_107 = arith.constant dense<0.000000e+00> : vector<8x1xf32>
    %293 = vector.multi_reduction <add>, %292, %cst_107 [2] : vector<8x1x16xf32> to vector<8x1xf32>
    %294 = vector.shape_cast %293 : vector<8x1xf32> to vector<8x1x1xf32>
    %295 = tpu.reciprocal %294 {approx = true} : vector<8x1x1xf32> -> vector<8x1x1xf32>
    %296 = vector.broadcast %295 : vector<8x1x1xf32> to vector<8x1x16xf32>
    %297 = arith.mulf %292, %296 : vector<8x1x16xf32>
    "tpu.trace_start"() <{level = 10 : i32, message = "bql,blf->bqf"}> : () -> ()
    %cst_108 = arith.constant dense<0.000000e+00> : vector<8x1x32xf32>
    %298 = tpu.matmul %297, %0, %cst_108 {dimension_numbers = #tpu.dot_dimension_numbers<[2], [1], [1], [2], [0, 0, 0, 1, 1, 2], [0], [0]>} : vector<8x1x16xf32>, vector<8x16x32xf32>, vector<8x1x32xf32> -> vector<8x1x32xf32>
    "tpu.trace_stop"() : () -> ()
    %299 = vector.shape_cast %298 : vector<8x1x32xf32> to vector<8x32xf32>
    %c0_109 = arith.constant 0 : index
    %c0_110 = arith.constant 0 : index
    %300 = vector.load %arg5[%c0_109, %c0_110] : memref<32x512xf32, #tpu.memory_space<vmem>>, vector<32x512xf32>
    %cst_111 = arith.constant dense<0.000000e+00> : vector<8x512xf32>
    %301 = tpu.matmul %299, %300, %cst_111 {dimension_numbers = #tpu.dot_dimension_numbers<[1], [0], [0], [1], [0, 0, 1, 1], [], []>} : vector<8x32xf32>, vector<32x512xf32>, vector<8x512xf32> -> vector<8x512xf32>
    %c0_112 = arith.constant 0 : index
    %c0_113 = arith.constant 0 : index
    %302 = vector.load %arg7[%c0_112, %c0_113] : memref<128x512xf32, #tpu.memory_space<vmem>>, vector<128x512xf32>
    %cst_114 = arith.constant dense<0.000000e+00> : vector<8x512xf32>
    %303 = tpu.matmul %279, %302, %cst_114 {dimension_numbers = #tpu.dot_dimension_numbers<[1], [0], [0], [1], [0, 0, 1, 1], [], []>} : vector<8x128xf32>, vector<128x512xf32>, vector<8x512xf32> -> vector<8x512xf32>
    %304 = arith.addf %301, %303 : vector<8x512xf32>
    %305 = arith.index_cast %285 : i32 to index
    %c0_115 = arith.constant 0 : index
    %306 = vector.load %arg15[%305, %c0_115] : memref<64x512xf32, #tpu.memory_space<vmem>>, vector<8x512xf32>
    %307 = arith.addf %304, %306 : vector<8x512xf32>
    %308 = vector.extract_strided_slice %307 {offsets = [0, 0], sizes = [8, 128], strides = [1, 1]} : vector<8x512xf32> to vector<8x128xf32>
    %309 = arith.negf %308 : vector<8x128xf32>
    %310 = math.exp %309 : vector<8x128xf32>
    %cst_116 = arith.constant 1.000000e+00 : f32
    %311 = vector.broadcast %cst_116 : f32 to vector<8x128xf32>
    %312 = arith.addf %311, %310 : vector<8x128xf32>
    %313 = arith.divf %311, %312 : vector<8x128xf32>
    %314 = vector.extract_strided_slice %307 {offsets = [0, 128], sizes = [8, 128], strides = [1, 1]} : vector<8x512xf32> to vector<8x128xf32>
    %315 = arith.negf %314 : vector<8x128xf32>
    %316 = math.exp %315 : vector<8x128xf32>
    %cst_117 = arith.constant 1.000000e+00 : f32
    %317 = vector.broadcast %cst_117 : f32 to vector<8x128xf32>
    %318 = arith.addf %317, %316 : vector<8x128xf32>
    %319 = arith.divf %317, %318 : vector<8x128xf32>
    %320 = vector.extract_strided_slice %307 {offsets = [0, 256], sizes = [8, 128], strides = [1, 1]} : vector<8x512xf32> to vector<8x128xf32>
    %321 = math.tanh %320 : vector<8x128xf32>
    %322 = vector.extract_strided_slice %307 {offsets = [0, 384], sizes = [8, 128], strides = [1, 1]} : vector<8x512xf32> to vector<8x128xf32>
    %323 = arith.negf %322 : vector<8x128xf32>
    %324 = math.exp %323 : vector<8x128xf32>
    %cst_118 = arith.constant 1.000000e+00 : f32
    %325 = vector.broadcast %cst_118 : f32 to vector<8x128xf32>
    %326 = arith.addf %325, %324 : vector<8x128xf32>
    %327 = arith.divf %325, %326 : vector<8x128xf32>
    %328 = arith.mulf %319, %277 : vector<8x128xf32>
    %329 = arith.mulf %313, %321 : vector<8x128xf32>
    %330 = arith.addf %328, %329 : vector<8x128xf32>
    %331 = math.tanh %330 : vector<8x128xf32>
    %332 = arith.mulf %327, %331 : vector<8x128xf32>
    %333 = arith.index_cast %285 : i32 to index
    %c0_119 = arith.constant 0 : index
    %334 = vector.load %arg16[%333, %c0_119] : memref<64x128xf32, #tpu.memory_space<vmem>>, vector<8x128xf32>
    tpu.vector_store %arg16[%333, %c0_119], %332 {strides = array<i32>} : memref<64x128xf32, #tpu.memory_space<vmem>>, vector<8x128xf32>,
    %335 = arith.index_cast %285 : i32 to index
    %c0_120 = arith.constant 0 : index
    %336 = vector.load %arg17[%335, %c0_120] : memref<64x32xf32, #tpu.memory_space<vmem>>, vector<8x32xf32>
    tpu.vector_store %arg17[%335, %c0_120], %299 {strides = array<i32>} : memref<64x32xf32, #tpu.memory_space<vmem>>, vector<8x32xf32>,
    %c6_i32 = arith.constant 6 : i32
    %c8_i32_121 = arith.constant 8 : i32
    %337 = arith.muli %c6_i32, %c8_i32_121 : i32
    %338 = tpu.assume_multiple %337, 8 : i32
    %339 = vector.shape_cast %332 : vector<8x128xf32> to vector<8x1x128xf32>
    "tpu.trace_start"() <{level = 10 : i32, message = "bqh,blh->bql"}> : () -> ()
    %cst_122 = arith.constant dense<0.000000e+00> : vector<8x1x16xf32>
    %340 = tpu.matmul %339, %9, %cst_122 {dimension_numbers = #tpu.dot_dimension_numbers<[2], [2], [1], [1], [0, 0, 0, 1, 1, 1], [0], [0]>} : vector<8x1x128xf32>, vector<8x16x128xf32>, vector<8x1x16xf32> -> vector<8x1x16xf32>
    "tpu.trace_stop"() : () -> ()
    %cst_123 = arith.constant dense<0xFF800000> : vector<8x1xf32>
    %341 = vector.multi_reduction <maximumf>, %340, %cst_123 [2] : vector<8x1x16xf32> to vector<8x1xf32>
    %342 = vector.shape_cast %341 : vector<8x1xf32> to vector<8x1x1xf32>
    %343 = vector.broadcast %342 : vector<8x1x1xf32> to vector<8x1x16xf32>
    %344 = arith.subf %340, %343 : vector<8x1x16xf32>
    %345 = math.exp %344 : vector<8x1x16xf32>
    %cst_124 = arith.constant dense<0.000000e+00> : vector<8x1xf32>
    %346 = vector.multi_reduction <add>, %345, %cst_124 [2] : vector<8x1x16xf32> to vector<8x1xf32>
    %347 = vector.shape_cast %346 : vector<8x1xf32> to vector<8x1x1xf32>
    %348 = tpu.reciprocal %347 {approx = true} : vector<8x1x1xf32> -> vector<8x1x1xf32>
    %349 = vector.broadcast %348 : vector<8x1x1xf32> to vector<8x1x16xf32>
    %350 = arith.mulf %345, %349 : vector<8x1x16xf32>
    "tpu.trace_start"() <{level = 10 : i32, message = "bql,blf->bqf"}> : () -> ()
    %cst_125 = arith.constant dense<0.000000e+00> : vector<8x1x32xf32>
    %351 = tpu.matmul %350, %0, %cst_125 {dimension_numbers = #tpu.dot_dimension_numbers<[2], [1], [1], [2], [0, 0, 0, 1, 1, 2], [0], [0]>} : vector<8x1x16xf32>, vector<8x16x32xf32>, vector<8x1x32xf32> -> vector<8x1x32xf32>
    "tpu.trace_stop"() : () -> ()
    %352 = vector.shape_cast %351 : vector<8x1x32xf32> to vector<8x32xf32>
    %c0_126 = arith.constant 0 : index
    %c0_127 = arith.constant 0 : index
    %353 = vector.load %arg5[%c0_126, %c0_127] : memref<32x512xf32, #tpu.memory_space<vmem>>, vector<32x512xf32>
    %cst_128 = arith.constant dense<0.000000e+00> : vector<8x512xf32>
    %354 = tpu.matmul %352, %353, %cst_128 {dimension_numbers = #tpu.dot_dimension_numbers<[1], [0], [0], [1], [0, 0, 1, 1], [], []>} : vector<8x32xf32>, vector<32x512xf32>, vector<8x512xf32> -> vector<8x512xf32>
    %c0_129 = arith.constant 0 : index
    %c0_130 = arith.constant 0 : index
    %355 = vector.load %arg7[%c0_129, %c0_130] : memref<128x512xf32, #tpu.memory_space<vmem>>, vector<128x512xf32>
    %cst_131 = arith.constant dense<0.000000e+00> : vector<8x512xf32>
    %356 = tpu.matmul %332, %355, %cst_131 {dimension_numbers = #tpu.dot_dimension_numbers<[1], [0], [0], [1], [0, 0, 1, 1], [], []>} : vector<8x128xf32>, vector<128x512xf32>, vector<8x512xf32> -> vector<8x512xf32>
    %357 = arith.addf %354, %356 : vector<8x512xf32>
    %358 = arith.index_cast %338 : i32 to index
    %c0_132 = arith.constant 0 : index
    %359 = vector.load %arg15[%358, %c0_132] : memref<64x512xf32, #tpu.memory_space<vmem>>, vector<8x512xf32>
    %360 = arith.addf %357, %359 : vector<8x512xf32>
    %361 = vector.extract_strided_slice %360 {offsets = [0, 0], sizes = [8, 128], strides = [1, 1]} : vector<8x512xf32> to vector<8x128xf32>
    %362 = arith.negf %361 : vector<8x128xf32>
    %363 = math.exp %362 : vector<8x128xf32>
    %cst_133 = arith.constant 1.000000e+00 : f32
    %364 = vector.broadcast %cst_133 : f32 to vector<8x128xf32>
    %365 = arith.addf %364, %363 : vector<8x128xf32>
    %366 = arith.divf %364, %365 : vector<8x128xf32>
    %367 = vector.extract_strided_slice %360 {offsets = [0, 128], sizes = [8, 128], strides = [1, 1]} : vector<8x512xf32> to vector<8x128xf32>
    %368 = arith.negf %367 : vector<8x128xf32>
    %369 = math.exp %368 : vector<8x128xf32>
    %cst_134 = arith.constant 1.000000e+00 : f32
    %370 = vector.broadcast %cst_134 : f32 to vector<8x128xf32>
    %371 = arith.addf %370, %369 : vector<8x128xf32>
    %372 = arith.divf %370, %371 : vector<8x128xf32>
    %373 = vector.extract_strided_slice %360 {offsets = [0, 256], sizes = [8, 128], strides = [1, 1]} : vector<8x512xf32> to vector<8x128xf32>
    %374 = math.tanh %373 : vector<8x128xf32>
    %375 = vector.extract_strided_slice %360 {offsets = [0, 384], sizes = [8, 128], strides = [1, 1]} : vector<8x512xf32> to vector<8x128xf32>
    %376 = arith.negf %375 : vector<8x128xf32>
    %377 = math.exp %376 : vector<8x128xf32>
    %cst_135 = arith.constant 1.000000e+00 : f32
    %378 = vector.broadcast %cst_135 : f32 to vector<8x128xf32>
    %379 = arith.addf %378, %377 : vector<8x128xf32>
    %380 = arith.divf %378, %379 : vector<8x128xf32>
    %381 = arith.mulf %372, %330 : vector<8x128xf32>
    %382 = arith.mulf %366, %374 : vector<8x128xf32>
    %383 = arith.addf %381, %382 : vector<8x128xf32>
    %384 = math.tanh %383 : vector<8x128xf32>
    %385 = arith.mulf %380, %384 : vector<8x128xf32>
    %386 = arith.index_cast %338 : i32 to index
    %c0_136 = arith.constant 0 : index
    %387 = vector.load %arg16[%386, %c0_136] : memref<64x128xf32, #tpu.memory_space<vmem>>, vector<8x128xf32>
    tpu.vector_store %arg16[%386, %c0_136], %385 {strides = array<i32>} : memref<64x128xf32, #tpu.memory_space<vmem>>, vector<8x128xf32>,
    %388 = arith.index_cast %338 : i32 to index
    %c0_137 = arith.constant 0 : index
    %389 = vector.load %arg17[%388, %c0_137] : memref<64x32xf32, #tpu.memory_space<vmem>>, vector<8x32xf32>
    tpu.vector_store %arg17[%388, %c0_137], %352 {strides = array<i32>} : memref<64x32xf32, #tpu.memory_space<vmem>>, vector<8x32xf32>,
    %c7_i32 = arith.constant 7 : i32
    %c8_i32_138 = arith.constant 8 : i32
    %390 = arith.muli %c7_i32, %c8_i32_138 : i32
    %391 = tpu.assume_multiple %390, 8 : i32
    %392 = vector.shape_cast %385 : vector<8x128xf32> to vector<8x1x128xf32>
    "tpu.trace_start"() <{level = 10 : i32, message = "bqh,blh->bql"}> : () -> ()
    %cst_139 = arith.constant dense<0.000000e+00> : vector<8x1x16xf32>
    %393 = tpu.matmul %392, %9, %cst_139 {dimension_numbers = #tpu.dot_dimension_numbers<[2], [2], [1], [1], [0, 0, 0, 1, 1, 1], [0], [0]>} : vector<8x1x128xf32>, vector<8x16x128xf32>, vector<8x1x16xf32> -> vector<8x1x16xf32>
    "tpu.trace_stop"() : () -> ()
    %cst_140 = arith.constant dense<0xFF800000> : vector<8x1xf32>
    %394 = vector.multi_reduction <maximumf>, %393, %cst_140 [2] : vector<8x1x16xf32> to vector<8x1xf32>
    %395 = vector.shape_cast %394 : vector<8x1xf32> to vector<8x1x1xf32>
    %396 = vector.broadcast %395 : vector<8x1x1xf32> to vector<8x1x16xf32>
    %397 = arith.subf %393, %396 : vector<8x1x16xf32>
    %398 = math.exp %397 : vector<8x1x16xf32>
    %cst_141 = arith.constant dense<0.000000e+00> : vector<8x1xf32>
    %399 = vector.multi_reduction <add>, %398, %cst_141 [2] : vector<8x1x16xf32> to vector<8x1xf32>
    %400 = vector.shape_cast %399 : vector<8x1xf32> to vector<8x1x1xf32>
    %401 = tpu.reciprocal %400 {approx = true} : vector<8x1x1xf32> -> vector<8x1x1xf32>
    %402 = vector.broadcast %401 : vector<8x1x1xf32> to vector<8x1x16xf32>
    %403 = arith.mulf %398, %402 : vector<8x1x16xf32>
    "tpu.trace_start"() <{level = 10 : i32, message = "bql,blf->bqf"}> : () -> ()
    %cst_142 = arith.constant dense<0.000000e+00> : vector<8x1x32xf32>
    %404 = tpu.matmul %403, %0, %cst_142 {dimension_numbers = #tpu.dot_dimension_numbers<[2], [1], [1], [2], [0, 0, 0, 1, 1, 2], [0], [0]>} : vector<8x1x16xf32>, vector<8x16x32xf32>, vector<8x1x32xf32> -> vector<8x1x32xf32>
    "tpu.trace_stop"() : () -> ()
    %405 = vector.shape_cast %404 : vector<8x1x32xf32> to vector<8x32xf32>
    %c0_143 = arith.constant 0 : index
    %c0_144 = arith.constant 0 : index
    %406 = vector.load %arg5[%c0_143, %c0_144] : memref<32x512xf32, #tpu.memory_space<vmem>>, vector<32x512xf32>
    %cst_145 = arith.constant dense<0.000000e+00> : vector<8x512xf32>
    %407 = tpu.matmul %405, %406, %cst_145 {dimension_numbers = #tpu.dot_dimension_numbers<[1], [0], [0], [1], [0, 0, 1, 1], [], []>} : vector<8x32xf32>, vector<32x512xf32>, vector<8x512xf32> -> vector<8x512xf32>
    %c0_146 = arith.constant 0 : index
    %c0_147 = arith.constant 0 : index
    %408 = vector.load %arg7[%c0_146, %c0_147] : memref<128x512xf32, #tpu.memory_space<vmem>>, vector<128x512xf32>
    %cst_148 = arith.constant dense<0.000000e+00> : vector<8x512xf32>
    %409 = tpu.matmul %385, %408, %cst_148 {dimension_numbers = #tpu.dot_dimension_numbers<[1], [0], [0], [1], [0, 0, 1, 1], [], []>} : vector<8x128xf32>, vector<128x512xf32>, vector<8x512xf32> -> vector<8x512xf32>
    %410 = arith.addf %407, %409 : vector<8x512xf32>
    %411 = arith.index_cast %391 : i32 to index
    %c0_149 = arith.constant 0 : index
    %412 = vector.load %arg15[%411, %c0_149] : memref<64x512xf32, #tpu.memory_space<vmem>>, vector<8x512xf32>
    %413 = arith.addf %410, %412 : vector<8x512xf32>
    %414 = vector.extract_strided_slice %413 {offsets = [0, 0], sizes = [8, 128], strides = [1, 1]} : vector<8x512xf32> to vector<8x128xf32>
    %415 = arith.negf %414 : vector<8x128xf32>
    %416 = math.exp %415 : vector<8x128xf32>
    %cst_150 = arith.constant 1.000000e+00 : f32
    %417 = vector.broadcast %cst_150 : f32 to vector<8x128xf32>
    %418 = arith.addf %417, %416 : vector<8x128xf32>
    %419 = arith.divf %417, %418 : vector<8x128xf32>
    %420 = vector.extract_strided_slice %413 {offsets = [0, 128], sizes = [8, 128], strides = [1, 1]} : vector<8x512xf32> to vector<8x128xf32>
    %421 = arith.negf %420 : vector<8x128xf32>
    %422 = math.exp %421 : vector<8x128xf32>
    %cst_151 = arith.constant 1.000000e+00 : f32
    %423 = vector.broadcast %cst_151 : f32 to vector<8x128xf32>
    %424 = arith.addf %423, %422 : vector<8x128xf32>
    %425 = arith.divf %423, %424 : vector<8x128xf32>
    %426 = vector.extract_strided_slice %413 {offsets = [0, 256], sizes = [8, 128], strides = [1, 1]} : vector<8x512xf32> to vector<8x128xf32>
    %427 = math.tanh %426 : vector<8x128xf32>
    %428 = vector.extract_strided_slice %413 {offsets = [0, 384], sizes = [8, 128], strides = [1, 1]} : vector<8x512xf32> to vector<8x128xf32>
    %429 = arith.negf %428 : vector<8x128xf32>
    %430 = math.exp %429 : vector<8x128xf32>
    %cst_152 = arith.constant 1.000000e+00 : f32
    %431 = vector.broadcast %cst_152 : f32 to vector<8x128xf32>
    %432 = arith.addf %431, %430 : vector<8x128xf32>
    %433 = arith.divf %431, %432 : vector<8x128xf32>
    %434 = arith.mulf %425, %383 : vector<8x128xf32>
    %435 = arith.mulf %419, %427 : vector<8x128xf32>
    %436 = arith.addf %434, %435 : vector<8x128xf32>
    %437 = math.tanh %436 : vector<8x128xf32>
    %438 = arith.mulf %433, %437 : vector<8x128xf32>
    %439 = arith.index_cast %391 : i32 to index
    %c0_153 = arith.constant 0 : index
    %440 = vector.load %arg16[%439, %c0_153] : memref<64x128xf32, #tpu.memory_space<vmem>>, vector<8x128xf32>
    tpu.vector_store %arg16[%439, %c0_153], %438 {strides = array<i32>} : memref<64x128xf32, #tpu.memory_space<vmem>>, vector<8x128xf32>,
    %441 = arith.index_cast %391 : i32 to index
    %c0_154 = arith.constant 0 : index
    %442 = vector.load %arg17[%441, %c0_154] : memref<64x32xf32, #tpu.memory_space<vmem>>, vector<8x32xf32>
    tpu.vector_store %arg17[%441, %c0_154], %405 {strides = array<i32>} : memref<64x32xf32, #tpu.memory_space<vmem>>, vector<8x32xf32>,
    %c8_i32_155 = arith.constant 8 : i32
    %c0_156 = arith.constant 0 : index
    %c0_157 = arith.constant 0 : index
    %443 = vector.load %arg16[%c0_156, %c0_157] : memref<64x128xf32, #tpu.memory_space<vmem>>, vector<64x128xf32>
    %c0_158 = arith.constant 0 : index
    %c0_159 = arith.constant 0 : index
    %444 = vector.load %arg9[%c0_158, %c0_159] : memref<128x32xf32, #tpu.memory_space<vmem>>, vector<128x32xf32>
    %cst_160 = arith.constant dense<0.000000e+00> : vector<64x32xf32>
    %445 = tpu.matmul %443, %444, %cst_160 {dimension_numbers = #tpu.dot_dimension_numbers<[1], [0], [0], [1], [0, 0, 1, 1], [], []>} : vector<64x128xf32>, vector<128x32xf32>, vector<64x32xf32> -> vector<64x32xf32>
    %c0_161 = arith.constant 0 : index
    %c0_162 = arith.constant 0 : index
    %446 = vector.load %arg17[%c0_161, %c0_162] : memref<64x32xf32, #tpu.memory_space<vmem>>, vector<64x32xf32>
    %c0_163 = arith.constant 0 : index
    %c0_164 = arith.constant 0 : index
    %447 = vector.load %arg10[%c0_163, %c0_164] : memref<32x32xf32, #tpu.memory_space<vmem>>, vector<32x32xf32>
    %cst_165 = arith.constant dense<0.000000e+00> : vector<64x32xf32>
    %448 = tpu.matmul %446, %447, %cst_165 {dimension_numbers = #tpu.dot_dimension_numbers<[1], [0], [0], [1], [0, 0, 1, 1], [], []>} : vector<64x32xf32>, vector<32x32xf32>, vector<64x32xf32> -> vector<64x32xf32>
    %449 = arith.addf %445, %448 : vector<64x32xf32>
    %450 = arith.addf %449, %1 : vector<64x32xf32>
    %c0_166 = arith.constant 0 : index
    %c0_167 = arith.constant 0 : index
    %451 = vector.load %arg11[%c0_166, %c0_167] : memref<1x32xf32, #tpu.memory_space<vmem>>, vector<1x32xf32>
    %452 = vector.broadcast %451 : vector<1x32xf32> to vector<64x32xf32>
    %453 = arith.addf %450, %452 : vector<64x32xf32>
    %454 = math.tanh %453 : vector<64x32xf32>
    %c0_168 = arith.constant 0 : index
    %c0_169 = arith.constant 0 : index
    %455 = vector.load %arg12[%c0_168, %c0_169] : memref<32x128xf32, #tpu.memory_space<vmem>>, vector<32x128xf32>
    %cst_170 = arith.constant dense<0.000000e+00> : vector<64x128xf32>
    %456 = tpu.matmul %454, %455, %cst_170 {dimension_numbers = #tpu.dot_dimension_numbers<[1], [0], [0], [1], [0, 0, 1, 1], [], []>} : vector<64x32xf32>, vector<32x128xf32>, vector<64x128xf32> -> vector<64x128xf32>
    %c0_171 = arith.constant 0 : index
    %c0_172 = arith.constant 0 : index
    %457 = vector.load %arg13[%c0_171, %c0_172] : memref<1x128xf32, #tpu.memory_space<vmem>>, vector<1x128xf32>
    %458 = vector.broadcast %457 : vector<1x128xf32> to vector<64x128xf32>
    %459 = arith.addf %456, %458 : vector<64x128xf32>
    %c0_173 = arith.constant 0 : index
    %c0_174 = arith.constant 0 : index
    %460 = vector.load %arg14[%c0_173, %c0_174] : memref<64x128xf32, #tpu.memory_space<vmem>>, vector<64x128xf32>
    tpu.vector_store %arg14[%c0_173, %c0_174], %459 {strides = array<i32>} : memref<64x128xf32, #tpu.memory_space<vmem>>, vector<64x128xf32>,
    return
  }
}

</mosaic_0001>

<llo_original>
// kernel: tpu_custom_call.1
$region0: #{tpu_custom_call.1}
  #allocation0 [shape = 'u32[]', space=smem, size = 0x4, offset = 0x4, fixed_abs, tag = 'smem constant byte address 0x4 - core index']
  #allocation1 [shape = 'u32[72,128]{1,0:T(1,128)}', space=vmem, size = 0x9000, scoped, tag = 'internal scratch']
  #allocation2 [shape = 'f32[64,512]{1,0:T(8,128)}', space=vmem, size = 0x20000, scoped, tag = 'scratch operand']
  #allocation3 [shape = 'f32[64,128]{1,0:T(8,128)}', space=vmem, size = 0x8000, scoped, tag = 'scratch operand']
  #allocation4 [shape = 'f32[64,32]{1,0:T(8,128)}', space=vmem, size = 0x8000, scoped, tag = 'scratch operand']
  %s0 = inlined_call_operand.vmem [shape: f32[64,32], index: 0, kind: input, shape index: {}]
  %s1 = inlined_call_operand.vmem [shape: f32[8,16,32], index: 1, kind: input, shape index: {}]
  %s2 = inlined_call_operand.vmem [shape: f32[32,128], index: 2, kind: input, shape index: {}]
  %s3 = inlined_call_operand.vmem [shape: f32[32,128], index: 3, kind: input, shape index: {}]
  %s4 = inlined_call_operand.vmem [shape: f32[1,128], index: 4, kind: input, shape index: {}]
  %s5 = inlined_call_operand.hbm [shape: f32[32,512], index: 5, kind: input, shape index: {}]
  %s6 = inlined_call_operand.hbm [shape: f32[32,512], index: 6, kind: input, shape index: {}]
  %s7 = inlined_call_operand.hbm [shape: f32[128,512], index: 7, kind: input, shape index: {}]
  %s8 = inlined_call_operand.vmem [shape: f32[1,512], index: 8, kind: input, shape index: {}]
  %s9 = inlined_call_operand.vmem [shape: f32[128,32], index: 9, kind: input, shape index: {}]
  %s10 = inlined_call_operand.vmem [shape: f32[32,32], index: 10, kind: input, shape index: {}]
  %s11 = inlined_call_operand.vmem [shape: f32[1,32], index: 11, kind: input, shape index: {}]
  %s12 = inlined_call_operand.hbm [shape: f32[32,128], index: 12, kind: input, shape index: {}]
  %s13 = inlined_call_operand.vmem [shape: f32[1,128], index: 13, kind: input, shape index: {}]
  %s14 = inlined_call_operand.hbm [shape: f32[64,128], index: 14, kind: output, shape index: {}]
  %s15 = sld [smem:[#allocation0]]
  $region82: #{tpu_custom_call.1} parent=0
    _
  %s17 = ssub.s32 1, %s15
  %s18 = scalar_select 0, %s17, %s15
  $region1: #{tpu_custom_call.1} parent=0
    #allocation5 [shape = 'u8[65536]{0}', space=vmem, size = 0x10000, scoped, tag = 'input window, operand 5, single buffered']
    #allocation6 [shape = 's32[1]{0}', space=sflag, size = 0x4, scoped, tag = 'scoped memory for tpu_custom_call.1']
    #allocation7 [shape = 's32[1]{0}', space=sflag, size = 0x4, scoped, tag = 'scoped memory for tpu_custom_call.1']
    #allocation8 [shape = 'u8[65536]{0}', space=vmem, size = 0x10000, scoped, tag = 'input window, operand 6, single buffered']
    #allocation9 [shape = 's32[1]{0}', space=sflag, size = 0x4, scoped, tag = 'scoped memory for tpu_custom_call.1']
    #allocation10 [shape = 'u8[262144]{0}', space=vmem, size = 0x40000, scoped, tag = 'input window, operand 7, single buffered']
    #allocation11 [shape = 'u8[16384]{0}', space=vmem, size = 0x4000, scoped, tag = 'input window, operand 12, single buffered']
    #allocation12 [shape = 's32[1]{0}', space=sflag, size = 0x4, scoped, tag = 'scoped memory for tpu_custom_call.1']
    #allocation13 [shape = 'u8[32768]{0}', space=vmem, size = 0x8000, scoped, tag = 'output window, operand 0, single buffered']
    %19 = vsyncpa [#allocation6], 0
    %20 = vsyncpa [#allocation9], 0
    %21 = vsyncpa [#allocation12], 0
    %22 = vsyncpa [#allocation7], 0
    // Predicated region
    $region2: #{tpu_custom_call.1} parent=1 // pred_check
      _
    $region3: #{tpu_custom_call.1} parent=1 // pred_check_branch
      %24 = sbr.rel (0) target = $region5
    $region4: #{tpu_custom_call.1} parent=1 // pred_region
      _
    $region5: #{tpu_custom_call.1} parent=1 // pred_fallthru
      _
    // Predicated region
    $region6: #{tpu_custom_call.1} parent=1 // pred_check
      _
    $region7: #{tpu_custom_call.1} parent=1 // pred_check_branch
      %26 = sbr.rel (0) target = $region9
    $region8: #{tpu_custom_call.1} parent=1 // pred_region
      _
    $region9: #{tpu_custom_call.1} parent=1 // pred_fallthru
      _
    // Predicated region
    $region10: #{tpu_custom_call.1} parent=1 // pred_check
      _
    $region11: #{tpu_custom_call.1} parent=1 // pred_check_branch
      %28 = sbr.rel (0) target = $region13
    $region12: #{tpu_custom_call.1} parent=1 // pred_region
      _
    $region13: #{tpu_custom_call.1} parent=1 // pred_fallthru
      _
    // Predicated region
    $region14: #{tpu_custom_call.1} parent=1 // pred_check
      _
    $region15: #{tpu_custom_call.1} parent=1 // pred_check_branch
      %30 = sbr.rel (0) target = $region17
    $region16: #{tpu_custom_call.1} parent=1 // pred_region
      _
    $region17: #{tpu_custom_call.1} parent=1 // pred_fallthru
      _
    // Predicated region
    $region18: #{tpu_custom_call.1} parent=1 // pred_check
      _
    $region19: #{tpu_custom_call.1} parent=1 // pred_check_branch
      %32 = sbr.rel (0) target = $region21
    $region20: #{tpu_custom_call.1} parent=1 // pred_region
      _
    $region21: #{tpu_custom_call.1} parent=1 // pred_fallthru
      _
    // Predicated region
    $region22: #{tpu_custom_call.1} parent=1 // pred_check
      _
    $region23: #{tpu_custom_call.1} parent=1 // pred_check_branch
      %34 = sbr.rel (0) target = $region25
    $region24: #{tpu_custom_call.1} parent=1 // pred_region
      %36 = vsyncadd [#allocation6], 0
      %s37 = sshll.u32 %s5, 4
      %s38 = int_to_ptr.hbm [resolvable:$true] %s37
      %s39 = sshll.u32 [#allocation5], 4
      %s40 = int_to_ptr.vmem [resolvable:$true] %s39
      %45 = dma.hbm_to_vmem [thread:$0]  %s38, 2048, %s40, [#allocation6], 512, 512, 32
    $region25: #{tpu_custom_call.1} parent=1 // pred_fallthru
      _
    // Predicated region
    $region26: #{tpu_custom_call.1} parent=1 // pred_check
      _
    $region27: #{tpu_custom_call.1} parent=1 // pred_check_branch
      %47 = sbr.rel (0) target = $region29
    $region28: #{tpu_custom_call.1} parent=1 // pred_region
      %49 = vsyncadd [#allocation9], 0
      %s50 = sshll.u32 %s6, 4
      %s51 = int_to_ptr.hbm [resolvable:$true] %s50
      %s52 = sshll.u32 [#allocation8], 4
      %s53 = int_to_ptr.vmem [resolvable:$true] %s52
      %58 = dma.hbm_to_vmem [thread:$0]  %s51, 2048, %s53, [#allocation9], 512, 512, 32
    $region29: #{tpu_custom_call.1} parent=1 // pred_fallthru
      _
    // Predicated region
    $region30: #{tpu_custom_call.1} parent=1 // pred_check
      _
    $region31: #{tpu_custom_call.1} parent=1 // pred_check_branch
      %60 = sbr.rel (0) target = $region33
    $region32: #{tpu_custom_call.1} parent=1 // pred_region
      %62 = vsyncadd [#allocation9], 0
      %s63 = sshll.u32 %s7, 4
      %s64 = int_to_ptr.hbm [resolvable:$true] %s63
      %s65 = sshll.u32 [#allocation10], 4
      %s66 = int_to_ptr.vmem [resolvable:$true] %s65
      %71 = dma.hbm_to_vmem [thread:$0]  %s64, 8192, %s66, [#allocation9], 512, 512, 32
    $region33: #{tpu_custom_call.1} parent=1 // pred_fallthru
      _
    // Predicated region
    $region34: #{tpu_custom_call.1} parent=1 // pred_check
      _
    $region35: #{tpu_custom_call.1} parent=1 // pred_check_branch
      %73 = sbr.rel (0) target = $region37
    $region36: #{tpu_custom_call.1} parent=1 // pred_region
      _
    $region37: #{tpu_custom_call.1} parent=1 // pred_fallthru
      _
    // Predicated region
    $region38: #{tpu_custom_call.1} parent=1 // pred_check
      _
    $region39: #{tpu_custom_call.1} parent=1 // pred_check_branch
      %75 = sbr.rel (0) target = $region41
    $region40: #{tpu_custom_call.1} parent=1 // pred_region
      _
    $region41: #{tpu_custom_call.1} parent=1 // pred_fallthru
      _
    // Predicated region
    $region42: #{tpu_custom_call.1} parent=1 // pred_check
      _
    $region43: #{tpu_custom_call.1} parent=1 // pred_check_branch
      %77 = sbr.rel (0) target = $region45
    $region44: #{tpu_custom_call.1} parent=1 // pred_region
      _
    $region45: #{tpu_custom_call.1} parent=1 // pred_fallthru
      _
    // Predicated region
    $region46: #{tpu_custom_call.1} parent=1 // pred_check
      _
    $region47: #{tpu_custom_call.1} parent=1 // pred_check_branch
      %79 = sbr.rel (0) target = $region49
    $region48: #{tpu_custom_call.1} parent=1 // pred_region
      _
    $region49: #{tpu_custom_call.1} parent=1 // pred_fallthru
      _
    // Predicated region
    $region50: #{tpu_custom_call.1} parent=1 // pred_check
      _
    $region51: #{tpu_custom_call.1} parent=1 // pred_check_branch
      %81 = sbr.rel (0) target = $region53
    $region52: #{tpu_custom_call.1} parent=1 // pred_region
      %83 = vsyncadd [#allocation12], 0
      %s84 = sshll.u32 %s12, 4
      %s85 = int_to_ptr.hbm [resolvable:$true] %s84
      %s86 = sshll.u32 [#allocation11], 4
      %s87 = int_to_ptr.vmem [resolvable:$true] %s86
      %92 = dma.hbm_to_vmem [thread:$0]  %s85, 512, %s87, [#allocation12], 128, 128, 8
    $region53: #{tpu_custom_call.1} parent=1 // pred_fallthru
      _
    // Predicated region
    $region54: #{tpu_custom_call.1} parent=1 // pred_check
      _
    $region55: #{tpu_custom_call.1} parent=1 // pred_check_branch
      %94 = sbr.rel (0) target = $region57
    $region56: #{tpu_custom_call.1} parent=1 // pred_region
      _
    $region57: #{tpu_custom_call.1} parent=1 // pred_fallthru
      _
    // Predicated region
    $region58: #{tpu_custom_call.1} parent=1 // pred_check
      _
    $region59: #{tpu_custom_call.1} parent=1 // pred_check_branch
      %96 = sbr.rel (0) target = $region61
    $region60: #{tpu_custom_call.1} parent=1 // pred_region
      %98 = dma.done [#allocation6], 2048
    $region61: #{tpu_custom_call.1} parent=1 // pred_fallthru
      _
    // Predicated region
    $region62: #{tpu_custom_call.1} parent=1 // pred_check
      _
    $region63: #{tpu_custom_call.1} parent=1 // pred_check_branch
      %100 = sbr.rel (0) target = $region65
    $region64: #{tpu_custom_call.1} parent=1 // pred_region
      %102 = dma.done [#allocation9], 2048
    $region65: #{tpu_custom_call.1} parent=1 // pred_fallthru
      _
    // Predicated region
    $region66: #{tpu_custom_call.1} parent=1 // pred_check
      _
    $region67: #{tpu_custom_call.1} parent=1 // pred_check_branch
      %104 = sbr.rel (0) target = $region69
    $region68: #{tpu_custom_call.1} parent=1 // pred_region
      %106 = dma.done [#allocation9], 8192
    $region69: #{tpu_custom_call.1} parent=1 // pred_fallthru
      _
    // Predicated region
    $region70: #{tpu_custom_call.1} parent=1 // pred_check
      _
    $region71: #{tpu_custom_call.1} parent=1 // pred_check_branch
      %108 = sbr.rel (0) target = $region73
    $region72: #{tpu_custom_call.1} parent=1 // pred_region
      %110 = dma.done [#allocation12], 512
    $region73: #{tpu_custom_call.1} parent=1 // pred_fallthru
      _
    %v111 = vld [vmem:[%s1] sm:$0xff]
    %v112 = vld [vmem:[%s1 + $0x8] sm:$0xff]
    %v113 = vld [vmem:[%s1 + $0x10] sm:$0xff]
    %v114 = vld [vmem:[%s1 + $0x18] sm:$0xff]
    %v115 = vld [vmem:[%s1 + $0x20] sm:$0xff]
    %v116 = vld [vmem:[%s1 + $0x28] sm:$0xff]
    %v117 = vld [vmem:[%s1 + $0x30] sm:$0xff]
    %v118 = vld [vmem:[%s1 + $0x38] sm:$0xff]
    %v119 = vld [vmem:[%s1 + $0x40] sm:$0xff]
    %v120 = vld [vmem:[%s1 + $0x48] sm:$0xff]
    %v121 = vld [vmem:[%s1 + $0x50] sm:$0xff]
    %v122 = vld [vmem:[%s1 + $0x58] sm:$0xff]
    %v123 = vld [vmem:[%s1 + $0x60] sm:$0xff]
    %v124 = vld [vmem:[%s1 + $0x68] sm:$0xff]
    %v125 = vld [vmem:[%s1 + $0x70] sm:$0xff]
    %v126 = vld [vmem:[%s1 + $0x78] sm:$0xff]
    %v127 = vld [vmem:[%s0] sm:$0xff]
    %v128 = vld [vmem:[%s0 + $0x8] sm:$0xff]
    %v129 = vld [vmem:[%s0 + $0x10] sm:$0xff]
    %v130 = vld [vmem:[%s0 + $0x18] sm:$0xff]
    %v131 = vld [vmem:[%s0 + $0x20] sm:$0xff]
    %v132 = vld [vmem:[%s0 + $0x28] sm:$0xff]
    %v133 = vld [vmem:[%s0 + $0x30] sm:$0xff]
    %v134 = vld [vmem:[%s0 + $0x38] sm:$0xff]
    %v135 = vld [vmem:[#allocation8] sm:$0xff]
    %v136 = vld [vmem:[#allocation8 + $0x8] sm:$0xff]
    %v137 = vld [vmem:[#allocation8 + $0x10] sm:$0xff]
    %v138 = vld [vmem:[#allocation8 + $0x18] sm:$0xff]
    %v139 = vld [vmem:[#allocation8 + $0x20] sm:$0xff]
    %v140 = vld [vmem:[#allocation8 + $0x28] sm:$0xff]
    %v141 = vld [vmem:[#allocation8 + $0x30] sm:$0xff]
    %v142 = vld [vmem:[#allocation8 + $0x38] sm:$0xff]
    %v143 = vld [vmem:[#allocation8 + $0x40] sm:$0xff]
    %v144 = vld [vmem:[#allocation8 + $0x48] sm:$0xff]
    %v145 = vld [vmem:[#allocation8 + $0x50] sm:$0xff]
    %v146 = vld [vmem:[#allocation8 + $0x58] sm:$0xff]
    %v147 = vld [vmem:[#allocation8 + $0x60] sm:$0xff]
    %v148 = vld [vmem:[#allocation8 + $0x68] sm:$0xff]
    %v149 = vld [vmem:[#allocation8 + $0x70] sm:$0xff]
    %v150 = vld [vmem:[#allocation8 + $0x78] sm:$0xff]
    %v151 = vld [vmem:[%s8] sm:$0xf]
    %v153 = vperm.slane %v151, 0
    %v154 = vperm.slane %v151, 1
    %v155 = vperm.slane %v151, 2
    %v156 = vperm.slane %v151, 3
    %vm161 = vcmask 261120
    %v163 = vsel %vm161, %v127, 0
    %v166 = vsel %vm161, %v128, 0
    %v169 = vsel %vm161, %v129, 0
    %v172 = vsel %vm161, %v130, 0
    %v175 = vsel %vm161, %v131, 0
    %v178 = vsel %vm161, %v132, 0
    %v181 = vsel %vm161, %v133, 0
    %v184 = vsel %vm161, %v134, 0
    %186 = vmatpush.msra.mxu0 0.0
    %187 = vmatpush.msra.mxu0 0.0
    %188 = vmatpush.msra.mxu0 0.0
    %189 = vmatpush.msra.mxu0 0.0
    %190 = vmatpush.msra.mxu0 0.0
    %191 = vmatpush.msra.mxu0 0.0
    %192 = vmatpush.msra.mxu0 0.0
    %193 = vmatpush.msra.mxu0 0.0
    %194 = vmatpush.msra.mxu0 0.0
    %195 = vmatpush.msra.mxu0 0.0
    %196 = vmatpush.msra.mxu0 0.0
    %197 = vmatpush.msra.mxu0 0.0
    %198 = vmatpush.msra.mxu0 %v147
    %199 = vmatpush.msra.mxu0 %v143
    %200 = vmatpush.msra.mxu0 %v139
    %201 = vmatpush.msra.mxu0 %v135
    %202 = vmatmul.f32.gmra.mxu0 %v163
    %v203 = vpop.f32.mrf.mxu0
    %v204 = vadd.f32 %v153, %v203
    %205 = vmatmul.f32.gmra.mxu0 %v166
    %v206 = vpop.f32.mrf.mxu0
    %v207 = vadd.f32 %v153, %v206
    %208 = vmatmul.f32.gmra.mxu0 %v169
    %v209 = vpop.f32.mrf.mxu0
    %v210 = vadd.f32 %v153, %v209
    %211 = vmatmul.f32.gmra.mxu0 %v172
    %v212 = vpop.f32.mrf.mxu0
    %v213 = vadd.f32 %v153, %v212
    %214 = vmatmul.f32.gmra.mxu0 %v175
    %v215 = vpop.f32.mrf.mxu0
    %v216 = vadd.f32 %v153, %v215
    %217 = vmatmul.f32.gmra.mxu0 %v178
    %v218 = vpop.f32.mrf.mxu0
    %v219 = vadd.f32 %v153, %v218
    %220 = vmatmul.f32.gmra.mxu0 %v181
    %v221 = vpop.f32.mrf.mxu0
    %v222 = vadd.f32 %v153, %v221
    %223 = vmatmul.f32.gmra.mxu0 %v184
    %v224 = vpop.f32.mrf.mxu0
    %v225 = vadd.f32 %v153, %v224
    %226 = vdwg.mxu0
    %227 = vmatpush.msra.mxu0 0.0
    %228 = vmatpush.msra.mxu0 0.0
    %229 = vmatpush.msra.mxu0 0.0
    %230 = vmatpush.msra.mxu0 0.0
    %231 = vmatpush.msra.mxu0 0.0
    %232 = vmatpush.msra.mxu0 0.0
    %233 = vmatpush.msra.mxu0 0.0
    %234 = vmatpush.msra.mxu0 0.0
    %235 = vmatpush.msra.mxu0 0.0
    %236 = vmatpush.msra.mxu0 0.0
    %237 = vmatpush.msra.mxu0 0.0
    %238 = vmatpush.msra.mxu0 0.0
    %239 = vmatpush.msra.mxu0 %v148
    %240 = vmatpush.msra.mxu0 %v144
    %241 = vmatpush.msra.mxu0 %v140
    %242 = vmatpush.msra.mxu0 %v136
    %243 = vmatmul.f32.gmra.mxu0 %v163
    %v244 = vpop.f32.mrf.mxu0
    %v245 = vadd.f32 %v154, %v244
    %246 = vmatmul.f32.gmra.mxu0 %v166
    %v247 = vpop.f32.mrf.mxu0
    %v248 = vadd.f32 %v154, %v247
    %249 = vmatmul.f32.gmra.mxu0 %v169
    %v250 = vpop.f32.mrf.mxu0
    %v251 = vadd.f32 %v154, %v250
    %252 = vmatmul.f32.gmra.mxu0 %v172
    %v253 = vpop.f32.mrf.mxu0
    %v254 = vadd.f32 %v154, %v253
    %255 = vmatmul.f32.gmra.mxu0 %v175
    %v256 = vpop.f32.mrf.mxu0
    %v257 = vadd.f32 %v154, %v256
    %258 = vmatmul.f32.gmra.mxu0 %v178
    %v259 = vpop.f32.mrf.mxu0
    %v260 = vadd.f32 %v154, %v259
    %261 = vmatmul.f32.gmra.mxu0 %v181
    %v262 = vpop.f32.mrf.mxu0
    %v263 = vadd.f32 %v154, %v262
    %264 = vmatmul.f32.gmra.mxu0 %v184
    %v265 = vpop.f32.mrf.mxu0
    %v266 = vadd.f32 %v154, %v265
    %267 = vdwg.mxu0
    %268 = vmatpush.msra.mxu0 0.0
    %269 = vmatpush.msra.mxu0 0.0
    %270 = vmatpush.msra.mxu0 0.0
    %271 = vmatpush.msra.mxu0 0.0
    %272 = vmatpush.msra.mxu0 0.0
    %273 = vmatpush.msra.mxu0 0.0
    %274 = vmatpush.msra.mxu0 0.0
    %275 = vmatpush.msra.mxu0 0.0
    %276 = vmatpush.msra.mxu0 0.0
    %277 = vmatpush.msra.mxu0 0.0
    %278 = vmatpush.msra.mxu0 0.0
    %279 = vmatpush.msra.mxu0 0.0
    %280 = vmatpush.msra.mxu0 %v149
    %281 = vmatpush.msra.mxu0 %v145
    %282 = vmatpush.msra.mxu0 %v141
    %283 = vmatpush.msra.mxu0 %v137
    %284 = vmatmul.f32.gmra.mxu0 %v163
    %v285 = vpop.f32.mrf.mxu0
    %v286 = vadd.f32 %v155, %v285
    %287 = vmatmul.f32.gmra.mxu0 %v166
    %v288 = vpop.f32.mrf.mxu0
    %v289 = vadd.f32 %v155, %v288
    %290 = vmatmul.f32.gmra.mxu0 %v169
    %v291 = vpop.f32.mrf.mxu0
    %v292 = vadd.f32 %v155, %v291
    %293 = vmatmul.f32.gmra.mxu0 %v172
    %v294 = vpop.f32.mrf.mxu0
    %v295 = vadd.f32 %v155, %v294
    %296 = vmatmul.f32.gmra.mxu0 %v175
    %v297 = vpop.f32.mrf.mxu0
    %v298 = vadd.f32 %v155, %v297
    %299 = vmatmul.f32.gmra.mxu0 %v178
    %v300 = vpop.f32.mrf.mxu0
    %v301 = vadd.f32 %v155, %v300
    %302 = vmatmul.f32.gmra.mxu0 %v181
    %v303 = vpop.f32.mrf.mxu0
    %v304 = vadd.f32 %v155, %v303
    %305 = vmatmul.f32.gmra.mxu0 %v184
    %v306 = vpop.f32.mrf.mxu0
    %v307 = vadd.f32 %v155, %v306
    %308 = vdwg.mxu0
    %309 = vmatpush.msra.mxu0 0.0
    %310 = vmatpush.msra.mxu0 0.0
    %311 = vmatpush.msra.mxu0 0.0
    %312 = vmatpush.msra.mxu0 0.0
    %313 = vmatpush.msra.mxu0 0.0
    %314 = vmatpush.msra.mxu0 0.0
    %315 = vmatpush.msra.mxu0 0.0
    %316 = vmatpush.msra.mxu0 0.0
    %317 = vmatpush.msra.mxu0 0.0
    %318 = vmatpush.msra.mxu0 0.0
    %319 = vmatpush.msra.mxu0 0.0
    %320 = vmatpush.msra.mxu0 0.0
    %321 = vmatpush.msra.mxu0 %v150
    %322 = vmatpush.msra.mxu0 %v146
    %323 = vmatpush.msra.mxu0 %v142
    %324 = vmatpush.msra.mxu0 %v138
    %325 = vmatmul.f32.gmra.mxu0 %v163
    %v326 = vpop.f32.mrf.mxu0
    %v327 = vadd.f32 %v156, %v326
    %328 = vmatmul.f32.gmra.mxu0 %v166
    %v329 = vpop.f32.mrf.mxu0
    %v330 = vadd.f32 %v156, %v329
    %331 = vmatmul.f32.gmra.mxu0 %v169
    %v332 = vpop.f32.mrf.mxu0
    %v333 = vadd.f32 %v156, %v332
    %334 = vmatmul.f32.gmra.mxu0 %v172
    %v335 = vpop.f32.mrf.mxu0
    %v336 = vadd.f32 %v156, %v335
    %337 = vmatmul.f32.gmra.mxu0 %v175
    %v338 = vpop.f32.mrf.mxu0
    %v339 = vadd.f32 %v156, %v338
    %340 = vmatmul.f32.gmra.mxu0 %v178
    %v341 = vpop.f32.mrf.mxu0
    %v342 = vadd.f32 %v156, %v341
    %343 = vmatmul.f32.gmra.mxu0 %v181
    %v344 = vpop.f32.mrf.mxu0
    %v345 = vadd.f32 %v156, %v344
    %346 = vmatmul.f32.gmra.mxu0 %v184
    %v347 = vpop.f32.mrf.mxu0
    %v348 = vadd.f32 %v156, %v347
    %349 = vdwg.mxu0
    %350 = vst [vmem:[#allocation2] sm:$0xff] %v204
    %351 = vst [vmem:[#allocation2 + $0x8] sm:$0xff] %v245
    %352 = vst [vmem:[#allocation2 + $0x10] sm:$0xff] %v286
    %353 = vst [vmem:[#allocation2 + $0x18] sm:$0xff] %v327
    %354 = vst [vmem:[#allocation2 + $0x20] sm:$0xff] %v207
    %355 = vst [vmem:[#allocation2 + $0x28] sm:$0xff] %v248
    %356 = vst [vmem:[#allocation2 + $0x30] sm:$0xff] %v289
    %357 = vst [vmem:[#allocation2 + $0x38] sm:$0xff] %v330
    %358 = vst [vmem:[#allocation2 + $0x40] sm:$0xff] %v210
    %359 = vst [vmem:[#allocation2 + $0x48] sm:$0xff] %v251
    %360 = vst [vmem:[#allocation2 + $0x50] sm:$0xff] %v292
    %361 = vst [vmem:[#allocation2 + $0x58] sm:$0xff] %v333
    %362 = vst [vmem:[#allocation2 + $0x60] sm:$0xff] %v213
    %363 = vst [vmem:[#allocation2 + $0x68] sm:$0xff] %v254
    %364 = vst [vmem:[#allocation2 + $0x70] sm:$0xff] %v295
    %365 = vst [vmem:[#allocation2 + $0x78] sm:$0xff] %v336
    %366 = vst [vmem:[#allocation2 + $0x80] sm:$0xff] %v216
    %367 = vst [vmem:[#allocation2 + $0x88] sm:$0xff] %v257
    %368 = vst [vmem:[#allocation2 + $0x90] sm:$0xff] %v298
    %369 = vst [vmem:[#allocation2 + $0x98] sm:$0xff] %v339
    %370 = vst [vmem:[#allocation2 + $0xa0] sm:$0xff] %v219
    %371 = vst [vmem:[#allocation2 + $0xa8] sm:$0xff] %v260
    %372 = vst [vmem:[#allocation2 + $0xb0] sm:$0xff] %v301
    %373 = vst [vmem:[#allocation2 + $0xb8] sm:$0xff] %v342
    %374 = vst [vmem:[#allocation2 + $0xc0] sm:$0xff] %v222
    %375 = vst [vmem:[#allocation2 + $0xc8] sm:$0xff] %v263
    %376 = vst [vmem:[#allocation2 + $0xd0] sm:$0xff] %v304
    %377 = vst [vmem:[#allocation2 + $0xd8] sm:$0xff] %v345
    %378 = vst [vmem:[#allocation2 + $0xe0] sm:$0xff] %v225
    %379 = vst [vmem:[#allocation2 + $0xe8] sm:$0xff] %v266
    %380 = vst [vmem:[#allocation2 + $0xf0] sm:$0xff] %v307
    %381 = vst [vmem:[#allocation2 + $0xf8] sm:$0xff] %v348
    %v382 = vld [vmem:[%s2] sm:$0xff]
    %v383 = vld [vmem:[%s2 + $0x8] sm:$0xff]
    %v384 = vld [vmem:[%s2 + $0x10] sm:$0xff]
    %v385 = vld [vmem:[%s2 + $0x18] sm:$0xff]
    %v387 = vsel %vm161, %v111, 0
    %v390 = vsel %vm161, %v112, 0
    %v393 = vsel %vm161, %v113, 0
    %v396 = vsel %vm161, %v114, 0
    %v399 = vsel %vm161, %v115, 0
    %v402 = vsel %vm161, %v116, 0
    %v405 = vsel %vm161, %v117, 0
    %v408 = vsel %vm161, %v118, 0
    %v411 = vsel %vm161, %v119, 0
    %v414 = vsel %vm161, %v120, 0
    %v417 = vsel %vm161, %v121, 0
    %v420 = vsel %vm161, %v122, 0
    %v423 = vsel %vm161, %v123, 0
    %v426 = vsel %vm161, %v124, 0
    %v429 = vsel %vm161, %v125, 0
    %v432 = vsel %vm161, %v126, 0
    %434 = vmatpush.msra.mxu0 0.0
    %435 = vmatpush.msra.mxu0 0.0
    %436 = vmatpush.msra.mxu0 0.0
    %437 = vmatpush.msra.mxu0 0.0
    %438 = vmatpush.msra.mxu0 0.0
    %439 = vmatpush.msra.mxu0 0.0
    %440 = vmatpush.msra.mxu0 0.0
    %441 = vmatpush.msra.mxu0 0.0
    %442 = vmatpush.msra.mxu0 0.0
    %443 = vmatpush.msra.mxu0 0.0
    %444 = vmatpush.msra.mxu0 0.0
    %445 = vmatpush.msra.mxu0 0.0
    %446 = vmatpush.msra.mxu0 %v385
    %447 = vmatpush.msra.mxu0 %v384
    %448 = vmatpush.msra.mxu0 %v383
    %449 = vmatpush.msra.mxu0 %v382
    %450 = vmatmul.f32.gmra.mxu0 %v387
    %v451 = vpop.f32.mrf.mxu0
    %v452 = vadd.f32 0.0, %v451
    %453 = vmatmul.f32.gmra.mxu0 %v390
    %v454 = vpop.f32.mrf.mxu0
    %v455 = vadd.f32 0.0, %v454
    %456 = vmatmul.f32.gmra.mxu0 %v393
    %v457 = vpop.f32.mrf.mxu0
    %v458 = vadd.f32 0.0, %v457
    %459 = vmatmul.f32.gmra.mxu0 %v396
    %v460 = vpop.f32.mrf.mxu0
    %v461 = vadd.f32 0.0, %v460
    %462 = vmatmul.f32.gmra.mxu0 %v399
    %v463 = vpop.f32.mrf.mxu0
    %v464 = vadd.f32 0.0, %v463
    %465 = vmatmul.f32.gmra.mxu0 %v402
    %v466 = vpop.f32.mrf.mxu0
    %v467 = vadd.f32 0.0, %v466
    %468 = vmatmul.f32.gmra.mxu0 %v405
    %v469 = vpop.f32.mrf.mxu0
    %v470 = vadd.f32 0.0, %v469
    %471 = vmatmul.f32.gmra.mxu0 %v408
    %v472 = vpop.f32.mrf.mxu0
    %v473 = vadd.f32 0.0, %v472
    %474 = vmatmul.f32.gmra.mxu0 %v411
    %v475 = vpop.f32.mrf.mxu0
    %v476 = vadd.f32 0.0, %v475
    %477 = vmatmul.f32.gmra.mxu0 %v414
    %v478 = vpop.f32.mrf.mxu0
    %v479 = vadd.f32 0.0, %v478
    %480 = vmatmul.f32.gmra.mxu0 %v417
    %v481 = vpop.f32.mrf.mxu0
    %v482 = vadd.f32 0.0, %v481
    %483 = vmatmul.f32.gmra.mxu0 %v420
    %v484 = vpop.f32.mrf.mxu0
    %v485 = vadd.f32 0.0, %v484
    %486 = vmatmul.f32.gmra.mxu0 %v423
    %v487 = vpop.f32.mrf.mxu0
    %v488 = vadd.f32 0.0, %v487
    %489 = vmatmul.f32.gmra.mxu0 %v426
    %v490 = vpop.f32.mrf.mxu0
    %v491 = vadd.f32 0.0, %v490
    %492 = vmatmul.f32.gmra.mxu0 %v429
    %v493 = vpop.f32.mrf.mxu0
    %v494 = vadd.f32 0.0, %v493
    %495 = vmatmul.f32.gmra.mxu0 %v432
    %v496 = vpop.f32.mrf.mxu0
    %v497 = vadd.f32 0.0, %v496
    %498 = vdwg.mxu0
    %v499 = vsel %vm161, %v111, 0.0
    %v500 = vsel %vm161, %v112, 0.0
    %v501 = vadd.f32 %v499, %v500
    %v502 = vrot.slane %v501, 4
    %v503 = vadd.f32 %v501, %v502
    %v504 = vrot.slane %v503, 2
    %v505 = vadd.f32 %v503, %v504
    %v506 = vrot.slane %v505, 1
    %v507 = vadd.f32 %v505, %v506
    %v508 = vsel %vm161, %v113, 0.0
    %v509 = vsel %vm161, %v114, 0.0
    %v510 = vadd.f32 %v508, %v509
    %v511 = vrot.slane %v510, 4
    %v512 = vadd.f32 %v510, %v511
    %v513 = vrot.slane %v512, 2
    %v514 = vadd.f32 %v512, %v513
    %v515 = vrot.slane %v514, 1
    %v516 = vadd.f32 %v514, %v515
    %v517 = vsel %vm161, %v115, 0.0
    %v518 = vsel %vm161, %v116, 0.0
    %v519 = vadd.f32 %v517, %v518
    %v520 = vrot.slane %v519, 4
    %v521 = vadd.f32 %v519, %v520
    %v522 = vrot.slane %v521, 2
    %v523 = vadd.f32 %v521, %v522
    %v524 = vrot.slane %v523, 1
    %v525 = vadd.f32 %v523, %v524
    %v526 = vsel %vm161, %v117, 0.0
    %v527 = vsel %vm161, %v118, 0.0
    %v528 = vadd.f32 %v526, %v527
    %v529 = vrot.slane %v528, 4
    %v530 = vadd.f32 %v528, %v529
    %v531 = vrot.slane %v530, 2
    %v532 = vadd.f32 %v530, %v531
    %v533 = vrot.slane %v532, 1
    %v534 = vadd.f32 %v532, %v533
    %v535 = vsel %vm161, %v119, 0.0
    %v536 = vsel %vm161, %v120, 0.0
    %v537 = vadd.f32 %v535, %v536
    %v538 = vrot.slane %v537, 4
    %v539 = vadd.f32 %v537, %v538
    %v540 = vrot.slane %v539, 2
    %v541 = vadd.f32 %v539, %v540
    %v542 = vrot.slane %v541, 1
    %v543 = vadd.f32 %v541, %v542
    %v544 = vsel %vm161, %v121, 0.0
    %v545 = vsel %vm161, %v122, 0.0
    %v546 = vadd.f32 %v544, %v545
    %v547 = vrot.slane %v546, 4
    %v548 = vadd.f32 %v546, %v547
    %v549 = vrot.slane %v548, 2
    %v550 = vadd.f32 %v548, %v549
    %v551 = vrot.slane %v550, 1
    %v552 = vadd.f32 %v550, %v551
    %v553 = vsel %vm161, %v123, 0.0
    %v554 = vsel %vm161, %v124, 0.0
    %v555 = vadd.f32 %v553, %v554
    %v556 = vrot.slane %v555, 4
    %v557 = vadd.f32 %v555, %v556
    %v558 = vrot.slane %v557, 2
    %v559 = vadd.f32 %v557, %v558
    %v560 = vrot.slane %v559, 1
    %v561 = vadd.f32 %v559, %v560
    %v562 = vsel %vm161, %v125, 0.0
    %v563 = vsel %vm161, %v126, 0.0
    %v564 = vadd.f32 %v562, %v563
    %v565 = vrot.slane %v564, 4
    %v566 = vadd.f32 %v564, %v565
    %v567 = vrot.slane %v566, 2
    %v568 = vadd.f32 %v566, %v567
    %v569 = vrot.slane %v568, 1
    %v570 = vadd.f32 %v568, %v569
    %v571 = vrcp.pop 16.0
    %v572 = vmul.f32 16.0, %v571
    %v573 = vsub.f32 1.0, %v572
    %v574 = vmul.f32 %v571, %v573
    %v575 = vadd.f32 %v571, %v574
    %vm576 = vweird.f32 %v571
    %v577 = vsel %vm576, %v571, %v575
    %v578 = vmul.f32 %v507, %v577
    %v579 = vmul.f32 %v516, %v577
    %v580 = vmul.f32 %v525, %v577
    %v581 = vmul.f32 %v534, %v577
    %v582 = vmul.f32 %v543, %v577
    %v583 = vmul.f32 %v552, %v577
    %v584 = vmul.f32 %v561, %v577
    %v585 = vmul.f32 %v570, %v577
    %v586 = vld [vmem:[%s3] sm:$0xff]
    %v587 = vld [vmem:[%s3 + $0x8] sm:$0xff]
    %v588 = vld [vmem:[%s3 + $0x10] sm:$0xff]
    %v589 = vld [vmem:[%s3 + $0x18] sm:$0xff]
    %v590 = vld [vmem:[%s4] sm:$0x1]
    %v592 = vperm.slane %v590, 0
    %vm602 = vcmask 1041409
    %v603 = vsel %vm602, %v579, %v578
    %vm604 = vcmask 1042434
    %v605 = vsel %vm604, %v580, %v603
    %vm606 = vcmask 1043459
    %v607 = vsel %vm606, %v581, %v605
    %vm608 = vcmask 1044484
    %v609 = vsel %vm608, %v582, %v607
    %vm610 = vcmask 1045509
    %v611 = vsel %vm610, %v583, %v609
    %vm612 = vcmask 1046534
    %v613 = vsel %vm612, %v584, %v611
    %vm614 = vcmask 1047559
    %v615 = vsel %vm614, %v585, %v613
    %v616 = vsel %vm161, %v615, 0
    %618 = vmatpush.msra.mxu0 0.0
    %619 = vmatpush.msra.mxu0 0.0
    %620 = vmatpush.msra.mxu0 0.0
    %621 = vmatpush.msra.mxu0 0.0
    %622 = vmatpush.msra.mxu0 0.0
    %623 = vmatpush.msra.mxu0 0.0
    %624 = vmatpush.msra.mxu0 0.0
    %625 = vmatpush.msra.mxu0 0.0
    %626 = vmatpush.msra.mxu0 0.0
    %627 = vmatpush.msra.mxu0 0.0
    %628 = vmatpush.msra.mxu0 0.0
    %629 = vmatpush.msra.mxu0 0.0
    %630 = vmatpush.msra.mxu0 %v589
    %631 = vmatpush.msra.mxu0 %v588
    %632 = vmatpush.msra.mxu0 %v587
    %633 = vmatpush.msra.mxu0 %v586
    %634 = vmatmul.f32.gmra.mxu0 %v616
    %v635 = vpop.f32.mrf.mxu0
    %v636 = vadd.f32 %v592, %v635
    %637 = vdwg.mxu0
    %v638 = vtanh.pop %v636
    %v640 = vrot.slane %v638, 1
    %v641 = vrot.slane %v638, 2
    %v642 = vrot.slane %v638, 3
    %v643 = vrot.slane %v638, 4
    %v644 = vrot.slane %v638, 5
    %v645 = vrot.slane %v638, 6
    %v646 = vrot.slane %v638, 7
    %654 = vmatpush.xpose.msra.mxu0 0.0
    %655 = vmatpush.xpose.msra.mxu0 0.0
    %656 = vmatpush.xpose.msra.mxu0 0.0
    %657 = vmatpush.xpose.msra.mxu0 0.0
    %658 = vmatpush.xpose.msra.mxu0 0.0
    %659 = vmatpush.xpose.msra.mxu0 0.0
    %660 = vmatpush.xpose.msra.mxu0 0.0
    %661 = vmatpush.xpose.msra.mxu0 0.0
    %662 = vmatpush.xpose.msra.mxu0 0.0
    %663 = vmatpush.xpose.msra.mxu0 0.0
    %664 = vmatpush.xpose.msra.mxu0 0.0
    %665 = vmatpush.xpose.msra.mxu0 0.0
    %666 = vmatpush.xpose.msra.mxu0 0.0
    %667 = vmatpush.xpose.msra.mxu0 0.0
    %668 = vmatpush.xpose.msra.mxu0 %v455
    %669 = vmatpush.xpose.msra.mxu0 %v452
    %670 = vmatmul.f32.gmra.mxu0 %v638
    %v671 = vpop.f32.mrf.mxu0
    %v672 = vadd.f32 0.0, %v671
    %673 = vdwg.mxu0
    %674 = vmatpush.xpose.msra.mxu0 0.0
    %675 = vmatpush.xpose.msra.mxu0 0.0
    %676 = vmatpush.xpose.msra.mxu0 0.0
    %677 = vmatpush.xpose.msra.mxu0 0.0
    %678 = vmatpush.xpose.msra.mxu0 0.0
    %679 = vmatpush.xpose.msra.mxu0 0.0
    %680 = vmatpush.xpose.msra.mxu0 0.0
    %681 = vmatpush.xpose.msra.mxu0 0.0
    %682 = vmatpush.xpose.msra.mxu0 0.0
    %683 = vmatpush.xpose.msra.mxu0 0.0
    %684 = vmatpush.xpose.msra.mxu0 0.0
    %685 = vmatpush.xpose.msra.mxu0 0.0
    %686 = vmatpush.xpose.msra.mxu0 0.0
    %687 = vmatpush.xpose.msra.mxu0 0.0
    %688 = vmatpush.xpose.msra.mxu0 %v461
    %689 = vmatpush.xpose.msra.mxu0 %v458
    %690 = vmatmul.f32.gmra.mxu0 %v640
    %v691 = vpop.f32.mrf.mxu0
    %v692 = vadd.f32 0.0, %v691
    %693 = vdwg.mxu0
    %694 = vmatpush.xpose.msra.mxu0 0.0
    %695 = vmatpush.xpose.msra.mxu0 0.0
    %696 = vmatpush.xpose.msra.mxu0 0.0
    %697 = vmatpush.xpose.msra.mxu0 0.0
    %698 = vmatpush.xpose.msra.mxu0 0.0
    %699 = vmatpush.xpose.msra.mxu0 0.0
    %700 = vmatpush.xpose.msra.mxu0 0.0
    %701 = vmatpush.xpose.msra.mxu0 0.0
    %702 = vmatpush.xpose.msra.mxu0 0.0
    %703 = vmatpush.xpose.msra.mxu0 0.0
    %704 = vmatpush.xpose.msra.mxu0 0.0
    %705 = vmatpush.xpose.msra.mxu0 0.0
    %706 = vmatpush.xpose.msra.mxu0 0.0
    %707 = vmatpush.xpose.msra.mxu0 0.0
    %708 = vmatpush.xpose.msra.mxu0 %v467
    %709 = vmatpush.xpose.msra.mxu0 %v464
    %710 = vmatmul.f32.gmra.mxu0 %v641
    %v711 = vpop.f32.mrf.mxu0
    %v712 = vadd.f32 0.0, %v711
    %713 = vdwg.mxu0
    %714 = vmatpush.xpose.msra.mxu0 0.0
    %715 = vmatpush.xpose.msra.mxu0 0.0
    %716 = vmatpush.xpose.msra.mxu0 0.0
    %717 = vmatpush.xpose.msra.mxu0 0.0
    %718 = vmatpush.xpose.msra.mxu0 0.0
    %719 = vmatpush.xpose.msra.mxu0 0.0
    %720 = vmatpush.xpose.msra.mxu0 0.0
    %721 = vmatpush.xpose.msra.mxu0 0.0
    %722 = vmatpush.xpose.msra.mxu0 0.0
    %723 = vmatpush.xpose.msra.mxu0 0.0
    %724 = vmatpush.xpose.msra.mxu0 0.0
    %725 = vmatpush.xpose.msra.mxu0 0.0
    %726 = vmatpush.xpose.msra.mxu0 0.0
    %727 = vmatpush.xpose.msra.mxu0 0.0
    %728 = vmatpush.xpose.msra.mxu0 %v473
    %729 = vmatpush.xpose.msra.mxu0 %v470
    %730 = vmatmul.f32.gmra.mxu0 %v642
    %v731 = vpop.f32.mrf.mxu0
    %v732 = vadd.f32 0.0, %v731
    %733 = vdwg.mxu0
    %734 = vmatpush.xpose.msra.mxu0 0.0
    %735 = vmatpush.xpose.msra.mxu0 0.0
    %736 = vmatpush.xpose.msra.mxu0 0.0
    %737 = vmatpush.xpose.msra.mxu0 0.0
    %738 = vmatpush.xpose.msra.mxu0 0.0
    %739 = vmatpush.xpose.msra.mxu0 0.0
    %740 = vmatpush.xpose.msra.mxu0 0.0
    %741 = vmatpush.xpose.msra.mxu0 0.0
    %742 = vmatpush.xpose.msra.mxu0 0.0
    %743 = vmatpush.xpose.msra.mxu0 0.0
    %744 = vmatpush.xpose.msra.mxu0 0.0
    %745 = vmatpush.xpose.msra.mxu0 0.0
    %746 = vmatpush.xpose.msra.mxu0 0.0
    %747 = vmatpush.xpose.msra.mxu0 0.0
    %748 = vmatpush.xpose.msra.mxu0 %v479
    %749 = vmatpush.xpose.msra.mxu0 %v476
    %750 = vmatmul.f32.gmra.mxu0 %v643
    %v751 = vpop.f32.mrf.mxu0
    %v752 = vadd.f32 0.0, %v751
    %753 = vdwg.mxu0
    %754 = vmatpush.xpose.msra.mxu0 0.0
    %755 = vmatpush.xpose.msra.mxu0 0.0
    %756 = vmatpush.xpose.msra.mxu0 0.0
    %757 = vmatpush.xpose.msra.mxu0 0.0
    %758 = vmatpush.xpose.msra.mxu0 0.0
    %759 = vmatpush.xpose.msra.mxu0 0.0
    %760 = vmatpush.xpose.msra.mxu0 0.0
    %761 = vmatpush.xpose.msra.mxu0 0.0
    %762 = vmatpush.xpose.msra.mxu0 0.0
    %763 = vmatpush.xpose.msra.mxu0 0.0
    %764 = vmatpush.xpose.msra.mxu0 0.0
    %765 = vmatpush.xpose.msra.mxu0 0.0
    %766 = vmatpush.xpose.msra.mxu0 0.0
    %767 = vmatpush.xpose.msra.mxu0 0.0
    %768 = vmatpush.xpose.msra.mxu0 %v485
    %769 = vmatpush.xpose.msra.mxu0 %v482
    %770 = vmatmul.f32.gmra.mxu0 %v644
    %v771 = vpop.f32.mrf.mxu0
    %v772 = vadd.f32 0.0, %v771
    %773 = vdwg.mxu0
    %774 = vmatpush.xpose.msra.mxu0 0.0
    %775 = vmatpush.xpose.msra.mxu0 0.0
    %776 = vmatpush.xpose.msra.mxu0 0.0
    %777 = vmatpush.xpose.msra.mxu0 0.0
    %778 = vmatpush.xpose.msra.mxu0 0.0
    %779 = vmatpush.xpose.msra.mxu0 0.0
    %780 = vmatpush.xpose.msra.mxu0 0.0
    %781 = vmatpush.xpose.msra.mxu0 0.0
    %782 = vmatpush.xpose.msra.mxu0 0.0
    %783 = vmatpush.xpose.msra.mxu0 0.0
    %784 = vmatpush.xpose.msra.mxu0 0.0
    %785 = vmatpush.xpose.msra.mxu0 0.0
    %786 = vmatpush.xpose.msra.mxu0 0.0
    %787 = vmatpush.xpose.msra.mxu0 0.0
    %788 = vmatpush.xpose.msra.mxu0 %v491
    %789 = vmatpush.xpose.msra.mxu0 %v488
    %790 = vmatmul.f32.gmra.mxu0 %v645
    %v791 = vpop.f32.mrf.mxu0
    %v792 = vadd.f32 0.0, %v791
    %793 = vdwg.mxu0
    %794 = vmatpush.xpose.msra.mxu0 0.0
    %795 = vmatpush.xpose.msra.mxu0 0.0
    %796 = vmatpush.xpose.msra.mxu0 0.0
    %797 = vmatpush.xpose.msra.mxu0 0.0
    %798 = vmatpush.xpose.msra.mxu0 0.0
    %799 = vmatpush.xpose.msra.mxu0 0.0
    %800 = vmatpush.xpose.msra.mxu0 0.0
    %801 = vmatpush.xpose.msra.mxu0 0.0
    %802 = vmatpush.xpose.msra.mxu0 0.0
    %803 = vmatpush.xpose.msra.mxu0 0.0
    %804 = vmatpush.xpose.msra.mxu0 0.0
    %805 = vmatpush.xpose.msra.mxu0 0.0
    %806 = vmatpush.xpose.msra.mxu0 0.0
    %807 = vmatpush.xpose.msra.mxu0 0.0
    %808 = vmatpush.xpose.msra.mxu0 %v497
    %809 = vmatpush.xpose.msra.mxu0 %v494
    %810 = vmatmul.f32.gmra.mxu0 %v646
    %v811 = vpop.f32.mrf.mxu0
    %v812 = vadd.f32 0.0, %v811
    %813 = vdwg.mxu0
    %vm814 = vcmask 122880
    %v815 = vsel %vm814, %v672, -inf
    %816 = vmax.xlane.f32.xlu0 %v815
    %v817 = vpop.xlane.xlu0 %816
    %v818 = vsel %vm814, %v692, -inf
    %819 = vmax.xlane.f32.xlu0 %v818
    %v820 = vpop.xlane.xlu0 %819
    %v821 = vsel %vm814, %v712, -inf
    %822 = vmax.xlane.f32.xlu0 %v821
    %v823 = vpop.xlane.xlu0 %822
    %v824 = vsel %vm814, %v732, -inf
    %825 = vmax.xlane.f32.xlu0 %v824
    %v826 = vpop.xlane.xlu0 %825
    %v827 = vsel %vm814, %v752, -inf
    %828 = vmax.xlane.f32.xlu0 %v827
    %v829 = vpop.xlane.xlu0 %828
    %v830 = vsel %vm814, %v772, -inf
    %831 = vmax.xlane.f32.xlu0 %v830
    %v832 = vpop.xlane.xlu0 %831
    %v833 = vsel %vm814, %v792, -inf
    %834 = vmax.xlane.f32.xlu0 %v833
    %v835 = vpop.xlane.xlu0 %834
    %v836 = vsel %vm814, %v812, -inf
    %837 = vmax.xlane.f32.xlu0 %v836
    %v838 = vpop.xlane.xlu0 %837
    %v839 = vsub.f32 %v672, %v817
    %v840 = vsub.f32 %v692, %v820
    %v841 = vsub.f32 %v712, %v823
    %v842 = vsub.f32 %v732, %v826
    %v843 = vsub.f32 %v752, %v829
    %v844 = vsub.f32 %v772, %v832
    %v845 = vsub.f32 %v792, %v835
    %v846 = vsub.f32 %v812, %v838
    %v847 = vmul.f32 %v839, 1.442695
    %v848 = vpow.pop %v847
    %v849 = vmul.f32 %v840, 1.442695
    %v850 = vpow.pop %v849
    %v851 = vmul.f32 %v841, 1.442695
    %v852 = vpow.pop %v851
    %v853 = vmul.f32 %v842, 1.442695
    %v854 = vpow.pop %v853
    %v855 = vmul.f32 %v843, 1.442695
    %v856 = vpow.pop %v855
    %v857 = vmul.f32 %v844, 1.442695
    %v858 = vpow.pop %v857
    %v859 = vmul.f32 %v845, 1.442695
    %v860 = vpow.pop %v859
    %v861 = vmul.f32 %v846, 1.442695
    %v862 = vpow.pop %v861
    %v863 = vsel %vm814, %v848, 0.0
    %864 = vadd.xlane.f32.xlu0 %v863
    %v865 = vpop.xlane.xlu0 %864
    %v866 = vsel %vm814, %v850, 0.0
    %867 = vadd.xlane.f32.xlu0 %v866
    %v868 = vpop.xlane.xlu0 %867
    %v869 = vsel %vm814, %v852, 0.0
    %870 = vadd.xlane.f32.xlu0 %v869
    %v871 = vpop.xlane.xlu0 %870
    %v872 = vsel %vm814, %v854, 0.0
    %873 = vadd.xlane.f32.xlu0 %v872
    %v874 = vpop.xlane.xlu0 %873
    %v875 = vsel %vm814, %v856, 0.0
    %876 = vadd.xlane.f32.xlu0 %v875
    %v877 = vpop.xlane.xlu0 %876
    %v878 = vsel %vm814, %v858, 0.0
    %879 = vadd.xlane.f32.xlu0 %v878
    %v880 = vpop.xlane.xlu0 %879
    %v881 = vsel %vm814, %v860, 0.0
    %882 = vadd.xlane.f32.xlu0 %v881
    %v883 = vpop.xlane.xlu0 %882
    %v884 = vsel %vm814, %v862, 0.0
    %885 = vadd.xlane.f32.xlu0 %v884
    %v886 = vpop.xlane.xlu0 %885
    %v887 = vrcp.pop %v865
    %v888 = vrcp.pop %v868
    %v889 = vrcp.pop %v871
    %v890 = vrcp.pop %v874
    %v891 = vrcp.pop %v877
    %v892 = vrcp.pop %v880
    %v893 = vrcp.pop %v883
    %v894 = vrcp.pop %v886
    %v895 = vmul.f32 %v848, %v887
    %v896 = vmul.f32 %v850, %v888
    %v897 = vmul.f32 %v852, %v889
    %v898 = vmul.f32 %v854, %v890
    %v899 = vmul.f32 %v856, %v891
    %v900 = vmul.f32 %v858, %v892
    %v901 = vmul.f32 %v860, %v893
    %v902 = vmul.f32 %v862, %v894
    %vm903 = vcmask 130048
    %v905 = vsel %vm903, %v895, 0
    %907 = vmatpush.msra.mxu0 0.0
    %908 = vmatpush.msra.mxu0 0.0
    %909 = vmatpush.msra.mxu0 0.0
    %910 = vmatpush.msra.mxu0 0.0
    %911 = vmatpush.msra.mxu0 0.0
    %912 = vmatpush.msra.mxu0 0.0
    %913 = vmatpush.msra.mxu0 0.0
    %914 = vmatpush.msra.mxu0 0.0
    %915 = vmatpush.msra.mxu0 0.0
    %916 = vmatpush.msra.mxu0 0.0
    %917 = vmatpush.msra.mxu0 0.0
    %918 = vmatpush.msra.mxu0 0.0
    %919 = vmatpush.msra.mxu0 0.0
    %920 = vmatpush.msra.mxu0 0.0
    %921 = vmatpush.msra.mxu0 %v112
    %922 = vmatpush.msra.mxu0 %v111
    %923 = vmatmul.f32.gmra.mxu0 %v905
    %v924 = vpop.f32.mrf.mxu0
    %v925 = vadd.f32 0.0, %v924
    %926 = vdwg.mxu0
    %v928 = vsel %vm903, %v896, 0
    %930 = vmatpush.msra.mxu0 0.0
    %931 = vmatpush.msra.mxu0 0.0
    %932 = vmatpush.msra.mxu0 0.0
    %933 = vmatpush.msra.mxu0 0.0
    %934 = vmatpush.msra.mxu0 0.0
    %935 = vmatpush.msra.mxu0 0.0
    %936 = vmatpush.msra.mxu0 0.0
    %937 = vmatpush.msra.mxu0 0.0
    %938 = vmatpush.msra.mxu0 0.0
    %939 = vmatpush.msra.mxu0 0.0
    %940 = vmatpush.msra.mxu0 0.0
    %941 = vmatpush.msra.mxu0 0.0
    %942 = vmatpush.msra.mxu0 0.0
    %943 = vmatpush.msra.mxu0 0.0
    %944 = vmatpush.msra.mxu0 %v114
    %945 = vmatpush.msra.mxu0 %v113
    %946 = vmatmul.f32.gmra.mxu0 %v928
    %v947 = vpop.f32.mrf.mxu0
    %v948 = vadd.f32 0.0, %v947
    %949 = vdwg.mxu0
    %v951 = vsel %vm903, %v897, 0
    %953 = vmatpush.msra.mxu0 0.0
    %954 = vmatpush.msra.mxu0 0.0
    %955 = vmatpush.msra.mxu0 0.0
    %956 = vmatpush.msra.mxu0 0.0
    %957 = vmatpush.msra.mxu0 0.0
    %958 = vmatpush.msra.mxu0 0.0
    %959 = vmatpush.msra.mxu0 0.0
    %960 = vmatpush.msra.mxu0 0.0
    %961 = vmatpush.msra.mxu0 0.0
    %962 = vmatpush.msra.mxu0 0.0
    %963 = vmatpush.msra.mxu0 0.0
    %964 = vmatpush.msra.mxu0 0.0
    %965 = vmatpush.msra.mxu0 0.0
    %966 = vmatpush.msra.mxu0 0.0
    %967 = vmatpush.msra.mxu0 %v116
    %968 = vmatpush.msra.mxu0 %v115
    %969 = vmatmul.f32.gmra.mxu0 %v951
    %v970 = vpop.f32.mrf.mxu0
    %v971 = vadd.f32 0.0, %v970
    %972 = vdwg.mxu0
    %v974 = vsel %vm903, %v898, 0
    %976 = vmatpush.msra.mxu0 0.0
    %977 = vmatpush.msra.mxu0 0.0
    %978 = vmatpush.msra.mxu0 0.0
    %979 = vmatpush.msra.mxu0 0.0
    %980 = vmatpush.msra.mxu0 0.0
    %981 = vmatpush.msra.mxu0 0.0
    %982 = vmatpush.msra.mxu0 0.0
    %983 = vmatpush.msra.mxu0 0.0
    %984 = vmatpush.msra.mxu0 0.0
    %985 = vmatpush.msra.mxu0 0.0
    %986 = vmatpush.msra.mxu0 0.0
    %987 = vmatpush.msra.mxu0 0.0
    %988 = vmatpush.msra.mxu0 0.0
    %989 = vmatpush.msra.mxu0 0.0
    %990 = vmatpush.msra.mxu0 %v118
    %991 = vmatpush.msra.mxu0 %v117
    %992 = vmatmul.f32.gmra.mxu0 %v974
    %v993 = vpop.f32.mrf.mxu0
    %v994 = vadd.f32 0.0, %v993
    %995 = vdwg.mxu0
    %v997 = vsel %vm903, %v899, 0
    %999 = vmatpush.msra.mxu0 0.0
    %1000 = vmatpush.msra.mxu0 0.0
    %1001 = vmatpush.msra.mxu0 0.0
    %1002 = vmatpush.msra.mxu0 0.0
    %1003 = vmatpush.msra.mxu0 0.0
    %1004 = vmatpush.msra.mxu0 0.0
    %1005 = vmatpush.msra.mxu0 0.0
    %1006 = vmatpush.msra.mxu0 0.0
    %1007 = vmatpush.msra.mxu0 0.0
    %1008 = vmatpush.msra.mxu0 0.0
    %1009 = vmatpush.msra.mxu0 0.0
    %1010 = vmatpush.msra.mxu0 0.0
    %1011 = vmatpush.msra.mxu0 0.0
    %1012 = vmatpush.msra.mxu0 0.0
    %1013 = vmatpush.msra.mxu0 %v120
    %1014 = vmatpush.msra.mxu0 %v119
    %1015 = vmatmul.f32.gmra.mxu0 %v997
    %v1016 = vpop.f32.mrf.mxu0
    %v1017 = vadd.f32 0.0, %v1016
    %1018 = vdwg.mxu0
    %v1020 = vsel %vm903, %v900, 0
    %1022 = vmatpush.msra.mxu0 0.0
    %1023 = vmatpush.msra.mxu0 0.0
    %1024 = vmatpush.msra.mxu0 0.0
    %1025 = vmatpush.msra.mxu0 0.0
    %1026 = vmatpush.msra.mxu0 0.0
    %1027 = vmatpush.msra.mxu0 0.0
    %1028 = vmatpush.msra.mxu0 0.0
    %1029 = vmatpush.msra.mxu0 0.0
    %1030 = vmatpush.msra.mxu0 0.0
    %1031 = vmatpush.msra.mxu0 0.0
    %1032 = vmatpush.msra.mxu0 0.0
    %1033 = vmatpush.msra.mxu0 0.0
    %1034 = vmatpush.msra.mxu0 0.0
    %1035 = vmatpush.msra.mxu0 0.0
    %1036 = vmatpush.msra.mxu0 %v122
    %1037 = vmatpush.msra.mxu0 %v121
    %1038 = vmatmul.f32.gmra.mxu0 %v1020
    %v1039 = vpop.f32.mrf.mxu0
    %v1040 = vadd.f32 0.0, %v1039
    %1041 = vdwg.mxu0
    %v1043 = vsel %vm903, %v901, 0
    %1045 = vmatpush.msra.mxu0 0.0
    %1046 = vmatpush.msra.mxu0 0.0
    %1047 = vmatpush.msra.mxu0 0.0
    %1048 = vmatpush.msra.mxu0 0.0
    %1049 = vmatpush.msra.mxu0 0.0
    %1050 = vmatpush.msra.mxu0 0.0
    %1051 = vmatpush.msra.mxu0 0.0
    %1052 = vmatpush.msra.mxu0 0.0
    %1053 = vmatpush.msra.mxu0 0.0
    %1054 = vmatpush.msra.mxu0 0.0
    %1055 = vmatpush.msra.mxu0 0.0
    %1056 = vmatpush.msra.mxu0 0.0
    %1057 = vmatpush.msra.mxu0 0.0
    %1058 = vmatpush.msra.mxu0 0.0
    %1059 = vmatpush.msra.mxu0 %v124
    %1060 = vmatpush.msra.mxu0 %v123
    %1061 = vmatmul.f32.gmra.mxu0 %v1043
    %v1062 = vpop.f32.mrf.mxu0
    %v1063 = vadd.f32 0.0, %v1062
    %1064 = vdwg.mxu0
    %v1066 = vsel %vm903, %v902, 0
    %1068 = vmatpush.msra.mxu0 0.0
    %1069 = vmatpush.msra.mxu0 0.0
    %1070 = vmatpush.msra.mxu0 0.0
    %1071 = vmatpush.msra.mxu0 0.0
    %1072 = vmatpush.msra.mxu0 0.0
    %1073 = vmatpush.msra.mxu0 0.0
    %1074 = vmatpush.msra.mxu0 0.0
    %1075 = vmatpush.msra.mxu0 0.0
    %1076 = vmatpush.msra.mxu0 0.0
    %1077 = vmatpush.msra.mxu0 0.0
    %1078 = vmatpush.msra.mxu0 0.0
    %1079 = vmatpush.msra.mxu0 0.0
    %1080 = vmatpush.msra.mxu0 0.0
    %1081 = vmatpush.msra.mxu0 0.0
    %1082 = vmatpush.msra.mxu0 %v126
    %1083 = vmatpush.msra.mxu0 %v125
    %1084 = vmatmul.f32.gmra.mxu0 %v1066
    %v1085 = vpop.f32.mrf.mxu0
    %v1086 = vadd.f32 0.0, %v1085
    %1087 = vdwg.mxu0
    %v1088 = vld [vmem:[#allocation5] sm:$0xff]
    %v1089 = vld [vmem:[#allocation5 + $0x8] sm:$0xff]
    %v1090 = vld [vmem:[#allocation5 + $0x10] sm:$0xff]
    %v1091 = vld [vmem:[#allocation5 + $0x18] sm:$0xff]
    %v1092 = vld [vmem:[#allocation5 + $0x20] sm:$0xff]
    %v1093 = vld [vmem:[#allocation5 + $0x28] sm:$0xff]
    %v1094 = vld [vmem:[#allocation5 + $0x30] sm:$0xff]
    %v1095 = vld [vmem:[#allocation5 + $0x38] sm:$0xff]
    %v1096 = vld [vmem:[#allocation5 + $0x40] sm:$0xff]
    %v1097 = vld [vmem:[#allocation5 + $0x48] sm:$0xff]
    %v1098 = vld [vmem:[#allocation5 + $0x50] sm:$0xff]
    %v1099 = vld [vmem:[#allocation5 + $0x58] sm:$0xff]
    %v1100 = vld [vmem:[#allocation5 + $0x60] sm:$0xff]
    %v1101 = vld [vmem:[#allocation5 + $0x68] sm:$0xff]
    %v1102 = vld [vmem:[#allocation5 + $0x70] sm:$0xff]
    %v1103 = vld [vmem:[#allocation5 + $0x78] sm:$0xff]
    %v1104 = vld [vmem:[#allocation10] sm:$0xff]
    %v1105 = vld [vmem:[#allocation10 + $0x8] sm:$0xff]
    %v1106 = vld [vmem:[#allocation10 + $0x10] sm:$0xff]
    %v1107 = vld [vmem:[#allocation10 + $0x18] sm:$0xff]
    %v1108 = vld [vmem:[#allocation10 + $0x20] sm:$0xff]
    %v1109 = vld [vmem:[#allocation10 + $0x28] sm:$0xff]
    %v1110 = vld [vmem:[#allocation10 + $0x30] sm:$0xff]
    %v1111 = vld [vmem:[#allocation10 + $0x38] sm:$0xff]
    %v1112 = vld [vmem:[#allocation10 + $0x40] sm:$0xff]
    %v1113 = vld [vmem:[#allocation10 + $0x48] sm:$0xff]
    %v1114 = vld [vmem:[#allocation10 + $0x50] sm:$0xff]
    %v1115 = vld [vmem:[#allocation10 + $0x58] sm:$0xff]
    %v1116 = vld [vmem:[#allocation10 + $0x60] sm:$0xff]
    %v1117 = vld [vmem:[#allocation10 + $0x68] sm:$0xff]
    %v1118 = vld [vmem:[#allocation10 + $0x70] sm:$0xff]
    %v1119 = vld [vmem:[#allocation10 + $0x78] sm:$0xff]
    %v1120 = vld [vmem:[#allocation10 + $0x80] sm:$0xff]
    %v1121 = vld [vmem:[#allocation10 + $0x88] sm:$0xff]
    %v1122 = vld [vmem:[#allocation10 + $0x90] sm:$0xff]
    %v1123 = vld [vmem:[#allocation10 + $0x98] sm:$0xff]
    %v1124 = vld [vmem:[#allocation10 + $0xa0] sm:$0xff]
    %v1125 = vld [vmem:[#allocation10 + $0xa8] sm:$0xff]
    %v1126 = vld [vmem:[#allocation10 + $0xb0] sm:$0xff]
    %v1127 = vld [vmem:[#allocation10 + $0xb8] sm:$0xff]
    %v1128 = vld [vmem:[#allocation10 + $0xc0] sm:$0xff]
    %v1129 = vld [vmem:[#allocation10 + $0xc8] sm:$0xff]
    %v1130 = vld [vmem:[#allocation10 + $0xd0] sm:$0xff]
    %v1131 = vld [vmem:[#allocation10 + $0xd8] sm:$0xff]
    %v1132 = vld [vmem:[#allocation10 + $0xe0] sm:$0xff]
    %v1133 = vld [vmem:[#allocation10 + $0xe8] sm:$0xff]
    %v1134 = vld [vmem:[#allocation10 + $0xf0] sm:$0xff]
    %v1135 = vld [vmem:[#allocation10 + $0xf8] sm:$0xff]
    %v1136 = vld [vmem:[#allocation10 + $0x100] sm:$0xff]
    %v1137 = vld [vmem:[#allocation10 + $0x108] sm:$0xff]
    %v1138 = vld [vmem:[#allocation10 + $0x110] sm:$0xff]
    %v1139 = vld [vmem:[#allocation10 + $0x118] sm:$0xff]
    %v1140 = vld [vmem:[#allocation10 + $0x120] sm:$0xff]
    %v1141 = vld [vmem:[#allocation10 + $0x128] sm:$0xff]
    %v1142 = vld [vmem:[#allocation10 + $0x130] sm:$0xff]
    %v1143 = vld [vmem:[#allocation10 + $0x138] sm:$0xff]
    %v1144 = vld [vmem:[#allocation10 + $0x140] sm:$0xff]
    %v1145 = vld [vmem:[#allocation10 + $0x148] sm:$0xff]
    %v1146 = vld [vmem:[#allocation10 + $0x150] sm:$0xff]
    %v1147 = vld [vmem:[#allocation10 + $0x158] sm:$0xff]
    %v1148 = vld [vmem:[#allocation10 + $0x160] sm:$0xff]
    %v1149 = vld [vmem:[#allocation10 + $0x168] sm:$0xff]
    %v1150 = vld [vmem:[#allocation10 + $0x170] sm:$0xff]
    %v1151 = vld [vmem:[#allocation10 + $0x178] sm:$0xff]
    %v1152 = vld [vmem:[#allocation10 + $0x180] sm:$0xff]
    %v1153 = vld [vmem:[#allocation10 + $0x188] sm:$0xff]
    %v1154 = vld [vmem:[#allocation10 + $0x190] sm:$0xff]
    %v1155 = vld [vmem:[#allocation10 + $0x198] sm:$0xff]
    %v1156 = vld [vmem:[#allocation10 + $0x1a0] sm:$0xff]
    %v1157 = vld [vmem:[#allocation10 + $0x1a8] sm:$0xff]
    %v1158 = vld [vmem:[#allocation10 + $0x1b0] sm:$0xff]
    %v1159 = vld [vmem:[#allocation10 + $0x1b8] sm:$0xff]
    %v1160 = vld [vmem:[#allocation10 + $0x1c0] sm:$0xff]
    %v1161 = vld [vmem:[#allocation10 + $0x1c8] sm:$0xff]
    %v1162 = vld [vmem:[#allocation10 + $0x1d0] sm:$0xff]
    %v1163 = vld [vmem:[#allocation10 + $0x1d8] sm:$0xff]
    %v1164 = vld [vmem:[#allocation10 + $0x1e0] sm:$0xff]
    %v1165 = vld [vmem:[#allocation10 + $0x1e8] sm:$0xff]
    %v1166 = vld [vmem:[#allocation10 + $0x1f0] sm:$0xff]
    %v1167 = vld [vmem:[#allocation10 + $0x1f8] sm:$0xff]
    %1168 = vmatpush.msra.mxu0 %v1164
    %1169 = vmatpush.msra.mxu0 %v1160
    %1170 = vmatpush.msra.mxu0 %v1156
    %1171 = vmatpush.msra.mxu0 %v1152
    %1172 = vmatpush.msra.mxu0 %v1148
    %1173 = vmatpush.msra.mxu0 %v1144
    %1174 = vmatpush.msra.mxu0 %v1140
    %1175 = vmatpush.msra.mxu0 %v1136
    %1176 = vmatpush.msra.mxu0 %v1132
    %1177 = vmatpush.msra.mxu0 %v1128
    %1178 = vmatpush.msra.mxu0 %v1124
    %1179 = vmatpush.msra.mxu0 %v1120
    %1180 = vmatpush.msra.mxu0 %v1116
    %1181 = vmatpush.msra.mxu0 %v1112
    %1182 = vmatpush.msra.mxu0 %v1108
    %1183 = vmatpush.msra.mxu0 %v1104
    %1184 = vmatmul.f32.gmra.mxu0 %v638
    %v1185 = vpop.f32.mrf.mxu0
    %v1186 = vadd.f32 0.0, %v1185
    %1187 = vdwg.mxu0
    %1188 = vmatpush.msra.mxu0 %v1165
    %1189 = vmatpush.msra.mxu0 %v1161
    %1190 = vmatpush.msra.mxu0 %v1157
    %1191 = vmatpush.msra.mxu0 %v1153
    %1192 = vmatpush.msra.mxu0 %v1149
    %1193 = vmatpush.msra.mxu0 %v1145
    %1194 = vmatpush.msra.mxu0 %v1141
    %1195 = vmatpush.msra.mxu0 %v1137
    %1196 = vmatpush.msra.mxu0 %v1133
    %1197 = vmatpush.msra.mxu0 %v1129
    %1198 = vmatpush.msra.mxu0 %v1125
    %1199 = vmatpush.msra.mxu0 %v1121
    %1200 = vmatpush.msra.mxu0 %v1117
    %1201 = vmatpush.msra.mxu0 %v1113
    %1202 = vmatpush.msra.mxu0 %v1109
    %1203 = vmatpush.msra.mxu0 %v1105
    %1204 = vmatmul.f32.gmra.mxu0 %v638
    %v1205 = vpop.f32.mrf.mxu0
    %v1206 = vadd.f32 0.0, %v1205
    %1207 = vdwg.mxu0
    %1208 = vmatpush.msra.mxu0 %v1166
    %1209 = vmatpush.msra.mxu0 %v1162
    %1210 = vmatpush.msra.mxu0 %v1158
    %1211 = vmatpush.msra.mxu0 %v1154
    %1212 = vmatpush.msra.mxu0 %v1150
    %1213 = vmatpush.msra.mxu0 %v1146
    %1214 = vmatpush.msra.mxu0 %v1142
    %1215 = vmatpush.msra.mxu0 %v1138
    %1216 = vmatpush.msra.mxu0 %v1134
    %1217 = vmatpush.msra.mxu0 %v1130
    %1218 = vmatpush.msra.mxu0 %v1126
    %1219 = vmatpush.msra.mxu0 %v1122
    %1220 = vmatpush.msra.mxu0 %v1118
    %1221 = vmatpush.msra.mxu0 %v1114
    %1222 = vmatpush.msra.mxu0 %v1110
    %1223 = vmatpush.msra.mxu0 %v1106
    %1224 = vmatmul.f32.gmra.mxu0 %v638
    %v1225 = vpop.f32.mrf.mxu0
    %v1226 = vadd.f32 0.0, %v1225
    %1227 = vdwg.mxu0
    %1228 = vmatpush.msra.mxu0 %v1167
    %1229 = vmatpush.msra.mxu0 %v1163
    %1230 = vmatpush.msra.mxu0 %v1159
    %1231 = vmatpush.msra.mxu0 %v1155
    %1232 = vmatpush.msra.mxu0 %v1151
    %1233 = vmatpush.msra.mxu0 %v1147
    %1234 = vmatpush.msra.mxu0 %v1143
    %1235 = vmatpush.msra.mxu0 %v1139
    %1236 = vmatpush.msra.mxu0 %v1135
    %1237 = vmatpush.msra.mxu0 %v1131
    %1238 = vmatpush.msra.mxu0 %v1127
    %1239 = vmatpush.msra.mxu0 %v1123
    %1240 = vmatpush.msra.mxu0 %v1119
    %1241 = vmatpush.msra.mxu0 %v1115
    %1242 = vmatpush.msra.mxu0 %v1111
    %1243 = vmatpush.msra.mxu0 %v1107
    %1244 = vmatmul.f32.gmra.mxu0 %v638
    %v1245 = vpop.f32.mrf.mxu0
    %v1246 = vadd.f32 0.0, %v1245
    %1247 = vdwg.mxu0
    %v1256 = vrot.slane %v948, 7
    %v1257 = vsel %vm602, %v1256, %v925
    %v1258 = vrot.slane %v971, 6
    %v1259 = vsel %vm604, %v1258, %v1257
    %v1260 = vrot.slane %v994, 5
    %v1261 = vsel %vm606, %v1260, %v1259
    %v1262 = vrot.slane %v1017, 4
    %v1263 = vsel %vm608, %v1262, %v1261
    %v1264 = vrot.slane %v1040, 3
    %v1265 = vsel %vm610, %v1264, %v1263
    %v1266 = vrot.slane %v1063, 2
    %v1267 = vsel %vm612, %v1266, %v1265
    %v1268 = vrot.slane %v1086, 1
    %v1269 = vsel %vm614, %v1268, %v1267
    %v1270 = vsel %vm161, %v1269, 0
    %1272 = vmatpush.msra.mxu0 0.0
    %1273 = vmatpush.msra.mxu0 0.0
    %1274 = vmatpush.msra.mxu0 0.0
    %1275 = vmatpush.msra.mxu0 0.0
    %1276 = vmatpush.msra.mxu0 0.0
    %1277 = vmatpush.msra.mxu0 0.0
    %1278 = vmatpush.msra.mxu0 0.0
    %1279 = vmatpush.msra.mxu0 0.0
    %1280 = vmatpush.msra.mxu0 0.0
    %1281 = vmatpush.msra.mxu0 0.0
    %1282 = vmatpush.msra.mxu0 0.0
    %1283 = vmatpush.msra.mxu0 0.0
    %1284 = vmatpush.msra.mxu0 %v1100
    %1285 = vmatpush.msra.mxu0 %v1096
    %1286 = vmatpush.msra.mxu0 %v1092
    %1287 = vmatpush.msra.mxu0 %v1088
    %1288 = vmatmul.f32.gmra.mxu0 %v1270
    %v1289 = vpop.f32.mrf.mxu0
    %v1290 = vadd.f32 %v1186, %v1289
    %1291 = vdwg.mxu0
    %1292 = vmatpush.msra.mxu0 0.0
    %1293 = vmatpush.msra.mxu0 0.0
    %1294 = vmatpush.msra.mxu0 0.0
    %1295 = vmatpush.msra.mxu0 0.0
    %1296 = vmatpush.msra.mxu0 0.0
    %1297 = vmatpush.msra.mxu0 0.0
    %1298 = vmatpush.msra.mxu0 0.0
    %1299 = vmatpush.msra.mxu0 0.0
    %1300 = vmatpush.msra.mxu0 0.0
    %1301 = vmatpush.msra.mxu0 0.0
    %1302 = vmatpush.msra.mxu0 0.0
    %1303 = vmatpush.msra.mxu0 0.0
    %1304 = vmatpush.msra.mxu0 %v1101
    %1305 = vmatpush.msra.mxu0 %v1097
    %1306 = vmatpush.msra.mxu0 %v1093
    %1307 = vmatpush.msra.mxu0 %v1089
    %1308 = vmatmul.f32.gmra.mxu0 %v1270
    %v1309 = vpop.f32.mrf.mxu0
    %v1310 = vadd.f32 %v1206, %v1309
    %1311 = vdwg.mxu0
    %1312 = vmatpush.msra.mxu0 0.0
    %1313 = vmatpush.msra.mxu0 0.0
    %1314 = vmatpush.msra.mxu0 0.0
    %1315 = vmatpush.msra.mxu0 0.0
    %1316 = vmatpush.msra.mxu0 0.0
    %1317 = vmatpush.msra.mxu0 0.0
    %1318 = vmatpush.msra.mxu0 0.0
    %1319 = vmatpush.msra.mxu0 0.0
    %1320 = vmatpush.msra.mxu0 0.0
    %1321 = vmatpush.msra.mxu0 0.0
    %1322 = vmatpush.msra.mxu0 0.0
    %1323 = vmatpush.msra.mxu0 0.0
    %1324 = vmatpush.msra.mxu0 %v1102
    %1325 = vmatpush.msra.mxu0 %v1098
    %1326 = vmatpush.msra.mxu0 %v1094
    %1327 = vmatpush.msra.mxu0 %v1090
    %1328 = vmatmul.f32.gmra.mxu0 %v1270
    %v1329 = vpop.f32.mrf.mxu0
    %v1330 = vadd.f32 %v1226, %v1329
    %1331 = vdwg.mxu0
    %1332 = vmatpush.msra.mxu0 0.0
    %1333 = vmatpush.msra.mxu0 0.0
    %1334 = vmatpush.msra.mxu0 0.0
    %1335 = vmatpush.msra.mxu0 0.0
    %1336 = vmatpush.msra.mxu0 0.0
    %1337 = vmatpush.msra.mxu0 0.0
    %1338 = vmatpush.msra.mxu0 0.0
    %1339 = vmatpush.msra.mxu0 0.0
    %1340 = vmatpush.msra.mxu0 0.0
    %1341 = vmatpush.msra.mxu0 0.0
    %1342 = vmatpush.msra.mxu0 0.0
    %1343 = vmatpush.msra.mxu0 0.0
    %1344 = vmatpush.msra.mxu0 %v1103
    %1345 = vmatpush.msra.mxu0 %v1099
    %1346 = vmatpush.msra.mxu0 %v1095
    %1347 = vmatpush.msra.mxu0 %v1091
    %1348 = vmatmul.f32.gmra.mxu0 %v1270
    %v1349 = vpop.f32.mrf.mxu0
    %v1350 = vadd.f32 %v1246, %v1349
    %1351 = vdwg.mxu0
    %s1352 = smul.u32 0, 4
    %s1353 = smul.addr %s1352, 8
    %s1354 = scalar_lea.vmem [#allocation2], %s1353
    %v1355 = vld [vmem:[%s1354] sm:$0xff]
    %v1356 = vld [vmem:[%s1354 + $0x8] sm:$0xff]
    %v1357 = vld [vmem:[%s1354 + $0x10] sm:$0xff]
    %v1358 = vld [vmem:[%s1354 + $0x18] sm:$0xff]
    %v1359 = vadd.f32 %v1290, %v1355
    %v1360 = vadd.f32 %v1310, %v1356
    %v1361 = vadd.f32 %v1330, %v1357
    %v1362 = vadd.f32 %v1350, %v1358
    %v1363 = vxor.u32 %v1359, 2147483648
    %v1364 = vmul.f32 %v1363, 1.442695
    %v1365 = vpow.pop %v1364
    %v1366 = vadd.f32 %v1365, 1.0
    %v1367 = vrcp.pop %v1366
    %v1368 = vmul.f32 %v1366, %v1367
    %v1369 = vsub.f32 1.0, %v1368
    %v1370 = vmul.f32 %v1367, %v1369
    %v1371 = vadd.f32 %v1367, %v1370
    %vm1372 = vweird.f32 %v1366
    %vm1373 = vweird.f32 %v1367
    %vm1374 = vmor %vm1372, %vm1373
    %v1375 = vsel %vm1374, %v1367, %v1371
    %v1376 = vand.u32 2147483647, %v1366
    %vm1377 = vcmp.eq.f32.partialorder %v1376, 8.507059e+37
    %v1378 = vand.u32 %v1366, 2147483648
    %v1379 = vor.u32 1.1754944e-38, %v1378
    %v1380 = vsel %vm1377, %v1379, %v1375
    %v1381 = vmul.f32 1.0, %v1380
    %v1382 = vxor.u32 %v1360, 2147483648
    %v1383 = vmul.f32 %v1382, 1.442695
    %v1384 = vpow.pop %v1383
    %v1385 = vadd.f32 %v1384, 1.0
    %v1386 = vrcp.pop %v1385
    %v1387 = vmul.f32 %v1385, %v1386
    %v1388 = vsub.f32 1.0, %v1387
    %v1389 = vmul.f32 %v1386, %v1388
    %v1390 = vadd.f32 %v1386, %v1389
    %vm1391 = vweird.f32 %v1385
    %vm1392 = vweird.f32 %v1386
    %vm1393 = vmor %vm1391, %vm1392
    %v1394 = vsel %vm1393, %v1386, %v1390
    %v1395 = vand.u32 2147483647, %v1385
    %vm1396 = vcmp.eq.f32.partialorder %v1395, 8.507059e+37
    %v1397 = vand.u32 %v1385, 2147483648
    %v1398 = vor.u32 1.1754944e-38, %v1397
    %v1399 = vsel %vm1396, %v1398, %v1394
    %v1400 = vmul.f32 1.0, %v1399
    %v1401 = vtanh.pop %v1361
    %v1402 = vxor.u32 %v1362, 2147483648
    %v1403 = vmul.f32 %v1402, 1.442695
    %v1404 = vpow.pop %v1403
    %v1405 = vadd.f32 %v1404, 1.0
    %v1406 = vrcp.pop %v1405
    %v1407 = vmul.f32 %v1405, %v1406
    %v1408 = vsub.f32 1.0, %v1407
    %v1409 = vmul.f32 %v1406, %v1408
    %v1410 = vadd.f32 %v1406, %v1409
    %vm1411 = vweird.f32 %v1405
    %vm1412 = vweird.f32 %v1406
    %vm1413 = vmor %vm1411, %vm1412
    %v1414 = vsel %vm1413, %v1406, %v1410
    %v1415 = vand.u32 2147483647, %v1405
    %vm1416 = vcmp.eq.f32.partialorder %v1415, 8.507059e+37
    %v1417 = vand.u32 %v1405, 2147483648
    %v1418 = vor.u32 1.1754944e-38, %v1417
    %v1419 = vsel %vm1416, %v1418, %v1414
    %v1420 = vmul.f32 1.0, %v1419
    %v1421 = vmul.f32 %v1400, %v638
    %v1422 = vmul.f32 %v1381, %v1401
    %v1423 = vadd.f32 %v1421, %v1422
    %v1424 = vtanh.pop %v1423
    %v1425 = vmul.f32 %v1420, %v1424
    %1426 = vst [vmem:[#allocation3] sm:$0xff] %v1425
    %1428 = vst.msk [vmem:[#allocation4] sm:$0xff] %vm161, %v1269
    %v1430 = vrot.slane %v1425, 1
    %v1431 = vrot.slane %v1425, 2
    %v1432 = vrot.slane %v1425, 3
    %v1433 = vrot.slane %v1425, 4
    %v1434 = vrot.slane %v1425, 5
    %v1435 = vrot.slane %v1425, 6
    %v1436 = vrot.slane %v1425, 7
    %1444 = vmatpush.xpose.msra.mxu0 0.0
    %1445 = vmatpush.xpose.msra.mxu0 0.0
    %1446 = vmatpush.xpose.msra.mxu0 0.0
    %1447 = vmatpush.xpose.msra.mxu0 0.0
    %1448 = vmatpush.xpose.msra.mxu0 0.0
    %1449 = vmatpush.xpose.msra.mxu0 0.0
    %1450 = vmatpush.xpose.msra.mxu0 0.0
    %1451 = vmatpush.xpose.msra.mxu0 0.0
    %1452 = vmatpush.xpose.msra.mxu0 0.0
    %1453 = vmatpush.xpose.msra.mxu0 0.0
    %1454 = vmatpush.xpose.msra.mxu0 0.0
    %1455 = vmatpush.xpose.msra.mxu0 0.0
    %1456 = vmatpush.xpose.msra.mxu0 0.0
    %1457 = vmatpush.xpose.msra.mxu0 0.0
    %1458 = vmatpush.xpose.msra.mxu0 %v455
    %1459 = vmatpush.xpose.msra.mxu0 %v452
    %1460 = vmatmul.f32.gmra.mxu0 %v1425
    %v1461 = vpop.f32.mrf.mxu0
    %v1462 = vadd.f32 0.0, %v1461
    %1463 = vdwg.mxu0
    %1464 = vmatpush.xpose.msra.mxu0 0.0
    %1465 = vmatpush.xpose.msra.mxu0 0.0
    %1466 = vmatpush.xpose.msra.mxu0 0.0
    %1467 = vmatpush.xpose.msra.mxu0 0.0
    %1468 = vmatpush.xpose.msra.mxu0 0.0
    %1469 = vmatpush.xpose.msra.mxu0 0.0
    %1470 = vmatpush.xpose.msra.mxu0 0.0
    %1471 = vmatpush.xpose.msra.mxu0 0.0
    %1472 = vmatpush.xpose.msra.mxu0 0.0
    %1473 = vmatpush.xpose.msra.mxu0 0.0
    %1474 = vmatpush.xpose.msra.mxu0 0.0
    %1475 = vmatpush.xpose.msra.mxu0 0.0
    %1476 = vmatpush.xpose.msra.mxu0 0.0
    %1477 = vmatpush.xpose.msra.mxu0 0.0
    %1478 = vmatpush.xpose.msra.mxu0 %v461
    %1479 = vmatpush.xpose.msra.mxu0 %v458
    %1480 = vmatmul.f32.gmra.mxu0 %v1430
    %v1481 = vpop.f32.mrf.mxu0
    %v1482 = vadd.f32 0.0, %v1481
    %1483 = vdwg.mxu0
    %1484 = vmatpush.xpose.msra.mxu0 0.0
    %1485 = vmatpush.xpose.msra.mxu0 0.0
    %1486 = vmatpush.xpose.msra.mxu0 0.0
    %1487 = vmatpush.xpose.msra.mxu0 0.0
    %1488 = vmatpush.xpose.msra.mxu0 0.0
    %1489 = vmatpush.xpose.msra.mxu0 0.0
    %1490 = vmatpush.xpose.msra.mxu0 0.0
    %1491 = vmatpush.xpose.msra.mxu0 0.0
    %1492 = vmatpush.xpose.msra.mxu0 0.0
    %1493 = vmatpush.xpose.msra.mxu0 0.0
    %1494 = vmatpush.xpose.msra.mxu0 0.0
    %1495 = vmatpush.xpose.msra.mxu0 0.0
    %1496 = vmatpush.xpose.msra.mxu0 0.0
    %1497 = vmatpush.xpose.msra.mxu0 0.0
    %1498 = vmatpush.xpose.msra.mxu0 %v467
    %1499 = vmatpush.xpose.msra.mxu0 %v464
    %1500 = vmatmul.f32.gmra.mxu0 %v1431
    %v1501 = vpop.f32.mrf.mxu0
    %v1502 = vadd.f32 0.0, %v1501
    %1503 = vdwg.mxu0
    %1504 = vmatpush.xpose.msra.mxu0 0.0
    %1505 = vmatpush.xpose.msra.mxu0 0.0
    %1506 = vmatpush.xpose.msra.mxu0 0.0
    %1507 = vmatpush.xpose.msra.mxu0 0.0
    %1508 = vmatpush.xpose.msra.mxu0 0.0
    %1509 = vmatpush.xpose.msra.mxu0 0.0
    %1510 = vmatpush.xpose.msra.mxu0 0.0
    %1511 = vmatpush.xpose.msra.mxu0 0.0
    %1512 = vmatpush.xpose.msra.mxu0 0.0
    %1513 = vmatpush.xpose.msra.mxu0 0.0
    %1514 = vmatpush.xpose.msra.mxu0 0.0
    %1515 = vmatpush.xpose.msra.mxu0 0.0
    %1516 = vmatpush.xpose.msra.mxu0 0.0
    %1517 = vmatpush.xpose.msra.mxu0 0.0
    %1518 = vmatpush.xpose.msra.mxu0 %v473
    %1519 = vmatpush.xpose.msra.mxu0 %v470
    %1520 = vmatmul.f32.gmra.mxu0 %v1432
    %v1521 = vpop.f32.mrf.mxu0
    %v1522 = vadd.f32 0.0, %v1521
    %1523 = vdwg.mxu0
    %1524 = vmatpush.xpose.msra.mxu0 0.0
    %1525 = vmatpush.xpose.msra.mxu0 0.0
    %1526 = vmatpush.xpose.msra.mxu0 0.0
    %1527 = vmatpush.xpose.msra.mxu0 0.0
    %1528 = vmatpush.xpose.msra.mxu0 0.0
    %1529 = vmatpush.xpose.msra.mxu0 0.0
    %1530 = vmatpush.xpose.msra.mxu0 0.0
    %1531 = vmatpush.xpose.msra.mxu0 0.0
    %1532 = vmatpush.xpose.msra.mxu0 0.0
    %1533 = vmatpush.xpose.msra.mxu0 0.0
    %1534 = vmatpush.xpose.msra.mxu0 0.0
    %1535 = vmatpush.xpose.msra.mxu0 0.0
    %1536 = vmatpush.xpose.msra.mxu0 0.0
    %1537 = vmatpush.xpose.msra.mxu0 0.0
    %1538 = vmatpush.xpose.msra.mxu0 %v479
    %1539 = vmatpush.xpose.msra.mxu0 %v476
    %1540 = vmatmul.f32.gmra.mxu0 %v1433
    %v1541 = vpop.f32.mrf.mxu0
    %v1542 = vadd.f32 0.0, %v1541
    %1543 = vdwg.mxu0
    %1544 = vmatpush.xpose.msra.mxu0 0.0
    %1545 = vmatpush.xpose.msra.mxu0 0.0
    %1546 = vmatpush.xpose.msra.mxu0 0.0
    %1547 = vmatpush.xpose.msra.mxu0 0.0
    %1548 = vmatpush.xpose.msra.mxu0 0.0
    %1549 = vmatpush.xpose.msra.mxu0 0.0
    %1550 = vmatpush.xpose.msra.mxu0 0.0
    %1551 = vmatpush.xpose.msra.mxu0 0.0
    %1552 = vmatpush.xpose.msra.mxu0 0.0
    %1553 = vmatpush.xpose.msra.mxu0 0.0
    %1554 = vmatpush.xpose.msra.mxu0 0.0
    %1555 = vmatpush.xpose.msra.mxu0 0.0
    %1556 = vmatpush.xpose.msra.mxu0 0.0
    %1557 = vmatpush.xpose.msra.mxu0 0.0
    %1558 = vmatpush.xpose.msra.mxu0 %v485
    %1559 = vmatpush.xpose.msra.mxu0 %v482
    %1560 = vmatmul.f32.gmra.mxu0 %v1434
    %v1561 = vpop.f32.mrf.mxu0
    %v1562 = vadd.f32 0.0, %v1561
    %1563 = vdwg.mxu0
    %1564 = vmatpush.xpose.msra.mxu0 0.0
    %1565 = vmatpush.xpose.msra.mxu0 0.0
    %1566 = vmatpush.xpose.msra.mxu0 0.0
    %1567 = vmatpush.xpose.msra.mxu0 0.0
    %1568 = vmatpush.xpose.msra.mxu0 0.0
    %1569 = vmatpush.xpose.msra.mxu0 0.0
    %1570 = vmatpush.xpose.msra.mxu0 0.0
    %1571 = vmatpush.xpose.msra.mxu0 0.0
    %1572 = vmatpush.xpose.msra.mxu0 0.0
    %1573 = vmatpush.xpose.msra.mxu0 0.0
    %1574 = vmatpush.xpose.msra.mxu0 0.0
    %1575 = vmatpush.xpose.msra.mxu0 0.0
    %1576 = vmatpush.xpose.msra.mxu0 0.0
    %1577 = vmatpush.xpose.msra.mxu0 0.0
    %1578 = vmatpush.xpose.msra.mxu0 %v491
    %1579 = vmatpush.xpose.msra.mxu0 %v488
    %1580 = vmatmul.f32.gmra.mxu0 %v1435
    %v1581 = vpop.f32.mrf.mxu0
    %v1582 = vadd.f32 0.0, %v1581
    %1583 = vdwg.mxu0
    %1584 = vmatpush.xpose.msra.mxu0 0.0
    %1585 = vmatpush.xpose.msra.mxu0 0.0
    %1586 = vmatpush.xpose.msra.mxu0 0.0
    %1587 = vmatpush.xpose.msra.mxu0 0.0
    %1588 = vmatpush.xpose.msra.mxu0 0.0
    %1589 = vmatpush.xpose.msra.mxu0 0.0
    %1590 = vmatpush.xpose.msra.mxu0 0.0
    %1591 = vmatpush.xpose.msra.mxu0 0.0
    %1592 = vmatpush.xpose.msra.mxu0 0.0
    %1593 = vmatpush.xpose.msra.mxu0 0.0
    %1594 = vmatpush.xpose.msra.mxu0 0.0
    %1595 = vmatpush.xpose.msra.mxu0 0.0
    %1596 = vmatpush.xpose.msra.mxu0 0.0
    %1597 = vmatpush.xpose.msra.mxu0 0.0
    %1598 = vmatpush.xpose.msra.mxu0 %v497
    %1599 = vmatpush.xpose.msra.mxu0 %v494
    %1600 = vmatmul.f32.gmra.mxu0 %v1436
    %v1601 = vpop.f32.mrf.mxu0
    %v1602 = vadd.f32 0.0, %v1601
    %1603 = vdwg.mxu0
    %v1604 = vsel %vm814, %v1462, -inf
    %1605 = vmax.xlane.f32.xlu0 %v1604
    %v1606 = vpop.xlane.xlu0 %1605
    %v1607 = vsel %vm814, %v1482, -inf
    %1608 = vmax.xlane.f32.xlu0 %v1607
    %v1609 = vpop.xlane.xlu0 %1608
    %v1610 = vsel %vm814, %v1502, -inf
    %1611 = vmax.xlane.f32.xlu0 %v1610
    %v1612 = vpop.xlane.xlu0 %1611
    %v1613 = vsel %vm814, %v1522, -inf
    %1614 = vmax.xlane.f32.xlu0 %v1613
    %v1615 = vpop.xlane.xlu0 %1614
    %v1616 = vsel %vm814, %v1542, -inf
    %1617 = vmax.xlane.f32.xlu0 %v1616
    %v1618 = vpop.xlane.xlu0 %1617
    %v1619 = vsel %vm814, %v1562, -inf
    %1620 = vmax.xlane.f32.xlu0 %v1619
    %v1621 = vpop.xlane.xlu0 %1620
    %v1622 = vsel %vm814, %v1582, -inf
    %1623 = vmax.xlane.f32.xlu0 %v1622
    %v1624 = vpop.xlane.xlu0 %1623
    %v1625 = vsel %vm814, %v1602, -inf
    %1626 = vmax.xlane.f32.xlu0 %v1625
    %v1627 = vpop.xlane.xlu0 %1626
    %v1628 = vsub.f32 %v1462, %v1606
    %v1629 = vsub.f32 %v1482, %v1609
    %v1630 = vsub.f32 %v1502, %v1612
    %v1631 = vsub.f32 %v1522, %v1615
    %v1632 = vsub.f32 %v1542, %v1618
    %v1633 = vsub.f32 %v1562, %v1621
    %v1634 = vsub.f32 %v1582, %v1624
    %v1635 = vsub.f32 %v1602, %v1627
    %v1636 = vmul.f32 %v1628, 1.442695
    %v1637 = vpow.pop %v1636
    %v1638 = vmul.f32 %v1629, 1.442695
    %v1639 = vpow.pop %v1638
    %v1640 = vmul.f32 %v1630, 1.442695
    %v1641 = vpow.pop %v1640
    %v1642 = vmul.f32 %v1631, 1.442695
    %v1643 = vpow.pop %v1642
    %v1644 = vmul.f32 %v1632, 1.442695
    %v1645 = vpow.pop %v1644
    %v1646 = vmul.f32 %v1633, 1.442695
    %v1647 = vpow.pop %v1646
    %v1648 = vmul.f32 %v1634, 1.442695
    %v1649 = vpow.pop %v1648
    %v1650 = vmul.f32 %v1635, 1.442695
    %v1651 = vpow.pop %v1650
    %v1652 = vsel %vm814, %v1637, 0.0
    %1653 = vadd.xlane.f32.xlu0 %v1652
    %v1654 = vpop.xlane.xlu0 %1653
    %v1655 = vsel %vm814, %v1639, 0.0
    %1656 = vadd.xlane.f32.xlu0 %v1655
    %v1657 = vpop.xlane.xlu0 %1656
    %v1658 = vsel %vm814, %v1641, 0.0
    %1659 = vadd.xlane.f32.xlu0 %v1658
    %v1660 = vpop.xlane.xlu0 %1659
    %v1661 = vsel %vm814, %v1643, 0.0
    %1662 = vadd.xlane.f32.xlu0 %v1661
    %v1663 = vpop.xlane.xlu0 %1662
    %v1664 = vsel %vm814, %v1645, 0.0
    %1665 = vadd.xlane.f32.xlu0 %v1664
    %v1666 = vpop.xlane.xlu0 %1665
    %v1667 = vsel %vm814, %v1647, 0.0
    %1668 = vadd.xlane.f32.xlu0 %v1667
    %v1669 = vpop.xlane.xlu0 %1668
    %v1670 = vsel %vm814, %v1649, 0.0
    %1671 = vadd.xlane.f32.xlu0 %v1670
    %v1672 = vpop.xlane.xlu0 %1671
    %v1673 = vsel %vm814, %v1651, 0.0
    %1674 = vadd.xlane.f32.xlu0 %v1673
    %v1675 = vpop.xlane.xlu0 %1674
    %v1676 = vrcp.pop %v1654
    %v1677 = vrcp.pop %v1657
    %v1678 = vrcp.pop %v1660
    %v1679 = vrcp.pop %v1663
    %v1680 = vrcp.pop %v1666
    %v1681 = vrcp.pop %v1669
    %v1682 = vrcp.pop %v1672
    %v1683 = vrcp.pop %v1675
    %v1684 = vmul.f32 %v1637, %v1676
    %v1685 = vmul.f32 %v1639, %v1677
    %v1686 = vmul.f32 %v1641, %v1678
    %v1687 = vmul.f32 %v1643, %v1679
    %v1688 = vmul.f32 %v1645, %v1680
    %v1689 = vmul.f32 %v1647, %v1681
    %v1690 = vmul.f32 %v1649, %v1682
    %v1691 = vmul.f32 %v1651, %v1683
    %v1693 = vsel %vm903, %v1684, 0
    %1695 = vmatpush.msra.mxu0 0.0
    %1696 = vmatpush.msra.mxu0 0.0
    %1697 = vmatpush.msra.mxu0 0.0
    %1698 = vmatpush.msra.mxu0 0.0
    %1699 = vmatpush.msra.mxu0 0.0
    %1700 = vmatpush.msra.mxu0 0.0
    %1701 = vmatpush.msra.mxu0 0.0
    %1702 = vmatpush.msra.mxu0 0.0
    %1703 = vmatpush.msra.mxu0 0.0
    %1704 = vmatpush.msra.mxu0 0.0
    %1705 = vmatpush.msra.mxu0 0.0
    %1706 = vmatpush.msra.mxu0 0.0
    %1707 = vmatpush.msra.mxu0 0.0
    %1708 = vmatpush.msra.mxu0 0.0
    %1709 = vmatpush.msra.mxu0 %v112
    %1710 = vmatpush.msra.mxu0 %v111
    %1711 = vmatmul.f32.gmra.mxu0 %v1693
    %v1712 = vpop.f32.mrf.mxu0
    %v1713 = vadd.f32 0.0, %v1712
    %1714 = vdwg.mxu0
    %v1716 = vsel %vm903, %v1685, 0
    %1718 = vmatpush.msra.mxu0 0.0
    %1719 = vmatpush.msra.mxu0 0.0
    %1720 = vmatpush.msra.mxu0 0.0
    %1721 = vmatpush.msra.mxu0 0.0
    %1722 = vmatpush.msra.mxu0 0.0
    %1723 = vmatpush.msra.mxu0 0.0
    %1724 = vmatpush.msra.mxu0 0.0
    %1725 = vmatpush.msra.mxu0 0.0
    %1726 = vmatpush.msra.mxu0 0.0
    %1727 = vmatpush.msra.mxu0 0.0
    %1728 = vmatpush.msra.mxu0 0.0
    %1729 = vmatpush.msra.mxu0 0.0
    %1730 = vmatpush.msra.mxu0 0.0
    %1731 = vmatpush.msra.mxu0 0.0
    %1732 = vmatpush.msra.mxu0 %v114
    %1733 = vmatpush.msra.mxu0 %v113
    %1734 = vmatmul.f32.gmra.mxu0 %v1716
    %v1735 = vpop.f32.mrf.mxu0
    %v1736 = vadd.f32 0.0, %v1735
    %1737 = vdwg.mxu0
    %v1739 = vsel %vm903, %v1686, 0
    %1741 = vmatpush.msra.mxu0 0.0
    %1742 = vmatpush.msra.mxu0 0.0
    %1743 = vmatpush.msra.mxu0 0.0
    %1744 = vmatpush.msra.mxu0 0.0
    %1745 = vmatpush.msra.mxu0 0.0
    %1746 = vmatpush.msra.mxu0 0.0
    %1747 = vmatpush.msra.mxu0 0.0
    %1748 = vmatpush.msra.mxu0 0.0
    %1749 = vmatpush.msra.mxu0 0.0
    %1750 = vmatpush.msra.mxu0 0.0
    %1751 = vmatpush.msra.mxu0 0.0
    %1752 = vmatpush.msra.mxu0 0.0
    %1753 = vmatpush.msra.mxu0 0.0
    %1754 = vmatpush.msra.mxu0 0.0
    %1755 = vmatpush.msra.mxu0 %v116
    %1756 = vmatpush.msra.mxu0 %v115
    %1757 = vmatmul.f32.gmra.mxu0 %v1739
    %v1758 = vpop.f32.mrf.mxu0
    %v1759 = vadd.f32 0.0, %v1758
    %1760 = vdwg.mxu0
    %v1762 = vsel %vm903, %v1687, 0
    %1764 = vmatpush.msra.mxu0 0.0
    %1765 = vmatpush.msra.mxu0 0.0
    %1766 = vmatpush.msra.mxu0 0.0
    %1767 = vmatpush.msra.mxu0 0.0
    %1768 = vmatpush.msra.mxu0 0.0
    %1769 = vmatpush.msra.mxu0 0.0
    %1770 = vmatpush.msra.mxu0 0.0
    %1771 = vmatpush.msra.mxu0 0.0
    %1772 = vmatpush.msra.mxu0 0.0
    %1773 = vmatpush.msra.mxu0 0.0
    %1774 = vmatpush.msra.mxu0 0.0
    %1775 = vmatpush.msra.mxu0 0.0
    %1776 = vmatpush.msra.mxu0 0.0
    %1777 = vmatpush.msra.mxu0 0.0
    %1778 = vmatpush.msra.mxu0 %v118
    %1779 = vmatpush.msra.mxu0 %v117
    %1780 = vmatmul.f32.gmra.mxu0 %v1762
    %v1781 = vpop.f32.mrf.mxu0
    %v1782 = vadd.f32 0.0, %v1781
    %1783 = vdwg.mxu0
    %v1785 = vsel %vm903, %v1688, 0
    %1787 = vmatpush.msra.mxu0 0.0
    %1788 = vmatpush.msra.mxu0 0.0
    %1789 = vmatpush.msra.mxu0 0.0
    %1790 = vmatpush.msra.mxu0 0.0
    %1791 = vmatpush.msra.mxu0 0.0
    %1792 = vmatpush.msra.mxu0 0.0
    %1793 = vmatpush.msra.mxu0 0.0
    %1794 = vmatpush.msra.mxu0 0.0
    %1795 = vmatpush.msra.mxu0 0.0
    %1796 = vmatpush.msra.mxu0 0.0
    %1797 = vmatpush.msra.mxu0 0.0
    %1798 = vmatpush.msra.mxu0 0.0
    %1799 = vmatpush.msra.mxu0 0.0
    %1800 = vmatpush.msra.mxu0 0.0
    %1801 = vmatpush.msra.mxu0 %v120
    %1802 = vmatpush.msra.mxu0 %v119
    %1803 = vmatmul.f32.gmra.mxu0 %v1785
    %v1804 = vpop.f32.mrf.mxu0
    %v1805 = vadd.f32 0.0, %v1804
    %1806 = vdwg.mxu0
    %v1808 = vsel %vm903, %v1689, 0
    %1810 = vmatpush.msra.mxu0 0.0
    %1811 = vmatpush.msra.mxu0 0.0
    %1812 = vmatpush.msra.mxu0 0.0
    %1813 = vmatpush.msra.mxu0 0.0
    %1814 = vmatpush.msra.mxu0 0.0
    %1815 = vmatpush.msra.mxu0 0.0
    %1816 = vmatpush.msra.mxu0 0.0
    %1817 = vmatpush.msra.mxu0 0.0
    %1818 = vmatpush.msra.mxu0 0.0
    %1819 = vmatpush.msra.mxu0 0.0
    %1820 = vmatpush.msra.mxu0 0.0
    %1821 = vmatpush.msra.mxu0 0.0
    %1822 = vmatpush.msra.mxu0 0.0
    %1823 = vmatpush.msra.mxu0 0.0
    %1824 = vmatpush.msra.mxu0 %v122
    %1825 = vmatpush.msra.mxu0 %v121
    %1826 = vmatmul.f32.gmra.mxu0 %v1808
    %v1827 = vpop.f32.mrf.mxu0
    %v1828 = vadd.f32 0.0, %v1827
    %1829 = vdwg.mxu0
    %v1831 = vsel %vm903, %v1690, 0
    %1833 = vmatpush.msra.mxu0 0.0
    %1834 = vmatpush.msra.mxu0 0.0
    %1835 = vmatpush.msra.mxu0 0.0
    %1836 = vmatpush.msra.mxu0 0.0
    %1837 = vmatpush.msra.mxu0 0.0
    %1838 = vmatpush.msra.mxu0 0.0
    %1839 = vmatpush.msra.mxu0 0.0
    %1840 = vmatpush.msra.mxu0 0.0
    %1841 = vmatpush.msra.mxu0 0.0
    %1842 = vmatpush.msra.mxu0 0.0
    %1843 = vmatpush.msra.mxu0 0.0
    %1844 = vmatpush.msra.mxu0 0.0
    %1845 = vmatpush.msra.mxu0 0.0
    %1846 = vmatpush.msra.mxu0 0.0
    %1847 = vmatpush.msra.mxu0 %v124
    %1848 = vmatpush.msra.mxu0 %v123
    %1849 = vmatmul.f32.gmra.mxu0 %v1831
    %v1850 = vpop.f32.mrf.mxu0
    %v1851 = vadd.f32 0.0, %v1850
    %1852 = vdwg.mxu0
    %v1854 = vsel %vm903, %v1691, 0
    %1856 = vmatpush.msra.mxu0 0.0
    %1857 = vmatpush.msra.mxu0 0.0
    %1858 = vmatpush.msra.mxu0 0.0
    %1859 = vmatpush.msra.mxu0 0.0
    %1860 = vmatpush.msra.mxu0 0.0
    %1861 = vmatpush.msra.mxu0 0.0
    %1862 = vmatpush.msra.mxu0 0.0
    %1863 = vmatpush.msra.mxu0 0.0
    %1864 = vmatpush.msra.mxu0 0.0
    %1865 = vmatpush.msra.mxu0 0.0
    %1866 = vmatpush.msra.mxu0 0.0
    %1867 = vmatpush.msra.mxu0 0.0
    %1868 = vmatpush.msra.mxu0 0.0
    %1869 = vmatpush.msra.mxu0 0.0
    %1870 = vmatpush.msra.mxu0 %v126
    %1871 = vmatpush.msra.mxu0 %v125
    %1872 = vmatmul.f32.gmra.mxu0 %v1854
    %v1873 = vpop.f32.mrf.mxu0
    %v1874 = vadd.f32 0.0, %v1873
    %1875 = vdwg.mxu0
    %v1876 = vld [vmem:[#allocation5] sm:$0xff]
    %v1877 = vld [vmem:[#allocation5 + $0x8] sm:$0xff]
    %v1878 = vld [vmem:[#allocation5 + $0x10] sm:$0xff]
    %v1879 = vld [vmem:[#allocation5 + $0x18] sm:$0xff]
    %v1880 = vld [vmem:[#allocation5 + $0x20] sm:$0xff]
    %v1881 = vld [vmem:[#allocation5 + $0x28] sm:$0xff]
    %v1882 = vld [vmem:[#allocation5 + $0x30] sm:$0xff]
    %v1883 = vld [vmem:[#allocation5 + $0x38] sm:$0xff]
    %v1884 = vld [vmem:[#allocation5 + $0x40] sm:$0xff]
    %v1885 = vld [vmem:[#allocation5 + $0x48] sm:$0xff]
    %v1886 = vld [vmem:[#allocation5 + $0x50] sm:$0xff]
    %v1887 = vld [vmem:[#allocation5 + $0x58] sm:$0xff]
    %v1888 = vld [vmem:[#allocation5 + $0x60] sm:$0xff]
    %v1889 = vld [vmem:[#allocation5 + $0x68] sm:$0xff]
    %v1890 = vld [vmem:[#allocation5 + $0x70] sm:$0xff]
    %v1891 = vld [vmem:[#allocation5 + $0x78] sm:$0xff]
    %v1892 = vld [vmem:[#allocation10] sm:$0xff]
    %v1893 = vld [vmem:[#allocation10 + $0x8] sm:$0xff]
    %v1894 = vld [vmem:[#allocation10 + $0x10] sm:$0xff]
    %v1895 = vld [vmem:[#allocation10 + $0x18] sm:$0xff]
    %v1896 = vld [vmem:[#allocation10 + $0x20] sm:$0xff]
    %v1897 = vld [vmem:[#allocation10 + $0x28] sm:$0xff]
    %v1898 = vld [vmem:[#allocation10 + $0x30] sm:$0xff]
    %v1899 = vld [vmem:[#allocation10 + $0x38] sm:$0xff]
    %v1900 = vld [vmem:[#allocation10 + $0x40] sm:$0xff]
    %v1901 = vld [vmem:[#allocation10 + $0x48] sm:$0xff]
    %v1902 = vld [vmem:[#allocation10 + $0x50] sm:$0xff]
    %v1903 = vld [vmem:[#allocation10 + $0x58] sm:$0xff]
    %v1904 = vld [vmem:[#allocation10 + $0x60] sm:$0xff]
    %v1905 = vld [vmem:[#allocation10 + $0x68] sm:$0xff]
    %v1906 = vld [vmem:[#allocation10 + $0x70] sm:$0xff]
    %v1907 = vld [vmem:[#allocation10 + $0x78] sm:$0xff]
    %v1908 = vld [vmem:[#allocation10 + $0x80] sm:$0xff]
    %v1909 = vld [vmem:[#allocation10 + $0x88] sm:$0xff]
    %v1910 = vld [vmem:[#allocation10 + $0x90] sm:$0xff]
    %v1911 = vld [vmem:[#allocation10 + $0x98] sm:$0xff]
    %v1912 = vld [vmem:[#allocation10 + $0xa0] sm:$0xff]
    %v1913 = vld [vmem:[#allocation10 + $0xa8] sm:$0xff]
    %v1914 = vld [vmem:[#allocation10 + $0xb0] sm:$0xff]
    %v1915 = vld [vmem:[#allocation10 + $0xb8] sm:$0xff]
    %v1916 = vld [vmem:[#allocation10 + $0xc0] sm:$0xff]
    %v1917 = vld [vmem:[#allocation10 + $0xc8] sm:$0xff]
    %v1918 = vld [vmem:[#allocation10 + $0xd0] sm:$0xff]
    %v1919 = vld [vmem:[#allocation10 + $0xd8] sm:$0xff]
    %v1920 = vld [vmem:[#allocation10 + $0xe0] sm:$0xff]
    %v1921 = vld [vmem:[#allocation10 + $0xe8] sm:$0xff]
    %v1922 = vld [vmem:[#allocation10 + $0xf0] sm:$0xff]
    %v1923 = vld [vmem:[#allocation10 + $0xf8] sm:$0xff]
    %v1924 = vld [vmem:[#allocation10 + $0x100] sm:$0xff]
    %v1925 = vld [vmem:[#allocation10 + $0x108] sm:$0xff]
    %v1926 = vld [vmem:[#allocation10 + $0x110] sm:$0xff]
    %v1927 = vld [vmem:[#allocation10 + $0x118] sm:$0xff]
    %v1928 = vld [vmem:[#allocation10 + $0x120] sm:$0xff]
    %v1929 = vld [vmem:[#allocation10 + $0x128] sm:$0xff]
    %v1930 = vld [vmem:[#allocation10 + $0x130] sm:$0xff]
    %v1931 = vld [vmem:[#allocation10 + $0x138] sm:$0xff]
    %v1932 = vld [vmem:[#allocation10 + $0x140] sm:$0xff]
    %v1933 = vld [vmem:[#allocation10 + $0x148] sm:$0xff]
    %v1934 = vld [vmem:[#allocation10 + $0x150] sm:$0xff]
    %v1935 = vld [vmem:[#allocation10 + $0x158] sm:$0xff]
    %v1936 = vld [vmem:[#allocation10 + $0x160] sm:$0xff]
    %v1937 = vld [vmem:[#allocation10 + $0x168] sm:$0xff]
    %v1938 = vld [vmem:[#allocation10 + $0x170] sm:$0xff]
    %v1939 = vld [vmem:[#allocation10 + $0x178] sm:$0xff]
    %v1940 = vld [vmem:[#allocation10 + $0x180] sm:$0xff]
    %v1941 = vld [vmem:[#allocation10 + $0x188] sm:$0xff]
    %v1942 = vld [vmem:[#allocation10 + $0x190] sm:$0xff]
    %v1943 = vld [vmem:[#allocation10 + $0x198] sm:$0xff]
    %v1944 = vld [vmem:[#allocation10 + $0x1a0] sm:$0xff]
    %v1945 = vld [vmem:[#allocation10 + $0x1a8] sm:$0xff]
    %v1946 = vld [vmem:[#allocation10 + $0x1b0] sm:$0xff]
    %v1947 = vld [vmem:[#allocation10 + $0x1b8] sm:$0xff]
    %v1948 = vld [vmem:[#allocation10 + $0x1c0] sm:$0xff]
    %v1949 = vld [vmem:[#allocation10 + $0x1c8] sm:$0xff]
    %v1950 = vld [vmem:[#allocation10 + $0x1d0] sm:$0xff]
    %v1951 = vld [vmem:[#allocation10 + $0x1d8] sm:$0xff]
    %v1952 = vld [vmem:[#allocation10 + $0x1e0] sm:$0xff]
    %v1953 = vld [vmem:[#allocation10 + $0x1e8] sm:$0xff]
    %v1954 = vld [vmem:[#allocation10 + $0x1f0] sm:$0xff]
    %v1955 = vld [vmem:[#allocation10 + $0x1f8] sm:$0xff]
    %1956 = vmatpush.msra.mxu0 %v1952
    %1957 = vmatpush.msra.mxu0 %v1948
    %1958 = vmatpush.msra.mxu0 %v1944
    %1959 = vmatpush.msra.mxu0 %v1940
    %1960 = vmatpush.msra.mxu0 %v1936
    %1961 = vmatpush.msra.mxu0 %v1932
    %1962 = vmatpush.msra.mxu0 %v1928
    %1963 = vmatpush.msra.mxu0 %v1924
    %1964 = vmatpush.msra.mxu0 %v1920
    %1965 = vmatpush.msra.mxu0 %v1916
    %1966 = vmatpush.msra.mxu0 %v1912
    %1967 = vmatpush.msra.mxu0 %v1908
    %1968 = vmatpush.msra.mxu0 %v1904
    %1969 = vmatpush.msra.mxu0 %v1900
    %1970 = vmatpush.msra.mxu0 %v1896
    %1971 = vmatpush.msra.mxu0 %v1892
    %1972 = vmatmul.f32.gmra.mxu0 %v1425
    %v1973 = vpop.f32.mrf.mxu0
    %v1974 = vadd.f32 0.0, %v1973
    %1975 = vdwg.mxu0
    %1976 = vmatpush.msra.mxu0 %v1953
    %1977 = vmatpush.msra.mxu0 %v1949
    %1978 = vmatpush.msra.mxu0 %v1945
    %1979 = vmatpush.msra.mxu0 %v1941
    %1980 = vmatpush.msra.mxu0 %v1937
    %1981 = vmatpush.msra.mxu0 %v1933
    %1982 = vmatpush.msra.mxu0 %v1929
    %1983 = vmatpush.msra.mxu0 %v1925
    %1984 = vmatpush.msra.mxu0 %v1921
    %1985 = vmatpush.msra.mxu0 %v1917
    %1986 = vmatpush.msra.mxu0 %v1913
    %1987 = vmatpush.msra.mxu0 %v1909
    %1988 = vmatpush.msra.mxu0 %v1905
    %1989 = vmatpush.msra.mxu0 %v1901
    %1990 = vmatpush.msra.mxu0 %v1897
    %1991 = vmatpush.msra.mxu0 %v1893
    %1992 = vmatmul.f32.gmra.mxu0 %v1425
    %v1993 = vpop.f32.mrf.mxu0
    %v1994 = vadd.f32 0.0, %v1993
    %1995 = vdwg.mxu0
    %1996 = vmatpush.msra.mxu0 %v1954
    %1997 = vmatpush.msra.mxu0 %v1950
    %1998 = vmatpush.msra.mxu0 %v1946
    %1999 = vmatpush.msra.mxu0 %v1942
    %2000 = vmatpush.msra.mxu0 %v1938
    %2001 = vmatpush.msra.mxu0 %v1934
    %2002 = vmatpush.msra.mxu0 %v1930
    %2003 = vmatpush.msra.mxu0 %v1926
    %2004 = vmatpush.msra.mxu0 %v1922
    %2005 = vmatpush.msra.mxu0 %v1918
    %2006 = vmatpush.msra.mxu0 %v1914
    %2007 = vmatpush.msra.mxu0 %v1910
    %2008 = vmatpush.msra.mxu0 %v1906
    %2009 = vmatpush.msra.mxu0 %v1902
    %2010 = vmatpush.msra.mxu0 %v1898
    %2011 = vmatpush.msra.mxu0 %v1894
    %2012 = vmatmul.f32.gmra.mxu0 %v1425
    %v2013 = vpop.f32.mrf.mxu0
    %v2014 = vadd.f32 0.0, %v2013
    %2015 = vdwg.mxu0
    %2016 = vmatpush.msra.mxu0 %v1955
    %2017 = vmatpush.msra.mxu0 %v1951
    %2018 = vmatpush.msra.mxu0 %v1947
    %2019 = vmatpush.msra.mxu0 %v1943
    %2020 = vmatpush.msra.mxu0 %v1939
    %2021 = vmatpush.msra.mxu0 %v1935
    %2022 = vmatpush.msra.mxu0 %v1931
    %2023 = vmatpush.msra.mxu0 %v1927
    %2024 = vmatpush.msra.mxu0 %v1923
    %2025 = vmatpush.msra.mxu0 %v1919
    %2026 = vmatpush.msra.mxu0 %v1915
    %2027 = vmatpush.msra.mxu0 %v1911
    %2028 = vmatpush.msra.mxu0 %v1907
    %2029 = vmatpush.msra.mxu0 %v1903
    %2030 = vmatpush.msra.mxu0 %v1899
    %2031 = vmatpush.msra.mxu0 %v1895
    %2032 = vmatmul.f32.gmra.mxu0 %v1425
    %v2033 = vpop.f32.mrf.mxu0
    %v2034 = vadd.f32 0.0, %v2033
    %2035 = vdwg.mxu0
    %v2044 = vrot.slane %v1736, 7
    %v2045 = vsel %vm602, %v2044, %v1713
    %v2046 = vrot.slane %v1759, 6
    %v2047 = vsel %vm604, %v2046, %v2045
    %v2048 = vrot.slane %v1782, 5
    %v2049 = vsel %vm606, %v2048, %v2047
    %v2050 = vrot.slane %v1805, 4
    %v2051 = vsel %vm608, %v2050, %v2049
    %v2052 = vrot.slane %v1828, 3
    %v2053 = vsel %vm610, %v2052, %v2051
    %v2054 = vrot.slane %v1851, 2
    %v2055 = vsel %vm612, %v2054, %v2053
    %v2056 = vrot.slane %v1874, 1
    %v2057 = vsel %vm614, %v2056, %v2055
    %v2058 = vsel %vm161, %v2057, 0
    %2060 = vmatpush.msra.mxu0 0.0
    %2061 = vmatpush.msra.mxu0 0.0
    %2062 = vmatpush.msra.mxu0 0.0
    %2063 = vmatpush.msra.mxu0 0.0
    %2064 = vmatpush.msra.mxu0 0.0
    %2065 = vmatpush.msra.mxu0 0.0
    %2066 = vmatpush.msra.mxu0 0.0
    %2067 = vmatpush.msra.mxu0 0.0
    %2068 = vmatpush.msra.mxu0 0.0
    %2069 = vmatpush.msra.mxu0 0.0
    %2070 = vmatpush.msra.mxu0 0.0
    %2071 = vmatpush.msra.mxu0 0.0
    %2072 = vmatpush.msra.mxu0 %v1888
    %2073 = vmatpush.msra.mxu0 %v1884
    %2074 = vmatpush.msra.mxu0 %v1880
    %2075 = vmatpush.msra.mxu0 %v1876
    %2076 = vmatmul.f32.gmra.mxu0 %v2058
    %v2077 = vpop.f32.mrf.mxu0
    %v2078 = vadd.f32 %v1974, %v2077
    %2079 = vdwg.mxu0
    %2080 = vmatpush.msra.mxu0 0.0
    %2081 = vmatpush.msra.mxu0 0.0
    %2082 = vmatpush.msra.mxu0 0.0
    %2083 = vmatpush.msra.mxu0 0.0
    %2084 = vmatpush.msra.mxu0 0.0
    %2085 = vmatpush.msra.mxu0 0.0
    %2086 = vmatpush.msra.mxu0 0.0
    %2087 = vmatpush.msra.mxu0 0.0
    %2088 = vmatpush.msra.mxu0 0.0
    %2089 = vmatpush.msra.mxu0 0.0
    %2090 = vmatpush.msra.mxu0 0.0
    %2091 = vmatpush.msra.mxu0 0.0
    %2092 = vmatpush.msra.mxu0 %v1889
    %2093 = vmatpush.msra.mxu0 %v1885
    %2094 = vmatpush.msra.mxu0 %v1881
    %2095 = vmatpush.msra.mxu0 %v1877
    %2096 = vmatmul.f32.gmra.mxu0 %v2058
    %v2097 = vpop.f32.mrf.mxu0
    %v2098 = vadd.f32 %v1994, %v2097
    %2099 = vdwg.mxu0
    %2100 = vmatpush.msra.mxu0 0.0
    %2101 = vmatpush.msra.mxu0 0.0
    %2102 = vmatpush.msra.mxu0 0.0
    %2103 = vmatpush.msra.mxu0 0.0
    %2104 = vmatpush.msra.mxu0 0.0
    %2105 = vmatpush.msra.mxu0 0.0
    %2106 = vmatpush.msra.mxu0 0.0
    %2107 = vmatpush.msra.mxu0 0.0
    %2108 = vmatpush.msra.mxu0 0.0
    %2109 = vmatpush.msra.mxu0 0.0
    %2110 = vmatpush.msra.mxu0 0.0
    %2111 = vmatpush.msra.mxu0 0.0
    %2112 = vmatpush.msra.mxu0 %v1890
    %2113 = vmatpush.msra.mxu0 %v1886
    %2114 = vmatpush.msra.mxu0 %v1882
    %2115 = vmatpush.msra.mxu0 %v1878
    %2116 = vmatmul.f32.gmra.mxu0 %v2058
    %v2117 = vpop.f32.mrf.mxu0
    %v2118 = vadd.f32 %v2014, %v2117
    %2119 = vdwg.mxu0
    %2120 = vmatpush.msra.mxu0 0.0
    %2121 = vmatpush.msra.mxu0 0.0
    %2122 = vmatpush.msra.mxu0 0.0
    %2123 = vmatpush.msra.mxu0 0.0
    %2124 = vmatpush.msra.mxu0 0.0
    %2125 = vmatpush.msra.mxu0 0.0
    %2126 = vmatpush.msra.mxu0 0.0
    %2127 = vmatpush.msra.mxu0 0.0
    %2128 = vmatpush.msra.mxu0 0.0
    %2129 = vmatpush.msra.mxu0 0.0
    %2130 = vmatpush.msra.mxu0 0.0
    %2131 = vmatpush.msra.mxu0 0.0
    %2132 = vmatpush.msra.mxu0 %v1891
    %2133 = vmatpush.msra.mxu0 %v1887
    %2134 = vmatpush.msra.mxu0 %v1883
    %2135 = vmatpush.msra.mxu0 %v1879
    %2136 = vmatmul.f32.gmra.mxu0 %v2058
    %v2137 = vpop.f32.mrf.mxu0
    %v2138 = vadd.f32 %v2034, %v2137
    %2139 = vdwg.mxu0
    %s2140 = smul.u32 1, 4
    %s2141 = smul.addr %s2140, 8
    %s2142 = scalar_lea.vmem [#allocation2], %s2141
    %v2143 = vld [vmem:[%s2142] sm:$0xff]
    %v2144 = vld [vmem:[%s2142 + $0x8] sm:$0xff]
    %v2145 = vld [vmem:[%s2142 + $0x10] sm:$0xff]
    %v2146 = vld [vmem:[%s2142 + $0x18] sm:$0xff]
    %v2147 = vadd.f32 %v2078, %v2143
    %v2148 = vadd.f32 %v2098, %v2144
    %v2149 = vadd.f32 %v2118, %v2145
    %v2150 = vadd.f32 %v2138, %v2146
    %v2151 = vxor.u32 %v2147, 2147483648
    %v2152 = vmul.f32 %v2151, 1.442695
    %v2153 = vpow.pop %v2152
    %v2154 = vadd.f32 %v2153, 1.0
    %v2155 = vrcp.pop %v2154
    %v2156 = vmul.f32 %v2154, %v2155
    %v2157 = vsub.f32 1.0, %v2156
    %v2158 = vmul.f32 %v2155, %v2157
    %v2159 = vadd.f32 %v2155, %v2158
    %vm2160 = vweird.f32 %v2154
    %vm2161 = vweird.f32 %v2155
    %vm2162 = vmor %vm2160, %vm2161
    %v2163 = vsel %vm2162, %v2155, %v2159
    %v2164 = vand.u32 2147483647, %v2154
    %vm2165 = vcmp.eq.f32.partialorder %v2164, 8.507059e+37
    %v2166 = vand.u32 %v2154, 2147483648
    %v2167 = vor.u32 1.1754944e-38, %v2166
    %v2168 = vsel %vm2165, %v2167, %v2163
    %v2169 = vmul.f32 1.0, %v2168
    %v2170 = vxor.u32 %v2148, 2147483648
    %v2171 = vmul.f32 %v2170, 1.442695
    %v2172 = vpow.pop %v2171
    %v2173 = vadd.f32 %v2172, 1.0
    %v2174 = vrcp.pop %v2173
    %v2175 = vmul.f32 %v2173, %v2174
    %v2176 = vsub.f32 1.0, %v2175
    %v2177 = vmul.f32 %v2174, %v2176
    %v2178 = vadd.f32 %v2174, %v2177
    %vm2179 = vweird.f32 %v2173
    %vm2180 = vweird.f32 %v2174
    %vm2181 = vmor %vm2179, %vm2180
    %v2182 = vsel %vm2181, %v2174, %v2178
    %v2183 = vand.u32 2147483647, %v2173
    %vm2184 = vcmp.eq.f32.partialorder %v2183, 8.507059e+37
    %v2185 = vand.u32 %v2173, 2147483648
    %v2186 = vor.u32 1.1754944e-38, %v2185
    %v2187 = vsel %vm2184, %v2186, %v2182
    %v2188 = vmul.f32 1.0, %v2187
    %v2189 = vtanh.pop %v2149
    %v2190 = vxor.u32 %v2150, 2147483648
    %v2191 = vmul.f32 %v2190, 1.442695
    %v2192 = vpow.pop %v2191
    %v2193 = vadd.f32 %v2192, 1.0
    %v2194 = vrcp.pop %v2193
    %v2195 = vmul.f32 %v2193, %v2194
    %v2196 = vsub.f32 1.0, %v2195
    %v2197 = vmul.f32 %v2194, %v2196
    %v2198 = vadd.f32 %v2194, %v2197
    %vm2199 = vweird.f32 %v2193
    %vm2200 = vweird.f32 %v2194
    %vm2201 = vmor %vm2199, %vm2200
    %v2202 = vsel %vm2201, %v2194, %v2198
    %v2203 = vand.u32 2147483647, %v2193
    %vm2204 = vcmp.eq.f32.partialorder %v2203, 8.507059e+37
    %v2205 = vand.u32 %v2193, 2147483648
    %v2206 = vor.u32 1.1754944e-38, %v2205
    %v2207 = vsel %vm2204, %v2206, %v2202
    %v2208 = vmul.f32 1.0, %v2207
    %v2209 = vmul.f32 %v2188, %v1423
    %v2210 = vmul.f32 %v2169, %v2189
    %v2211 = vadd.f32 %v2209, %v2210
    %v2212 = vtanh.pop %v2211
    %v2213 = vmul.f32 %v2208, %v2212
    %s2214 = scalar_lea.vmem [#allocation3], 8
    %2215 = vst [vmem:[%s2214] sm:$0xff] %v2213
    %s2217 = scalar_lea.vmem [#allocation4], 8
    %2218 = vst.msk [vmem:[%s2217] sm:$0xff] %vm161, %v2057
    %v2220 = vrot.slane %v2213, 1
    %v2221 = vrot.slane %v2213, 2
    %v2222 = vrot.slane %v2213, 3
    %v2223 = vrot.slane %v2213, 4
    %v2224 = vrot.slane %v2213, 5
    %v2225 = vrot.slane %v2213, 6
    %v2226 = vrot.slane %v2213, 7
    %2234 = vmatpush.xpose.msra.mxu0 0.0
    %2235 = vmatpush.xpose.msra.mxu0 0.0
    %2236 = vmatpush.xpose.msra.mxu0 0.0
    %2237 = vmatpush.xpose.msra.mxu0 0.0
    %2238 = vmatpush.xpose.msra.mxu0 0.0
    %2239 = vmatpush.xpose.msra.mxu0 0.0
    %2240 = vmatpush.xpose.msra.mxu0 0.0
    %2241 = vmatpush.xpose.msra.mxu0 0.0
    %2242 = vmatpush.xpose.msra.mxu0 0.0
    %2243 = vmatpush.xpose.msra.mxu0 0.0
    %2244 = vmatpush.xpose.msra.mxu0 0.0
    %2245 = vmatpush.xpose.msra.mxu0 0.0
    %2246 = vmatpush.xpose.msra.mxu0 0.0
    %2247 = vmatpush.xpose.msra.mxu0 0.0
    %2248 = vmatpush.xpose.msra.mxu0 %v455
    %2249 = vmatpush.xpose.msra.mxu0 %v452
    %2250 = vmatmul.f32.gmra.mxu0 %v2213
    %v2251 = vpop.f32.mrf.mxu0
    %v2252 = vadd.f32 0.0, %v2251
    %2253 = vdwg.mxu0
    %2254 = vmatpush.xpose.msra.mxu0 0.0
    %2255 = vmatpush.xpose.msra.mxu0 0.0
    %2256 = vmatpush.xpose.msra.mxu0 0.0
    %2257 = vmatpush.xpose.msra.mxu0 0.0
    %2258 = vmatpush.xpose.msra.mxu0 0.0
    %2259 = vmatpush.xpose.msra.mxu0 0.0
    %2260 = vmatpush.xpose.msra.mxu0 0.0
    %2261 = vmatpush.xpose.msra.mxu0 0.0
    %2262 = vmatpush.xpose.msra.mxu0 0.0
    %2263 = vmatpush.xpose.msra.mxu0 0.0
    %2264 = vmatpush.xpose.msra.mxu0 0.0
    %2265 = vmatpush.xpose.msra.mxu0 0.0
    %2266 = vmatpush.xpose.msra.mxu0 0.0
    %2267 = vmatpush.xpose.msra.mxu0 0.0
    %2268 = vmatpush.xpose.msra.mxu0 %v461
    %2269 = vmatpush.xpose.msra.mxu0 %v458
    %2270 = vmatmul.f32.gmra.mxu0 %v2220
    %v2271 = vpop.f32.mrf.mxu0
    %v2272 = vadd.f32 0.0, %v2271
    %2273 = vdwg.mxu0
    %2274 = vmatpush.xpose.msra.mxu0 0.0
    %2275 = vmatpush.xpose.msra.mxu0 0.0
    %2276 = vmatpush.xpose.msra.mxu0 0.0
    %2277 = vmatpush.xpose.msra.mxu0 0.0
    %2278 = vmatpush.xpose.msra.mxu0 0.0
    %2279 = vmatpush.xpose.msra.mxu0 0.0
    %2280 = vmatpush.xpose.msra.mxu0 0.0
    %2281 = vmatpush.xpose.msra.mxu0 0.0
    %2282 = vmatpush.xpose.msra.mxu0 0.0
    %2283 = vmatpush.xpose.msra.mxu0 0.0
    %2284 = vmatpush.xpose.msra.mxu0 0.0
    %2285 = vmatpush.xpose.msra.mxu0 0.0
    %2286 = vmatpush.xpose.msra.mxu0 0.0
    %2287 = vmatpush.xpose.msra.mxu0 0.0
    %2288 = vmatpush.xpose.msra.mxu0 %v467
    %2289 = vmatpush.xpose.msra.mxu0 %v464
    %2290 = vmatmul.f32.gmra.mxu0 %v2221
    %v2291 = vpop.f32.mrf.mxu0
    %v2292 = vadd.f32 0.0, %v2291
    %2293 = vdwg.mxu0
    %2294 = vmatpush.xpose.msra.mxu0 0.0
    %2295 = vmatpush.xpose.msra.mxu0 0.0
    %2296 = vmatpush.xpose.msra.mxu0 0.0
    %2297 = vmatpush.xpose.msra.mxu0 0.0
    %2298 = vmatpush.xpose.msra.mxu0 0.0
    %2299 = vmatpush.xpose.msra.mxu0 0.0
    %2300 = vmatpush.xpose.msra.mxu0 0.0
    %2301 = vmatpush.xpose.msra.mxu0 0.0
    %2302 = vmatpush.xpose.msra.mxu0 0.0
    %2303 = vmatpush.xpose.msra.mxu0 0.0
    %2304 = vmatpush.xpose.msra.mxu0 0.0
    %2305 = vmatpush.xpose.msra.mxu0 0.0
    %2306 = vmatpush.xpose.msra.mxu0 0.0
    %2307 = vmatpush.xpose.msra.mxu0 0.0
    %2308 = vmatpush.xpose.msra.mxu0 %v473
    %2309 = vmatpush.xpose.msra.mxu0 %v470
    %2310 = vmatmul.f32.gmra.mxu0 %v2222
    %v2311 = vpop.f32.mrf.mxu0
    %v2312 = vadd.f32 0.0, %v2311
    %2313 = vdwg.mxu0
    %2314 = vmatpush.xpose.msra.mxu0 0.0
    %2315 = vmatpush.xpose.msra.mxu0 0.0
    %2316 = vmatpush.xpose.msra.mxu0 0.0
    %2317 = vmatpush.xpose.msra.mxu0 0.0
    %2318 = vmatpush.xpose.msra.mxu0 0.0
    %2319 = vmatpush.xpose.msra.mxu0 0.0
    %2320 = vmatpush.xpose.msra.mxu0 0.0
    %2321 = vmatpush.xpose.msra.mxu0 0.0
    %2322 = vmatpush.xpose.msra.mxu0 0.0
    %2323 = vmatpush.xpose.msra.mxu0 0.0
    %2324 = vmatpush.xpose.msra.mxu0 0.0
    %2325 = vmatpush.xpose.msra.mxu0 0.0
    %2326 = vmatpush.xpose.msra.mxu0 0.0
    %2327 = vmatpush.xpose.msra.mxu0 0.0
    %2328 = vmatpush.xpose.msra.mxu0 %v479
    %2329 = vmatpush.xpose.msra.mxu0 %v476
    %2330 = vmatmul.f32.gmra.mxu0 %v2223
    %v2331 = vpop.f32.mrf.mxu0
    %v2332 = vadd.f32 0.0, %v2331
    %2333 = vdwg.mxu0
    %2334 = vmatpush.xpose.msra.mxu0 0.0
    %2335 = vmatpush.xpose.msra.mxu0 0.0
    %2336 = vmatpush.xpose.msra.mxu0 0.0
    %2337 = vmatpush.xpose.msra.mxu0 0.0
    %2338 = vmatpush.xpose.msra.mxu0 0.0
    %2339 = vmatpush.xpose.msra.mxu0 0.0
    %2340 = vmatpush.xpose.msra.mxu0 0.0
    %2341 = vmatpush.xpose.msra.mxu0 0.0
    %2342 = vmatpush.xpose.msra.mxu0 0.0
    %2343 = vmatpush.xpose.msra.mxu0 0.0
    %2344 = vmatpush.xpose.msra.mxu0 0.0
    %2345 = vmatpush.xpose.msra.mxu0 0.0
    %2346 = vmatpush.xpose.msra.mxu0 0.0
    %2347 = vmatpush.xpose.msra.mxu0 0.0
    %2348 = vmatpush.xpose.msra.mxu0 %v485
    %2349 = vmatpush.xpose.msra.mxu0 %v482
    %2350 = vmatmul.f32.gmra.mxu0 %v2224
    %v2351 = vpop.f32.mrf.mxu0
    %v2352 = vadd.f32 0.0, %v2351
    %2353 = vdwg.mxu0
    %2354 = vmatpush.xpose.msra.mxu0 0.0
    %2355 = vmatpush.xpose.msra.mxu0 0.0
    %2356 = vmatpush.xpose.msra.mxu0 0.0
    %2357 = vmatpush.xpose.msra.mxu0 0.0
    %2358 = vmatpush.xpose.msra.mxu0 0.0
    %2359 = vmatpush.xpose.msra.mxu0 0.0
    %2360 = vmatpush.xpose.msra.mxu0 0.0
    %2361 = vmatpush.xpose.msra.mxu0 0.0
    %2362 = vmatpush.xpose.msra.mxu0 0.0
    %2363 = vmatpush.xpose.msra.mxu0 0.0
    %2364 = vmatpush.xpose.msra.mxu0 0.0
    %2365 = vmatpush.xpose.msra.mxu0 0.0
    %2366 = vmatpush.xpose.msra.mxu0 0.0
    %2367 = vmatpush.xpose.msra.mxu0 0.0
    %2368 = vmatpush.xpose.msra.mxu0 %v491
    %2369 = vmatpush.xpose.msra.mxu0 %v488
    %2370 = vmatmul.f32.gmra.mxu0 %v2225
    %v2371 = vpop.f32.mrf.mxu0
    %v2372 = vadd.f32 0.0, %v2371
    %2373 = vdwg.mxu0
    %2374 = vmatpush.xpose.msra.mxu0 0.0
    %2375 = vmatpush.xpose.msra.mxu0 0.0
    %2376 = vmatpush.xpose.msra.mxu0 0.0
    %2377 = vmatpush.xpose.msra.mxu0 0.0
    %2378 = vmatpush.xpose.msra.mxu0 0.0
    %2379 = vmatpush.xpose.msra.mxu0 0.0
    %2380 = vmatpush.xpose.msra.mxu0 0.0
    %2381 = vmatpush.xpose.msra.mxu0 0.0
    %2382 = vmatpush.xpose.msra.mxu0 0.0
    %2383 = vmatpush.xpose.msra.mxu0 0.0
    %2384 = vmatpush.xpose.msra.mxu0 0.0
    %2385 = vmatpush.xpose.msra.mxu0 0.0
    %2386 = vmatpush.xpose.msra.mxu0 0.0
    %2387 = vmatpush.xpose.msra.mxu0 0.0
    %2388 = vmatpush.xpose.msra.mxu0 %v497
    %2389 = vmatpush.xpose.msra.mxu0 %v494
    %2390 = vmatmul.f32.gmra.mxu0 %v2226
    %v2391 = vpop.f32.mrf.mxu0
    %v2392 = vadd.f32 0.0, %v2391
    %2393 = vdwg.mxu0
    %v2394 = vsel %vm814, %v2252, -inf
    %2395 = vmax.xlane.f32.xlu0 %v2394
    %v2396 = vpop.xlane.xlu0 %2395
    %v2397 = vsel %vm814, %v2272, -inf
    %2398 = vmax.xlane.f32.xlu0 %v2397
    %v2399 = vpop.xlane.xlu0 %2398
    %v2400 = vsel %vm814, %v2292, -inf
    %2401 = vmax.xlane.f32.xlu0 %v2400
    %v2402 = vpop.xlane.xlu0 %2401
    %v2403 = vsel %vm814, %v2312, -inf
    %2404 = vmax.xlane.f32.xlu0 %v2403
    %v2405 = vpop.xlane.xlu0 %2404
    %v2406 = vsel %vm814, %v2332, -inf
    %2407 = vmax.xlane.f32.xlu0 %v2406
    %v2408 = vpop.xlane.xlu0 %2407
    %v2409 = vsel %vm814, %v2352, -inf
    %2410 = vmax.xlane.f32.xlu0 %v2409
    %v2411 = vpop.xlane.xlu0 %2410
    %v2412 = vsel %vm814, %v2372, -inf
    %2413 = vmax.xlane.f32.xlu0 %v2412
    %v2414 = vpop.xlane.xlu0 %2413
    %v2415 = vsel %vm814, %v2392, -inf
    %2416 = vmax.xlane.f32.xlu0 %v2415
    %v2417 = vpop.xlane.xlu0 %2416
    %v2418 = vsub.f32 %v2252, %v2396
    %v2419 = vsub.f32 %v2272, %v2399
    %v2420 = vsub.f32 %v2292, %v2402
    %v2421 = vsub.f32 %v2312, %v2405
    %v2422 = vsub.f32 %v2332, %v2408
    %v2423 = vsub.f32 %v2352, %v2411
    %v2424 = vsub.f32 %v2372, %v2414
    %v2425 = vsub.f32 %v2392, %v2417
    %v2426 = vmul.f32 %v2418, 1.442695
    %v2427 = vpow.pop %v2426
    %v2428 = vmul.f32 %v2419, 1.442695
    %v2429 = vpow.pop %v2428
    %v2430 = vmul.f32 %v2420, 1.442695
    %v2431 = vpow.pop %v2430
    %v2432 = vmul.f32 %v2421, 1.442695
    %v2433 = vpow.pop %v2432
    %v2434 = vmul.f32 %v2422, 1.442695
    %v2435 = vpow.pop %v2434
    %v2436 = vmul.f32 %v2423, 1.442695
    %v2437 = vpow.pop %v2436
    %v2438 = vmul.f32 %v2424, 1.442695
    %v2439 = vpow.pop %v2438
    %v2440 = vmul.f32 %v2425, 1.442695
    %v2441 = vpow.pop %v2440
    %v2442 = vsel %vm814, %v2427, 0.0
    %2443 = vadd.xlane.f32.xlu0 %v2442
    %v2444 = vpop.xlane.xlu0 %2443
    %v2445 = vsel %vm814, %v2429, 0.0
    %2446 = vadd.xlane.f32.xlu0 %v2445
    %v2447 = vpop.xlane.xlu0 %2446
    %v2448 = vsel %vm814, %v2431, 0.0
    %2449 = vadd.xlane.f32.xlu0 %v2448
    %v2450 = vpop.xlane.xlu0 %2449
    %v2451 = vsel %vm814, %v2433, 0.0
    %2452 = vadd.xlane.f32.xlu0 %v2451
    %v2453 = vpop.xlane.xlu0 %2452
    %v2454 = vsel %vm814, %v2435, 0.0
    %2455 = vadd.xlane.f32.xlu0 %v2454
    %v2456 = vpop.xlane.xlu0 %2455
    %v2457 = vsel %vm814, %v2437, 0.0
    %2458 = vadd.xlane.f32.xlu0 %v2457
    %v2459 = vpop.xlane.xlu0 %2458
    %v2460 = vsel %vm814, %v2439, 0.0
    %2461 = vadd.xlane.f32.xlu0 %v2460
    %v2462 = vpop.xlane.xlu0 %2461
    %v2463 = vsel %vm814, %v2441, 0.0
    %2464 = vadd.xlane.f32.xlu0 %v2463
    %v2465 = vpop.xlane.xlu0 %2464
    %v2466 = vrcp.pop %v2444
    %v2467 = vrcp.pop %v2447
    %v2468 = vrcp.pop %v2450
    %v2469 = vrcp.pop %v2453
    %v2470 = vrcp.pop %v2456
    %v2471 = vrcp.pop %v2459
    %v2472 = vrcp.pop %v2462
    %v2473 = vrcp.pop %v2465
    %v2474 = vmul.f32 %v2427, %v2466
    %v2475 = vmul.f32 %v2429, %v2467
    %v2476 = vmul.f32 %v2431, %v2468
    %v2477 = vmul.f32 %v2433, %v2469
    %v2478 = vmul.f32 %v2435, %v2470
    %v2479 = vmul.f32 %v2437, %v2471
    %v2480 = vmul.f32 %v2439, %v2472
    %v2481 = vmul.f32 %v2441, %v2473
    %v2483 = vsel %vm903, %v2474, 0
    %2485 = vmatpush.msra.mxu0 0.0
    %2486 = vmatpush.msra.mxu0 0.0
    %2487 = vmatpush.msra.mxu0 0.0
    %2488 = vmatpush.msra.mxu0 0.0
    %2489 = vmatpush.msra.mxu0 0.0
    %2490 = vmatpush.msra.mxu0 0.0
    %2491 = vmatpush.msra.mxu0 0.0
    %2492 = vmatpush.msra.mxu0 0.0
    %2493 = vmatpush.msra.mxu0 0.0
    %2494 = vmatpush.msra.mxu0 0.0
    %2495 = vmatpush.msra.mxu0 0.0
    %2496 = vmatpush.msra.mxu0 0.0
    %2497 = vmatpush.msra.mxu0 0.0
    %2498 = vmatpush.msra.mxu0 0.0
    %2499 = vmatpush.msra.mxu0 %v112
    %2500 = vmatpush.msra.mxu0 %v111
    %2501 = vmatmul.f32.gmra.mxu0 %v2483
    %v2502 = vpop.f32.mrf.mxu0
    %v2503 = vadd.f32 0.0, %v2502
    %2504 = vdwg.mxu0
    %v2506 = vsel %vm903, %v2475, 0
    %2508 = vmatpush.msra.mxu0 0.0
    %2509 = vmatpush.msra.mxu0 0.0
    %2510 = vmatpush.msra.mxu0 0.0
    %2511 = vmatpush.msra.mxu0 0.0
    %2512 = vmatpush.msra.mxu0 0.0
    %2513 = vmatpush.msra.mxu0 0.0
    %2514 = vmatpush.msra.mxu0 0.0
    %2515 = vmatpush.msra.mxu0 0.0
    %2516 = vmatpush.msra.mxu0 0.0
    %2517 = vmatpush.msra.mxu0 0.0
    %2518 = vmatpush.msra.mxu0 0.0
    %2519 = vmatpush.msra.mxu0 0.0
    %2520 = vmatpush.msra.mxu0 0.0
    %2521 = vmatpush.msra.mxu0 0.0
    %2522 = vmatpush.msra.mxu0 %v114
    %2523 = vmatpush.msra.mxu0 %v113
    %2524 = vmatmul.f32.gmra.mxu0 %v2506
    %v2525 = vpop.f32.mrf.mxu0
    %v2526 = vadd.f32 0.0, %v2525
    %2527 = vdwg.mxu0
    %v2529 = vsel %vm903, %v2476, 0
    %2531 = vmatpush.msra.mxu0 0.0
    %2532 = vmatpush.msra.mxu0 0.0
    %2533 = vmatpush.msra.mxu0 0.0
    %2534 = vmatpush.msra.mxu0 0.0
    %2535 = vmatpush.msra.mxu0 0.0
    %2536 = vmatpush.msra.mxu0 0.0
    %2537 = vmatpush.msra.mxu0 0.0
    %2538 = vmatpush.msra.mxu0 0.0
    %2539 = vmatpush.msra.mxu0 0.0
    %2540 = vmatpush.msra.mxu0 0.0
    %2541 = vmatpush.msra.mxu0 0.0
    %2542 = vmatpush.msra.mxu0 0.0
    %2543 = vmatpush.msra.mxu0 0.0
    %2544 = vmatpush.msra.mxu0 0.0
    %2545 = vmatpush.msra.mxu0 %v116
    %2546 = vmatpush.msra.mxu0 %v115
    %2547 = vmatmul.f32.gmra.mxu0 %v2529
    %v2548 = vpop.f32.mrf.mxu0
    %v2549 = vadd.f32 0.0, %v2548
    %2550 = vdwg.mxu0
    %v2552 = vsel %vm903, %v2477, 0
    %2554 = vmatpush.msra.mxu0 0.0
    %2555 = vmatpush.msra.mxu0 0.0
    %2556 = vmatpush.msra.mxu0 0.0
    %2557 = vmatpush.msra.mxu0 0.0
    %2558 = vmatpush.msra.mxu0 0.0
    %2559 = vmatpush.msra.mxu0 0.0
    %2560 = vmatpush.msra.mxu0 0.0
    %2561 = vmatpush.msra.mxu0 0.0
    %2562 = vmatpush.msra.mxu0 0.0
    %2563 = vmatpush.msra.mxu0 0.0
    %2564 = vmatpush.msra.mxu0 0.0
    %2565 = vmatpush.msra.mxu0 0.0
    %2566 = vmatpush.msra.mxu0 0.0
    %2567 = vmatpush.msra.mxu0 0.0
    %2568 = vmatpush.msra.mxu0 %v118
    %2569 = vmatpush.msra.mxu0 %v117
    %2570 = vmatmul.f32.gmra.mxu0 %v2552
    %v2571 = vpop.f32.mrf.mxu0
    %v2572 = vadd.f32 0.0, %v2571
    %2573 = vdwg.mxu0
    %v2575 = vsel %vm903, %v2478, 0
    %2577 = vmatpush.msra.mxu0 0.0
    %2578 = vmatpush.msra.mxu0 0.0
    %2579 = vmatpush.msra.mxu0 0.0
    %2580 = vmatpush.msra.mxu0 0.0
    %2581 = vmatpush.msra.mxu0 0.0
    %2582 = vmatpush.msra.mxu0 0.0
    %2583 = vmatpush.msra.mxu0 0.0
    %2584 = vmatpush.msra.mxu0 0.0
    %2585 = vmatpush.msra.mxu0 0.0
    %2586 = vmatpush.msra.mxu0 0.0
    %2587 = vmatpush.msra.mxu0 0.0
    %2588 = vmatpush.msra.mxu0 0.0
    %2589 = vmatpush.msra.mxu0 0.0
    %2590 = vmatpush.msra.mxu0 0.0
    %2591 = vmatpush.msra.mxu0 %v120
    %2592 = vmatpush.msra.mxu0 %v119
    %2593 = vmatmul.f32.gmra.mxu0 %v2575
    %v2594 = vpop.f32.mrf.mxu0
    %v2595 = vadd.f32 0.0, %v2594
    %2596 = vdwg.mxu0
    %v2598 = vsel %vm903, %v2479, 0
    %2600 = vmatpush.msra.mxu0 0.0
    %2601 = vmatpush.msra.mxu0 0.0
    %2602 = vmatpush.msra.mxu0 0.0
    %2603 = vmatpush.msra.mxu0 0.0
    %2604 = vmatpush.msra.mxu0 0.0
    %2605 = vmatpush.msra.mxu0 0.0
    %2606 = vmatpush.msra.mxu0 0.0
    %2607 = vmatpush.msra.mxu0 0.0
    %2608 = vmatpush.msra.mxu0 0.0
    %2609 = vmatpush.msra.mxu0 0.0
    %2610 = vmatpush.msra.mxu0 0.0
    %2611 = vmatpush.msra.mxu0 0.0
    %2612 = vmatpush.msra.mxu0 0.0
    %2613 = vmatpush.msra.mxu0 0.0
    %2614 = vmatpush.msra.mxu0 %v122
    %2615 = vmatpush.msra.mxu0 %v121
    %2616 = vmatmul.f32.gmra.mxu0 %v2598
    %v2617 = vpop.f32.mrf.mxu0
    %v2618 = vadd.f32 0.0, %v2617
    %2619 = vdwg.mxu0
    %v2621 = vsel %vm903, %v2480, 0
    %2623 = vmatpush.msra.mxu0 0.0
    %2624 = vmatpush.msra.mxu0 0.0
    %2625 = vmatpush.msra.mxu0 0.0
    %2626 = vmatpush.msra.mxu0 0.0
    %2627 = vmatpush.msra.mxu0 0.0
    %2628 = vmatpush.msra.mxu0 0.0
    %2629 = vmatpush.msra.mxu0 0.0
    %2630 = vmatpush.msra.mxu0 0.0
    %2631 = vmatpush.msra.mxu0 0.0
    %2632 = vmatpush.msra.mxu0 0.0
    %2633 = vmatpush.msra.mxu0 0.0
    %2634 = vmatpush.msra.mxu0 0.0
    %2635 = vmatpush.msra.mxu0 0.0
    %2636 = vmatpush.msra.mxu0 0.0
    %2637 = vmatpush.msra.mxu0 %v124
    %2638 = vmatpush.msra.mxu0 %v123
    %2639 = vmatmul.f32.gmra.mxu0 %v2621
    %v2640 = vpop.f32.mrf.mxu0
    %v2641 = vadd.f32 0.0, %v2640
    %2642 = vdwg.mxu0
    %v2644 = vsel %vm903, %v2481, 0
    %2646 = vmatpush.msra.mxu0 0.0
    %2647 = vmatpush.msra.mxu0 0.0
    %2648 = vmatpush.msra.mxu0 0.0
    %2649 = vmatpush.msra.mxu0 0.0
    %2650 = vmatpush.msra.mxu0 0.0
    %2651 = vmatpush.msra.mxu0 0.0
    %2652 = vmatpush.msra.mxu0 0.0
    %2653 = vmatpush.msra.mxu0 0.0
    %2654 = vmatpush.msra.mxu0 0.0
    %2655 = vmatpush.msra.mxu0 0.0
    %2656 = vmatpush.msra.mxu0 0.0
    %2657 = vmatpush.msra.mxu0 0.0
    %2658 = vmatpush.msra.mxu0 0.0
    %2659 = vmatpush.msra.mxu0 0.0
    %2660 = vmatpush.msra.mxu0 %v126
    %2661 = vmatpush.msra.mxu0 %v125
    %2662 = vmatmul.f32.gmra.mxu0 %v2644
    %v2663 = vpop.f32.mrf.mxu0
    %v2664 = vadd.f32 0.0, %v2663
    %2665 = vdwg.mxu0
    %v2666 = vld [vmem:[#allocation5] sm:$0xff]
    %v2667 = vld [vmem:[#allocation5 + $0x8] sm:$0xff]
    %v2668 = vld [vmem:[#allocation5 + $0x10] sm:$0xff]
    %v2669 = vld [vmem:[#allocation5 + $0x18] sm:$0xff]
    %v2670 = vld [vmem:[#allocation5 + $0x20] sm:$0xff]
    %v2671 = vld [vmem:[#allocation5 + $0x28] sm:$0xff]
    %v2672 = vld [vmem:[#allocation5 + $0x30] sm:$0xff]
    %v2673 = vld [vmem:[#allocation5 + $0x38] sm:$0xff]
    %v2674 = vld [vmem:[#allocation5 + $0x40] sm:$0xff]
    %v2675 = vld [vmem:[#allocation5 + $0x48] sm:$0xff]
    %v2676 = vld [vmem:[#allocation5 + $0x50] sm:$0xff]
    %v2677 = vld [vmem:[#allocation5 + $0x58] sm:$0xff]
    %v2678 = vld [vmem:[#allocation5 + $0x60] sm:$0xff]
    %v2679 = vld [vmem:[#allocation5 + $0x68] sm:$0xff]
    %v2680 = vld [vmem:[#allocation5 + $0x70] sm:$0xff]
    %v2681 = vld [vmem:[#allocation5 + $0x78] sm:$0xff]
    %v2682 = vld [vmem:[#allocation10] sm:$0xff]
    %v2683 = vld [vmem:[#allocation10 + $0x8] sm:$0xff]
    %v2684 = vld [vmem:[#allocation10 + $0x10] sm:$0xff]
    %v2685 = vld [vmem:[#allocation10 + $0x18] sm:$0xff]
    %v2686 = vld [vmem:[#allocation10 + $0x20] sm:$0xff]
    %v2687 = vld [vmem:[#allocation10 + $0x28] sm:$0xff]
    %v2688 = vld [vmem:[#allocation10 + $0x30] sm:$0xff]
    %v2689 = vld [vmem:[#allocation10 + $0x38] sm:$0xff]
    %v2690 = vld [vmem:[#allocation10 + $0x40] sm:$0xff]
    %v2691 = vld [vmem:[#allocation10 + $0x48] sm:$0xff]
    %v2692 = vld [vmem:[#allocation10 + $0x50] sm:$0xff]
    %v2693 = vld [vmem:[#allocation10 + $0x58] sm:$0xff]
    %v2694 = vld [vmem:[#allocation10 + $0x60] sm:$0xff]
    %v2695 = vld [vmem:[#allocation10 + $0x68] sm:$0xff]
    %v2696 = vld [vmem:[#allocation10 + $0x70] sm:$0xff]
    %v2697 = vld [vmem:[#allocation10 + $0x78] sm:$0xff]
    %v2698 = vld [vmem:[#allocation10 + $0x80] sm:$0xff]
    %v2699 = vld [vmem:[#allocation10 + $0x88] sm:$0xff]
    %v2700 = vld [vmem:[#allocation10 + $0x90] sm:$0xff]
    %v2701 = vld [vmem:[#allocation10 + $0x98] sm:$0xff]
    %v2702 = vld [vmem:[#allocation10 + $0xa0] sm:$0xff]
    %v2703 = vld [vmem:[#allocation10 + $0xa8] sm:$0xff]
    %v2704 = vld [vmem:[#allocation10 + $0xb0] sm:$0xff]
    %v2705 = vld [vmem:[#allocation10 + $0xb8] sm:$0xff]
    %v2706 = vld [vmem:[#allocation10 + $0xc0] sm:$0xff]
    %v2707 = vld [vmem:[#allocation10 + $0xc8] sm:$0xff]
    %v2708 = vld [vmem:[#allocation10 + $0xd0] sm:$0xff]
    %v2709 = vld [vmem:[#allocation10 + $0xd8] sm:$0xff]
    %v2710 = vld [vmem:[#allocation10 + $0xe0] sm:$0xff]
    %v2711 = vld [vmem:[#allocation10 + $0xe8] sm:$0xff]
    %v2712 = vld [vmem:[#allocation10 + $0xf0] sm:$0xff]
    %v2713 = vld [vmem:[#allocation10 + $0xf8] sm:$0xff]
    %v2714 = vld [vmem:[#allocation10 + $0x100] sm:$0xff]
    %v2715 = vld [vmem:[#allocation10 + $0x108] sm:$0xff]
    %v2716 = vld [vmem:[#allocation10 + $0x110] sm:$0xff]
    %v2717 = vld [vmem:[#allocation10 + $0x118] sm:$0xff]
    %v2718 = vld [vmem:[#allocation10 + $0x120] sm:$0xff]
    %v2719 = vld [vmem:[#allocation10 + $0x128] sm:$0xff]
    %v2720 = vld [vmem:[#allocation10 + $0x130] sm:$0xff]
    %v2721 = vld [vmem:[#allocation10 + $0x138] sm:$0xff]
    %v2722 = vld [vmem:[#allocation10 + $0x140] sm:$0xff]
    %v2723 = vld [vmem:[#allocation10 + $0x148] sm:$0xff]
    %v2724 = vld [vmem:[#allocation10 + $0x150] sm:$0xff]
    %v2725 = vld [vmem:[#allocation10 + $0x158] sm:$0xff]
    %v2726 = vld [vmem:[#allocation10 + $0x160] sm:$0xff]
    %v2727 = vld [vmem:[#allocation10 + $0x168] sm:$0xff]
    %v2728 = vld [vmem:[#allocation10 + $0x170] sm:$0xff]
    %v2729 = vld [vmem:[#allocation10 + $0x178] sm:$0xff]
    %v2730 = vld [vmem:[#allocation10 + $0x180] sm:$0xff]
    %v2731 = vld [vmem:[#allocation10 + $0x188] sm:$0xff]
    %v2732 = vld [vmem:[#allocation10 + $0x190] sm:$0xff]
    %v2733 = vld [vmem:[#allocation10 + $0x198] sm:$0xff]
    %v2734 = vld [vmem:[#allocation10 + $0x1a0] sm:$0xff]
    %v2735 = vld [vmem:[#allocation10 + $0x1a8] sm:$0xff]
    %v2736 = vld [vmem:[#allocation10 + $0x1b0] sm:$0xff]
    %v2737 = vld [vmem:[#allocation10 + $0x1b8] sm:$0xff]
    %v2738 = vld [vmem:[#allocation10 + $0x1c0] sm:$0xff]
    %v2739 = vld [vmem:[#allocation10 + $0x1c8] sm:$0xff]
    %v2740 = vld [vmem:[#allocation10 + $0x1d0] sm:$0xff]
    %v2741 = vld [vmem:[#allocation10 + $0x1d8] sm:$0xff]
    %v2742 = vld [vmem:[#allocation10 + $0x1e0] sm:$0xff]
    %v2743 = vld [vmem:[#allocation10 + $0x1e8] sm:$0xff]
    %v2744 = vld [vmem:[#allocation10 + $0x1f0] sm:$0xff]
    %v2745 = vld [vmem:[#allocation10 + $0x1f8] sm:$0xff]
    %2746 = vmatpush.msra.mxu0 %v2742
    %2747 = vmatpush.msra.mxu0 %v2738
    %2748 = vmatpush.msra.mxu0 %v2734
    %2749 = vmatpush.msra.mxu0 %v2730
    %2750 = vmatpush.msra.mxu0 %v2726
    %2751 = vmatpush.msra.mxu0 %v2722
    %2752 = vmatpush.msra.mxu0 %v2718
    %2753 = vmatpush.msra.mxu0 %v2714
    %2754 = vmatpush.msra.mxu0 %v2710
    %2755 = vmatpush.msra.mxu0 %v2706
    %2756 = vmatpush.msra.mxu0 %v2702
    %2757 = vmatpush.msra.mxu0 %v2698
    %2758 = vmatpush.msra.mxu0 %v2694
    %2759 = vmatpush.msra.mxu0 %v2690
    %2760 = vmatpush.msra.mxu0 %v2686
    %2761 = vmatpush.msra.mxu0 %v2682
    %2762 = vmatmul.f32.gmra.mxu0 %v2213
    %v2763 = vpop.f32.mrf.mxu0
    %v2764 = vadd.f32 0.0, %v2763
    %2765 = vdwg.mxu0
    %2766 = vmatpush.msra.mxu0 %v2743
    %2767 = vmatpush.msra.mxu0 %v2739
    %2768 = vmatpush.msra.mxu0 %v2735
    %2769 = vmatpush.msra.mxu0 %v2731
    %2770 = vmatpush.msra.mxu0 %v2727
    %2771 = vmatpush.msra.mxu0 %v2723
    %2772 = vmatpush.msra.mxu0 %v2719
    %2773 = vmatpush.msra.mxu0 %v2715
    %2774 = vmatpush.msra.mxu0 %v2711
    %2775 = vmatpush.msra.mxu0 %v2707
    %2776 = vmatpush.msra.mxu0 %v2703
    %2777 = vmatpush.msra.mxu0 %v2699
    %2778 = vmatpush.msra.mxu0 %v2695
    %2779 = vmatpush.msra.mxu0 %v2691
    %2780 = vmatpush.msra.mxu0 %v2687
    %2781 = vmatpush.msra.mxu0 %v2683
    %2782 = vmatmul.f32.gmra.mxu0 %v2213
    %v2783 = vpop.f32.mrf.mxu0
    %v2784 = vadd.f32 0.0, %v2783
    %2785 = vdwg.mxu0
    %2786 = vmatpush.msra.mxu0 %v2744
    %2787 = vmatpush.msra.mxu0 %v2740
    %2788 = vmatpush.msra.mxu0 %v2736
    %2789 = vmatpush.msra.mxu0 %v2732
    %2790 = vmatpush.msra.mxu0 %v2728
    %2791 = vmatpush.msra.mxu0 %v2724
    %2792 = vmatpush.msra.mxu0 %v2720
    %2793 = vmatpush.msra.mxu0 %v2716
    %2794 = vmatpush.msra.mxu0 %v2712
    %2795 = vmatpush.msra.mxu0 %v2708
    %2796 = vmatpush.msra.mxu0 %v2704
    %2797 = vmatpush.msra.mxu0 %v2700
    %2798 = vmatpush.msra.mxu0 %v2696
    %2799 = vmatpush.msra.mxu0 %v2692
    %2800 = vmatpush.msra.mxu0 %v2688
    %2801 = vmatpush.msra.mxu0 %v2684
    %2802 = vmatmul.f32.gmra.mxu0 %v2213
    %v2803 = vpop.f32.mrf.mxu0
    %v2804 = vadd.f32 0.0, %v2803
    %2805 = vdwg.mxu0
    %2806 = vmatpush.msra.mxu0 %v2745
    %2807 = vmatpush.msra.mxu0 %v2741
    %2808 = vmatpush.msra.mxu0 %v2737
    %2809 = vmatpush.msra.mxu0 %v2733
    %2810 = vmatpush.msra.mxu0 %v2729
    %2811 = vmatpush.msra.mxu0 %v2725
    %2812 = vmatpush.msra.mxu0 %v2721
    %2813 = vmatpush.msra.mxu0 %v2717
    %2814 = vmatpush.msra.mxu0 %v2713
    %2815 = vmatpush.msra.mxu0 %v2709
    %2816 = vmatpush.msra.mxu0 %v2705
    %2817 = vmatpush.msra.mxu0 %v2701
    %2818 = vmatpush.msra.mxu0 %v2697
    %2819 = vmatpush.msra.mxu0 %v2693
    %2820 = vmatpush.msra.mxu0 %v2689
    %2821 = vmatpush.msra.mxu0 %v2685
    %2822 = vmatmul.f32.gmra.mxu0 %v2213
    %v2823 = vpop.f32.mrf.mxu0
    %v2824 = vadd.f32 0.0, %v2823
    %2825 = vdwg.mxu0
    %v2834 = vrot.slane %v2526, 7
    %v2835 = vsel %vm602, %v2834, %v2503
    %v2836 = vrot.slane %v2549, 6
    %v2837 = vsel %vm604, %v2836, %v2835
    %v2838 = vrot.slane %v2572, 5
    %v2839 = vsel %vm606, %v2838, %v2837
    %v2840 = vrot.slane %v2595, 4
    %v2841 = vsel %vm608, %v2840, %v2839
    %v2842 = vrot.slane %v2618, 3
    %v2843 = vsel %vm610, %v2842, %v2841
    %v2844 = vrot.slane %v2641, 2
    %v2845 = vsel %vm612, %v2844, %v2843
    %v2846 = vrot.slane %v2664, 1
    %v2847 = vsel %vm614, %v2846, %v2845
    %v2848 = vsel %vm161, %v2847, 0
    %2850 = vmatpush.msra.mxu0 0.0
    %2851 = vmatpush.msra.mxu0 0.0
    %2852 = vmatpush.msra.mxu0 0.0
    %2853 = vmatpush.msra.mxu0 0.0
    %2854 = vmatpush.msra.mxu0 0.0
    %2855 = vmatpush.msra.mxu0 0.0
    %2856 = vmatpush.msra.mxu0 0.0
    %2857 = vmatpush.msra.mxu0 0.0
    %2858 = vmatpush.msra.mxu0 0.0
    %2859 = vmatpush.msra.mxu0 0.0
    %2860 = vmatpush.msra.mxu0 0.0
    %2861 = vmatpush.msra.mxu0 0.0
    %2862 = vmatpush.msra.mxu0 %v2678
    %2863 = vmatpush.msra.mxu0 %v2674
    %2864 = vmatpush.msra.mxu0 %v2670
    %2865 = vmatpush.msra.mxu0 %v2666
    %2866 = vmatmul.f32.gmra.mxu0 %v2848
    %v2867 = vpop.f32.mrf.mxu0
    %v2868 = vadd.f32 %v2764, %v2867
    %2869 = vdwg.mxu0
    %2870 = vmatpush.msra.mxu0 0.0
    %2871 = vmatpush.msra.mxu0 0.0
    %2872 = vmatpush.msra.mxu0 0.0
    %2873 = vmatpush.msra.mxu0 0.0
    %2874 = vmatpush.msra.mxu0 0.0
    %2875 = vmatpush.msra.mxu0 0.0
    %2876 = vmatpush.msra.mxu0 0.0
    %2877 = vmatpush.msra.mxu0 0.0
    %2878 = vmatpush.msra.mxu0 0.0
    %2879 = vmatpush.msra.mxu0 0.0
    %2880 = vmatpush.msra.mxu0 0.0
    %2881 = vmatpush.msra.mxu0 0.0
    %2882 = vmatpush.msra.mxu0 %v2679
    %2883 = vmatpush.msra.mxu0 %v2675
    %2884 = vmatpush.msra.mxu0 %v2671
    %2885 = vmatpush.msra.mxu0 %v2667
    %2886 = vmatmul.f32.gmra.mxu0 %v2848
    %v2887 = vpop.f32.mrf.mxu0
    %v2888 = vadd.f32 %v2784, %v2887
    %2889 = vdwg.mxu0
    %2890 = vmatpush.msra.mxu0 0.0
    %2891 = vmatpush.msra.mxu0 0.0
    %2892 = vmatpush.msra.mxu0 0.0
    %2893 = vmatpush.msra.mxu0 0.0
    %2894 = vmatpush.msra.mxu0 0.0
    %2895 = vmatpush.msra.mxu0 0.0
    %2896 = vmatpush.msra.mxu0 0.0
    %2897 = vmatpush.msra.mxu0 0.0
    %2898 = vmatpush.msra.mxu0 0.0
    %2899 = vmatpush.msra.mxu0 0.0
    %2900 = vmatpush.msra.mxu0 0.0
    %2901 = vmatpush.msra.mxu0 0.0
    %2902 = vmatpush.msra.mxu0 %v2680
    %2903 = vmatpush.msra.mxu0 %v2676
    %2904 = vmatpush.msra.mxu0 %v2672
    %2905 = vmatpush.msra.mxu0 %v2668
    %2906 = vmatmul.f32.gmra.mxu0 %v2848
    %v2907 = vpop.f32.mrf.mxu0
    %v2908 = vadd.f32 %v2804, %v2907
    %2909 = vdwg.mxu0
    %2910 = vmatpush.msra.mxu0 0.0
    %2911 = vmatpush.msra.mxu0 0.0
    %2912 = vmatpush.msra.mxu0 0.0
    %2913 = vmatpush.msra.mxu0 0.0
    %2914 = vmatpush.msra.mxu0 0.0
    %2915 = vmatpush.msra.mxu0 0.0
    %2916 = vmatpush.msra.mxu0 0.0
    %2917 = vmatpush.msra.mxu0 0.0
    %2918 = vmatpush.msra.mxu0 0.0
    %2919 = vmatpush.msra.mxu0 0.0
    %2920 = vmatpush.msra.mxu0 0.0
    %2921 = vmatpush.msra.mxu0 0.0
    %2922 = vmatpush.msra.mxu0 %v2681
    %2923 = vmatpush.msra.mxu0 %v2677
    %2924 = vmatpush.msra.mxu0 %v2673
    %2925 = vmatpush.msra.mxu0 %v2669
    %2926 = vmatmul.f32.gmra.mxu0 %v2848
    %v2927 = vpop.f32.mrf.mxu0
    %v2928 = vadd.f32 %v2824, %v2927
    %2929 = vdwg.mxu0
    %s2930 = smul.u32 2, 4
    %s2931 = smul.addr %s2930, 8
    %s2932 = scalar_lea.vmem [#allocation2], %s2931
    %v2933 = vld [vmem:[%s2932] sm:$0xff]
    %v2934 = vld [vmem:[%s2932 + $0x8] sm:$0xff]
    %v2935 = vld [vmem:[%s2932 + $0x10] sm:$0xff]
    %v2936 = vld [vmem:[%s2932 + $0x18] sm:$0xff]
    %v2937 = vadd.f32 %v2868, %v2933
    %v2938 = vadd.f32 %v2888, %v2934
    %v2939 = vadd.f32 %v2908, %v2935
    %v2940 = vadd.f32 %v2928, %v2936
    %v2941 = vxor.u32 %v2937, 2147483648
    %v2942 = vmul.f32 %v2941, 1.442695
    %v2943 = vpow.pop %v2942
    %v2944 = vadd.f32 %v2943, 1.0
    %v2945 = vrcp.pop %v2944
    %v2946 = vmul.f32 %v2944, %v2945
    %v2947 = vsub.f32 1.0, %v2946
    %v2948 = vmul.f32 %v2945, %v2947
    %v2949 = vadd.f32 %v2945, %v2948
    %vm2950 = vweird.f32 %v2944
    %vm2951 = vweird.f32 %v2945
    %vm2952 = vmor %vm2950, %vm2951
    %v2953 = vsel %vm2952, %v2945, %v2949
    %v2954 = vand.u32 2147483647, %v2944
    %vm2955 = vcmp.eq.f32.partialorder %v2954, 8.507059e+37
    %v2956 = vand.u32 %v2944, 2147483648
    %v2957 = vor.u32 1.1754944e-38, %v2956
    %v2958 = vsel %vm2955, %v2957, %v2953
    %v2959 = vmul.f32 1.0, %v2958
    %v2960 = vxor.u32 %v2938, 2147483648
    %v2961 = vmul.f32 %v2960, 1.442695
    %v2962 = vpow.pop %v2961
    %v2963 = vadd.f32 %v2962, 1.0
    %v2964 = vrcp.pop %v2963
    %v2965 = vmul.f32 %v2963, %v2964
    %v2966 = vsub.f32 1.0, %v2965
    %v2967 = vmul.f32 %v2964, %v2966
    %v2968 = vadd.f32 %v2964, %v2967
    %vm2969 = vweird.f32 %v2963
    %vm2970 = vweird.f32 %v2964
    %vm2971 = vmor %vm2969, %vm2970
    %v2972 = vsel %vm2971, %v2964, %v2968
    %v2973 = vand.u32 2147483647, %v2963
    %vm2974 = vcmp.eq.f32.partialorder %v2973, 8.507059e+37
    %v2975 = vand.u32 %v2963, 2147483648
    %v2976 = vor.u32 1.1754944e-38, %v2975
    %v2977 = vsel %vm2974, %v2976, %v2972
    %v2978 = vmul.f32 1.0, %v2977
    %v2979 = vtanh.pop %v2939
    %v2980 = vxor.u32 %v2940, 2147483648
    %v2981 = vmul.f32 %v2980, 1.442695
    %v2982 = vpow.pop %v2981
    %v2983 = vadd.f32 %v2982, 1.0
    %v2984 = vrcp.pop %v2983
    %v2985 = vmul.f32 %v2983, %v2984
    %v2986 = vsub.f32 1.0, %v2985
    %v2987 = vmul.f32 %v2984, %v2986
    %v2988 = vadd.f32 %v2984, %v2987
    %vm2989 = vweird.f32 %v2983
    %vm2990 = vweird.f32 %v2984
    %vm2991 = vmor %vm2989, %vm2990
    %v2992 = vsel %vm2991, %v2984, %v2988
    %v2993 = vand.u32 2147483647, %v2983
    %vm2994 = vcmp.eq.f32.partialorder %v2993, 8.507059e+37
    %v2995 = vand.u32 %v2983, 2147483648
    %v2996 = vor.u32 1.1754944e-38, %v2995
    %v2997 = vsel %vm2994, %v2996, %v2992
    %v2998 = vmul.f32 1.0, %v2997
    %v2999 = vmul.f32 %v2978, %v2211
    %v3000 = vmul.f32 %v2959, %v2979
    %v3001 = vadd.f32 %v2999, %v3000
    %v3002 = vtanh.pop %v3001
    %v3003 = vmul.f32 %v2998, %v3002
    %s3004 = scalar_lea.vmem [#allocation3], 16
    %3005 = vst [vmem:[%s3004] sm:$0xff] %v3003
    %s3007 = scalar_lea.vmem [#allocation4], 16
    %3008 = vst.msk [vmem:[%s3007] sm:$0xff] %vm161, %v2847
    %v3010 = vrot.slane %v3003, 1
    %v3011 = vrot.slane %v3003, 2
    %v3012 = vrot.slane %v3003, 3
    %v3013 = vrot.slane %v3003, 4
    %v3014 = vrot.slane %v3003, 5
    %v3015 = vrot.slane %v3003, 6
    %v3016 = vrot.slane %v3003, 7
    %3024 = vmatpush.xpose.msra.mxu0 0.0
    %3025 = vmatpush.xpose.msra.mxu0 0.0
    %3026 = vmatpush.xpose.msra.mxu0 0.0
    %3027 = vmatpush.xpose.msra.mxu0 0.0
    %3028 = vmatpush.xpose.msra.mxu0 0.0
    %3029 = vmatpush.xpose.msra.mxu0 0.0
    %3030 = vmatpush.xpose.msra.mxu0 0.0
    %3031 = vmatpush.xpose.msra.mxu0 0.0
    %3032 = vmatpush.xpose.msra.mxu0 0.0
    %3033 = vmatpush.xpose.msra.mxu0 0.0
    %3034 = vmatpush.xpose.msra.mxu0 0.0
    %3035 = vmatpush.xpose.msra.mxu0 0.0
    %3036 = vmatpush.xpose.msra.mxu0 0.0
    %3037 = vmatpush.xpose.msra.mxu0 0.0
    %3038 = vmatpush.xpose.msra.mxu0 %v455
    %3039 = vmatpush.xpose.msra.mxu0 %v452
    %3040 = vmatmul.f32.gmra.mxu0 %v3003
    %v3041 = vpop.f32.mrf.mxu0
    %v3042 = vadd.f32 0.0, %v3041
    %3043 = vdwg.mxu0
    %3044 = vmatpush.xpose.msra.mxu0 0.0
    %3045 = vmatpush.xpose.msra.mxu0 0.0
    %3046 = vmatpush.xpose.msra.mxu0 0.0
    %3047 = vmatpush.xpose.msra.mxu0 0.0
    %3048 = vmatpush.xpose.msra.mxu0 0.0
    %3049 = vmatpush.xpose.msra.mxu0 0.0
    %3050 = vmatpush.xpose.msra.mxu0 0.0
    %3051 = vmatpush.xpose.msra.mxu0 0.0
    %3052 = vmatpush.xpose.msra.mxu0 0.0
    %3053 = vmatpush.xpose.msra.mxu0 0.0
    %3054 = vmatpush.xpose.msra.mxu0 0.0
    %3055 = vmatpush.xpose.msra.mxu0 0.0
    %3056 = vmatpush.xpose.msra.mxu0 0.0
    %3057 = vmatpush.xpose.msra.mxu0 0.0
    %3058 = vmatpush.xpose.msra.mxu0 %v461
    %3059 = vmatpush.xpose.msra.mxu0 %v458
    %3060 = vmatmul.f32.gmra.mxu0 %v3010
    %v3061 = vpop.f32.mrf.mxu0
    %v3062 = vadd.f32 0.0, %v3061
    %3063 = vdwg.mxu0
    %3064 = vmatpush.xpose.msra.mxu0 0.0
    %3065 = vmatpush.xpose.msra.mxu0 0.0
    %3066 = vmatpush.xpose.msra.mxu0 0.0
    %3067 = vmatpush.xpose.msra.mxu0 0.0
    %3068 = vmatpush.xpose.msra.mxu0 0.0
    %3069 = vmatpush.xpose.msra.mxu0 0.0
    %3070 = vmatpush.xpose.msra.mxu0 0.0
    %3071 = vmatpush.xpose.msra.mxu0 0.0
    %3072 = vmatpush.xpose.msra.mxu0 0.0
    %3073 = vmatpush.xpose.msra.mxu0 0.0
    %3074 = vmatpush.xpose.msra.mxu0 0.0
    %3075 = vmatpush.xpose.msra.mxu0 0.0
    %3076 = vmatpush.xpose.msra.mxu0 0.0
    %3077 = vmatpush.xpose.msra.mxu0 0.0
    %3078 = vmatpush.xpose.msra.mxu0 %v467
    %3079 = vmatpush.xpose.msra.mxu0 %v464
    %3080 = vmatmul.f32.gmra.mxu0 %v3011
    %v3081 = vpop.f32.mrf.mxu0
    %v3082 = vadd.f32 0.0, %v3081
    %3083 = vdwg.mxu0
    %3084 = vmatpush.xpose.msra.mxu0 0.0
    %3085 = vmatpush.xpose.msra.mxu0 0.0
    %3086 = vmatpush.xpose.msra.mxu0 0.0
    %3087 = vmatpush.xpose.msra.mxu0 0.0
    %3088 = vmatpush.xpose.msra.mxu0 0.0
    %3089 = vmatpush.xpose.msra.mxu0 0.0
    %3090 = vmatpush.xpose.msra.mxu0 0.0
    %3091 = vmatpush.xpose.msra.mxu0 0.0
    %3092 = vmatpush.xpose.msra.mxu0 0.0
    %3093 = vmatpush.xpose.msra.mxu0 0.0
    %3094 = vmatpush.xpose.msra.mxu0 0.0
    %3095 = vmatpush.xpose.msra.mxu0 0.0
    %3096 = vmatpush.xpose.msra.mxu0 0.0
    %3097 = vmatpush.xpose.msra.mxu0 0.0
    %3098 = vmatpush.xpose.msra.mxu0 %v473
    %3099 = vmatpush.xpose.msra.mxu0 %v470
    %3100 = vmatmul.f32.gmra.mxu0 %v3012
    %v3101 = vpop.f32.mrf.mxu0
    %v3102 = vadd.f32 0.0, %v3101
    %3103 = vdwg.mxu0
    %3104 = vmatpush.xpose.msra.mxu0 0.0
    %3105 = vmatpush.xpose.msra.mxu0 0.0
    %3106 = vmatpush.xpose.msra.mxu0 0.0
    %3107 = vmatpush.xpose.msra.mxu0 0.0
    %3108 = vmatpush.xpose.msra.mxu0 0.0
    %3109 = vmatpush.xpose.msra.mxu0 0.0
    %3110 = vmatpush.xpose.msra.mxu0 0.0
    %3111 = vmatpush.xpose.msra.mxu0 0.0
    %3112 = vmatpush.xpose.msra.mxu0 0.0
    %3113 = vmatpush.xpose.msra.mxu0 0.0
    %3114 = vmatpush.xpose.msra.mxu0 0.0
    %3115 = vmatpush.xpose.msra.mxu0 0.0
    %3116 = vmatpush.xpose.msra.mxu0 0.0
    %3117 = vmatpush.xpose.msra.mxu0 0.0
    %3118 = vmatpush.xpose.msra.mxu0 %v479
    %3119 = vmatpush.xpose.msra.mxu0 %v476
    %3120 = vmatmul.f32.gmra.mxu0 %v3013
    %v3121 = vpop.f32.mrf.mxu0
    %v3122 = vadd.f32 0.0, %v3121
    %3123 = vdwg.mxu0
    %3124 = vmatpush.xpose.msra.mxu0 0.0
    %3125 = vmatpush.xpose.msra.mxu0 0.0
    %3126 = vmatpush.xpose.msra.mxu0 0.0
    %3127 = vmatpush.xpose.msra.mxu0 0.0
    %3128 = vmatpush.xpose.msra.mxu0 0.0
    %3129 = vmatpush.xpose.msra.mxu0 0.0
    %3130 = vmatpush.xpose.msra.mxu0 0.0
    %3131 = vmatpush.xpose.msra.mxu0 0.0
    %3132 = vmatpush.xpose.msra.mxu0 0.0
    %3133 = vmatpush.xpose.msra.mxu0 0.0
    %3134 = vmatpush.xpose.msra.mxu0 0.0
    %3135 = vmatpush.xpose.msra.mxu0 0.0
    %3136 = vmatpush.xpose.msra.mxu0 0.0
    %3137 = vmatpush.xpose.msra.mxu0 0.0
    %3138 = vmatpush.xpose.msra.mxu0 %v485
    %3139 = vmatpush.xpose.msra.mxu0 %v482
    %3140 = vmatmul.f32.gmra.mxu0 %v3014
    %v3141 = vpop.f32.mrf.mxu0
    %v3142 = vadd.f32 0.0, %v3141
    %3143 = vdwg.mxu0
    %3144 = vmatpush.xpose.msra.mxu0 0.0
    %3145 = vmatpush.xpose.msra.mxu0 0.0
    %3146 = vmatpush.xpose.msra.mxu0 0.0
    %3147 = vmatpush.xpose.msra.mxu0 0.0
    %3148 = vmatpush.xpose.msra.mxu0 0.0
    %3149 = vmatpush.xpose.msra.mxu0 0.0
    %3150 = vmatpush.xpose.msra.mxu0 0.0
    %3151 = vmatpush.xpose.msra.mxu0 0.0
    %3152 = vmatpush.xpose.msra.mxu0 0.0
    %3153 = vmatpush.xpose.msra.mxu0 0.0
    %3154 = vmatpush.xpose.msra.mxu0 0.0
    %3155 = vmatpush.xpose.msra.mxu0 0.0
    %3156 = vmatpush.xpose.msra.mxu0 0.0
    %3157 = vmatpush.xpose.msra.mxu0 0.0
    %3158 = vmatpush.xpose.msra.mxu0 %v491
    %3159 = vmatpush.xpose.msra.mxu0 %v488
    %3160 = vmatmul.f32.gmra.mxu0 %v3015
    %v3161 = vpop.f32.mrf.mxu0
    %v3162 = vadd.f32 0.0, %v3161
    %3163 = vdwg.mxu0
    %3164 = vmatpush.xpose.msra.mxu0 0.0
    %3165 = vmatpush.xpose.msra.mxu0 0.0
    %3166 = vmatpush.xpose.msra.mxu0 0.0
    %3167 = vmatpush.xpose.msra.mxu0 0.0
    %3168 = vmatpush.xpose.msra.mxu0 0.0
    %3169 = vmatpush.xpose.msra.mxu0 0.0
    %3170 = vmatpush.xpose.msra.mxu0 0.0
    %3171 = vmatpush.xpose.msra.mxu0 0.0
    %3172 = vmatpush.xpose.msra.mxu0 0.0
    %3173 = vmatpush.xpose.msra.mxu0 0.0
    %3174 = vmatpush.xpose.msra.mxu0 0.0
    %3175 = vmatpush.xpose.msra.mxu0 0.0
    %3176 = vmatpush.xpose.msra.mxu0 0.0
    %3177 = vmatpush.xpose.msra.mxu0 0.0
    %3178 = vmatpush.xpose.msra.mxu0 %v497
    %3179 = vmatpush.xpose.msra.mxu0 %v494
    %3180 = vmatmul.f32.gmra.mxu0 %v3016
    %v3181 = vpop.f32.mrf.mxu0
    %v3182 = vadd.f32 0.0, %v3181
    %3183 = vdwg.mxu0
    %v3184 = vsel %vm814, %v3042, -inf
    %3185 = vmax.xlane.f32.xlu0 %v3184
    %v3186 = vpop.xlane.xlu0 %3185
    %v3187 = vsel %vm814, %v3062, -inf
    %3188 = vmax.xlane.f32.xlu0 %v3187
    %v3189 = vpop.xlane.xlu0 %3188
    %v3190 = vsel %vm814, %v3082, -inf
    %3191 = vmax.xlane.f32.xlu0 %v3190
    %v3192 = vpop.xlane.xlu0 %3191
    %v3193 = vsel %vm814, %v3102, -inf
    %3194 = vmax.xlane.f32.xlu0 %v3193
    %v3195 = vpop.xlane.xlu0 %3194
    %v3196 = vsel %vm814, %v3122, -inf
    %3197 = vmax.xlane.f32.xlu0 %v3196
    %v3198 = vpop.xlane.xlu0 %3197
    %v3199 = vsel %vm814, %v3142, -inf
    %3200 = vmax.xlane.f32.xlu0 %v3199
    %v3201 = vpop.xlane.xlu0 %3200
    %v3202 = vsel %vm814, %v3162, -inf
    %3203 = vmax.xlane.f32.xlu0 %v3202
    %v3204 = vpop.xlane.xlu0 %3203
    %v3205 = vsel %vm814, %v3182, -inf
    %3206 = vmax.xlane.f32.xlu0 %v3205
    %v3207 = vpop.xlane.xlu0 %3206
    %v3208 = vsub.f32 %v3042, %v3186
    %v3209 = vsub.f32 %v3062, %v3189
    %v3210 = vsub.f32 %v3082, %v3192
    %v3211 = vsub.f32 %v3102, %v3195
    %v3212 = vsub.f32 %v3122, %v3198
    %v3213 = vsub.f32 %v3142, %v3201
    %v3214 = vsub.f32 %v3162, %v3204
    %v3215 = vsub.f32 %v3182, %v3207
    %v3216 = vmul.f32 %v3208, 1.442695
    %v3217 = vpow.pop %v3216
    %v3218 = vmul.f32 %v3209, 1.442695
    %v3219 = vpow.pop %v3218
    %v3220 = vmul.f32 %v3210, 1.442695
    %v3221 = vpow.pop %v3220
    %v3222 = vmul.f32 %v3211, 1.442695
    %v3223 = vpow.pop %v3222
    %v3224 = vmul.f32 %v3212, 1.442695
    %v3225 = vpow.pop %v3224
    %v3226 = vmul.f32 %v3213, 1.442695
    %v3227 = vpow.pop %v3226
    %v3228 = vmul.f32 %v3214, 1.442695
    %v3229 = vpow.pop %v3228
    %v3230 = vmul.f32 %v3215, 1.442695
    %v3231 = vpow.pop %v3230
    %v3232 = vsel %vm814, %v3217, 0.0
    %3233 = vadd.xlane.f32.xlu0 %v3232
    %v3234 = vpop.xlane.xlu0 %3233
    %v3235 = vsel %vm814, %v3219, 0.0
    %3236 = vadd.xlane.f32.xlu0 %v3235
    %v3237 = vpop.xlane.xlu0 %3236
    %v3238 = vsel %vm814, %v3221, 0.0
    %3239 = vadd.xlane.f32.xlu0 %v3238
    %v3240 = vpop.xlane.xlu0 %3239
    %v3241 = vsel %vm814, %v3223, 0.0
    %3242 = vadd.xlane.f32.xlu0 %v3241
    %v3243 = vpop.xlane.xlu0 %3242
    %v3244 = vsel %vm814, %v3225, 0.0
    %3245 = vadd.xlane.f32.xlu0 %v3244
    %v3246 = vpop.xlane.xlu0 %3245
    %v3247 = vsel %vm814, %v3227, 0.0
    %3248 = vadd.xlane.f32.xlu0 %v3247
    %v3249 = vpop.xlane.xlu0 %3248
    %v3250 = vsel %vm814, %v3229, 0.0
    %3251 = vadd.xlane.f32.xlu0 %v3250
    %v3252 = vpop.xlane.xlu0 %3251
    %v3253 = vsel %vm814, %v3231, 0.0
    %3254 = vadd.xlane.f32.xlu0 %v3253
    %v3255 = vpop.xlane.xlu0 %3254
    %v3256 = vrcp.pop %v3234
    %v3257 = vrcp.pop %v3237
    %v3258 = vrcp.pop %v3240
    %v3259 = vrcp.pop %v3243
    %v3260 = vrcp.pop %v3246
    %v3261 = vrcp.pop %v3249
    %v3262 = vrcp.pop %v3252
    %v3263 = vrcp.pop %v3255
    %v3264 = vmul.f32 %v3217, %v3256
    %v3265 = vmul.f32 %v3219, %v3257
    %v3266 = vmul.f32 %v3221, %v3258
    %v3267 = vmul.f32 %v3223, %v3259
    %v3268 = vmul.f32 %v3225, %v3260
    %v3269 = vmul.f32 %v3227, %v3261
    %v3270 = vmul.f32 %v3229, %v3262
    %v3271 = vmul.f32 %v3231, %v3263
    %v3273 = vsel %vm903, %v3264, 0
    %3275 = vmatpush.msra.mxu0 0.0
    %3276 = vmatpush.msra.mxu0 0.0
    %3277 = vmatpush.msra.mxu0 0.0
    %3278 = vmatpush.msra.mxu0 0.0
    %3279 = vmatpush.msra.mxu0 0.0
    %3280 = vmatpush.msra.mxu0 0.0
    %3281 = vmatpush.msra.mxu0 0.0
    %3282 = vmatpush.msra.mxu0 0.0
    %3283 = vmatpush.msra.mxu0 0.0
    %3284 = vmatpush.msra.mxu0 0.0
    %3285 = vmatpush.msra.mxu0 0.0
    %3286 = vmatpush.msra.mxu0 0.0
    %3287 = vmatpush.msra.mxu0 0.0
    %3288 = vmatpush.msra.mxu0 0.0
    %3289 = vmatpush.msra.mxu0 %v112
    %3290 = vmatpush.msra.mxu0 %v111
    %3291 = vmatmul.f32.gmra.mxu0 %v3273
    %v3292 = vpop.f32.mrf.mxu0
    %v3293 = vadd.f32 0.0, %v3292
    %3294 = vdwg.mxu0
    %v3296 = vsel %vm903, %v3265, 0
    %3298 = vmatpush.msra.mxu0 0.0
    %3299 = vmatpush.msra.mxu0 0.0
    %3300 = vmatpush.msra.mxu0 0.0
    %3301 = vmatpush.msra.mxu0 0.0
    %3302 = vmatpush.msra.mxu0 0.0
    %3303 = vmatpush.msra.mxu0 0.0
    %3304 = vmatpush.msra.mxu0 0.0
    %3305 = vmatpush.msra.mxu0 0.0
    %3306 = vmatpush.msra.mxu0 0.0
    %3307 = vmatpush.msra.mxu0 0.0
    %3308 = vmatpush.msra.mxu0 0.0
    %3309 = vmatpush.msra.mxu0 0.0
    %3310 = vmatpush.msra.mxu0 0.0
    %3311 = vmatpush.msra.mxu0 0.0
    %3312 = vmatpush.msra.mxu0 %v114
    %3313 = vmatpush.msra.mxu0 %v113
    %3314 = vmatmul.f32.gmra.mxu0 %v3296
    %v3315 = vpop.f32.mrf.mxu0
    %v3316 = vadd.f32 0.0, %v3315
    %3317 = vdwg.mxu0
    %v3319 = vsel %vm903, %v3266, 0
    %3321 = vmatpush.msra.mxu0 0.0
    %3322 = vmatpush.msra.mxu0 0.0
    %3323 = vmatpush.msra.mxu0 0.0
    %3324 = vmatpush.msra.mxu0 0.0
    %3325 = vmatpush.msra.mxu0 0.0
    %3326 = vmatpush.msra.mxu0 0.0
    %3327 = vmatpush.msra.mxu0 0.0
    %3328 = vmatpush.msra.mxu0 0.0
    %3329 = vmatpush.msra.mxu0 0.0
    %3330 = vmatpush.msra.mxu0 0.0
    %3331 = vmatpush.msra.mxu0 0.0
    %3332 = vmatpush.msra.mxu0 0.0
    %3333 = vmatpush.msra.mxu0 0.0
    %3334 = vmatpush.msra.mxu0 0.0
    %3335 = vmatpush.msra.mxu0 %v116
    %3336 = vmatpush.msra.mxu0 %v115
    %3337 = vmatmul.f32.gmra.mxu0 %v3319
    %v3338 = vpop.f32.mrf.mxu0
    %v3339 = vadd.f32 0.0, %v3338
    %3340 = vdwg.mxu0
    %v3342 = vsel %vm903, %v3267, 0
    %3344 = vmatpush.msra.mxu0 0.0
    %3345 = vmatpush.msra.mxu0 0.0
    %3346 = vmatpush.msra.mxu0 0.0
    %3347 = vmatpush.msra.mxu0 0.0
    %3348 = vmatpush.msra.mxu0 0.0
    %3349 = vmatpush.msra.mxu0 0.0
    %3350 = vmatpush.msra.mxu0 0.0
    %3351 = vmatpush.msra.mxu0 0.0
    %3352 = vmatpush.msra.mxu0 0.0
    %3353 = vmatpush.msra.mxu0 0.0
    %3354 = vmatpush.msra.mxu0 0.0
    %3355 = vmatpush.msra.mxu0 0.0
    %3356 = vmatpush.msra.mxu0 0.0
    %3357 = vmatpush.msra.mxu0 0.0
    %3358 = vmatpush.msra.mxu0 %v118
    %3359 = vmatpush.msra.mxu0 %v117
    %3360 = vmatmul.f32.gmra.mxu0 %v3342
    %v3361 = vpop.f32.mrf.mxu0
    %v3362 = vadd.f32 0.0, %v3361
    %3363 = vdwg.mxu0
    %v3365 = vsel %vm903, %v3268, 0
    %3367 = vmatpush.msra.mxu0 0.0
    %3368 = vmatpush.msra.mxu0 0.0
    %3369 = vmatpush.msra.mxu0 0.0
    %3370 = vmatpush.msra.mxu0 0.0
    %3371 = vmatpush.msra.mxu0 0.0
    %3372 = vmatpush.msra.mxu0 0.0
    %3373 = vmatpush.msra.mxu0 0.0
    %3374 = vmatpush.msra.mxu0 0.0
    %3375 = vmatpush.msra.mxu0 0.0
    %3376 = vmatpush.msra.mxu0 0.0
    %3377 = vmatpush.msra.mxu0 0.0
    %3378 = vmatpush.msra.mxu0 0.0
    %3379 = vmatpush.msra.mxu0 0.0
    %3380 = vmatpush.msra.mxu0 0.0
    %3381 = vmatpush.msra.mxu0 %v120
    %3382 = vmatpush.msra.mxu0 %v119
    %3383 = vmatmul.f32.gmra.mxu0 %v3365
    %v3384 = vpop.f32.mrf.mxu0
    %v3385 = vadd.f32 0.0, %v3384
    %3386 = vdwg.mxu0
    %v3388 = vsel %vm903, %v3269, 0
    %3390 = vmatpush.msra.mxu0 0.0
    %3391 = vmatpush.msra.mxu0 0.0
    %3392 = vmatpush.msra.mxu0 0.0
    %3393 = vmatpush.msra.mxu0 0.0
    %3394 = vmatpush.msra.mxu0 0.0
    %3395 = vmatpush.msra.mxu0 0.0
    %3396 = vmatpush.msra.mxu0 0.0
    %3397 = vmatpush.msra.mxu0 0.0
    %3398 = vmatpush.msra.mxu0 0.0
    %3399 = vmatpush.msra.mxu0 0.0
    %3400 = vmatpush.msra.mxu0 0.0
    %3401 = vmatpush.msra.mxu0 0.0
    %3402 = vmatpush.msra.mxu0 0.0
    %3403 = vmatpush.msra.mxu0 0.0
    %3404 = vmatpush.msra.mxu0 %v122
    %3405 = vmatpush.msra.mxu0 %v121
    %3406 = vmatmul.f32.gmra.mxu0 %v3388
    %v3407 = vpop.f32.mrf.mxu0
    %v3408 = vadd.f32 0.0, %v3407
    %3409 = vdwg.mxu0
    %v3411 = vsel %vm903, %v3270, 0
    %3413 = vmatpush.msra.mxu0 0.0
    %3414 = vmatpush.msra.mxu0 0.0
    %3415 = vmatpush.msra.mxu0 0.0
    %3416 = vmatpush.msra.mxu0 0.0
    %3417 = vmatpush.msra.mxu0 0.0
    %3418 = vmatpush.msra.mxu0 0.0
    %3419 = vmatpush.msra.mxu0 0.0
    %3420 = vmatpush.msra.mxu0 0.0
    %3421 = vmatpush.msra.mxu0 0.0
    %3422 = vmatpush.msra.mxu0 0.0
    %3423 = vmatpush.msra.mxu0 0.0
    %3424 = vmatpush.msra.mxu0 0.0
    %3425 = vmatpush.msra.mxu0 0.0
    %3426 = vmatpush.msra.mxu0 0.0
    %3427 = vmatpush.msra.mxu0 %v124
    %3428 = vmatpush.msra.mxu0 %v123
    %3429 = vmatmul.f32.gmra.mxu0 %v3411
    %v3430 = vpop.f32.mrf.mxu0
    %v3431 = vadd.f32 0.0, %v3430
    %3432 = vdwg.mxu0
    %v3434 = vsel %vm903, %v3271, 0
    %3436 = vmatpush.msra.mxu0 0.0
    %3437 = vmatpush.msra.mxu0 0.0
    %3438 = vmatpush.msra.mxu0 0.0
    %3439 = vmatpush.msra.mxu0 0.0
    %3440 = vmatpush.msra.mxu0 0.0
    %3441 = vmatpush.msra.mxu0 0.0
    %3442 = vmatpush.msra.mxu0 0.0
    %3443 = vmatpush.msra.mxu0 0.0
    %3444 = vmatpush.msra.mxu0 0.0
    %3445 = vmatpush.msra.mxu0 0.0
    %3446 = vmatpush.msra.mxu0 0.0
    %3447 = vmatpush.msra.mxu0 0.0
    %3448 = vmatpush.msra.mxu0 0.0
    %3449 = vmatpush.msra.mxu0 0.0
    %3450 = vmatpush.msra.mxu0 %v126
    %3451 = vmatpush.msra.mxu0 %v125
    %3452 = vmatmul.f32.gmra.mxu0 %v3434
    %v3453 = vpop.f32.mrf.mxu0
    %v3454 = vadd.f32 0.0, %v3453
    %3455 = vdwg.mxu0
    %v3456 = vld [vmem:[#allocation5] sm:$0xff]
    %v3457 = vld [vmem:[#allocation5 + $0x8] sm:$0xff]
    %v3458 = vld [vmem:[#allocation5 + $0x10] sm:$0xff]
    %v3459 = vld [vmem:[#allocation5 + $0x18] sm:$0xff]
    %v3460 = vld [vmem:[#allocation5 + $0x20] sm:$0xff]
    %v3461 = vld [vmem:[#allocation5 + $0x28] sm:$0xff]
    %v3462 = vld [vmem:[#allocation5 + $0x30] sm:$0xff]
    %v3463 = vld [vmem:[#allocation5 + $0x38] sm:$0xff]
    %v3464 = vld [vmem:[#allocation5 + $0x40] sm:$0xff]
    %v3465 = vld [vmem:[#allocation5 + $0x48] sm:$0xff]
    %v3466 = vld [vmem:[#allocation5 + $0x50] sm:$0xff]
    %v3467 = vld [vmem:[#allocation5 + $0x58] sm:$0xff]
    %v3468 = vld [vmem:[#allocation5 + $0x60] sm:$0xff]
    %v3469 = vld [vmem:[#allocation5 + $0x68] sm:$0xff]
    %v3470 = vld [vmem:[#allocation5 + $0x70] sm:$0xff]
    %v3471 = vld [vmem:[#allocation5 + $0x78] sm:$0xff]
    %v3472 = vld [vmem:[#allocation10] sm:$0xff]
    %v3473 = vld [vmem:[#allocation10 + $0x8] sm:$0xff]
    %v3474 = vld [vmem:[#allocation10 + $0x10] sm:$0xff]
    %v3475 = vld [vmem:[#allocation10 + $0x18] sm:$0xff]
    %v3476 = vld [vmem:[#allocation10 + $0x20] sm:$0xff]
    %v3477 = vld [vmem:[#allocation10 + $0x28] sm:$0xff]
    %v3478 = vld [vmem:[#allocation10 + $0x30] sm:$0xff]
    %v3479 = vld [vmem:[#allocation10 + $0x38] sm:$0xff]
    %v3480 = vld [vmem:[#allocation10 + $0x40] sm:$0xff]
    %v3481 = vld [vmem:[#allocation10 + $0x48] sm:$0xff]
    %v3482 = vld [vmem:[#allocation10 + $0x50] sm:$0xff]
    %v3483 = vld [vmem:[#allocation10 + $0x58] sm:$0xff]
    %v3484 = vld [vmem:[#allocation10 + $0x60] sm:$0xff]
    %v3485 = vld [vmem:[#allocation10 + $0x68] sm:$0xff]
    %v3486 = vld [vmem:[#allocation10 + $0x70] sm:$0xff]
    %v3487 = vld [vmem:[#allocation10 + $0x78] sm:$0xff]
    %v3488 = vld [vmem:[#allocation10 + $0x80] sm:$0xff]
    %v3489 = vld [vmem:[#allocation10 + $0x88] sm:$0xff]
    %v3490 = vld [vmem:[#allocation10 + $0x90] sm:$0xff]
    %v3491 = vld [vmem:[#allocation10 + $0x98] sm:$0xff]
    %v3492 = vld [vmem:[#allocation10 + $0xa0] sm:$0xff]
    %v3493 = vld [vmem:[#allocation10 + $0xa8] sm:$0xff]
    %v3494 = vld [vmem:[#allocation10 + $0xb0] sm:$0xff]
    %v3495 = vld [vmem:[#allocation10 + $0xb8] sm:$0xff]
    %v3496 = vld [vmem:[#allocation10 + $0xc0] sm:$0xff]
    %v3497 = vld [vmem:[#allocation10 + $0xc8] sm:$0xff]
    %v3498 = vld [vmem:[#allocation10 + $0xd0] sm:$0xff]
    %v3499 = vld [vmem:[#allocation10 + $0xd8] sm:$0xff]
    %v3500 = vld [vmem:[#allocation10 + $0xe0] sm:$0xff]
    %v3501 = vld [vmem:[#allocation10 + $0xe8] sm:$0xff]
    %v3502 = vld [vmem:[#allocation10 + $0xf0] sm:$0xff]
    %v3503 = vld [vmem:[#allocation10 + $0xf8] sm:$0xff]
    %v3504 = vld [vmem:[#allocation10 + $0x100] sm:$0xff]
    %v3505 = vld [vmem:[#allocation10 + $0x108] sm:$0xff]
    %v3506 = vld [vmem:[#allocation10 + $0x110] sm:$0xff]
    %v3507 = vld [vmem:[#allocation10 + $0x118] sm:$0xff]
    %v3508 = vld [vmem:[#allocation10 + $0x120] sm:$0xff]
    %v3509 = vld [vmem:[#allocation10 + $0x128] sm:$0xff]
    %v3510 = vld [vmem:[#allocation10 + $0x130] sm:$0xff]
    %v3511 = vld [vmem:[#allocation10 + $0x138] sm:$0xff]
    %v3512 = vld [vmem:[#allocation10 + $0x140] sm:$0xff]
    %v3513 = vld [vmem:[#allocation10 + $0x148] sm:$0xff]
    %v3514 = vld [vmem:[#allocation10 + $0x150] sm:$0xff]
    %v3515 = vld [vmem:[#allocation10 + $0x158] sm:$0xff]
    %v3516 = vld [vmem:[#allocation10 + $0x160] sm:$0xff]
    %v3517 = vld [vmem:[#allocation10 + $0x168] sm:$0xff]
    %v3518 = vld [vmem:[#allocation10 + $0x170] sm:$0xff]
    %v3519 = vld [vmem:[#allocation10 + $0x178] sm:$0xff]
    %v3520 = vld [vmem:[#allocation10 + $0x180] sm:$0xff]
    %v3521 = vld [vmem:[#allocation10 + $0x188] sm:$0xff]
    %v3522 = vld [vmem:[#allocation10 + $0x190] sm:$0xff]
    %v3523 = vld [vmem:[#allocation10 + $0x198] sm:$0xff]
    %v3524 = vld [vmem:[#allocation10 + $0x1a0] sm:$0xff]
    %v3525 = vld [vmem:[#allocation10 + $0x1a8] sm:$0xff]
    %v3526 = vld [vmem:[#allocation10 + $0x1b0] sm:$0xff]
    %v3527 = vld [vmem:[#allocation10 + $0x1b8] sm:$0xff]
    %v3528 = vld [vmem:[#allocation10 + $0x1c0] sm:$0xff]
    %v3529 = vld [vmem:[#allocation10 + $0x1c8] sm:$0xff]
    %v3530 = vld [vmem:[#allocation10 + $0x1d0] sm:$0xff]
    %v3531 = vld [vmem:[#allocation10 + $0x1d8] sm:$0xff]
    %v3532 = vld [vmem:[#allocation10 + $0x1e0] sm:$0xff]
    %v3533 = vld [vmem:[#allocation10 + $0x1e8] sm:$0xff]
    %v3534 = vld [vmem:[#allocation10 + $0x1f0] sm:$0xff]
    %v3535 = vld [vmem:[#allocation10 + $0x1f8] sm:$0xff]
    %3536 = vmatpush.msra.mxu0 %v3532
    %3537 = vmatpush.msra.mxu0 %v3528
    %3538 = vmatpush.msra.mxu0 %v3524
    %3539 = vmatpush.msra.mxu0 %v3520
    %3540 = vmatpush.msra.mxu0 %v3516
    %3541 = vmatpush.msra.mxu0 %v3512
    %3542 = vmatpush.msra.mxu0 %v3508
    %3543 = vmatpush.msra.mxu0 %v3504
    %3544 = vmatpush.msra.mxu0 %v3500
    %3545 = vmatpush.msra.mxu0 %v3496
    %3546 = vmatpush.msra.mxu0 %v3492
    %3547 = vmatpush.msra.mxu0 %v3488
    %3548 = vmatpush.msra.mxu0 %v3484
    %3549 = vmatpush.msra.mxu0 %v3480
    %3550 = vmatpush.msra.mxu0 %v3476
    %3551 = vmatpush.msra.mxu0 %v3472
    %3552 = vmatmul.f32.gmra.mxu0 %v3003
    %v3553 = vpop.f32.mrf.mxu0
    %v3554 = vadd.f32 0.0, %v3553
    %3555 = vdwg.mxu0
    %3556 = vmatpush.msra.mxu0 %v3533
    %3557 = vmatpush.msra.mxu0 %v3529
    %3558 = vmatpush.msra.mxu0 %v3525
    %3559 = vmatpush.msra.mxu0 %v3521
    %3560 = vmatpush.msra.mxu0 %v3517
    %3561 = vmatpush.msra.mxu0 %v3513
    %3562 = vmatpush.msra.mxu0 %v3509
    %3563 = vmatpush.msra.mxu0 %v3505
    %3564 = vmatpush.msra.mxu0 %v3501
    %3565 = vmatpush.msra.mxu0 %v3497
    %3566 = vmatpush.msra.mxu0 %v3493
    %3567 = vmatpush.msra.mxu0 %v3489
    %3568 = vmatpush.msra.mxu0 %v3485
    %3569 = vmatpush.msra.mxu0 %v3481
    %3570 = vmatpush.msra.mxu0 %v3477
    %3571 = vmatpush.msra.mxu0 %v3473
    %3572 = vmatmul.f32.gmra.mxu0 %v3003
    %v3573 = vpop.f32.mrf.mxu0
    %v3574 = vadd.f32 0.0, %v3573
    %3575 = vdwg.mxu0
    %3576 = vmatpush.msra.mxu0 %v3534
    %3577 = vmatpush.msra.mxu0 %v3530
    %3578 = vmatpush.msra.mxu0 %v3526
    %3579 = vmatpush.msra.mxu0 %v3522
    %3580 = vmatpush.msra.mxu0 %v3518
    %3581 = vmatpush.msra.mxu0 %v3514
    %3582 = vmatpush.msra.mxu0 %v3510
    %3583 = vmatpush.msra.mxu0 %v3506
    %3584 = vmatpush.msra.mxu0 %v3502
    %3585 = vmatpush.msra.mxu0 %v3498
    %3586 = vmatpush.msra.mxu0 %v3494
    %3587 = vmatpush.msra.mxu0 %v3490
    %3588 = vmatpush.msra.mxu0 %v3486
    %3589 = vmatpush.msra.mxu0 %v3482
    %3590 = vmatpush.msra.mxu0 %v3478
    %3591 = vmatpush.msra.mxu0 %v3474
    %3592 = vmatmul.f32.gmra.mxu0 %v3003
    %v3593 = vpop.f32.mrf.mxu0
    %v3594 = vadd.f32 0.0, %v3593
    %3595 = vdwg.mxu0
    %3596 = vmatpush.msra.mxu0 %v3535
    %3597 = vmatpush.msra.mxu0 %v3531
    %3598 = vmatpush.msra.mxu0 %v3527
    %3599 = vmatpush.msra.mxu0 %v3523
    %3600 = vmatpush.msra.mxu0 %v3519
    %3601 = vmatpush.msra.mxu0 %v3515
    %3602 = vmatpush.msra.mxu0 %v3511
    %3603 = vmatpush.msra.mxu0 %v3507
    %3604 = vmatpush.msra.mxu0 %v3503
    %3605 = vmatpush.msra.mxu0 %v3499
    %3606 = vmatpush.msra.mxu0 %v3495
    %3607 = vmatpush.msra.mxu0 %v3491
    %3608 = vmatpush.msra.mxu0 %v3487
    %3609 = vmatpush.msra.mxu0 %v3483
    %3610 = vmatpush.msra.mxu0 %v3479
    %3611 = vmatpush.msra.mxu0 %v3475
    %3612 = vmatmul.f32.gmra.mxu0 %v3003
    %v3613 = vpop.f32.mrf.mxu0
    %v3614 = vadd.f32 0.0, %v3613
    %3615 = vdwg.mxu0
    %v3624 = vrot.slane %v3316, 7
    %v3625 = vsel %vm602, %v3624, %v3293
    %v3626 = vrot.slane %v3339, 6
    %v3627 = vsel %vm604, %v3626, %v3625
    %v3628 = vrot.slane %v3362, 5
    %v3629 = vsel %vm606, %v3628, %v3627
    %v3630 = vrot.slane %v3385, 4
    %v3631 = vsel %vm608, %v3630, %v3629
    %v3632 = vrot.slane %v3408, 3
    %v3633 = vsel %vm610, %v3632, %v3631
    %v3634 = vrot.slane %v3431, 2
    %v3635 = vsel %vm612, %v3634, %v3633
    %v3636 = vrot.slane %v3454, 1
    %v3637 = vsel %vm614, %v3636, %v3635
    %v3638 = vsel %vm161, %v3637, 0
    %3640 = vmatpush.msra.mxu0 0.0
    %3641 = vmatpush.msra.mxu0 0.0
    %3642 = vmatpush.msra.mxu0 0.0
    %3643 = vmatpush.msra.mxu0 0.0
    %3644 = vmatpush.msra.mxu0 0.0
    %3645 = vmatpush.msra.mxu0 0.0
    %3646 = vmatpush.msra.mxu0 0.0
    %3647 = vmatpush.msra.mxu0 0.0
    %3648 = vmatpush.msra.mxu0 0.0
    %3649 = vmatpush.msra.mxu0 0.0
    %3650 = vmatpush.msra.mxu0 0.0
    %3651 = vmatpush.msra.mxu0 0.0
    %3652 = vmatpush.msra.mxu0 %v3468
    %3653 = vmatpush.msra.mxu0 %v3464
    %3654 = vmatpush.msra.mxu0 %v3460
    %3655 = vmatpush.msra.mxu0 %v3456
    %3656 = vmatmul.f32.gmra.mxu0 %v3638
    %v3657 = vpop.f32.mrf.mxu0
    %v3658 = vadd.f32 %v3554, %v3657
    %3659 = vdwg.mxu0
    %3660 = vmatpush.msra.mxu0 0.0
    %3661 = vmatpush.msra.mxu0 0.0
    %3662 = vmatpush.msra.mxu0 0.0
    %3663 = vmatpush.msra.mxu0 0.0
    %3664 = vmatpush.msra.mxu0 0.0
    %3665 = vmatpush.msra.mxu0 0.0
    %3666 = vmatpush.msra.mxu0 0.0
    %3667 = vmatpush.msra.mxu0 0.0
    %3668 = vmatpush.msra.mxu0 0.0
    %3669 = vmatpush.msra.mxu0 0.0
    %3670 = vmatpush.msra.mxu0 0.0
    %3671 = vmatpush.msra.mxu0 0.0
    %3672 = vmatpush.msra.mxu0 %v3469
    %3673 = vmatpush.msra.mxu0 %v3465
    %3674 = vmatpush.msra.mxu0 %v3461
    %3675 = vmatpush.msra.mxu0 %v3457
    %3676 = vmatmul.f32.gmra.mxu0 %v3638
    %v3677 = vpop.f32.mrf.mxu0
    %v3678 = vadd.f32 %v3574, %v3677
    %3679 = vdwg.mxu0
    %3680 = vmatpush.msra.mxu0 0.0
    %3681 = vmatpush.msra.mxu0 0.0
    %3682 = vmatpush.msra.mxu0 0.0
    %3683 = vmatpush.msra.mxu0 0.0
    %3684 = vmatpush.msra.mxu0 0.0
    %3685 = vmatpush.msra.mxu0 0.0
    %3686 = vmatpush.msra.mxu0 0.0
    %3687 = vmatpush.msra.mxu0 0.0
    %3688 = vmatpush.msra.mxu0 0.0
    %3689 = vmatpush.msra.mxu0 0.0
    %3690 = vmatpush.msra.mxu0 0.0
    %3691 = vmatpush.msra.mxu0 0.0
    %3692 = vmatpush.msra.mxu0 %v3470
    %3693 = vmatpush.msra.mxu0 %v3466
    %3694 = vmatpush.msra.mxu0 %v3462
    %3695 = vmatpush.msra.mxu0 %v3458
    %3696 = vmatmul.f32.gmra.mxu0 %v3638
    %v3697 = vpop.f32.mrf.mxu0
    %v3698 = vadd.f32 %v3594, %v3697
    %3699 = vdwg.mxu0
    %3700 = vmatpush.msra.mxu0 0.0
    %3701 = vmatpush.msra.mxu0 0.0
    %3702 = vmatpush.msra.mxu0 0.0
    %3703 = vmatpush.msra.mxu0 0.0
    %3704 = vmatpush.msra.mxu0 0.0
    %3705 = vmatpush.msra.mxu0 0.0
    %3706 = vmatpush.msra.mxu0 0.0
    %3707 = vmatpush.msra.mxu0 0.0
    %3708 = vmatpush.msra.mxu0 0.0
    %3709 = vmatpush.msra.mxu0 0.0
    %3710 = vmatpush.msra.mxu0 0.0
    %3711 = vmatpush.msra.mxu0 0.0
    %3712 = vmatpush.msra.mxu0 %v3471
    %3713 = vmatpush.msra.mxu0 %v3467
    %3714 = vmatpush.msra.mxu0 %v3463
    %3715 = vmatpush.msra.mxu0 %v3459
    %3716 = vmatmul.f32.gmra.mxu0 %v3638
    %v3717 = vpop.f32.mrf.mxu0
    %v3718 = vadd.f32 %v3614, %v3717
    %3719 = vdwg.mxu0
    %s3720 = smul.u32 3, 4
    %s3721 = smul.addr %s3720, 8
    %s3722 = scalar_lea.vmem [#allocation2], %s3721
    %v3723 = vld [vmem:[%s3722] sm:$0xff]
    %v3724 = vld [vmem:[%s3722 + $0x8] sm:$0xff]
    %v3725 = vld [vmem:[%s3722 + $0x10] sm:$0xff]
    %v3726 = vld [vmem:[%s3722 + $0x18] sm:$0xff]
    %v3727 = vadd.f32 %v3658, %v3723
    %v3728 = vadd.f32 %v3678, %v3724
    %v3729 = vadd.f32 %v3698, %v3725
    %v3730 = vadd.f32 %v3718, %v3726
    %v3731 = vxor.u32 %v3727, 2147483648
    %v3732 = vmul.f32 %v3731, 1.442695
    %v3733 = vpow.pop %v3732
    %v3734 = vadd.f32 %v3733, 1.0
    %v3735 = vrcp.pop %v3734
    %v3736 = vmul.f32 %v3734, %v3735
    %v3737 = vsub.f32 1.0, %v3736
    %v3738 = vmul.f32 %v3735, %v3737
    %v3739 = vadd.f32 %v3735, %v3738
    %vm3740 = vweird.f32 %v3734
    %vm3741 = vweird.f32 %v3735
    %vm3742 = vmor %vm3740, %vm3741
    %v3743 = vsel %vm3742, %v3735, %v3739
    %v3744 = vand.u32 2147483647, %v3734
    %vm3745 = vcmp.eq.f32.partialorder %v3744, 8.507059e+37
    %v3746 = vand.u32 %v3734, 2147483648
    %v3747 = vor.u32 1.1754944e-38, %v3746
    %v3748 = vsel %vm3745, %v3747, %v3743
    %v3749 = vmul.f32 1.0, %v3748
    %v3750 = vxor.u32 %v3728, 2147483648
    %v3751 = vmul.f32 %v3750, 1.442695
    %v3752 = vpow.pop %v3751
    %v3753 = vadd.f32 %v3752, 1.0
    %v3754 = vrcp.pop %v3753
    %v3755 = vmul.f32 %v3753, %v3754
    %v3756 = vsub.f32 1.0, %v3755
    %v3757 = vmul.f32 %v3754, %v3756
    %v3758 = vadd.f32 %v3754, %v3757
    %vm3759 = vweird.f32 %v3753
    %vm3760 = vweird.f32 %v3754
    %vm3761 = vmor %vm3759, %vm3760
    %v3762 = vsel %vm3761, %v3754, %v3758
    %v3763 = vand.u32 2147483647, %v3753
    %vm3764 = vcmp.eq.f32.partialorder %v3763, 8.507059e+37
    %v3765 = vand.u32 %v3753, 2147483648
    %v3766 = vor.u32 1.1754944e-38, %v3765
    %v3767 = vsel %vm3764, %v3766, %v3762
    %v3768 = vmul.f32 1.0, %v3767
    %v3769 = vtanh.pop %v3729
    %v3770 = vxor.u32 %v3730, 2147483648
    %v3771 = vmul.f32 %v3770, 1.442695
    %v3772 = vpow.pop %v3771
    %v3773 = vadd.f32 %v3772, 1.0
    %v3774 = vrcp.pop %v3773
    %v3775 = vmul.f32 %v3773, %v3774
    %v3776 = vsub.f32 1.0, %v3775
    %v3777 = vmul.f32 %v3774, %v3776
    %v3778 = vadd.f32 %v3774, %v3777
    %vm3779 = vweird.f32 %v3773
    %vm3780 = vweird.f32 %v3774
    %vm3781 = vmor %vm3779, %vm3780
    %v3782 = vsel %vm3781, %v3774, %v3778
    %v3783 = vand.u32 2147483647, %v3773
    %vm3784 = vcmp.eq.f32.partialorder %v3783, 8.507059e+37
    %v3785 = vand.u32 %v3773, 2147483648
    %v3786 = vor.u32 1.1754944e-38, %v3785
    %v3787 = vsel %vm3784, %v3786, %v3782
    %v3788 = vmul.f32 1.0, %v3787
    %v3789 = vmul.f32 %v3768, %v3001
    %v3790 = vmul.f32 %v3749, %v3769
    %v3791 = vadd.f32 %v3789, %v3790
    %v3792 = vtanh.pop %v3791
    %v3793 = vmul.f32 %v3788, %v3792
    %s3794 = scalar_lea.vmem [#allocation3], 24
    %3795 = vst [vmem:[%s3794] sm:$0xff] %v3793
    %s3797 = scalar_lea.vmem [#allocation4], 24
    %3798 = vst.msk [vmem:[%s3797] sm:$0xff] %vm161, %v3637
    %v3800 = vrot.slane %v3793, 1
    %v3801 = vrot.slane %v3793, 2
    %v3802 = vrot.slane %v3793, 3
    %v3803 = vrot.slane %v3793, 4
    %v3804 = vrot.slane %v3793, 5
    %v3805 = vrot.slane %v3793, 6
    %v3806 = vrot.slane %v3793, 7
    %3814 = vmatpush.xpose.msra.mxu0 0.0
    %3815 = vmatpush.xpose.msra.mxu0 0.0
    %3816 = vmatpush.xpose.msra.mxu0 0.0
    %3817 = vmatpush.xpose.msra.mxu0 0.0
    %3818 = vmatpush.xpose.msra.mxu0 0.0
    %3819 = vmatpush.xpose.msra.mxu0 0.0
    %3820 = vmatpush.xpose.msra.mxu0 0.0
    %3821 = vmatpush.xpose.msra.mxu0 0.0
    %3822 = vmatpush.xpose.msra.mxu0 0.0
    %3823 = vmatpush.xpose.msra.mxu0 0.0
    %3824 = vmatpush.xpose.msra.mxu0 0.0
    %3825 = vmatpush.xpose.msra.mxu0 0.0
    %3826 = vmatpush.xpose.msra.mxu0 0.0
    %3827 = vmatpush.xpose.msra.mxu0 0.0
    %3828 = vmatpush.xpose.msra.mxu0 %v455
    %3829 = vmatpush.xpose.msra.mxu0 %v452
    %3830 = vmatmul.f32.gmra.mxu0 %v3793
    %v3831 = vpop.f32.mrf.mxu0
    %v3832 = vadd.f32 0.0, %v3831
    %3833 = vdwg.mxu0
    %3834 = vmatpush.xpose.msra.mxu0 0.0
    %3835 = vmatpush.xpose.msra.mxu0 0.0
    %3836 = vmatpush.xpose.msra.mxu0 0.0
    %3837 = vmatpush.xpose.msra.mxu0 0.0
    %3838 = vmatpush.xpose.msra.mxu0 0.0
    %3839 = vmatpush.xpose.msra.mxu0 0.0
    %3840 = vmatpush.xpose.msra.mxu0 0.0
    %3841 = vmatpush.xpose.msra.mxu0 0.0
    %3842 = vmatpush.xpose.msra.mxu0 0.0
    %3843 = vmatpush.xpose.msra.mxu0 0.0
    %3844 = vmatpush.xpose.msra.mxu0 0.0
    %3845 = vmatpush.xpose.msra.mxu0 0.0
    %3846 = vmatpush.xpose.msra.mxu0 0.0
    %3847 = vmatpush.xpose.msra.mxu0 0.0
    %3848 = vmatpush.xpose.msra.mxu0 %v461
    %3849 = vmatpush.xpose.msra.mxu0 %v458
    %3850 = vmatmul.f32.gmra.mxu0 %v3800
    %v3851 = vpop.f32.mrf.mxu0
    %v3852 = vadd.f32 0.0, %v3851
    %3853 = vdwg.mxu0
    %3854 = vmatpush.xpose.msra.mxu0 0.0
    %3855 = vmatpush.xpose.msra.mxu0 0.0
    %3856 = vmatpush.xpose.msra.mxu0 0.0
    %3857 = vmatpush.xpose.msra.mxu0 0.0
    %3858 = vmatpush.xpose.msra.mxu0 0.0
    %3859 = vmatpush.xpose.msra.mxu0 0.0
    %3860 = vmatpush.xpose.msra.mxu0 0.0
    %3861 = vmatpush.xpose.msra.mxu0 0.0
    %3862 = vmatpush.xpose.msra.mxu0 0.0
    %3863 = vmatpush.xpose.msra.mxu0 0.0
    %3864 = vmatpush.xpose.msra.mxu0 0.0
    %3865 = vmatpush.xpose.msra.mxu0 0.0
    %3866 = vmatpush.xpose.msra.mxu0 0.0
    %3867 = vmatpush.xpose.msra.mxu0 0.0
    %3868 = vmatpush.xpose.msra.mxu0 %v467
    %3869 = vmatpush.xpose.msra.mxu0 %v464
    %3870 = vmatmul.f32.gmra.mxu0 %v3801
    %v3871 = vpop.f32.mrf.mxu0
    %v3872 = vadd.f32 0.0, %v3871
    %3873 = vdwg.mxu0
    %3874 = vmatpush.xpose.msra.mxu0 0.0
    %3875 = vmatpush.xpose.msra.mxu0 0.0
    %3876 = vmatpush.xpose.msra.mxu0 0.0
    %3877 = vmatpush.xpose.msra.mxu0 0.0
    %3878 = vmatpush.xpose.msra.mxu0 0.0
    %3879 = vmatpush.xpose.msra.mxu0 0.0
    %3880 = vmatpush.xpose.msra.mxu0 0.0
    %3881 = vmatpush.xpose.msra.mxu0 0.0
    %3882 = vmatpush.xpose.msra.mxu0 0.0
    %3883 = vmatpush.xpose.msra.mxu0 0.0
    %3884 = vmatpush.xpose.msra.mxu0 0.0
    %3885 = vmatpush.xpose.msra.mxu0 0.0
    %3886 = vmatpush.xpose.msra.mxu0 0.0
    %3887 = vmatpush.xpose.msra.mxu0 0.0
    %3888 = vmatpush.xpose.msra.mxu0 %v473
    %3889 = vmatpush.xpose.msra.mxu0 %v470
    %3890 = vmatmul.f32.gmra.mxu0 %v3802
    %v3891 = vpop.f32.mrf.mxu0
    %v3892 = vadd.f32 0.0, %v3891
    %3893 = vdwg.mxu0
    %3894 = vmatpush.xpose.msra.mxu0 0.0
    %3895 = vmatpush.xpose.msra.mxu0 0.0
    %3896 = vmatpush.xpose.msra.mxu0 0.0
    %3897 = vmatpush.xpose.msra.mxu0 0.0
    %3898 = vmatpush.xpose.msra.mxu0 0.0
    %3899 = vmatpush.xpose.msra.mxu0 0.0
    %3900 = vmatpush.xpose.msra.mxu0 0.0
    %3901 = vmatpush.xpose.msra.mxu0 0.0
    %3902 = vmatpush.xpose.msra.mxu0 0.0
    %3903 = vmatpush.xpose.msra.mxu0 0.0
    %3904 = vmatpush.xpose.msra.mxu0 0.0
    %3905 = vmatpush.xpose.msra.mxu0 0.0
    %3906 = vmatpush.xpose.msra.mxu0 0.0
    %3907 = vmatpush.xpose.msra.mxu0 0.0
    %3908 = vmatpush.xpose.msra.mxu0 %v479
    %3909 = vmatpush.xpose.msra.mxu0 %v476
    %3910 = vmatmul.f32.gmra.mxu0 %v3803
    %v3911 = vpop.f32.mrf.mxu0
    %v3912 = vadd.f32 0.0, %v3911
    %3913 = vdwg.mxu0
    %3914 = vmatpush.xpose.msra.mxu0 0.0
    %3915 = vmatpush.xpose.msra.mxu0 0.0
    %3916 = vmatpush.xpose.msra.mxu0 0.0
    %3917 = vmatpush.xpose.msra.mxu0 0.0
    %3918 = vmatpush.xpose.msra.mxu0 0.0
    %3919 = vmatpush.xpose.msra.mxu0 0.0
    %3920 = vmatpush.xpose.msra.mxu0 0.0
    %3921 = vmatpush.xpose.msra.mxu0 0.0
    %3922 = vmatpush.xpose.msra.mxu0 0.0
    %3923 = vmatpush.xpose.msra.mxu0 0.0
    %3924 = vmatpush.xpose.msra.mxu0 0.0
    %3925 = vmatpush.xpose.msra.mxu0 0.0
    %3926 = vmatpush.xpose.msra.mxu0 0.0
    %3927 = vmatpush.xpose.msra.mxu0 0.0
    %3928 = vmatpush.xpose.msra.mxu0 %v485
    %3929 = vmatpush.xpose.msra.mxu0 %v482
    %3930 = vmatmul.f32.gmra.mxu0 %v3804
    %v3931 = vpop.f32.mrf.mxu0
    %v3932 = vadd.f32 0.0, %v3931
    %3933 = vdwg.mxu0
    %3934 = vmatpush.xpose.msra.mxu0 0.0
    %3935 = vmatpush.xpose.msra.mxu0 0.0
    %3936 = vmatpush.xpose.msra.mxu0 0.0
    %3937 = vmatpush.xpose.msra.mxu0 0.0
    %3938 = vmatpush.xpose.msra.mxu0 0.0
    %3939 = vmatpush.xpose.msra.mxu0 0.0
    %3940 = vmatpush.xpose.msra.mxu0 0.0
    %3941 = vmatpush.xpose.msra.mxu0 0.0
    %3942 = vmatpush.xpose.msra.mxu0 0.0
    %3943 = vmatpush.xpose.msra.mxu0 0.0
    %3944 = vmatpush.xpose.msra.mxu0 0.0
    %3945 = vmatpush.xpose.msra.mxu0 0.0
    %3946 = vmatpush.xpose.msra.mxu0 0.0
    %3947 = vmatpush.xpose.msra.mxu0 0.0
    %3948 = vmatpush.xpose.msra.mxu0 %v491
    %3949 = vmatpush.xpose.msra.mxu0 %v488
    %3950 = vmatmul.f32.gmra.mxu0 %v3805
    %v3951 = vpop.f32.mrf.mxu0
    %v3952 = vadd.f32 0.0, %v3951
    %3953 = vdwg.mxu0
    %3954 = vmatpush.xpose.msra.mxu0 0.0
    %3955 = vmatpush.xpose.msra.mxu0 0.0
    %3956 = vmatpush.xpose.msra.mxu0 0.0
    %3957 = vmatpush.xpose.msra.mxu0 0.0
    %3958 = vmatpush.xpose.msra.mxu0 0.0
    %3959 = vmatpush.xpose.msra.mxu0 0.0
    %3960 = vmatpush.xpose.msra.mxu0 0.0
    %3961 = vmatpush.xpose.msra.mxu0 0.0
    %3962 = vmatpush.xpose.msra.mxu0 0.0
    %3963 = vmatpush.xpose.msra.mxu0 0.0
    %3964 = vmatpush.xpose.msra.mxu0 0.0
    %3965 = vmatpush.xpose.msra.mxu0 0.0
    %3966 = vmatpush.xpose.msra.mxu0 0.0
    %3967 = vmatpush.xpose.msra.mxu0 0.0
    %3968 = vmatpush.xpose.msra.mxu0 %v497
    %3969 = vmatpush.xpose.msra.mxu0 %v494
    %3970 = vmatmul.f32.gmra.mxu0 %v3806
    %v3971 = vpop.f32.mrf.mxu0
    %v3972 = vadd.f32 0.0, %v3971
    %3973 = vdwg.mxu0
    %v3974 = vsel %vm814, %v3832, -inf
    %3975 = vmax.xlane.f32.xlu0 %v3974
    %v3976 = vpop.xlane.xlu0 %3975
    %v3977 = vsel %vm814, %v3852, -inf
    %3978 = vmax.xlane.f32.xlu0 %v3977
    %v3979 = vpop.xlane.xlu0 %3978
    %v3980 = vsel %vm814, %v3872, -inf
    %3981 = vmax.xlane.f32.xlu0 %v3980
    %v3982 = vpop.xlane.xlu0 %3981
    %v3983 = vsel %vm814, %v3892, -inf
    %3984 = vmax.xlane.f32.xlu0 %v3983
    %v3985 = vpop.xlane.xlu0 %3984
    %v3986 = vsel %vm814, %v3912, -inf
    %3987 = vmax.xlane.f32.xlu0 %v3986
    %v3988 = vpop.xlane.xlu0 %3987
    %v3989 = vsel %vm814, %v3932, -inf
    %3990 = vmax.xlane.f32.xlu0 %v3989
    %v3991 = vpop.xlane.xlu0 %3990
    %v3992 = vsel %vm814, %v3952, -inf
    %3993 = vmax.xlane.f32.xlu0 %v3992
    %v3994 = vpop.xlane.xlu0 %3993
    %v3995 = vsel %vm814, %v3972, -inf
    %3996 = vmax.xlane.f32.xlu0 %v3995
    %v3997 = vpop.xlane.xlu0 %3996
    %v3998 = vsub.f32 %v3832, %v3976
    %v3999 = vsub.f32 %v3852, %v3979
    %v4000 = vsub.f32 %v3872, %v3982
    %v4001 = vsub.f32 %v3892, %v3985
    %v4002 = vsub.f32 %v3912, %v3988
    %v4003 = vsub.f32 %v3932, %v3991
    %v4004 = vsub.f32 %v3952, %v3994
    %v4005 = vsub.f32 %v3972, %v3997
    %v4006 = vmul.f32 %v3998, 1.442695
    %v4007 = vpow.pop %v4006
    %v4008 = vmul.f32 %v3999, 1.442695
    %v4009 = vpow.pop %v4008
    %v4010 = vmul.f32 %v4000, 1.442695
    %v4011 = vpow.pop %v4010
    %v4012 = vmul.f32 %v4001, 1.442695
    %v4013 = vpow.pop %v4012
    %v4014 = vmul.f32 %v4002, 1.442695
    %v4015 = vpow.pop %v4014
    %v4016 = vmul.f32 %v4003, 1.442695
    %v4017 = vpow.pop %v4016
    %v4018 = vmul.f32 %v4004, 1.442695
    %v4019 = vpow.pop %v4018
    %v4020 = vmul.f32 %v4005, 1.442695
    %v4021 = vpow.pop %v4020
    %v4022 = vsel %vm814, %v4007, 0.0
    %4023 = vadd.xlane.f32.xlu0 %v4022
    %v4024 = vpop.xlane.xlu0 %4023
    %v4025 = vsel %vm814, %v4009, 0.0
    %4026 = vadd.xlane.f32.xlu0 %v4025
    %v4027 = vpop.xlane.xlu0 %4026
    %v4028 = vsel %vm814, %v4011, 0.0
    %4029 = vadd.xlane.f32.xlu0 %v4028
    %v4030 = vpop.xlane.xlu0 %4029
    %v4031 = vsel %vm814, %v4013, 0.0
    %4032 = vadd.xlane.f32.xlu0 %v4031
    %v4033 = vpop.xlane.xlu0 %4032
    %v4034 = vsel %vm814, %v4015, 0.0
    %4035 = vadd.xlane.f32.xlu0 %v4034
    %v4036 = vpop.xlane.xlu0 %4035
    %v4037 = vsel %vm814, %v4017, 0.0
    %4038 = vadd.xlane.f32.xlu0 %v4037
    %v4039 = vpop.xlane.xlu0 %4038
    %v4040 = vsel %vm814, %v4019, 0.0
    %4041 = vadd.xlane.f32.xlu0 %v4040
    %v4042 = vpop.xlane.xlu0 %4041
    %v4043 = vsel %vm814, %v4021, 0.0
    %4044 = vadd.xlane.f32.xlu0 %v4043
    %v4045 = vpop.xlane.xlu0 %4044
    %v4046 = vrcp.pop %v4024
    %v4047 = vrcp.pop %v4027
    %v4048 = vrcp.pop %v4030
    %v4049 = vrcp.pop %v4033
    %v4050 = vrcp.pop %v4036
    %v4051 = vrcp.pop %v4039
    %v4052 = vrcp.pop %v4042
    %v4053 = vrcp.pop %v4045
    %v4054 = vmul.f32 %v4007, %v4046
    %v4055 = vmul.f32 %v4009, %v4047
    %v4056 = vmul.f32 %v4011, %v4048
    %v4057 = vmul.f32 %v4013, %v4049
    %v4058 = vmul.f32 %v4015, %v4050
    %v4059 = vmul.f32 %v4017, %v4051
    %v4060 = vmul.f32 %v4019, %v4052
    %v4061 = vmul.f32 %v4021, %v4053
    %v4063 = vsel %vm903, %v4054, 0
    %4065 = vmatpush.msra.mxu0 0.0
    %4066 = vmatpush.msra.mxu0 0.0
    %4067 = vmatpush.msra.mxu0 0.0
    %4068 = vmatpush.msra.mxu0 0.0
    %4069 = vmatpush.msra.mxu0 0.0
    %4070 = vmatpush.msra.mxu0 0.0
    %4071 = vmatpush.msra.mxu0 0.0
    %4072 = vmatpush.msra.mxu0 0.0
    %4073 = vmatpush.msra.mxu0 0.0
    %4074 = vmatpush.msra.mxu0 0.0
    %4075 = vmatpush.msra.mxu0 0.0
    %4076 = vmatpush.msra.mxu0 0.0
    %4077 = vmatpush.msra.mxu0 0.0
    %4078 = vmatpush.msra.mxu0 0.0
    %4079 = vmatpush.msra.mxu0 %v112
    %4080 = vmatpush.msra.mxu0 %v111
    %4081 = vmatmul.f32.gmra.mxu0 %v4063
    %v4082 = vpop.f32.mrf.mxu0
    %v4083 = vadd.f32 0.0, %v4082
    %4084 = vdwg.mxu0
    %v4086 = vsel %vm903, %v4055, 0
    %4088 = vmatpush.msra.mxu0 0.0
    %4089 = vmatpush.msra.mxu0 0.0
    %4090 = vmatpush.msra.mxu0 0.0
    %4091 = vmatpush.msra.mxu0 0.0
    %4092 = vmatpush.msra.mxu0 0.0
    %4093 = vmatpush.msra.mxu0 0.0
    %4094 = vmatpush.msra.mxu0 0.0
    %4095 = vmatpush.msra.mxu0 0.0
    %4096 = vmatpush.msra.mxu0 0.0
    %4097 = vmatpush.msra.mxu0 0.0
    %4098 = vmatpush.msra.mxu0 0.0
    %4099 = vmatpush.msra.mxu0 0.0
    %4100 = vmatpush.msra.mxu0 0.0
    %4101 = vmatpush.msra.mxu0 0.0
    %4102 = vmatpush.msra.mxu0 %v114
    %4103 = vmatpush.msra.mxu0 %v113
    %4104 = vmatmul.f32.gmra.mxu0 %v4086
    %v4105 = vpop.f32.mrf.mxu0
    %v4106 = vadd.f32 0.0, %v4105
    %4107 = vdwg.mxu0
    %v4109 = vsel %vm903, %v4056, 0
    %4111 = vmatpush.msra.mxu0 0.0
    %4112 = vmatpush.msra.mxu0 0.0
    %4113 = vmatpush.msra.mxu0 0.0
    %4114 = vmatpush.msra.mxu0 0.0
    %4115 = vmatpush.msra.mxu0 0.0
    %4116 = vmatpush.msra.mxu0 0.0
    %4117 = vmatpush.msra.mxu0 0.0
    %4118 = vmatpush.msra.mxu0 0.0
    %4119 = vmatpush.msra.mxu0 0.0
    %4120 = vmatpush.msra.mxu0 0.0
    %4121 = vmatpush.msra.mxu0 0.0
    %4122 = vmatpush.msra.mxu0 0.0
    %4123 = vmatpush.msra.mxu0 0.0
    %4124 = vmatpush.msra.mxu0 0.0
    %4125 = vmatpush.msra.mxu0 %v116
    %4126 = vmatpush.msra.mxu0 %v115
    %4127 = vmatmul.f32.gmra.mxu0 %v4109
    %v4128 = vpop.f32.mrf.mxu0
    %v4129 = vadd.f32 0.0, %v4128
    %4130 = vdwg.mxu0
    %v4132 = vsel %vm903, %v4057, 0
    %4134 = vmatpush.msra.mxu0 0.0
    %4135 = vmatpush.msra.mxu0 0.0
    %4136 = vmatpush.msra.mxu0 0.0
    %4137 = vmatpush.msra.mxu0 0.0
    %4138 = vmatpush.msra.mxu0 0.0
    %4139 = vmatpush.msra.mxu0 0.0
    %4140 = vmatpush.msra.mxu0 0.0
    %4141 = vmatpush.msra.mxu0 0.0
    %4142 = vmatpush.msra.mxu0 0.0
    %4143 = vmatpush.msra.mxu0 0.0
    %4144 = vmatpush.msra.mxu0 0.0
    %4145 = vmatpush.msra.mxu0 0.0
    %4146 = vmatpush.msra.mxu0 0.0
    %4147 = vmatpush.msra.mxu0 0.0
    %4148 = vmatpush.msra.mxu0 %v118
    %4149 = vmatpush.msra.mxu0 %v117
    %4150 = vmatmul.f32.gmra.mxu0 %v4132
    %v4151 = vpop.f32.mrf.mxu0
    %v4152 = vadd.f32 0.0, %v4151
    %4153 = vdwg.mxu0
    %v4155 = vsel %vm903, %v4058, 0
    %4157 = vmatpush.msra.mxu0 0.0
    %4158 = vmatpush.msra.mxu0 0.0
    %4159 = vmatpush.msra.mxu0 0.0
    %4160 = vmatpush.msra.mxu0 0.0
    %4161 = vmatpush.msra.mxu0 0.0
    %4162 = vmatpush.msra.mxu0 0.0
    %4163 = vmatpush.msra.mxu0 0.0
    %4164 = vmatpush.msra.mxu0 0.0
    %4165 = vmatpush.msra.mxu0 0.0
    %4166 = vmatpush.msra.mxu0 0.0
    %4167 = vmatpush.msra.mxu0 0.0
    %4168 = vmatpush.msra.mxu0 0.0
    %4169 = vmatpush.msra.mxu0 0.0
    %4170 = vmatpush.msra.mxu0 0.0
    %4171 = vmatpush.msra.mxu0 %v120
    %4172 = vmatpush.msra.mxu0 %v119
    %4173 = vmatmul.f32.gmra.mxu0 %v4155
    %v4174 = vpop.f32.mrf.mxu0
    %v4175 = vadd.f32 0.0, %v4174
    %4176 = vdwg.mxu0
    %v4178 = vsel %vm903, %v4059, 0
    %4180 = vmatpush.msra.mxu0 0.0
    %4181 = vmatpush.msra.mxu0 0.0
    %4182 = vmatpush.msra.mxu0 0.0
    %4183 = vmatpush.msra.mxu0 0.0
    %4184 = vmatpush.msra.mxu0 0.0
    %4185 = vmatpush.msra.mxu0 0.0
    %4186 = vmatpush.msra.mxu0 0.0
    %4187 = vmatpush.msra.mxu0 0.0
    %4188 = vmatpush.msra.mxu0 0.0
    %4189 = vmatpush.msra.mxu0 0.0
    %4190 = vmatpush.msra.mxu0 0.0
    %4191 = vmatpush.msra.mxu0 0.0
    %4192 = vmatpush.msra.mxu0 0.0
    %4193 = vmatpush.msra.mxu0 0.0
    %4194 = vmatpush.msra.mxu0 %v122
    %4195 = vmatpush.msra.mxu0 %v121
    %4196 = vmatmul.f32.gmra.mxu0 %v4178
    %v4197 = vpop.f32.mrf.mxu0
    %v4198 = vadd.f32 0.0, %v4197
    %4199 = vdwg.mxu0
    %v4201 = vsel %vm903, %v4060, 0
    %4203 = vmatpush.msra.mxu0 0.0
    %4204 = vmatpush.msra.mxu0 0.0
    %4205 = vmatpush.msra.mxu0 0.0
    %4206 = vmatpush.msra.mxu0 0.0
    %4207 = vmatpush.msra.mxu0 0.0
    %4208 = vmatpush.msra.mxu0 0.0
    %4209 = vmatpush.msra.mxu0 0.0
    %4210 = vmatpush.msra.mxu0 0.0
    %4211 = vmatpush.msra.mxu0 0.0
    %4212 = vmatpush.msra.mxu0 0.0
    %4213 = vmatpush.msra.mxu0 0.0
    %4214 = vmatpush.msra.mxu0 0.0
    %4215 = vmatpush.msra.mxu0 0.0
    %4216 = vmatpush.msra.mxu0 0.0
    %4217 = vmatpush.msra.mxu0 %v124
    %4218 = vmatpush.msra.mxu0 %v123
    %4219 = vmatmul.f32.gmra.mxu0 %v4201
    %v4220 = vpop.f32.mrf.mxu0
    %v4221 = vadd.f32 0.0, %v4220
    %4222 = vdwg.mxu0
    %v4224 = vsel %vm903, %v4061, 0
    %4226 = vmatpush.msra.mxu0 0.0
    %4227 = vmatpush.msra.mxu0 0.0
    %4228 = vmatpush.msra.mxu0 0.0
    %4229 = vmatpush.msra.mxu0 0.0
    %4230 = vmatpush.msra.mxu0 0.0
    %4231 = vmatpush.msra.mxu0 0.0
    %4232 = vmatpush.msra.mxu0 0.0
    %4233 = vmatpush.msra.mxu0 0.0
    %4234 = vmatpush.msra.mxu0 0.0
    %4235 = vmatpush.msra.mxu0 0.0
    %4236 = vmatpush.msra.mxu0 0.0
    %4237 = vmatpush.msra.mxu0 0.0
    %4238 = vmatpush.msra.mxu0 0.0
    %4239 = vmatpush.msra.mxu0 0.0
    %4240 = vmatpush.msra.mxu0 %v126
    %4241 = vmatpush.msra.mxu0 %v125
    %4242 = vmatmul.f32.gmra.mxu0 %v4224
    %v4243 = vpop.f32.mrf.mxu0
    %v4244 = vadd.f32 0.0, %v4243
    %4245 = vdwg.mxu0
    %v4246 = vld [vmem:[#allocation5] sm:$0xff]
    %v4247 = vld [vmem:[#allocation5 + $0x8] sm:$0xff]
    %v4248 = vld [vmem:[#allocation5 + $0x10] sm:$0xff]
    %v4249 = vld [vmem:[#allocation5 + $0x18] sm:$0xff]
    %v4250 = vld [vmem:[#allocation5 + $0x20] sm:$0xff]
    %v4251 = vld [vmem:[#allocation5 + $0x28] sm:$0xff]
    %v4252 = vld [vmem:[#allocation5 + $0x30] sm:$0xff]
    %v4253 = vld [vmem:[#allocation5 + $0x38] sm:$0xff]
    %v4254 = vld [vmem:[#allocation5 + $0x40] sm:$0xff]
    %v4255 = vld [vmem:[#allocation5 + $0x48] sm:$0xff]
    %v4256 = vld [vmem:[#allocation5 + $0x50] sm:$0xff]
    %v4257 = vld [vmem:[#allocation5 + $0x58] sm:$0xff]
    %v4258 = vld [vmem:[#allocation5 + $0x60] sm:$0xff]
    %v4259 = vld [vmem:[#allocation5 + $0x68] sm:$0xff]
    %v4260 = vld [vmem:[#allocation5 + $0x70] sm:$0xff]
    %v4261 = vld [vmem:[#allocation5 + $0x78] sm:$0xff]
    %v4262 = vld [vmem:[#allocation10] sm:$0xff]
    %v4263 = vld [vmem:[#allocation10 + $0x8] sm:$0xff]
    %v4264 = vld [vmem:[#allocation10 + $0x10] sm:$0xff]
    %v4265 = vld [vmem:[#allocation10 + $0x18] sm:$0xff]
    %v4266 = vld [vmem:[#allocation10 + $0x20] sm:$0xff]
    %v4267 = vld [vmem:[#allocation10 + $0x28] sm:$0xff]
    %v4268 = vld [vmem:[#allocation10 + $0x30] sm:$0xff]
    %v4269 = vld [vmem:[#allocation10 + $0x38] sm:$0xff]
    %v4270 = vld [vmem:[#allocation10 + $0x40] sm:$0xff]
    %v4271 = vld [vmem:[#allocation10 + $0x48] sm:$0xff]
    %v4272 = vld [vmem:[#allocation10 + $0x50] sm:$0xff]
    %v4273 = vld [vmem:[#allocation10 + $0x58] sm:$0xff]
    %v4274 = vld [vmem:[#allocation10 + $0x60] sm:$0xff]
    %v4275 = vld [vmem:[#allocation10 + $0x68] sm:$0xff]
    %v4276 = vld [vmem:[#allocation10 + $0x70] sm:$0xff]
    %v4277 = vld [vmem:[#allocation10 + $0x78] sm:$0xff]
    %v4278 = vld [vmem:[#allocation10 + $0x80] sm:$0xff]
    %v4279 = vld [vmem:[#allocation10 + $0x88] sm:$0xff]
    %v4280 = vld [vmem:[#allocation10 + $0x90] sm:$0xff]
    %v4281 = vld [vmem:[#allocation10 + $0x98] sm:$0xff]
    %v4282 = vld [vmem:[#allocation10 + $0xa0] sm:$0xff]
    %v4283 = vld [vmem:[#allocation10 + $0xa8] sm:$0xff]
    %v4284 = vld [vmem:[#allocation10 + $0xb0] sm:$0xff]
    %v4285 = vld [vmem:[#allocation10 + $0xb8] sm:$0xff]
    %v4286 = vld [vmem:[#allocation10 + $0xc0] sm:$0xff]
    %v4287 = vld [vmem:[#allocation10 + $0xc8] sm:$0xff]
    %v4288 = vld [vmem:[#allocation10 + $0xd0] sm:$0xff]
    %v4289 = vld [vmem:[#allocation10 + $0xd8] sm:$0xff]
    %v4290 = vld [vmem:[#allocation10 + $0xe0] sm:$0xff]
    %v4291 = vld [vmem:[#allocation10 + $0xe8] sm:$0xff]
    %v4292 = vld [vmem:[#allocation10 + $0xf0] sm:$0xff]
    %v4293 = vld [vmem:[#allocation10 + $0xf8] sm:$0xff]
    %v4294 = vld [vmem:[#allocation10 + $0x100] sm:$0xff]
    %v4295 = vld [vmem:[#allocation10 + $0x108] sm:$0xff]
    %v4296 = vld [vmem:[#allocation10 + $0x110] sm:$0xff]
    %v4297 = vld [vmem:[#allocation10 + $0x118] sm:$0xff]
    %v4298 = vld [vmem:[#allocation10 + $0x120] sm:$0xff]
    %v4299 = vld [vmem:[#allocation10 + $0x128] sm:$0xff]
    %v4300 = vld [vmem:[#allocation10 + $0x130] sm:$0xff]
    %v4301 = vld [vmem:[#allocation10 + $0x138] sm:$0xff]
    %v4302 = vld [vmem:[#allocation10 + $0x140] sm:$0xff]
    %v4303 = vld [vmem:[#allocation10 + $0x148] sm:$0xff]
    %v4304 = vld [vmem:[#allocation10 + $0x150] sm:$0xff]
    %v4305 = vld [vmem:[#allocation10 + $0x158] sm:$0xff]
    %v4306 = vld [vmem:[#allocation10 + $0x160] sm:$0xff]
    %v4307 = vld [vmem:[#allocation10 + $0x168] sm:$0xff]
    %v4308 = vld [vmem:[#allocation10 + $0x170] sm:$0xff]
    %v4309 = vld [vmem:[#allocation10 + $0x178] sm:$0xff]
    %v4310 = vld [vmem:[#allocation10 + $0x180] sm:$0xff]
    %v4311 = vld [vmem:[#allocation10 + $0x188] sm:$0xff]
    %v4312 = vld [vmem:[#allocation10 + $0x190] sm:$0xff]
    %v4313 = vld [vmem:[#allocation10 + $0x198] sm:$0xff]
    %v4314 = vld [vmem:[#allocation10 + $0x1a0] sm:$0xff]
    %v4315 = vld [vmem:[#allocation10 + $0x1a8] sm:$0xff]
    %v4316 = vld [vmem:[#allocation10 + $0x1b0] sm:$0xff]
    %v4317 = vld [vmem:[#allocation10 + $0x1b8] sm:$0xff]
    %v4318 = vld [vmem:[#allocation10 + $0x1c0] sm:$0xff]
    %v4319 = vld [vmem:[#allocation10 + $0x1c8] sm:$0xff]
    %v4320 = vld [vmem:[#allocation10 + $0x1d0] sm:$0xff]
    %v4321 = vld [vmem:[#allocation10 + $0x1d8] sm:$0xff]
    %v4322 = vld [vmem:[#allocation10 + $0x1e0] sm:$0xff]
    %v4323 = vld [vmem:[#allocation10 + $0x1e8] sm:$0xff]
    %v4324 = vld [vmem:[#allocation10 + $0x1f0] sm:$0xff]
    %v4325 = vld [vmem:[#allocation10 + $0x1f8] sm:$0xff]
    %4326 = vmatpush.msra.mxu0 %v4322
    %4327 = vmatpush.msra.mxu0 %v4318
    %4328 = vmatpush.msra.mxu0 %v4314
    %4329 = vmatpush.msra.mxu0 %v4310
    %4330 = vmatpush.msra.mxu0 %v4306
    %4331 = vmatpush.msra.mxu0 %v4302
    %4332 = vmatpush.msra.mxu0 %v4298
    %4333 = vmatpush.msra.mxu0 %v4294
    %4334 = vmatpush.msra.mxu0 %v4290
    %4335 = vmatpush.msra.mxu0 %v4286
    %4336 = vmatpush.msra.mxu0 %v4282
    %4337 = vmatpush.msra.mxu0 %v4278
    %4338 = vmatpush.msra.mxu0 %v4274
    %4339 = vmatpush.msra.mxu0 %v4270
    %4340 = vmatpush.msra.mxu0 %v4266
    %4341 = vmatpush.msra.mxu0 %v4262
    %4342 = vmatmul.f32.gmra.mxu0 %v3793
    %v4343 = vpop.f32.mrf.mxu0
    %v4344 = vadd.f32 0.0, %v4343
    %4345 = vdwg.mxu0
    %4346 = vmatpush.msra.mxu0 %v4323
    %4347 = vmatpush.msra.mxu0 %v4319
    %4348 = vmatpush.msra.mxu0 %v4315
    %4349 = vmatpush.msra.mxu0 %v4311
    %4350 = vmatpush.msra.mxu0 %v4307
    %4351 = vmatpush.msra.mxu0 %v4303
    %4352 = vmatpush.msra.mxu0 %v4299
    %4353 = vmatpush.msra.mxu0 %v4295
    %4354 = vmatpush.msra.mxu0 %v4291
    %4355 = vmatpush.msra.mxu0 %v4287
    %4356 = vmatpush.msra.mxu0 %v4283
    %4357 = vmatpush.msra.mxu0 %v4279
    %4358 = vmatpush.msra.mxu0 %v4275
    %4359 = vmatpush.msra.mxu0 %v4271
    %4360 = vmatpush.msra.mxu0 %v4267
    %4361 = vmatpush.msra.mxu0 %v4263
    %4362 = vmatmul.f32.gmra.mxu0 %v3793
    %v4363 = vpop.f32.mrf.mxu0
    %v4364 = vadd.f32 0.0, %v4363
    %4365 = vdwg.mxu0
    %4366 = vmatpush.msra.mxu0 %v4324
    %4367 = vmatpush.msra.mxu0 %v4320
    %4368 = vmatpush.msra.mxu0 %v4316
    %4369 = vmatpush.msra.mxu0 %v4312
    %4370 = vmatpush.msra.mxu0 %v4308
    %4371 = vmatpush.msra.mxu0 %v4304
    %4372 = vmatpush.msra.mxu0 %v4300
    %4373 = vmatpush.msra.mxu0 %v4296
    %4374 = vmatpush.msra.mxu0 %v4292
    %4375 = vmatpush.msra.mxu0 %v4288
    %4376 = vmatpush.msra.mxu0 %v4284
    %4377 = vmatpush.msra.mxu0 %v4280
    %4378 = vmatpush.msra.mxu0 %v4276
    %4379 = vmatpush.msra.mxu0 %v4272
    %4380 = vmatpush.msra.mxu0 %v4268
    %4381 = vmatpush.msra.mxu0 %v4264
    %4382 = vmatmul.f32.gmra.mxu0 %v3793
    %v4383 = vpop.f32.mrf.mxu0
    %v4384 = vadd.f32 0.0, %v4383
    %4385 = vdwg.mxu0
    %4386 = vmatpush.msra.mxu0 %v4325
    %4387 = vmatpush.msra.mxu0 %v4321
    %4388 = vmatpush.msra.mxu0 %v4317
    %4389 = vmatpush.msra.mxu0 %v4313
    %4390 = vmatpush.msra.mxu0 %v4309
    %4391 = vmatpush.msra.mxu0 %v4305
    %4392 = vmatpush.msra.mxu0 %v4301
    %4393 = vmatpush.msra.mxu0 %v4297
    %4394 = vmatpush.msra.mxu0 %v4293
    %4395 = vmatpush.msra.mxu0 %v4289
    %4396 = vmatpush.msra.mxu0 %v4285
    %4397 = vmatpush.msra.mxu0 %v4281
    %4398 = vmatpush.msra.mxu0 %v4277
    %4399 = vmatpush.msra.mxu0 %v4273
    %4400 = vmatpush.msra.mxu0 %v4269
    %4401 = vmatpush.msra.mxu0 %v4265
    %4402 = vmatmul.f32.gmra.mxu0 %v3793
    %v4403 = vpop.f32.mrf.mxu0
    %v4404 = vadd.f32 0.0, %v4403
    %4405 = vdwg.mxu0
    %v4414 = vrot.slane %v4106, 7
    %v4415 = vsel %vm602, %v4414, %v4083
    %v4416 = vrot.slane %v4129, 6
    %v4417 = vsel %vm604, %v4416, %v4415
    %v4418 = vrot.slane %v4152, 5
    %v4419 = vsel %vm606, %v4418, %v4417
    %v4420 = vrot.slane %v4175, 4
    %v4421 = vsel %vm608, %v4420, %v4419
    %v4422 = vrot.slane %v4198, 3
    %v4423 = vsel %vm610, %v4422, %v4421
    %v4424 = vrot.slane %v4221, 2
    %v4425 = vsel %vm612, %v4424, %v4423
    %v4426 = vrot.slane %v4244, 1
    %v4427 = vsel %vm614, %v4426, %v4425
    %v4428 = vsel %vm161, %v4427, 0
    %4430 = vmatpush.msra.mxu0 0.0
    %4431 = vmatpush.msra.mxu0 0.0
    %4432 = vmatpush.msra.mxu0 0.0
    %4433 = vmatpush.msra.mxu0 0.0
    %4434 = vmatpush.msra.mxu0 0.0
    %4435 = vmatpush.msra.mxu0 0.0
    %4436 = vmatpush.msra.mxu0 0.0
    %4437 = vmatpush.msra.mxu0 0.0
    %4438 = vmatpush.msra.mxu0 0.0
    %4439 = vmatpush.msra.mxu0 0.0
    %4440 = vmatpush.msra.mxu0 0.0
    %4441 = vmatpush.msra.mxu0 0.0
    %4442 = vmatpush.msra.mxu0 %v4258
    %4443 = vmatpush.msra.mxu0 %v4254
    %4444 = vmatpush.msra.mxu0 %v4250
    %4445 = vmatpush.msra.mxu0 %v4246
    %4446 = vmatmul.f32.gmra.mxu0 %v4428
    %v4447 = vpop.f32.mrf.mxu0
    %v4448 = vadd.f32 %v4344, %v4447
    %4449 = vdwg.mxu0
    %4450 = vmatpush.msra.mxu0 0.0
    %4451 = vmatpush.msra.mxu0 0.0
    %4452 = vmatpush.msra.mxu0 0.0
    %4453 = vmatpush.msra.mxu0 0.0
    %4454 = vmatpush.msra.mxu0 0.0
    %4455 = vmatpush.msra.mxu0 0.0
    %4456 = vmatpush.msra.mxu0 0.0
    %4457 = vmatpush.msra.mxu0 0.0
    %4458 = vmatpush.msra.mxu0 0.0
    %4459 = vmatpush.msra.mxu0 0.0
    %4460 = vmatpush.msra.mxu0 0.0
    %4461 = vmatpush.msra.mxu0 0.0
    %4462 = vmatpush.msra.mxu0 %v4259
    %4463 = vmatpush.msra.mxu0 %v4255
    %4464 = vmatpush.msra.mxu0 %v4251
    %4465 = vmatpush.msra.mxu0 %v4247
    %4466 = vmatmul.f32.gmra.mxu0 %v4428
    %v4467 = vpop.f32.mrf.mxu0
    %v4468 = vadd.f32 %v4364, %v4467
    %4469 = vdwg.mxu0
    %4470 = vmatpush.msra.mxu0 0.0
    %4471 = vmatpush.msra.mxu0 0.0
    %4472 = vmatpush.msra.mxu0 0.0
    %4473 = vmatpush.msra.mxu0 0.0
    %4474 = vmatpush.msra.mxu0 0.0
    %4475 = vmatpush.msra.mxu0 0.0
    %4476 = vmatpush.msra.mxu0 0.0
    %4477 = vmatpush.msra.mxu0 0.0
    %4478 = vmatpush.msra.mxu0 0.0
    %4479 = vmatpush.msra.mxu0 0.0
    %4480 = vmatpush.msra.mxu0 0.0
    %4481 = vmatpush.msra.mxu0 0.0
    %4482 = vmatpush.msra.mxu0 %v4260
    %4483 = vmatpush.msra.mxu0 %v4256
    %4484 = vmatpush.msra.mxu0 %v4252
    %4485 = vmatpush.msra.mxu0 %v4248
    %4486 = vmatmul.f32.gmra.mxu0 %v4428
    %v4487 = vpop.f32.mrf.mxu0
    %v4488 = vadd.f32 %v4384, %v4487
    %4489 = vdwg.mxu0
    %4490 = vmatpush.msra.mxu0 0.0
    %4491 = vmatpush.msra.mxu0 0.0
    %4492 = vmatpush.msra.mxu0 0.0
    %4493 = vmatpush.msra.mxu0 0.0
    %4494 = vmatpush.msra.mxu0 0.0
    %4495 = vmatpush.msra.mxu0 0.0
    %4496 = vmatpush.msra.mxu0 0.0
    %4497 = vmatpush.msra.mxu0 0.0
    %4498 = vmatpush.msra.mxu0 0.0
    %4499 = vmatpush.msra.mxu0 0.0
    %4500 = vmatpush.msra.mxu0 0.0
    %4501 = vmatpush.msra.mxu0 0.0
    %4502 = vmatpush.msra.mxu0 %v4261
    %4503 = vmatpush.msra.mxu0 %v4257
    %4504 = vmatpush.msra.mxu0 %v4253
    %4505 = vmatpush.msra.mxu0 %v4249
    %4506 = vmatmul.f32.gmra.mxu0 %v4428
    %v4507 = vpop.f32.mrf.mxu0
    %v4508 = vadd.f32 %v4404, %v4507
    %4509 = vdwg.mxu0
    %s4510 = smul.u32 4, 4
    %s4511 = smul.addr %s4510, 8
    %s4512 = scalar_lea.vmem [#allocation2], %s4511
    %v4513 = vld [vmem:[%s4512] sm:$0xff]
    %v4514 = vld [vmem:[%s4512 + $0x8] sm:$0xff]
    %v4515 = vld [vmem:[%s4512 + $0x10] sm:$0xff]
    %v4516 = vld [vmem:[%s4512 + $0x18] sm:$0xff]
    %v4517 = vadd.f32 %v4448, %v4513
    %v4518 = vadd.f32 %v4468, %v4514
    %v4519 = vadd.f32 %v4488, %v4515
    %v4520 = vadd.f32 %v4508, %v4516
    %v4521 = vxor.u32 %v4517, 2147483648
    %v4522 = vmul.f32 %v4521, 1.442695
    %v4523 = vpow.pop %v4522
    %v4524 = vadd.f32 %v4523, 1.0
    %v4525 = vrcp.pop %v4524
    %v4526 = vmul.f32 %v4524, %v4525
    %v4527 = vsub.f32 1.0, %v4526
    %v4528 = vmul.f32 %v4525, %v4527
    %v4529 = vadd.f32 %v4525, %v4528
    %vm4530 = vweird.f32 %v4524
    %vm4531 = vweird.f32 %v4525
    %vm4532 = vmor %vm4530, %vm4531
    %v4533 = vsel %vm4532, %v4525, %v4529
    %v4534 = vand.u32 2147483647, %v4524
    %vm4535 = vcmp.eq.f32.partialorder %v4534, 8.507059e+37
    %v4536 = vand.u32 %v4524, 2147483648
    %v4537 = vor.u32 1.1754944e-38, %v4536
    %v4538 = vsel %vm4535, %v4537, %v4533
    %v4539 = vmul.f32 1.0, %v4538
    %v4540 = vxor.u32 %v4518, 2147483648
    %v4541 = vmul.f32 %v4540, 1.442695
    %v4542 = vpow.pop %v4541
    %v4543 = vadd.f32 %v4542, 1.0
    %v4544 = vrcp.pop %v4543
    %v4545 = vmul.f32 %v4543, %v4544
    %v4546 = vsub.f32 1.0, %v4545
    %v4547 = vmul.f32 %v4544, %v4546
    %v4548 = vadd.f32 %v4544, %v4547
    %vm4549 = vweird.f32 %v4543
    %vm4550 = vweird.f32 %v4544
    %vm4551 = vmor %vm4549, %vm4550
    %v4552 = vsel %vm4551, %v4544, %v4548
    %v4553 = vand.u32 2147483647, %v4543
    %vm4554 = vcmp.eq.f32.partialorder %v4553, 8.507059e+37
    %v4555 = vand.u32 %v4543, 2147483648
    %v4556 = vor.u32 1.1754944e-38, %v4555
    %v4557 = vsel %vm4554, %v4556, %v4552
    %v4558 = vmul.f32 1.0, %v4557
    %v4559 = vtanh.pop %v4519
    %v4560 = vxor.u32 %v4520, 2147483648
    %v4561 = vmul.f32 %v4560, 1.442695
    %v4562 = vpow.pop %v4561
    %v4563 = vadd.f32 %v4562, 1.0
    %v4564 = vrcp.pop %v4563
    %v4565 = vmul.f32 %v4563, %v4564
    %v4566 = vsub.f32 1.0, %v4565
    %v4567 = vmul.f32 %v4564, %v4566
    %v4568 = vadd.f32 %v4564, %v4567
    %vm4569 = vweird.f32 %v4563
    %vm4570 = vweird.f32 %v4564
    %vm4571 = vmor %vm4569, %vm4570
    %v4572 = vsel %vm4571, %v4564, %v4568
    %v4573 = vand.u32 2147483647, %v4563
    %vm4574 = vcmp.eq.f32.partialorder %v4573, 8.507059e+37
    %v4575 = vand.u32 %v4563, 2147483648
    %v4576 = vor.u32 1.1754944e-38, %v4575
    %v4577 = vsel %vm4574, %v4576, %v4572
    %v4578 = vmul.f32 1.0, %v4577
    %v4579 = vmul.f32 %v4558, %v3791
    %v4580 = vmul.f32 %v4539, %v4559
    %v4581 = vadd.f32 %v4579, %v4580
    %v4582 = vtanh.pop %v4581
    %v4583 = vmul.f32 %v4578, %v4582
    %s4584 = scalar_lea.vmem [#allocation3], 32
    %4585 = vst [vmem:[%s4584] sm:$0xff] %v4583
    %s4587 = scalar_lea.vmem [#allocation4], 32
    %4588 = vst.msk [vmem:[%s4587] sm:$0xff] %vm161, %v4427
    %v4590 = vrot.slane %v4583, 1
    %v4591 = vrot.slane %v4583, 2
    %v4592 = vrot.slane %v4583, 3
    %v4593 = vrot.slane %v4583, 4
    %v4594 = vrot.slane %v4583, 5
    %v4595 = vrot.slane %v4583, 6
    %v4596 = vrot.slane %v4583, 7
    %4604 = vmatpush.xpose.msra.mxu0 0.0
    %4605 = vmatpush.xpose.msra.mxu0 0.0
    %4606 = vmatpush.xpose.msra.mxu0 0.0
    %4607 = vmatpush.xpose.msra.mxu0 0.0
    %4608 = vmatpush.xpose.msra.mxu0 0.0
    %4609 = vmatpush.xpose.msra.mxu0 0.0
    %4610 = vmatpush.xpose.msra.mxu0 0.0
    %4611 = vmatpush.xpose.msra.mxu0 0.0
    %4612 = vmatpush.xpose.msra.mxu0 0.0
    %4613 = vmatpush.xpose.msra.mxu0 0.0
    %4614 = vmatpush.xpose.msra.mxu0 0.0
    %4615 = vmatpush.xpose.msra.mxu0 0.0
    %4616 = vmatpush.xpose.msra.mxu0 0.0
    %4617 = vmatpush.xpose.msra.mxu0 0.0
    %4618 = vmatpush.xpose.msra.mxu0 %v455
    %4619 = vmatpush.xpose.msra.mxu0 %v452
    %4620 = vmatmul.f32.gmra.mxu0 %v4583
    %v4621 = vpop.f32.mrf.mxu0
    %v4622 = vadd.f32 0.0, %v4621
    %4623 = vdwg.mxu0
    %4624 = vmatpush.xpose.msra.mxu0 0.0
    %4625 = vmatpush.xpose.msra.mxu0 0.0
    %4626 = vmatpush.xpose.msra.mxu0 0.0
    %4627 = vmatpush.xpose.msra.mxu0 0.0
    %4628 = vmatpush.xpose.msra.mxu0 0.0
    %4629 = vmatpush.xpose.msra.mxu0 0.0
    %4630 = vmatpush.xpose.msra.mxu0 0.0
    %4631 = vmatpush.xpose.msra.mxu0 0.0
    %4632 = vmatpush.xpose.msra.mxu0 0.0
    %4633 = vmatpush.xpose.msra.mxu0 0.0
    %4634 = vmatpush.xpose.msra.mxu0 0.0
    %4635 = vmatpush.xpose.msra.mxu0 0.0
    %4636 = vmatpush.xpose.msra.mxu0 0.0
    %4637 = vmatpush.xpose.msra.mxu0 0.0
    %4638 = vmatpush.xpose.msra.mxu0 %v461
    %4639 = vmatpush.xpose.msra.mxu0 %v458
    %4640 = vmatmul.f32.gmra.mxu0 %v4590
    %v4641 = vpop.f32.mrf.mxu0
    %v4642 = vadd.f32 0.0, %v4641
    %4643 = vdwg.mxu0
    %4644 = vmatpush.xpose.msra.mxu0 0.0
    %4645 = vmatpush.xpose.msra.mxu0 0.0
    %4646 = vmatpush.xpose.msra.mxu0 0.0
    %4647 = vmatpush.xpose.msra.mxu0 0.0
    %4648 = vmatpush.xpose.msra.mxu0 0.0
    %4649 = vmatpush.xpose.msra.mxu0 0.0
    %4650 = vmatpush.xpose.msra.mxu0 0.0
    %4651 = vmatpush.xpose.msra.mxu0 0.0
    %4652 = vmatpush.xpose.msra.mxu0 0.0
    %4653 = vmatpush.xpose.msra.mxu0 0.0
    %4654 = vmatpush.xpose.msra.mxu0 0.0
    %4655 = vmatpush.xpose.msra.mxu0 0.0
    %4656 = vmatpush.xpose.msra.mxu0 0.0
    %4657 = vmatpush.xpose.msra.mxu0 0.0
    %4658 = vmatpush.xpose.msra.mxu0 %v467
    %4659 = vmatpush.xpose.msra.mxu0 %v464
    %4660 = vmatmul.f32.gmra.mxu0 %v4591
    %v4661 = vpop.f32.mrf.mxu0
    %v4662 = vadd.f32 0.0, %v4661
    %4663 = vdwg.mxu0
    %4664 = vmatpush.xpose.msra.mxu0 0.0
    %4665 = vmatpush.xpose.msra.mxu0 0.0
    %4666 = vmatpush.xpose.msra.mxu0 0.0
    %4667 = vmatpush.xpose.msra.mxu0 0.0
    %4668 = vmatpush.xpose.msra.mxu0 0.0
    %4669 = vmatpush.xpose.msra.mxu0 0.0
    %4670 = vmatpush.xpose.msra.mxu0 0.0
    %4671 = vmatpush.xpose.msra.mxu0 0.0
    %4672 = vmatpush.xpose.msra.mxu0 0.0
    %4673 = vmatpush.xpose.msra.mxu0 0.0
    %4674 = vmatpush.xpose.msra.mxu0 0.0
    %4675 = vmatpush.xpose.msra.mxu0 0.0
    %4676 = vmatpush.xpose.msra.mxu0 0.0
    %4677 = vmatpush.xpose.msra.mxu0 0.0
    %4678 = vmatpush.xpose.msra.mxu0 %v473
    %4679 = vmatpush.xpose.msra.mxu0 %v470
    %4680 = vmatmul.f32.gmra.mxu0 %v4592
    %v4681 = vpop.f32.mrf.mxu0
    %v4682 = vadd.f32 0.0, %v4681
    %4683 = vdwg.mxu0
    %4684 = vmatpush.xpose.msra.mxu0 0.0
    %4685 = vmatpush.xpose.msra.mxu0 0.0
    %4686 = vmatpush.xpose.msra.mxu0 0.0
    %4687 = vmatpush.xpose.msra.mxu0 0.0
    %4688 = vmatpush.xpose.msra.mxu0 0.0
    %4689 = vmatpush.xpose.msra.mxu0 0.0
    %4690 = vmatpush.xpose.msra.mxu0 0.0
    %4691 = vmatpush.xpose.msra.mxu0 0.0
    %4692 = vmatpush.xpose.msra.mxu0 0.0
    %4693 = vmatpush.xpose.msra.mxu0 0.0
    %4694 = vmatpush.xpose.msra.mxu0 0.0
    %4695 = vmatpush.xpose.msra.mxu0 0.0
    %4696 = vmatpush.xpose.msra.mxu0 0.0
    %4697 = vmatpush.xpose.msra.mxu0 0.0
    %4698 = vmatpush.xpose.msra.mxu0 %v479
    %4699 = vmatpush.xpose.msra.mxu0 %v476
    %4700 = vmatmul.f32.gmra.mxu0 %v4593
    %v4701 = vpop.f32.mrf.mxu0
    %v4702 = vadd.f32 0.0, %v4701
    %4703 = vdwg.mxu0
    %4704 = vmatpush.xpose.msra.mxu0 0.0
    %4705 = vmatpush.xpose.msra.mxu0 0.0
    %4706 = vmatpush.xpose.msra.mxu0 0.0
    %4707 = vmatpush.xpose.msra.mxu0 0.0
    %4708 = vmatpush.xpose.msra.mxu0 0.0
    %4709 = vmatpush.xpose.msra.mxu0 0.0
    %4710 = vmatpush.xpose.msra.mxu0 0.0
    %4711 = vmatpush.xpose.msra.mxu0 0.0
    %4712 = vmatpush.xpose.msra.mxu0 0.0
    %4713 = vmatpush.xpose.msra.mxu0 0.0
    %4714 = vmatpush.xpose.msra.mxu0 0.0
    %4715 = vmatpush.xpose.msra.mxu0 0.0
    %4716 = vmatpush.xpose.msra.mxu0 0.0
    %4717 = vmatpush.xpose.msra.mxu0 0.0
    %4718 = vmatpush.xpose.msra.mxu0 %v485
    %4719 = vmatpush.xpose.msra.mxu0 %v482
    %4720 = vmatmul.f32.gmra.mxu0 %v4594
    %v4721 = vpop.f32.mrf.mxu0
    %v4722 = vadd.f32 0.0, %v4721
    %4723 = vdwg.mxu0
    %4724 = vmatpush.xpose.msra.mxu0 0.0
    %4725 = vmatpush.xpose.msra.mxu0 0.0
    %4726 = vmatpush.xpose.msra.mxu0 0.0
    %4727 = vmatpush.xpose.msra.mxu0 0.0
    %4728 = vmatpush.xpose.msra.mxu0 0.0
    %4729 = vmatpush.xpose.msra.mxu0 0.0
    %4730 = vmatpush.xpose.msra.mxu0 0.0
    %4731 = vmatpush.xpose.msra.mxu0 0.0
    %4732 = vmatpush.xpose.msra.mxu0 0.0
    %4733 = vmatpush.xpose.msra.mxu0 0.0
    %4734 = vmatpush.xpose.msra.mxu0 0.0
    %4735 = vmatpush.xpose.msra.mxu0 0.0
    %4736 = vmatpush.xpose.msra.mxu0 0.0
    %4737 = vmatpush.xpose.msra.mxu0 0.0
    %4738 = vmatpush.xpose.msra.mxu0 %v491
    %4739 = vmatpush.xpose.msra.mxu0 %v488
    %4740 = vmatmul.f32.gmra.mxu0 %v4595
    %v4741 = vpop.f32.mrf.mxu0
    %v4742 = vadd.f32 0.0, %v4741
    %4743 = vdwg.mxu0
    %4744 = vmatpush.xpose.msra.mxu0 0.0
    %4745 = vmatpush.xpose.msra.mxu0 0.0
    %4746 = vmatpush.xpose.msra.mxu0 0.0
    %4747 = vmatpush.xpose.msra.mxu0 0.0
    %4748 = vmatpush.xpose.msra.mxu0 0.0
    %4749 = vmatpush.xpose.msra.mxu0 0.0
    %4750 = vmatpush.xpose.msra.mxu0 0.0
    %4751 = vmatpush.xpose.msra.mxu0 0.0
    %4752 = vmatpush.xpose.msra.mxu0 0.0
    %4753 = vmatpush.xpose.msra.mxu0 0.0
    %4754 = vmatpush.xpose.msra.mxu0 0.0
    %4755 = vmatpush.xpose.msra.mxu0 0.0
    %4756 = vmatpush.xpose.msra.mxu0 0.0
    %4757 = vmatpush.xpose.msra.mxu0 0.0
    %4758 = vmatpush.xpose.msra.mxu0 %v497
    %4759 = vmatpush.xpose.msra.mxu0 %v494
    %4760 = vmatmul.f32.gmra.mxu0 %v4596
    %v4761 = vpop.f32.mrf.mxu0
    %v4762 = vadd.f32 0.0, %v4761
    %4763 = vdwg.mxu0
    %v4764 = vsel %vm814, %v4622, -inf
    %4765 = vmax.xlane.f32.xlu0 %v4764
    %v4766 = vpop.xlane.xlu0 %4765
    %v4767 = vsel %vm814, %v4642, -inf
    %4768 = vmax.xlane.f32.xlu0 %v4767
    %v4769 = vpop.xlane.xlu0 %4768
    %v4770 = vsel %vm814, %v4662, -inf
    %4771 = vmax.xlane.f32.xlu0 %v4770
    %v4772 = vpop.xlane.xlu0 %4771
    %v4773 = vsel %vm814, %v4682, -inf
    %4774 = vmax.xlane.f32.xlu0 %v4773
    %v4775 = vpop.xlane.xlu0 %4774
    %v4776 = vsel %vm814, %v4702, -inf
    %4777 = vmax.xlane.f32.xlu0 %v4776
    %v4778 = vpop.xlane.xlu0 %4777
    %v4779 = vsel %vm814, %v4722, -inf
    %4780 = vmax.xlane.f32.xlu0 %v4779
    %v4781 = vpop.xlane.xlu0 %4780
    %v4782 = vsel %vm814, %v4742, -inf
    %4783 = vmax.xlane.f32.xlu0 %v4782
    %v4784 = vpop.xlane.xlu0 %4783
    %v4785 = vsel %vm814, %v4762, -inf
    %4786 = vmax.xlane.f32.xlu0 %v4785
    %v4787 = vpop.xlane.xlu0 %4786
    %v4788 = vsub.f32 %v4622, %v4766
    %v4789 = vsub.f32 %v4642, %v4769
    %v4790 = vsub.f32 %v4662, %v4772
    %v4791 = vsub.f32 %v4682, %v4775
    %v4792 = vsub.f32 %v4702, %v4778
    %v4793 = vsub.f32 %v4722, %v4781
    %v4794 = vsub.f32 %v4742, %v4784
    %v4795 = vsub.f32 %v4762, %v4787
    %v4796 = vmul.f32 %v4788, 1.442695
    %v4797 = vpow.pop %v4796
    %v4798 = vmul.f32 %v4789, 1.442695
    %v4799 = vpow.pop %v4798
    %v4800 = vmul.f32 %v4790, 1.442695
    %v4801 = vpow.pop %v4800
    %v4802 = vmul.f32 %v4791, 1.442695
    %v4803 = vpow.pop %v4802
    %v4804 = vmul.f32 %v4792, 1.442695
    %v4805 = vpow.pop %v4804
    %v4806 = vmul.f32 %v4793, 1.442695
    %v4807 = vpow.pop %v4806
    %v4808 = vmul.f32 %v4794, 1.442695
    %v4809 = vpow.pop %v4808
    %v4810 = vmul.f32 %v4795, 1.442695
    %v4811 = vpow.pop %v4810
    %v4812 = vsel %vm814, %v4797, 0.0
    %4813 = vadd.xlane.f32.xlu0 %v4812
    %v4814 = vpop.xlane.xlu0 %4813
    %v4815 = vsel %vm814, %v4799, 0.0
    %4816 = vadd.xlane.f32.xlu0 %v4815
    %v4817 = vpop.xlane.xlu0 %4816
    %v4818 = vsel %vm814, %v4801, 0.0
    %4819 = vadd.xlane.f32.xlu0 %v4818
    %v4820 = vpop.xlane.xlu0 %4819
    %v4821 = vsel %vm814, %v4803, 0.0
    %4822 = vadd.xlane.f32.xlu0 %v4821
    %v4823 = vpop.xlane.xlu0 %4822
    %v4824 = vsel %vm814, %v4805, 0.0
    %4825 = vadd.xlane.f32.xlu0 %v4824
    %v4826 = vpop.xlane.xlu0 %4825
    %v4827 = vsel %vm814, %v4807, 0.0
    %4828 = vadd.xlane.f32.xlu0 %v4827
    %v4829 = vpop.xlane.xlu0 %4828
    %v4830 = vsel %vm814, %v4809, 0.0
    %4831 = vadd.xlane.f32.xlu0 %v4830
    %v4832 = vpop.xlane.xlu0 %4831
    %v4833 = vsel %vm814, %v4811, 0.0
    %4834 = vadd.xlane.f32.xlu0 %v4833
    %v4835 = vpop.xlane.xlu0 %4834
    %v4836 = vrcp.pop %v4814
    %v4837 = vrcp.pop %v4817
    %v4838 = vrcp.pop %v4820
    %v4839 = vrcp.pop %v4823
    %v4840 = vrcp.pop %v4826
    %v4841 = vrcp.pop %v4829
    %v4842 = vrcp.pop %v4832
    %v4843 = vrcp.pop %v4835
    %v4844 = vmul.f32 %v4797, %v4836
    %v4845 = vmul.f32 %v4799, %v4837
    %v4846 = vmul.f32 %v4801, %v4838
    %v4847 = vmul.f32 %v4803, %v4839
    %v4848 = vmul.f32 %v4805, %v4840
    %v4849 = vmul.f32 %v4807, %v4841
    %v4850 = vmul.f32 %v4809, %v4842
    %v4851 = vmul.f32 %v4811, %v4843
    %v4853 = vsel %vm903, %v4844, 0
    %4855 = vmatpush.msra.mxu0 0.0
    %4856 = vmatpush.msra.mxu0 0.0
    %4857 = vmatpush.msra.mxu0 0.0
    %4858 = vmatpush.msra.mxu0 0.0
    %4859 = vmatpush.msra.mxu0 0.0
    %4860 = vmatpush.msra.mxu0 0.0
    %4861 = vmatpush.msra.mxu0 0.0
    %4862 = vmatpush.msra.mxu0 0.0
    %4863 = vmatpush.msra.mxu0 0.0
    %4864 = vmatpush.msra.mxu0 0.0
    %4865 = vmatpush.msra.mxu0 0.0
    %4866 = vmatpush.msra.mxu0 0.0
    %4867 = vmatpush.msra.mxu0 0.0
    %4868 = vmatpush.msra.mxu0 0.0
    %4869 = vmatpush.msra.mxu0 %v112
    %4870 = vmatpush.msra.mxu0 %v111
    %4871 = vmatmul.f32.gmra.mxu0 %v4853
    %v4872 = vpop.f32.mrf.mxu0
    %v4873 = vadd.f32 0.0, %v4872
    %4874 = vdwg.mxu0
    %v4876 = vsel %vm903, %v4845, 0
    %4878 = vmatpush.msra.mxu0 0.0
    %4879 = vmatpush.msra.mxu0 0.0
    %4880 = vmatpush.msra.mxu0 0.0
    %4881 = vmatpush.msra.mxu0 0.0
    %4882 = vmatpush.msra.mxu0 0.0
    %4883 = vmatpush.msra.mxu0 0.0
    %4884 = vmatpush.msra.mxu0 0.0
    %4885 = vmatpush.msra.mxu0 0.0
    %4886 = vmatpush.msra.mxu0 0.0
    %4887 = vmatpush.msra.mxu0 0.0
    %4888 = vmatpush.msra.mxu0 0.0
    %4889 = vmatpush.msra.mxu0 0.0
    %4890 = vmatpush.msra.mxu0 0.0
    %4891 = vmatpush.msra.mxu0 0.0
    %4892 = vmatpush.msra.mxu0 %v114
    %4893 = vmatpush.msra.mxu0 %v113
    %4894 = vmatmul.f32.gmra.mxu0 %v4876
    %v4895 = vpop.f32.mrf.mxu0
    %v4896 = vadd.f32 0.0, %v4895
    %4897 = vdwg.mxu0
    %v4899 = vsel %vm903, %v4846, 0
    %4901 = vmatpush.msra.mxu0 0.0
    %4902 = vmatpush.msra.mxu0 0.0
    %4903 = vmatpush.msra.mxu0 0.0
    %4904 = vmatpush.msra.mxu0 0.0
    %4905 = vmatpush.msra.mxu0 0.0
    %4906 = vmatpush.msra.mxu0 0.0
    %4907 = vmatpush.msra.mxu0 0.0
    %4908 = vmatpush.msra.mxu0 0.0
    %4909 = vmatpush.msra.mxu0 0.0
    %4910 = vmatpush.msra.mxu0 0.0
    %4911 = vmatpush.msra.mxu0 0.0
    %4912 = vmatpush.msra.mxu0 0.0
    %4913 = vmatpush.msra.mxu0 0.0
    %4914 = vmatpush.msra.mxu0 0.0
    %4915 = vmatpush.msra.mxu0 %v116
    %4916 = vmatpush.msra.mxu0 %v115
    %4917 = vmatmul.f32.gmra.mxu0 %v4899
    %v4918 = vpop.f32.mrf.mxu0
    %v4919 = vadd.f32 0.0, %v4918
    %4920 = vdwg.mxu0
    %v4922 = vsel %vm903, %v4847, 0
    %4924 = vmatpush.msra.mxu0 0.0
    %4925 = vmatpush.msra.mxu0 0.0
    %4926 = vmatpush.msra.mxu0 0.0
    %4927 = vmatpush.msra.mxu0 0.0
    %4928 = vmatpush.msra.mxu0 0.0
    %4929 = vmatpush.msra.mxu0 0.0
    %4930 = vmatpush.msra.mxu0 0.0
    %4931 = vmatpush.msra.mxu0 0.0
    %4932 = vmatpush.msra.mxu0 0.0
    %4933 = vmatpush.msra.mxu0 0.0
    %4934 = vmatpush.msra.mxu0 0.0
    %4935 = vmatpush.msra.mxu0 0.0
    %4936 = vmatpush.msra.mxu0 0.0
    %4937 = vmatpush.msra.mxu0 0.0
    %4938 = vmatpush.msra.mxu0 %v118
    %4939 = vmatpush.msra.mxu0 %v117
    %4940 = vmatmul.f32.gmra.mxu0 %v4922
    %v4941 = vpop.f32.mrf.mxu0
    %v4942 = vadd.f32 0.0, %v4941
    %4943 = vdwg.mxu0
    %v4945 = vsel %vm903, %v4848, 0
    %4947 = vmatpush.msra.mxu0 0.0
    %4948 = vmatpush.msra.mxu0 0.0
    %4949 = vmatpush.msra.mxu0 0.0
    %4950 = vmatpush.msra.mxu0 0.0
    %4951 = vmatpush.msra.mxu0 0.0
    %4952 = vmatpush.msra.mxu0 0.0
    %4953 = vmatpush.msra.mxu0 0.0
    %4954 = vmatpush.msra.mxu0 0.0
    %4955 = vmatpush.msra.mxu0 0.0
    %4956 = vmatpush.msra.mxu0 0.0
    %4957 = vmatpush.msra.mxu0 0.0
    %4958 = vmatpush.msra.mxu0 0.0
    %4959 = vmatpush.msra.mxu0 0.0
    %4960 = vmatpush.msra.mxu0 0.0
    %4961 = vmatpush.msra.mxu0 %v120
    %4962 = vmatpush.msra.mxu0 %v119
    %4963 = vmatmul.f32.gmra.mxu0 %v4945
    %v4964 = vpop.f32.mrf.mxu0
    %v4965 = vadd.f32 0.0, %v4964
    %4966 = vdwg.mxu0
    %v4968 = vsel %vm903, %v4849, 0
    %4970 = vmatpush.msra.mxu0 0.0
    %4971 = vmatpush.msra.mxu0 0.0
    %4972 = vmatpush.msra.mxu0 0.0
    %4973 = vmatpush.msra.mxu0 0.0
    %4974 = vmatpush.msra.mxu0 0.0
    %4975 = vmatpush.msra.mxu0 0.0
    %4976 = vmatpush.msra.mxu0 0.0
    %4977 = vmatpush.msra.mxu0 0.0
    %4978 = vmatpush.msra.mxu0 0.0
    %4979 = vmatpush.msra.mxu0 0.0
    %4980 = vmatpush.msra.mxu0 0.0
    %4981 = vmatpush.msra.mxu0 0.0
    %4982 = vmatpush.msra.mxu0 0.0
    %4983 = vmatpush.msra.mxu0 0.0
    %4984 = vmatpush.msra.mxu0 %v122
    %4985 = vmatpush.msra.mxu0 %v121
    %4986 = vmatmul.f32.gmra.mxu0 %v4968
    %v4987 = vpop.f32.mrf.mxu0
    %v4988 = vadd.f32 0.0, %v4987
    %4989 = vdwg.mxu0
    %v4991 = vsel %vm903, %v4850, 0
    %4993 = vmatpush.msra.mxu0 0.0
    %4994 = vmatpush.msra.mxu0 0.0
    %4995 = vmatpush.msra.mxu0 0.0
    %4996 = vmatpush.msra.mxu0 0.0
    %4997 = vmatpush.msra.mxu0 0.0
    %4998 = vmatpush.msra.mxu0 0.0
    %4999 = vmatpush.msra.mxu0 0.0
    %5000 = vmatpush.msra.mxu0 0.0
    %5001 = vmatpush.msra.mxu0 0.0
    %5002 = vmatpush.msra.mxu0 0.0
    %5003 = vmatpush.msra.mxu0 0.0
    %5004 = vmatpush.msra.mxu0 0.0
    %5005 = vmatpush.msra.mxu0 0.0
    %5006 = vmatpush.msra.mxu0 0.0
    %5007 = vmatpush.msra.mxu0 %v124
    %5008 = vmatpush.msra.mxu0 %v123
    %5009 = vmatmul.f32.gmra.mxu0 %v4991
    %v5010 = vpop.f32.mrf.mxu0
    %v5011 = vadd.f32 0.0, %v5010
    %5012 = vdwg.mxu0
    %v5014 = vsel %vm903, %v4851, 0
    %5016 = vmatpush.msra.mxu0 0.0
    %5017 = vmatpush.msra.mxu0 0.0
    %5018 = vmatpush.msra.mxu0 0.0
    %5019 = vmatpush.msra.mxu0 0.0
    %5020 = vmatpush.msra.mxu0 0.0
    %5021 = vmatpush.msra.mxu0 0.0
    %5022 = vmatpush.msra.mxu0 0.0
    %5023 = vmatpush.msra.mxu0 0.0
    %5024 = vmatpush.msra.mxu0 0.0
    %5025 = vmatpush.msra.mxu0 0.0
    %5026 = vmatpush.msra.mxu0 0.0
    %5027 = vmatpush.msra.mxu0 0.0
    %5028 = vmatpush.msra.mxu0 0.0
    %5029 = vmatpush.msra.mxu0 0.0
    %5030 = vmatpush.msra.mxu0 %v126
    %5031 = vmatpush.msra.mxu0 %v125
    %5032 = vmatmul.f32.gmra.mxu0 %v5014
    %v5033 = vpop.f32.mrf.mxu0
    %v5034 = vadd.f32 0.0, %v5033
    %5035 = vdwg.mxu0
    %v5036 = vld [vmem:[#allocation5] sm:$0xff]
    %v5037 = vld [vmem:[#allocation5 + $0x8] sm:$0xff]
    %v5038 = vld [vmem:[#allocation5 + $0x10] sm:$0xff]
    %v5039 = vld [vmem:[#allocation5 + $0x18] sm:$0xff]
    %v5040 = vld [vmem:[#allocation5 + $0x20] sm:$0xff]
    %v5041 = vld [vmem:[#allocation5 + $0x28] sm:$0xff]
    %v5042 = vld [vmem:[#allocation5 + $0x30] sm:$0xff]
    %v5043 = vld [vmem:[#allocation5 + $0x38] sm:$0xff]
    %v5044 = vld [vmem:[#allocation5 + $0x40] sm:$0xff]
    %v5045 = vld [vmem:[#allocation5 + $0x48] sm:$0xff]
    %v5046 = vld [vmem:[#allocation5 + $0x50] sm:$0xff]
    %v5047 = vld [vmem:[#allocation5 + $0x58] sm:$0xff]
    %v5048 = vld [vmem:[#allocation5 + $0x60] sm:$0xff]
    %v5049 = vld [vmem:[#allocation5 + $0x68] sm:$0xff]
    %v5050 = vld [vmem:[#allocation5 + $0x70] sm:$0xff]
    %v5051 = vld [vmem:[#allocation5 + $0x78] sm:$0xff]
    %v5052 = vld [vmem:[#allocation10] sm:$0xff]
    %v5053 = vld [vmem:[#allocation10 + $0x8] sm:$0xff]
    %v5054 = vld [vmem:[#allocation10 + $0x10] sm:$0xff]
    %v5055 = vld [vmem:[#allocation10 + $0x18] sm:$0xff]
    %v5056 = vld [vmem:[#allocation10 + $0x20] sm:$0xff]
    %v5057 = vld [vmem:[#allocation10 + $0x28] sm:$0xff]
    %v5058 = vld [vmem:[#allocation10 + $0x30] sm:$0xff]
    %v5059 = vld [vmem:[#allocation10 + $0x38] sm:$0xff]
    %v5060 = vld [vmem:[#allocation10 + $0x40] sm:$0xff]
    %v5061 = vld [vmem:[#allocation10 + $0x48] sm:$0xff]
    %v5062 = vld [vmem:[#allocation10 + $0x50] sm:$0xff]
    %v5063 = vld [vmem:[#allocation10 + $0x58] sm:$0xff]
    %v5064 = vld [vmem:[#allocation10 + $0x60] sm:$0xff]
    %v5065 = vld [vmem:[#allocation10 + $0x68] sm:$0xff]
    %v5066 = vld [vmem:[#allocation10 + $0x70] sm:$0xff]
    %v5067 = vld [vmem:[#allocation10 + $0x78] sm:$0xff]
    %v5068 = vld [vmem:[#allocation10 + $0x80] sm:$0xff]
    %v5069 = vld [vmem:[#allocation10 + $0x88] sm:$0xff]
    %v5070 = vld [vmem:[#allocation10 + $0x90] sm:$0xff]
    %v5071 = vld [vmem:[#allocation10 + $0x98] sm:$0xff]
    %v5072 = vld [vmem:[#allocation10 + $0xa0] sm:$0xff]
    %v5073 = vld [vmem:[#allocation10 + $0xa8] sm:$0xff]
    %v5074 = vld [vmem:[#allocation10 + $0xb0] sm:$0xff]
    %v5075 = vld [vmem:[#allocation10 + $0xb8] sm:$0xff]
    %v5076 = vld [vmem:[#allocation10 + $0xc0] sm:$0xff]
    %v5077 = vld [vmem:[#allocation10 + $0xc8] sm:$0xff]
    %v5078 = vld [vmem:[#allocation10 + $0xd0] sm:$0xff]
    %v5079 = vld [vmem:[#allocation10 + $0xd8] sm:$0xff]
    %v5080 = vld [vmem:[#allocation10 + $0xe0] sm:$0xff]
    %v5081 = vld [vmem:[#allocation10 + $0xe8] sm:$0xff]
    %v5082 = vld [vmem:[#allocation10 + $0xf0] sm:$0xff]
    %v5083 = vld [vmem:[#allocation10 + $0xf8] sm:$0xff]
    %v5084 = vld [vmem:[#allocation10 + $0x100] sm:$0xff]
    %v5085 = vld [vmem:[#allocation10 + $0x108] sm:$0xff]
    %v5086 = vld [vmem:[#allocation10 + $0x110] sm:$0xff]
    %v5087 = vld [vmem:[#allocation10 + $0x118] sm:$0xff]
    %v5088 = vld [vmem:[#allocation10 + $0x120] sm:$0xff]
    %v5089 = vld [vmem:[#allocation10 + $0x128] sm:$0xff]
    %v5090 = vld [vmem:[#allocation10 + $0x130] sm:$0xff]
    %v5091 = vld [vmem:[#allocation10 + $0x138] sm:$0xff]
    %v5092 = vld [vmem:[#allocation10 + $0x140] sm:$0xff]
    %v5093 = vld [vmem:[#allocation10 + $0x148] sm:$0xff]
    %v5094 = vld [vmem:[#allocation10 + $0x150] sm:$0xff]
    %v5095 = vld [vmem:[#allocation10 + $0x158] sm:$0xff]
    %v5096 = vld [vmem:[#allocation10 + $0x160] sm:$0xff]
    %v5097 = vld [vmem:[#allocation10 + $0x168] sm:$0xff]
    %v5098 = vld [vmem:[#allocation10 + $0x170] sm:$0xff]
    %v5099 = vld [vmem:[#allocation10 + $0x178] sm:$0xff]
    %v5100 = vld [vmem:[#allocation10 + $0x180] sm:$0xff]
    %v5101 = vld [vmem:[#allocation10 + $0x188] sm:$0xff]
    %v5102 = vld [vmem:[#allocation10 + $0x190] sm:$0xff]
    %v5103 = vld [vmem:[#allocation10 + $0x198] sm:$0xff]
    %v5104 = vld [vmem:[#allocation10 + $0x1a0] sm:$0xff]
    %v5105 = vld [vmem:[#allocation10 + $0x1a8] sm:$0xff]
    %v5106 = vld [vmem:[#allocation10 + $0x1b0] sm:$0xff]
    %v5107 = vld [vmem:[#allocation10 + $0x1b8] sm:$0xff]
    %v5108 = vld [vmem:[#allocation10 + $0x1c0] sm:$0xff]
    %v5109 = vld [vmem:[#allocation10 + $0x1c8] sm:$0xff]
    %v5110 = vld [vmem:[#allocation10 + $0x1d0] sm:$0xff]
    %v5111 = vld [vmem:[#allocation10 + $0x1d8] sm:$0xff]
    %v5112 = vld [vmem:[#allocation10 + $0x1e0] sm:$0xff]
    %v5113 = vld [vmem:[#allocation10 + $0x1e8] sm:$0xff]
    %v5114 = vld [vmem:[#allocation10 + $0x1f0] sm:$0xff]
    %v5115 = vld [vmem:[#allocation10 + $0x1f8] sm:$0xff]
    %5116 = vmatpush.msra.mxu0 %v5112
    %5117 = vmatpush.msra.mxu0 %v5108
    %5118 = vmatpush.msra.mxu0 %v5104
    %5119 = vmatpush.msra.mxu0 %v5100
    %5120 = vmatpush.msra.mxu0 %v5096
    %5121 = vmatpush.msra.mxu0 %v5092
    %5122 = vmatpush.msra.mxu0 %v5088
    %5123 = vmatpush.msra.mxu0 %v5084
    %5124 = vmatpush.msra.mxu0 %v5080
    %5125 = vmatpush.msra.mxu0 %v5076
    %5126 = vmatpush.msra.mxu0 %v5072
    %5127 = vmatpush.msra.mxu0 %v5068
    %5128 = vmatpush.msra.mxu0 %v5064
    %5129 = vmatpush.msra.mxu0 %v5060
    %5130 = vmatpush.msra.mxu0 %v5056
    %5131 = vmatpush.msra.mxu0 %v5052
    %5132 = vmatmul.f32.gmra.mxu0 %v4583
    %v5133 = vpop.f32.mrf.mxu0
    %v5134 = vadd.f32 0.0, %v5133
    %5135 = vdwg.mxu0
    %5136 = vmatpush.msra.mxu0 %v5113
    %5137 = vmatpush.msra.mxu0 %v5109
    %5138 = vmatpush.msra.mxu0 %v5105
    %5139 = vmatpush.msra.mxu0 %v5101
    %5140 = vmatpush.msra.mxu0 %v5097
    %5141 = vmatpush.msra.mxu0 %v5093
    %5142 = vmatpush.msra.mxu0 %v5089
    %5143 = vmatpush.msra.mxu0 %v5085
    %5144 = vmatpush.msra.mxu0 %v5081
    %5145 = vmatpush.msra.mxu0 %v5077
    %5146 = vmatpush.msra.mxu0 %v5073
    %5147 = vmatpush.msra.mxu0 %v5069
    %5148 = vmatpush.msra.mxu0 %v5065
    %5149 = vmatpush.msra.mxu0 %v5061
    %5150 = vmatpush.msra.mxu0 %v5057
    %5151 = vmatpush.msra.mxu0 %v5053
    %5152 = vmatmul.f32.gmra.mxu0 %v4583
    %v5153 = vpop.f32.mrf.mxu0
    %v5154 = vadd.f32 0.0, %v5153
    %5155 = vdwg.mxu0
    %5156 = vmatpush.msra.mxu0 %v5114
    %5157 = vmatpush.msra.mxu0 %v5110
    %5158 = vmatpush.msra.mxu0 %v5106
    %5159 = vmatpush.msra.mxu0 %v5102
    %5160 = vmatpush.msra.mxu0 %v5098
    %5161 = vmatpush.msra.mxu0 %v5094
    %5162 = vmatpush.msra.mxu0 %v5090
    %5163 = vmatpush.msra.mxu0 %v5086
    %5164 = vmatpush.msra.mxu0 %v5082
    %5165 = vmatpush.msra.mxu0 %v5078
    %5166 = vmatpush.msra.mxu0 %v5074
    %5167 = vmatpush.msra.mxu0 %v5070
    %5168 = vmatpush.msra.mxu0 %v5066
    %5169 = vmatpush.msra.mxu0 %v5062
    %5170 = vmatpush.msra.mxu0 %v5058
    %5171 = vmatpush.msra.mxu0 %v5054
    %5172 = vmatmul.f32.gmra.mxu0 %v4583
    %v5173 = vpop.f32.mrf.mxu0
    %v5174 = vadd.f32 0.0, %v5173
    %5175 = vdwg.mxu0
    %5176 = vmatpush.msra.mxu0 %v5115
    %5177 = vmatpush.msra.mxu0 %v5111
    %5178 = vmatpush.msra.mxu0 %v5107
    %5179 = vmatpush.msra.mxu0 %v5103
    %5180 = vmatpush.msra.mxu0 %v5099
    %5181 = vmatpush.msra.mxu0 %v5095
    %5182 = vmatpush.msra.mxu0 %v5091
    %5183 = vmatpush.msra.mxu0 %v5087
    %5184 = vmatpush.msra.mxu0 %v5083
    %5185 = vmatpush.msra.mxu0 %v5079
    %5186 = vmatpush.msra.mxu0 %v5075
    %5187 = vmatpush.msra.mxu0 %v5071
    %5188 = vmatpush.msra.mxu0 %v5067
    %5189 = vmatpush.msra.mxu0 %v5063
    %5190 = vmatpush.msra.mxu0 %v5059
    %5191 = vmatpush.msra.mxu0 %v5055
    %5192 = vmatmul.f32.gmra.mxu0 %v4583
    %v5193 = vpop.f32.mrf.mxu0
    %v5194 = vadd.f32 0.0, %v5193
    %5195 = vdwg.mxu0
    %v5204 = vrot.slane %v4896, 7
    %v5205 = vsel %vm602, %v5204, %v4873
    %v5206 = vrot.slane %v4919, 6
    %v5207 = vsel %vm604, %v5206, %v5205
    %v5208 = vrot.slane %v4942, 5
    %v5209 = vsel %vm606, %v5208, %v5207
    %v5210 = vrot.slane %v4965, 4
    %v5211 = vsel %vm608, %v5210, %v5209
    %v5212 = vrot.slane %v4988, 3
    %v5213 = vsel %vm610, %v5212, %v5211
    %v5214 = vrot.slane %v5011, 2
    %v5215 = vsel %vm612, %v5214, %v5213
    %v5216 = vrot.slane %v5034, 1
    %v5217 = vsel %vm614, %v5216, %v5215
    %v5218 = vsel %vm161, %v5217, 0
    %5220 = vmatpush.msra.mxu0 0.0
    %5221 = vmatpush.msra.mxu0 0.0
    %5222 = vmatpush.msra.mxu0 0.0
    %5223 = vmatpush.msra.mxu0 0.0
    %5224 = vmatpush.msra.mxu0 0.0
    %5225 = vmatpush.msra.mxu0 0.0
    %5226 = vmatpush.msra.mxu0 0.0
    %5227 = vmatpush.msra.mxu0 0.0
    %5228 = vmatpush.msra.mxu0 0.0
    %5229 = vmatpush.msra.mxu0 0.0
    %5230 = vmatpush.msra.mxu0 0.0
    %5231 = vmatpush.msra.mxu0 0.0
    %5232 = vmatpush.msra.mxu0 %v5048
    %5233 = vmatpush.msra.mxu0 %v5044
    %5234 = vmatpush.msra.mxu0 %v5040
    %5235 = vmatpush.msra.mxu0 %v5036
    %5236 = vmatmul.f32.gmra.mxu0 %v5218
    %v5237 = vpop.f32.mrf.mxu0
    %v5238 = vadd.f32 %v5134, %v5237
    %5239 = vdwg.mxu0
    %5240 = vmatpush.msra.mxu0 0.0
    %5241 = vmatpush.msra.mxu0 0.0
    %5242 = vmatpush.msra.mxu0 0.0
    %5243 = vmatpush.msra.mxu0 0.0
    %5244 = vmatpush.msra.mxu0 0.0
    %5245 = vmatpush.msra.mxu0 0.0
    %5246 = vmatpush.msra.mxu0 0.0
    %5247 = vmatpush.msra.mxu0 0.0
    %5248 = vmatpush.msra.mxu0 0.0
    %5249 = vmatpush.msra.mxu0 0.0
    %5250 = vmatpush.msra.mxu0 0.0
    %5251 = vmatpush.msra.mxu0 0.0
    %5252 = vmatpush.msra.mxu0 %v5049
    %5253 = vmatpush.msra.mxu0 %v5045
    %5254 = vmatpush.msra.mxu0 %v5041
    %5255 = vmatpush.msra.mxu0 %v5037
    %5256 = vmatmul.f32.gmra.mxu0 %v5218
    %v5257 = vpop.f32.mrf.mxu0
    %v5258 = vadd.f32 %v5154, %v5257
    %5259 = vdwg.mxu0
    %5260 = vmatpush.msra.mxu0 0.0
    %5261 = vmatpush.msra.mxu0 0.0
    %5262 = vmatpush.msra.mxu0 0.0
    %5263 = vmatpush.msra.mxu0 0.0
    %5264 = vmatpush.msra.mxu0 0.0
    %5265 = vmatpush.msra.mxu0 0.0
    %5266 = vmatpush.msra.mxu0 0.0
    %5267 = vmatpush.msra.mxu0 0.0
    %5268 = vmatpush.msra.mxu0 0.0
    %5269 = vmatpush.msra.mxu0 0.0
    %5270 = vmatpush.msra.mxu0 0.0
    %5271 = vmatpush.msra.mxu0 0.0
    %5272 = vmatpush.msra.mxu0 %v5050
    %5273 = vmatpush.msra.mxu0 %v5046
    %5274 = vmatpush.msra.mxu0 %v5042
    %5275 = vmatpush.msra.mxu0 %v5038
    %5276 = vmatmul.f32.gmra.mxu0 %v5218
    %v5277 = vpop.f32.mrf.mxu0
    %v5278 = vadd.f32 %v5174, %v5277
    %5279 = vdwg.mxu0
    %5280 = vmatpush.msra.mxu0 0.0
    %5281 = vmatpush.msra.mxu0 0.0
    %5282 = vmatpush.msra.mxu0 0.0
    %5283 = vmatpush.msra.mxu0 0.0
    %5284 = vmatpush.msra.mxu0 0.0
    %5285 = vmatpush.msra.mxu0 0.0
    %5286 = vmatpush.msra.mxu0 0.0
    %5287 = vmatpush.msra.mxu0 0.0
    %5288 = vmatpush.msra.mxu0 0.0
    %5289 = vmatpush.msra.mxu0 0.0
    %5290 = vmatpush.msra.mxu0 0.0
    %5291 = vmatpush.msra.mxu0 0.0
    %5292 = vmatpush.msra.mxu0 %v5051
    %5293 = vmatpush.msra.mxu0 %v5047
    %5294 = vmatpush.msra.mxu0 %v5043
    %5295 = vmatpush.msra.mxu0 %v5039
    %5296 = vmatmul.f32.gmra.mxu0 %v5218
    %v5297 = vpop.f32.mrf.mxu0
    %v5298 = vadd.f32 %v5194, %v5297
    %5299 = vdwg.mxu0
    %s5300 = smul.u32 5, 4
    %s5301 = smul.addr %s5300, 8
    %s5302 = scalar_lea.vmem [#allocation2], %s5301
    %v5303 = vld [vmem:[%s5302] sm:$0xff]
    %v5304 = vld [vmem:[%s5302 + $0x8] sm:$0xff]
    %v5305 = vld [vmem:[%s5302 + $0x10] sm:$0xff]
    %v5306 = vld [vmem:[%s5302 + $0x18] sm:$0xff]
    %v5307 = vadd.f32 %v5238, %v5303
    %v5308 = vadd.f32 %v5258, %v5304
    %v5309 = vadd.f32 %v5278, %v5305
    %v5310 = vadd.f32 %v5298, %v5306
    %v5311 = vxor.u32 %v5307, 2147483648
    %v5312 = vmul.f32 %v5311, 1.442695
    %v5313 = vpow.pop %v5312
    %v5314 = vadd.f32 %v5313, 1.0
    %v5315 = vrcp.pop %v5314
    %v5316 = vmul.f32 %v5314, %v5315
    %v5317 = vsub.f32 1.0, %v5316
    %v5318 = vmul.f32 %v5315, %v5317
    %v5319 = vadd.f32 %v5315, %v5318
    %vm5320 = vweird.f32 %v5314
    %vm5321 = vweird.f32 %v5315
    %vm5322 = vmor %vm5320, %vm5321
    %v5323 = vsel %vm5322, %v5315, %v5319
    %v5324 = vand.u32 2147483647, %v5314
    %vm5325 = vcmp.eq.f32.partialorder %v5324, 8.507059e+37
    %v5326 = vand.u32 %v5314, 2147483648
    %v5327 = vor.u32 1.1754944e-38, %v5326
    %v5328 = vsel %vm5325, %v5327, %v5323
    %v5329 = vmul.f32 1.0, %v5328
    %v5330 = vxor.u32 %v5308, 2147483648
    %v5331 = vmul.f32 %v5330, 1.442695
    %v5332 = vpow.pop %v5331
    %v5333 = vadd.f32 %v5332, 1.0
    %v5334 = vrcp.pop %v5333
    %v5335 = vmul.f32 %v5333, %v5334
    %v5336 = vsub.f32 1.0, %v5335
    %v5337 = vmul.f32 %v5334, %v5336
    %v5338 = vadd.f32 %v5334, %v5337
    %vm5339 = vweird.f32 %v5333
    %vm5340 = vweird.f32 %v5334
    %vm5341 = vmor %vm5339, %vm5340
    %v5342 = vsel %vm5341, %v5334, %v5338
    %v5343 = vand.u32 2147483647, %v5333
    %vm5344 = vcmp.eq.f32.partialorder %v5343, 8.507059e+37
    %v5345 = vand.u32 %v5333, 2147483648
    %v5346 = vor.u32 1.1754944e-38, %v5345
    %v5347 = vsel %vm5344, %v5346, %v5342
    %v5348 = vmul.f32 1.0, %v5347
    %v5349 = vtanh.pop %v5309
    %v5350 = vxor.u32 %v5310, 2147483648
    %v5351 = vmul.f32 %v5350, 1.442695
    %v5352 = vpow.pop %v5351
    %v5353 = vadd.f32 %v5352, 1.0
    %v5354 = vrcp.pop %v5353
    %v5355 = vmul.f32 %v5353, %v5354
    %v5356 = vsub.f32 1.0, %v5355
    %v5357 = vmul.f32 %v5354, %v5356
    %v5358 = vadd.f32 %v5354, %v5357
    %vm5359 = vweird.f32 %v5353
    %vm5360 = vweird.f32 %v5354
    %vm5361 = vmor %vm5359, %vm5360
    %v5362 = vsel %vm5361, %v5354, %v5358
    %v5363 = vand.u32 2147483647, %v5353
    %vm5364 = vcmp.eq.f32.partialorder %v5363, 8.507059e+37
    %v5365 = vand.u32 %v5353, 2147483648
    %v5366 = vor.u32 1.1754944e-38, %v5365
    %v5367 = vsel %vm5364, %v5366, %v5362
    %v5368 = vmul.f32 1.0, %v5367
    %v5369 = vmul.f32 %v5348, %v4581
    %v5370 = vmul.f32 %v5329, %v5349
    %v5371 = vadd.f32 %v5369, %v5370
    %v5372 = vtanh.pop %v5371
    %v5373 = vmul.f32 %v5368, %v5372
    %s5374 = scalar_lea.vmem [#allocation3], 40
    %5375 = vst [vmem:[%s5374] sm:$0xff] %v5373
    %s5377 = scalar_lea.vmem [#allocation4], 40
    %5378 = vst.msk [vmem:[%s5377] sm:$0xff] %vm161, %v5217
    %v5380 = vrot.slane %v5373, 1
    %v5381 = vrot.slane %v5373, 2
    %v5382 = vrot.slane %v5373, 3
    %v5383 = vrot.slane %v5373, 4
    %v5384 = vrot.slane %v5373, 5
    %v5385 = vrot.slane %v5373, 6
    %v5386 = vrot.slane %v5373, 7
    %5394 = vmatpush.xpose.msra.mxu0 0.0
    %5395 = vmatpush.xpose.msra.mxu0 0.0
    %5396 = vmatpush.xpose.msra.mxu0 0.0
    %5397 = vmatpush.xpose.msra.mxu0 0.0
    %5398 = vmatpush.xpose.msra.mxu0 0.0
    %5399 = vmatpush.xpose.msra.mxu0 0.0
    %5400 = vmatpush.xpose.msra.mxu0 0.0
    %5401 = vmatpush.xpose.msra.mxu0 0.0
    %5402 = vmatpush.xpose.msra.mxu0 0.0
    %5403 = vmatpush.xpose.msra.mxu0 0.0
    %5404 = vmatpush.xpose.msra.mxu0 0.0
    %5405 = vmatpush.xpose.msra.mxu0 0.0
    %5406 = vmatpush.xpose.msra.mxu0 0.0
    %5407 = vmatpush.xpose.msra.mxu0 0.0
    %5408 = vmatpush.xpose.msra.mxu0 %v455
    %5409 = vmatpush.xpose.msra.mxu0 %v452
    %5410 = vmatmul.f32.gmra.mxu0 %v5373
    %v5411 = vpop.f32.mrf.mxu0
    %v5412 = vadd.f32 0.0, %v5411
    %5413 = vdwg.mxu0
    %5414 = vmatpush.xpose.msra.mxu0 0.0
    %5415 = vmatpush.xpose.msra.mxu0 0.0
    %5416 = vmatpush.xpose.msra.mxu0 0.0
    %5417 = vmatpush.xpose.msra.mxu0 0.0
    %5418 = vmatpush.xpose.msra.mxu0 0.0
    %5419 = vmatpush.xpose.msra.mxu0 0.0
    %5420 = vmatpush.xpose.msra.mxu0 0.0
    %5421 = vmatpush.xpose.msra.mxu0 0.0
    %5422 = vmatpush.xpose.msra.mxu0 0.0
    %5423 = vmatpush.xpose.msra.mxu0 0.0
    %5424 = vmatpush.xpose.msra.mxu0 0.0
    %5425 = vmatpush.xpose.msra.mxu0 0.0
    %5426 = vmatpush.xpose.msra.mxu0 0.0
    %5427 = vmatpush.xpose.msra.mxu0 0.0
    %5428 = vmatpush.xpose.msra.mxu0 %v461
    %5429 = vmatpush.xpose.msra.mxu0 %v458
    %5430 = vmatmul.f32.gmra.mxu0 %v5380
    %v5431 = vpop.f32.mrf.mxu0
    %v5432 = vadd.f32 0.0, %v5431
    %5433 = vdwg.mxu0
    %5434 = vmatpush.xpose.msra.mxu0 0.0
    %5435 = vmatpush.xpose.msra.mxu0 0.0
    %5436 = vmatpush.xpose.msra.mxu0 0.0
    %5437 = vmatpush.xpose.msra.mxu0 0.0
    %5438 = vmatpush.xpose.msra.mxu0 0.0
    %5439 = vmatpush.xpose.msra.mxu0 0.0
    %5440 = vmatpush.xpose.msra.mxu0 0.0
    %5441 = vmatpush.xpose.msra.mxu0 0.0
    %5442 = vmatpush.xpose.msra.mxu0 0.0
    %5443 = vmatpush.xpose.msra.mxu0 0.0
    %5444 = vmatpush.xpose.msra.mxu0 0.0
    %5445 = vmatpush.xpose.msra.mxu0 0.0
    %5446 = vmatpush.xpose.msra.mxu0 0.0
    %5447 = vmatpush.xpose.msra.mxu0 0.0
    %5448 = vmatpush.xpose.msra.mxu0 %v467
    %5449 = vmatpush.xpose.msra.mxu0 %v464
    %5450 = vmatmul.f32.gmra.mxu0 %v5381
    %v5451 = vpop.f32.mrf.mxu0
    %v5452 = vadd.f32 0.0, %v5451
    %5453 = vdwg.mxu0
    %5454 = vmatpush.xpose.msra.mxu0 0.0
    %5455 = vmatpush.xpose.msra.mxu0 0.0
    %5456 = vmatpush.xpose.msra.mxu0 0.0
    %5457 = vmatpush.xpose.msra.mxu0 0.0
    %5458 = vmatpush.xpose.msra.mxu0 0.0
    %5459 = vmatpush.xpose.msra.mxu0 0.0
    %5460 = vmatpush.xpose.msra.mxu0 0.0
    %5461 = vmatpush.xpose.msra.mxu0 0.0
    %5462 = vmatpush.xpose.msra.mxu0 0.0
    %5463 = vmatpush.xpose.msra.mxu0 0.0
    %5464 = vmatpush.xpose.msra.mxu0 0.0
    %5465 = vmatpush.xpose.msra.mxu0 0.0
    %5466 = vmatpush.xpose.msra.mxu0 0.0
    %5467 = vmatpush.xpose.msra.mxu0 0.0
    %5468 = vmatpush.xpose.msra.mxu0 %v473
    %5469 = vmatpush.xpose.msra.mxu0 %v470
    %5470 = vmatmul.f32.gmra.mxu0 %v5382
    %v5471 = vpop.f32.mrf.mxu0
    %v5472 = vadd.f32 0.0, %v5471
    %5473 = vdwg.mxu0
    %5474 = vmatpush.xpose.msra.mxu0 0.0
    %5475 = vmatpush.xpose.msra.mxu0 0.0
    %5476 = vmatpush.xpose.msra.mxu0 0.0
    %5477 = vmatpush.xpose.msra.mxu0 0.0
    %5478 = vmatpush.xpose.msra.mxu0 0.0
    %5479 = vmatpush.xpose.msra.mxu0 0.0
    %5480 = vmatpush.xpose.msra.mxu0 0.0
    %5481 = vmatpush.xpose.msra.mxu0 0.0
    %5482 = vmatpush.xpose.msra.mxu0 0.0
    %5483 = vmatpush.xpose.msra.mxu0 0.0
    %5484 = vmatpush.xpose.msra.mxu0 0.0
    %5485 = vmatpush.xpose.msra.mxu0 0.0
    %5486 = vmatpush.xpose.msra.mxu0 0.0
    %5487 = vmatpush.xpose.msra.mxu0 0.0
    %5488 = vmatpush.xpose.msra.mxu0 %v479
    %5489 = vmatpush.xpose.msra.mxu0 %v476
    %5490 = vmatmul.f32.gmra.mxu0 %v5383
    %v5491 = vpop.f32.mrf.mxu0
    %v5492 = vadd.f32 0.0, %v5491
    %5493 = vdwg.mxu0
    %5494 = vmatpush.xpose.msra.mxu0 0.0
    %5495 = vmatpush.xpose.msra.mxu0 0.0
    %5496 = vmatpush.xpose.msra.mxu0 0.0
    %5497 = vmatpush.xpose.msra.mxu0 0.0
    %5498 = vmatpush.xpose.msra.mxu0 0.0
    %5499 = vmatpush.xpose.msra.mxu0 0.0
    %5500 = vmatpush.xpose.msra.mxu0 0.0
    %5501 = vmatpush.xpose.msra.mxu0 0.0
    %5502 = vmatpush.xpose.msra.mxu0 0.0
    %5503 = vmatpush.xpose.msra.mxu0 0.0
    %5504 = vmatpush.xpose.msra.mxu0 0.0
    %5505 = vmatpush.xpose.msra.mxu0 0.0
    %5506 = vmatpush.xpose.msra.mxu0 0.0
    %5507 = vmatpush.xpose.msra.mxu0 0.0
    %5508 = vmatpush.xpose.msra.mxu0 %v485
    %5509 = vmatpush.xpose.msra.mxu0 %v482
    %5510 = vmatmul.f32.gmra.mxu0 %v5384
    %v5511 = vpop.f32.mrf.mxu0
    %v5512 = vadd.f32 0.0, %v5511
    %5513 = vdwg.mxu0
    %5514 = vmatpush.xpose.msra.mxu0 0.0
    %5515 = vmatpush.xpose.msra.mxu0 0.0
    %5516 = vmatpush.xpose.msra.mxu0 0.0
    %5517 = vmatpush.xpose.msra.mxu0 0.0
    %5518 = vmatpush.xpose.msra.mxu0 0.0
    %5519 = vmatpush.xpose.msra.mxu0 0.0
    %5520 = vmatpush.xpose.msra.mxu0 0.0
    %5521 = vmatpush.xpose.msra.mxu0 0.0
    %5522 = vmatpush.xpose.msra.mxu0 0.0
    %5523 = vmatpush.xpose.msra.mxu0 0.0
    %5524 = vmatpush.xpose.msra.mxu0 0.0
    %5525 = vmatpush.xpose.msra.mxu0 0.0
    %5526 = vmatpush.xpose.msra.mxu0 0.0
    %5527 = vmatpush.xpose.msra.mxu0 0.0
    %5528 = vmatpush.xpose.msra.mxu0 %v491
    %5529 = vmatpush.xpose.msra.mxu0 %v488
    %5530 = vmatmul.f32.gmra.mxu0 %v5385
    %v5531 = vpop.f32.mrf.mxu0
    %v5532 = vadd.f32 0.0, %v5531
    %5533 = vdwg.mxu0
    %5534 = vmatpush.xpose.msra.mxu0 0.0
    %5535 = vmatpush.xpose.msra.mxu0 0.0
    %5536 = vmatpush.xpose.msra.mxu0 0.0
    %5537 = vmatpush.xpose.msra.mxu0 0.0
    %5538 = vmatpush.xpose.msra.mxu0 0.0
    %5539 = vmatpush.xpose.msra.mxu0 0.0
    %5540 = vmatpush.xpose.msra.mxu0 0.0
    %5541 = vmatpush.xpose.msra.mxu0 0.0
    %5542 = vmatpush.xpose.msra.mxu0 0.0
    %5543 = vmatpush.xpose.msra.mxu0 0.0
    %5544 = vmatpush.xpose.msra.mxu0 0.0
    %5545 = vmatpush.xpose.msra.mxu0 0.0
    %5546 = vmatpush.xpose.msra.mxu0 0.0
    %5547 = vmatpush.xpose.msra.mxu0 0.0
    %5548 = vmatpush.xpose.msra.mxu0 %v497
    %5549 = vmatpush.xpose.msra.mxu0 %v494
    %5550 = vmatmul.f32.gmra.mxu0 %v5386
    %v5551 = vpop.f32.mrf.mxu0
    %v5552 = vadd.f32 0.0, %v5551
    %5553 = vdwg.mxu0
    %v5554 = vsel %vm814, %v5412, -inf
    %5555 = vmax.xlane.f32.xlu0 %v5554
    %v5556 = vpop.xlane.xlu0 %5555
    %v5557 = vsel %vm814, %v5432, -inf
    %5558 = vmax.xlane.f32.xlu0 %v5557
    %v5559 = vpop.xlane.xlu0 %5558
    %v5560 = vsel %vm814, %v5452, -inf
    %5561 = vmax.xlane.f32.xlu0 %v5560
    %v5562 = vpop.xlane.xlu0 %5561
    %v5563 = vsel %vm814, %v5472, -inf
    %5564 = vmax.xlane.f32.xlu0 %v5563
    %v5565 = vpop.xlane.xlu0 %5564
    %v5566 = vsel %vm814, %v5492, -inf
    %5567 = vmax.xlane.f32.xlu0 %v5566
    %v5568 = vpop.xlane.xlu0 %5567
    %v5569 = vsel %vm814, %v5512, -inf
    %5570 = vmax.xlane.f32.xlu0 %v5569
    %v5571 = vpop.xlane.xlu0 %5570
    %v5572 = vsel %vm814, %v5532, -inf
    %5573 = vmax.xlane.f32.xlu0 %v5572
    %v5574 = vpop.xlane.xlu0 %5573
    %v5575 = vsel %vm814, %v5552, -inf
    %5576 = vmax.xlane.f32.xlu0 %v5575
    %v5577 = vpop.xlane.xlu0 %5576
    %v5578 = vsub.f32 %v5412, %v5556
    %v5579 = vsub.f32 %v5432, %v5559
    %v5580 = vsub.f32 %v5452, %v5562
    %v5581 = vsub.f32 %v5472, %v5565
    %v5582 = vsub.f32 %v5492, %v5568
    %v5583 = vsub.f32 %v5512, %v5571
    %v5584 = vsub.f32 %v5532, %v5574
    %v5585 = vsub.f32 %v5552, %v5577
    %v5586 = vmul.f32 %v5578, 1.442695
    %v5587 = vpow.pop %v5586
    %v5588 = vmul.f32 %v5579, 1.442695
    %v5589 = vpow.pop %v5588
    %v5590 = vmul.f32 %v5580, 1.442695
    %v5591 = vpow.pop %v5590
    %v5592 = vmul.f32 %v5581, 1.442695
    %v5593 = vpow.pop %v5592
    %v5594 = vmul.f32 %v5582, 1.442695
    %v5595 = vpow.pop %v5594
    %v5596 = vmul.f32 %v5583, 1.442695
    %v5597 = vpow.pop %v5596
    %v5598 = vmul.f32 %v5584, 1.442695
    %v5599 = vpow.pop %v5598
    %v5600 = vmul.f32 %v5585, 1.442695
    %v5601 = vpow.pop %v5600
    %v5602 = vsel %vm814, %v5587, 0.0
    %5603 = vadd.xlane.f32.xlu0 %v5602
    %v5604 = vpop.xlane.xlu0 %5603
    %v5605 = vsel %vm814, %v5589, 0.0
    %5606 = vadd.xlane.f32.xlu0 %v5605
    %v5607 = vpop.xlane.xlu0 %5606
    %v5608 = vsel %vm814, %v5591, 0.0
    %5609 = vadd.xlane.f32.xlu0 %v5608
    %v5610 = vpop.xlane.xlu0 %5609
    %v5611 = vsel %vm814, %v5593, 0.0
    %5612 = vadd.xlane.f32.xlu0 %v5611
    %v5613 = vpop.xlane.xlu0 %5612
    %v5614 = vsel %vm814, %v5595, 0.0
    %5615 = vadd.xlane.f32.xlu0 %v5614
    %v5616 = vpop.xlane.xlu0 %5615
    %v5617 = vsel %vm814, %v5597, 0.0
    %5618 = vadd.xlane.f32.xlu0 %v5617
    %v5619 = vpop.xlane.xlu0 %5618
    %v5620 = vsel %vm814, %v5599, 0.0
    %5621 = vadd.xlane.f32.xlu0 %v5620
    %v5622 = vpop.xlane.xlu0 %5621
    %v5623 = vsel %vm814, %v5601, 0.0
    %5624 = vadd.xlane.f32.xlu0 %v5623
    %v5625 = vpop.xlane.xlu0 %5624
    %v5626 = vrcp.pop %v5604
    %v5627 = vrcp.pop %v5607
    %v5628 = vrcp.pop %v5610
    %v5629 = vrcp.pop %v5613
    %v5630 = vrcp.pop %v5616
    %v5631 = vrcp.pop %v5619
    %v5632 = vrcp.pop %v5622
    %v5633 = vrcp.pop %v5625
    %v5634 = vmul.f32 %v5587, %v5626
    %v5635 = vmul.f32 %v5589, %v5627
    %v5636 = vmul.f32 %v5591, %v5628
    %v5637 = vmul.f32 %v5593, %v5629
    %v5638 = vmul.f32 %v5595, %v5630
    %v5639 = vmul.f32 %v5597, %v5631
    %v5640 = vmul.f32 %v5599, %v5632
    %v5641 = vmul.f32 %v5601, %v5633
    %v5643 = vsel %vm903, %v5634, 0
    %5645 = vmatpush.msra.mxu0 0.0
    %5646 = vmatpush.msra.mxu0 0.0
    %5647 = vmatpush.msra.mxu0 0.0
    %5648 = vmatpush.msra.mxu0 0.0
    %5649 = vmatpush.msra.mxu0 0.0
    %5650 = vmatpush.msra.mxu0 0.0
    %5651 = vmatpush.msra.mxu0 0.0
    %5652 = vmatpush.msra.mxu0 0.0
    %5653 = vmatpush.msra.mxu0 0.0
    %5654 = vmatpush.msra.mxu0 0.0
    %5655 = vmatpush.msra.mxu0 0.0
    %5656 = vmatpush.msra.mxu0 0.0
    %5657 = vmatpush.msra.mxu0 0.0
    %5658 = vmatpush.msra.mxu0 0.0
    %5659 = vmatpush.msra.mxu0 %v112
    %5660 = vmatpush.msra.mxu0 %v111
    %5661 = vmatmul.f32.gmra.mxu0 %v5643
    %v5662 = vpop.f32.mrf.mxu0
    %v5663 = vadd.f32 0.0, %v5662
    %5664 = vdwg.mxu0
    %v5666 = vsel %vm903, %v5635, 0
    %5668 = vmatpush.msra.mxu0 0.0
    %5669 = vmatpush.msra.mxu0 0.0
    %5670 = vmatpush.msra.mxu0 0.0
    %5671 = vmatpush.msra.mxu0 0.0
    %5672 = vmatpush.msra.mxu0 0.0
    %5673 = vmatpush.msra.mxu0 0.0
    %5674 = vmatpush.msra.mxu0 0.0
    %5675 = vmatpush.msra.mxu0 0.0
    %5676 = vmatpush.msra.mxu0 0.0
    %5677 = vmatpush.msra.mxu0 0.0
    %5678 = vmatpush.msra.mxu0 0.0
    %5679 = vmatpush.msra.mxu0 0.0
    %5680 = vmatpush.msra.mxu0 0.0
    %5681 = vmatpush.msra.mxu0 0.0
    %5682 = vmatpush.msra.mxu0 %v114
    %5683 = vmatpush.msra.mxu0 %v113
    %5684 = vmatmul.f32.gmra.mxu0 %v5666
    %v5685 = vpop.f32.mrf.mxu0
    %v5686 = vadd.f32 0.0, %v5685
    %5687 = vdwg.mxu0
    %v5689 = vsel %vm903, %v5636, 0
    %5691 = vmatpush.msra.mxu0 0.0
    %5692 = vmatpush.msra.mxu0 0.0
    %5693 = vmatpush.msra.mxu0 0.0
    %5694 = vmatpush.msra.mxu0 0.0
    %5695 = vmatpush.msra.mxu0 0.0
    %5696 = vmatpush.msra.mxu0 0.0
    %5697 = vmatpush.msra.mxu0 0.0
    %5698 = vmatpush.msra.mxu0 0.0
    %5699 = vmatpush.msra.mxu0 0.0
    %5700 = vmatpush.msra.mxu0 0.0
    %5701 = vmatpush.msra.mxu0 0.0
    %5702 = vmatpush.msra.mxu0 0.0
    %5703 = vmatpush.msra.mxu0 0.0
    %5704 = vmatpush.msra.mxu0 0.0
    %5705 = vmatpush.msra.mxu0 %v116
    %5706 = vmatpush.msra.mxu0 %v115
    %5707 = vmatmul.f32.gmra.mxu0 %v5689
    %v5708 = vpop.f32.mrf.mxu0
    %v5709 = vadd.f32 0.0, %v5708
    %5710 = vdwg.mxu0
    %v5712 = vsel %vm903, %v5637, 0
    %5714 = vmatpush.msra.mxu0 0.0
    %5715 = vmatpush.msra.mxu0 0.0
    %5716 = vmatpush.msra.mxu0 0.0
    %5717 = vmatpush.msra.mxu0 0.0
    %5718 = vmatpush.msra.mxu0 0.0
    %5719 = vmatpush.msra.mxu0 0.0
    %5720 = vmatpush.msra.mxu0 0.0
    %5721 = vmatpush.msra.mxu0 0.0
    %5722 = vmatpush.msra.mxu0 0.0
    %5723 = vmatpush.msra.mxu0 0.0
    %5724 = vmatpush.msra.mxu0 0.0
    %5725 = vmatpush.msra.mxu0 0.0
    %5726 = vmatpush.msra.mxu0 0.0
    %5727 = vmatpush.msra.mxu0 0.0
    %5728 = vmatpush.msra.mxu0 %v118
    %5729 = vmatpush.msra.mxu0 %v117
    %5730 = vmatmul.f32.gmra.mxu0 %v5712
    %v5731 = vpop.f32.mrf.mxu0
    %v5732 = vadd.f32 0.0, %v5731
    %5733 = vdwg.mxu0
    %v5735 = vsel %vm903, %v5638, 0
    %5737 = vmatpush.msra.mxu0 0.0
    %5738 = vmatpush.msra.mxu0 0.0
    %5739 = vmatpush.msra.mxu0 0.0
    %5740 = vmatpush.msra.mxu0 0.0
    %5741 = vmatpush.msra.mxu0 0.0
    %5742 = vmatpush.msra.mxu0 0.0
    %5743 = vmatpush.msra.mxu0 0.0
    %5744 = vmatpush.msra.mxu0 0.0
    %5745 = vmatpush.msra.mxu0 0.0
    %5746 = vmatpush.msra.mxu0 0.0
    %5747 = vmatpush.msra.mxu0 0.0
    %5748 = vmatpush.msra.mxu0 0.0
    %5749 = vmatpush.msra.mxu0 0.0
    %5750 = vmatpush.msra.mxu0 0.0
    %5751 = vmatpush.msra.mxu0 %v120
    %5752 = vmatpush.msra.mxu0 %v119
    %5753 = vmatmul.f32.gmra.mxu0 %v5735
    %v5754 = vpop.f32.mrf.mxu0
    %v5755 = vadd.f32 0.0, %v5754
    %5756 = vdwg.mxu0
    %v5758 = vsel %vm903, %v5639, 0
    %5760 = vmatpush.msra.mxu0 0.0
    %5761 = vmatpush.msra.mxu0 0.0
    %5762 = vmatpush.msra.mxu0 0.0
    %5763 = vmatpush.msra.mxu0 0.0
    %5764 = vmatpush.msra.mxu0 0.0
    %5765 = vmatpush.msra.mxu0 0.0
    %5766 = vmatpush.msra.mxu0 0.0
    %5767 = vmatpush.msra.mxu0 0.0
    %5768 = vmatpush.msra.mxu0 0.0
    %5769 = vmatpush.msra.mxu0 0.0
    %5770 = vmatpush.msra.mxu0 0.0
    %5771 = vmatpush.msra.mxu0 0.0
    %5772 = vmatpush.msra.mxu0 0.0
    %5773 = vmatpush.msra.mxu0 0.0
    %5774 = vmatpush.msra.mxu0 %v122
    %5775 = vmatpush.msra.mxu0 %v121
    %5776 = vmatmul.f32.gmra.mxu0 %v5758
    %v5777 = vpop.f32.mrf.mxu0
    %v5778 = vadd.f32 0.0, %v5777
    %5779 = vdwg.mxu0
    %v5781 = vsel %vm903, %v5640, 0
    %5783 = vmatpush.msra.mxu0 0.0
    %5784 = vmatpush.msra.mxu0 0.0
    %5785 = vmatpush.msra.mxu0 0.0
    %5786 = vmatpush.msra.mxu0 0.0
    %5787 = vmatpush.msra.mxu0 0.0
    %5788 = vmatpush.msra.mxu0 0.0
    %5789 = vmatpush.msra.mxu0 0.0
    %5790 = vmatpush.msra.mxu0 0.0
    %5791 = vmatpush.msra.mxu0 0.0
    %5792 = vmatpush.msra.mxu0 0.0
    %5793 = vmatpush.msra.mxu0 0.0
    %5794 = vmatpush.msra.mxu0 0.0
    %5795 = vmatpush.msra.mxu0 0.0
    %5796 = vmatpush.msra.mxu0 0.0
    %5797 = vmatpush.msra.mxu0 %v124
    %5798 = vmatpush.msra.mxu0 %v123
    %5799 = vmatmul.f32.gmra.mxu0 %v5781
    %v5800 = vpop.f32.mrf.mxu0
    %v5801 = vadd.f32 0.0, %v5800
    %5802 = vdwg.mxu0
    %v5804 = vsel %vm903, %v5641, 0
    %5806 = vmatpush.msra.mxu0 0.0
    %5807 = vmatpush.msra.mxu0 0.0
    %5808 = vmatpush.msra.mxu0 0.0
    %5809 = vmatpush.msra.mxu0 0.0
    %5810 = vmatpush.msra.mxu0 0.0
    %5811 = vmatpush.msra.mxu0 0.0
    %5812 = vmatpush.msra.mxu0 0.0
    %5813 = vmatpush.msra.mxu0 0.0
    %5814 = vmatpush.msra.mxu0 0.0
    %5815 = vmatpush.msra.mxu0 0.0
    %5816 = vmatpush.msra.mxu0 0.0
    %5817 = vmatpush.msra.mxu0 0.0
    %5818 = vmatpush.msra.mxu0 0.0
    %5819 = vmatpush.msra.mxu0 0.0
    %5820 = vmatpush.msra.mxu0 %v126
    %5821 = vmatpush.msra.mxu0 %v125
    %5822 = vmatmul.f32.gmra.mxu0 %v5804
    %v5823 = vpop.f32.mrf.mxu0
    %v5824 = vadd.f32 0.0, %v5823
    %5825 = vdwg.mxu0
    %v5826 = vld [vmem:[#allocation5] sm:$0xff]
    %v5827 = vld [vmem:[#allocation5 + $0x8] sm:$0xff]
    %v5828 = vld [vmem:[#allocation5 + $0x10] sm:$0xff]
    %v5829 = vld [vmem:[#allocation5 + $0x18] sm:$0xff]
    %v5830 = vld [vmem:[#allocation5 + $0x20] sm:$0xff]
    %v5831 = vld [vmem:[#allocation5 + $0x28] sm:$0xff]
    %v5832 = vld [vmem:[#allocation5 + $0x30] sm:$0xff]
    %v5833 = vld [vmem:[#allocation5 + $0x38] sm:$0xff]
    %v5834 = vld [vmem:[#allocation5 + $0x40] sm:$0xff]
    %v5835 = vld [vmem:[#allocation5 + $0x48] sm:$0xff]
    %v5836 = vld [vmem:[#allocation5 + $0x50] sm:$0xff]
    %v5837 = vld [vmem:[#allocation5 + $0x58] sm:$0xff]
    %v5838 = vld [vmem:[#allocation5 + $0x60] sm:$0xff]
    %v5839 = vld [vmem:[#allocation5 + $0x68] sm:$0xff]
    %v5840 = vld [vmem:[#allocation5 + $0x70] sm:$0xff]
    %v5841 = vld [vmem:[#allocation5 + $0x78] sm:$0xff]
    %v5842 = vld [vmem:[#allocation10] sm:$0xff]
    %v5843 = vld [vmem:[#allocation10 + $0x8] sm:$0xff]
    %v5844 = vld [vmem:[#allocation10 + $0x10] sm:$0xff]
    %v5845 = vld [vmem:[#allocation10 + $0x18] sm:$0xff]
    %v5846 = vld [vmem:[#allocation10 + $0x20] sm:$0xff]
    %v5847 = vld [vmem:[#allocation10 + $0x28] sm:$0xff]
    %v5848 = vld [vmem:[#allocation10 + $0x30] sm:$0xff]
    %v5849 = vld [vmem:[#allocation10 + $0x38] sm:$0xff]
    %v5850 = vld [vmem:[#allocation10 + $0x40] sm:$0xff]
    %v5851 = vld [vmem:[#allocation10 + $0x48] sm:$0xff]
    %v5852 = vld [vmem:[#allocation10 + $0x50] sm:$0xff]
    %v5853 = vld [vmem:[#allocation10 + $0x58] sm:$0xff]
    %v5854 = vld [vmem:[#allocation10 + $0x60] sm:$0xff]
    %v5855 = vld [vmem:[#allocation10 + $0x68] sm:$0xff]
    %v5856 = vld [vmem:[#allocation10 + $0x70] sm:$0xff]
    %v5857 = vld [vmem:[#allocation10 + $0x78] sm:$0xff]
    %v5858 = vld [vmem:[#allocation10 + $0x80] sm:$0xff]
    %v5859 = vld [vmem:[#allocation10 + $0x88] sm:$0xff]
    %v5860 = vld [vmem:[#allocation10 + $0x90] sm:$0xff]
    %v5861 = vld [vmem:[#allocation10 + $0x98] sm:$0xff]
    %v5862 = vld [vmem:[#allocation10 + $0xa0] sm:$0xff]
    %v5863 = vld [vmem:[#allocation10 + $0xa8] sm:$0xff]
    %v5864 = vld [vmem:[#allocation10 + $0xb0] sm:$0xff]
    %v5865 = vld [vmem:[#allocation10 + $0xb8] sm:$0xff]
    %v5866 = vld [vmem:[#allocation10 + $0xc0] sm:$0xff]
    %v5867 = vld [vmem:[#allocation10 + $0xc8] sm:$0xff]
    %v5868 = vld [vmem:[#allocation10 + $0xd0] sm:$0xff]
    %v5869 = vld [vmem:[#allocation10 + $0xd8] sm:$0xff]
    %v5870 = vld [vmem:[#allocation10 + $0xe0] sm:$0xff]
    %v5871 = vld [vmem:[#allocation10 + $0xe8] sm:$0xff]
    %v5872 = vld [vmem:[#allocation10 + $0xf0] sm:$0xff]
    %v5873 = vld [vmem:[#allocation10 + $0xf8] sm:$0xff]
    %v5874 = vld [vmem:[#allocation10 + $0x100] sm:$0xff]
    %v5875 = vld [vmem:[#allocation10 + $0x108] sm:$0xff]
    %v5876 = vld [vmem:[#allocation10 + $0x110] sm:$0xff]
    %v5877 = vld [vmem:[#allocation10 + $0x118] sm:$0xff]
    %v5878 = vld [vmem:[#allocation10 + $0x120] sm:$0xff]
    %v5879 = vld [vmem:[#allocation10 + $0x128] sm:$0xff]
    %v5880 = vld [vmem:[#allocation10 + $0x130] sm:$0xff]
    %v5881 = vld [vmem:[#allocation10 + $0x138] sm:$0xff]
    %v5882 = vld [vmem:[#allocation10 + $0x140] sm:$0xff]
    %v5883 = vld [vmem:[#allocation10 + $0x148] sm:$0xff]
    %v5884 = vld [vmem:[#allocation10 + $0x150] sm:$0xff]
    %v5885 = vld [vmem:[#allocation10 + $0x158] sm:$0xff]
    %v5886 = vld [vmem:[#allocation10 + $0x160] sm:$0xff]
    %v5887 = vld [vmem:[#allocation10 + $0x168] sm:$0xff]
    %v5888 = vld [vmem:[#allocation10 + $0x170] sm:$0xff]
    %v5889 = vld [vmem:[#allocation10 + $0x178] sm:$0xff]
    %v5890 = vld [vmem:[#allocation10 + $0x180] sm:$0xff]
    %v5891 = vld [vmem:[#allocation10 + $0x188] sm:$0xff]
    %v5892 = vld [vmem:[#allocation10 + $0x190] sm:$0xff]
    %v5893 = vld [vmem:[#allocation10 + $0x198] sm:$0xff]
    %v5894 = vld [vmem:[#allocation10 + $0x1a0] sm:$0xff]
    %v5895 = vld [vmem:[#allocation10 + $0x1a8] sm:$0xff]
    %v5896 = vld [vmem:[#allocation10 + $0x1b0] sm:$0xff]
    %v5897 = vld [vmem:[#allocation10 + $0x1b8] sm:$0xff]
    %v5898 = vld [vmem:[#allocation10 + $0x1c0] sm:$0xff]
    %v5899 = vld [vmem:[#allocation10 + $0x1c8] sm:$0xff]
    %v5900 = vld [vmem:[#allocation10 + $0x1d0] sm:$0xff]
    %v5901 = vld [vmem:[#allocation10 + $0x1d8] sm:$0xff]
    %v5902 = vld [vmem:[#allocation10 + $0x1e0] sm:$0xff]
    %v5903 = vld [vmem:[#allocation10 + $0x1e8] sm:$0xff]
    %v5904 = vld [vmem:[#allocation10 + $0x1f0] sm:$0xff]
    %v5905 = vld [vmem:[#allocation10 + $0x1f8] sm:$0xff]
    %5906 = vmatpush.msra.mxu0 %v5902
    %5907 = vmatpush.msra.mxu0 %v5898
    %5908 = vmatpush.msra.mxu0 %v5894
    %5909 = vmatpush.msra.mxu0 %v5890
    %5910 = vmatpush.msra.mxu0 %v5886
    %5911 = vmatpush.msra.mxu0 %v5882
    %5912 = vmatpush.msra.mxu0 %v5878
    %5913 = vmatpush.msra.mxu0 %v5874
    %5914 = vmatpush.msra.mxu0 %v5870
    %5915 = vmatpush.msra.mxu0 %v5866
    %5916 = vmatpush.msra.mxu0 %v5862
    %5917 = vmatpush.msra.mxu0 %v5858
    %5918 = vmatpush.msra.mxu0 %v5854
    %5919 = vmatpush.msra.mxu0 %v5850
    %5920 = vmatpush.msra.mxu0 %v5846
    %5921 = vmatpush.msra.mxu0 %v5842
    %5922 = vmatmul.f32.gmra.mxu0 %v5373
    %v5923 = vpop.f32.mrf.mxu0
    %v5924 = vadd.f32 0.0, %v5923
    %5925 = vdwg.mxu0
    %5926 = vmatpush.msra.mxu0 %v5903
    %5927 = vmatpush.msra.mxu0 %v5899
    %5928 = vmatpush.msra.mxu0 %v5895
    %5929 = vmatpush.msra.mxu0 %v5891
    %5930 = vmatpush.msra.mxu0 %v5887
    %5931 = vmatpush.msra.mxu0 %v5883
    %5932 = vmatpush.msra.mxu0 %v5879
    %5933 = vmatpush.msra.mxu0 %v5875
    %5934 = vmatpush.msra.mxu0 %v5871
    %5935 = vmatpush.msra.mxu0 %v5867
    %5936 = vmatpush.msra.mxu0 %v5863
    %5937 = vmatpush.msra.mxu0 %v5859
    %5938 = vmatpush.msra.mxu0 %v5855
    %5939 = vmatpush.msra.mxu0 %v5851
    %5940 = vmatpush.msra.mxu0 %v5847
    %5941 = vmatpush.msra.mxu0 %v5843
    %5942 = vmatmul.f32.gmra.mxu0 %v5373
    %v5943 = vpop.f32.mrf.mxu0
    %v5944 = vadd.f32 0.0, %v5943
    %5945 = vdwg.mxu0
    %5946 = vmatpush.msra.mxu0 %v5904
    %5947 = vmatpush.msra.mxu0 %v5900
    %5948 = vmatpush.msra.mxu0 %v5896
    %5949 = vmatpush.msra.mxu0 %v5892
    %5950 = vmatpush.msra.mxu0 %v5888
    %5951 = vmatpush.msra.mxu0 %v5884
    %5952 = vmatpush.msra.mxu0 %v5880
    %5953 = vmatpush.msra.mxu0 %v5876
    %5954 = vmatpush.msra.mxu0 %v5872
    %5955 = vmatpush.msra.mxu0 %v5868
    %5956 = vmatpush.msra.mxu0 %v5864
    %5957 = vmatpush.msra.mxu0 %v5860
    %5958 = vmatpush.msra.mxu0 %v5856
    %5959 = vmatpush.msra.mxu0 %v5852
    %5960 = vmatpush.msra.mxu0 %v5848
    %5961 = vmatpush.msra.mxu0 %v5844
    %5962 = vmatmul.f32.gmra.mxu0 %v5373
    %v5963 = vpop.f32.mrf.mxu0
    %v5964 = vadd.f32 0.0, %v5963
    %5965 = vdwg.mxu0
    %5966 = vmatpush.msra.mxu0 %v5905
    %5967 = vmatpush.msra.mxu0 %v5901
    %5968 = vmatpush.msra.mxu0 %v5897
    %5969 = vmatpush.msra.mxu0 %v5893
    %5970 = vmatpush.msra.mxu0 %v5889
    %5971 = vmatpush.msra.mxu0 %v5885
    %5972 = vmatpush.msra.mxu0 %v5881
    %5973 = vmatpush.msra.mxu0 %v5877
    %5974 = vmatpush.msra.mxu0 %v5873
    %5975 = vmatpush.msra.mxu0 %v5869
    %5976 = vmatpush.msra.mxu0 %v5865
    %5977 = vmatpush.msra.mxu0 %v5861
    %5978 = vmatpush.msra.mxu0 %v5857
    %5979 = vmatpush.msra.mxu0 %v5853
    %5980 = vmatpush.msra.mxu0 %v5849
    %5981 = vmatpush.msra.mxu0 %v5845
    %5982 = vmatmul.f32.gmra.mxu0 %v5373
    %v5983 = vpop.f32.mrf.mxu0
    %v5984 = vadd.f32 0.0, %v5983
    %5985 = vdwg.mxu0
    %v5994 = vrot.slane %v5686, 7
    %v5995 = vsel %vm602, %v5994, %v5663
    %v5996 = vrot.slane %v5709, 6
    %v5997 = vsel %vm604, %v5996, %v5995
    %v5998 = vrot.slane %v5732, 5
    %v5999 = vsel %vm606, %v5998, %v5997
    %v6000 = vrot.slane %v5755, 4
    %v6001 = vsel %vm608, %v6000, %v5999
    %v6002 = vrot.slane %v5778, 3
    %v6003 = vsel %vm610, %v6002, %v6001
    %v6004 = vrot.slane %v5801, 2
    %v6005 = vsel %vm612, %v6004, %v6003
    %v6006 = vrot.slane %v5824, 1
    %v6007 = vsel %vm614, %v6006, %v6005
    %v6008 = vsel %vm161, %v6007, 0
    %6010 = vmatpush.msra.mxu0 0.0
    %6011 = vmatpush.msra.mxu0 0.0
    %6012 = vmatpush.msra.mxu0 0.0
    %6013 = vmatpush.msra.mxu0 0.0
    %6014 = vmatpush.msra.mxu0 0.0
    %6015 = vmatpush.msra.mxu0 0.0
    %6016 = vmatpush.msra.mxu0 0.0
    %6017 = vmatpush.msra.mxu0 0.0
    %6018 = vmatpush.msra.mxu0 0.0
    %6019 = vmatpush.msra.mxu0 0.0
    %6020 = vmatpush.msra.mxu0 0.0
    %6021 = vmatpush.msra.mxu0 0.0
    %6022 = vmatpush.msra.mxu0 %v5838
    %6023 = vmatpush.msra.mxu0 %v5834
    %6024 = vmatpush.msra.mxu0 %v5830
    %6025 = vmatpush.msra.mxu0 %v5826
    %6026 = vmatmul.f32.gmra.mxu0 %v6008
    %v6027 = vpop.f32.mrf.mxu0
    %v6028 = vadd.f32 %v5924, %v6027
    %6029 = vdwg.mxu0
    %6030 = vmatpush.msra.mxu0 0.0
    %6031 = vmatpush.msra.mxu0 0.0
    %6032 = vmatpush.msra.mxu0 0.0
    %6033 = vmatpush.msra.mxu0 0.0
    %6034 = vmatpush.msra.mxu0 0.0
    %6035 = vmatpush.msra.mxu0 0.0
    %6036 = vmatpush.msra.mxu0 0.0
    %6037 = vmatpush.msra.mxu0 0.0
    %6038 = vmatpush.msra.mxu0 0.0
    %6039 = vmatpush.msra.mxu0 0.0
    %6040 = vmatpush.msra.mxu0 0.0
    %6041 = vmatpush.msra.mxu0 0.0
    %6042 = vmatpush.msra.mxu0 %v5839
    %6043 = vmatpush.msra.mxu0 %v5835
    %6044 = vmatpush.msra.mxu0 %v5831
    %6045 = vmatpush.msra.mxu0 %v5827
    %6046 = vmatmul.f32.gmra.mxu0 %v6008
    %v6047 = vpop.f32.mrf.mxu0
    %v6048 = vadd.f32 %v5944, %v6047
    %6049 = vdwg.mxu0
    %6050 = vmatpush.msra.mxu0 0.0
    %6051 = vmatpush.msra.mxu0 0.0
    %6052 = vmatpush.msra.mxu0 0.0
    %6053 = vmatpush.msra.mxu0 0.0
    %6054 = vmatpush.msra.mxu0 0.0
    %6055 = vmatpush.msra.mxu0 0.0
    %6056 = vmatpush.msra.mxu0 0.0
    %6057 = vmatpush.msra.mxu0 0.0
    %6058 = vmatpush.msra.mxu0 0.0
    %6059 = vmatpush.msra.mxu0 0.0
    %6060 = vmatpush.msra.mxu0 0.0
    %6061 = vmatpush.msra.mxu0 0.0
    %6062 = vmatpush.msra.mxu0 %v5840
    %6063 = vmatpush.msra.mxu0 %v5836
    %6064 = vmatpush.msra.mxu0 %v5832
    %6065 = vmatpush.msra.mxu0 %v5828
    %6066 = vmatmul.f32.gmra.mxu0 %v6008
    %v6067 = vpop.f32.mrf.mxu0
    %v6068 = vadd.f32 %v5964, %v6067
    %6069 = vdwg.mxu0
    %6070 = vmatpush.msra.mxu0 0.0
    %6071 = vmatpush.msra.mxu0 0.0
    %6072 = vmatpush.msra.mxu0 0.0
    %6073 = vmatpush.msra.mxu0 0.0
    %6074 = vmatpush.msra.mxu0 0.0
    %6075 = vmatpush.msra.mxu0 0.0
    %6076 = vmatpush.msra.mxu0 0.0
    %6077 = vmatpush.msra.mxu0 0.0
    %6078 = vmatpush.msra.mxu0 0.0
    %6079 = vmatpush.msra.mxu0 0.0
    %6080 = vmatpush.msra.mxu0 0.0
    %6081 = vmatpush.msra.mxu0 0.0
    %6082 = vmatpush.msra.mxu0 %v5841
    %6083 = vmatpush.msra.mxu0 %v5837
    %6084 = vmatpush.msra.mxu0 %v5833
    %6085 = vmatpush.msra.mxu0 %v5829
    %6086 = vmatmul.f32.gmra.mxu0 %v6008
    %v6087 = vpop.f32.mrf.mxu0
    %v6088 = vadd.f32 %v5984, %v6087
    %6089 = vdwg.mxu0
    %s6090 = smul.u32 6, 4
    %s6091 = smul.addr %s6090, 8
    %s6092 = scalar_lea.vmem [#allocation2], %s6091
    %v6093 = vld [vmem:[%s6092] sm:$0xff]
    %v6094 = vld [vmem:[%s6092 + $0x8] sm:$0xff]
    %v6095 = vld [vmem:[%s6092 + $0x10] sm:$0xff]
    %v6096 = vld [vmem:[%s6092 + $0x18] sm:$0xff]
    %v6097 = vadd.f32 %v6028, %v6093
    %v6098 = vadd.f32 %v6048, %v6094
    %v6099 = vadd.f32 %v6068, %v6095
    %v6100 = vadd.f32 %v6088, %v6096
    %v6101 = vxor.u32 %v6097, 2147483648
    %v6102 = vmul.f32 %v6101, 1.442695
    %v6103 = vpow.pop %v6102
    %v6104 = vadd.f32 %v6103, 1.0
    %v6105 = vrcp.pop %v6104
    %v6106 = vmul.f32 %v6104, %v6105
    %v6107 = vsub.f32 1.0, %v6106
    %v6108 = vmul.f32 %v6105, %v6107
    %v6109 = vadd.f32 %v6105, %v6108
    %vm6110 = vweird.f32 %v6104
    %vm6111 = vweird.f32 %v6105
    %vm6112 = vmor %vm6110, %vm6111
    %v6113 = vsel %vm6112, %v6105, %v6109
    %v6114 = vand.u32 2147483647, %v6104
    %vm6115 = vcmp.eq.f32.partialorder %v6114, 8.507059e+37
    %v6116 = vand.u32 %v6104, 2147483648
    %v6117 = vor.u32 1.1754944e-38, %v6116
    %v6118 = vsel %vm6115, %v6117, %v6113
    %v6119 = vmul.f32 1.0, %v6118
    %v6120 = vxor.u32 %v6098, 2147483648
    %v6121 = vmul.f32 %v6120, 1.442695
    %v6122 = vpow.pop %v6121
    %v6123 = vadd.f32 %v6122, 1.0
    %v6124 = vrcp.pop %v6123
    %v6125 = vmul.f32 %v6123, %v6124
    %v6126 = vsub.f32 1.0, %v6125
    %v6127 = vmul.f32 %v6124, %v6126
    %v6128 = vadd.f32 %v6124, %v6127
    %vm6129 = vweird.f32 %v6123
    %vm6130 = vweird.f32 %v6124
    %vm6131 = vmor %vm6129, %vm6130
    %v6132 = vsel %vm6131, %v6124, %v6128
    %v6133 = vand.u32 2147483647, %v6123
    %vm6134 = vcmp.eq.f32.partialorder %v6133, 8.507059e+37
    %v6135 = vand.u32 %v6123, 2147483648
    %v6136 = vor.u32 1.1754944e-38, %v6135
    %v6137 = vsel %vm6134, %v6136, %v6132
    %v6138 = vmul.f32 1.0, %v6137
    %v6139 = vtanh.pop %v6099
    %v6140 = vxor.u32 %v6100, 2147483648
    %v6141 = vmul.f32 %v6140, 1.442695
    %v6142 = vpow.pop %v6141
    %v6143 = vadd.f32 %v6142, 1.0
    %v6144 = vrcp.pop %v6143
    %v6145 = vmul.f32 %v6143, %v6144
    %v6146 = vsub.f32 1.0, %v6145
    %v6147 = vmul.f32 %v6144, %v6146
    %v6148 = vadd.f32 %v6144, %v6147
    %vm6149 = vweird.f32 %v6143
    %vm6150 = vweird.f32 %v6144
    %vm6151 = vmor %vm6149, %vm6150
    %v6152 = vsel %vm6151, %v6144, %v6148
    %v6153 = vand.u32 2147483647, %v6143
    %vm6154 = vcmp.eq.f32.partialorder %v6153, 8.507059e+37
    %v6155 = vand.u32 %v6143, 2147483648
    %v6156 = vor.u32 1.1754944e-38, %v6155
    %v6157 = vsel %vm6154, %v6156, %v6152
    %v6158 = vmul.f32 1.0, %v6157
    %v6159 = vmul.f32 %v6138, %v5371
    %v6160 = vmul.f32 %v6119, %v6139
    %v6161 = vadd.f32 %v6159, %v6160
    %v6162 = vtanh.pop %v6161
    %v6163 = vmul.f32 %v6158, %v6162
    %s6164 = scalar_lea.vmem [#allocation3], 48
    %6165 = vst [vmem:[%s6164] sm:$0xff] %v6163
    %s6167 = scalar_lea.vmem [#allocation4], 48
    %6168 = vst.msk [vmem:[%s6167] sm:$0xff] %vm161, %v6007
    %v6170 = vrot.slane %v6163, 1
    %v6171 = vrot.slane %v6163, 2
    %v6172 = vrot.slane %v6163, 3
    %v6173 = vrot.slane %v6163, 4
    %v6174 = vrot.slane %v6163, 5
    %v6175 = vrot.slane %v6163, 6
    %v6176 = vrot.slane %v6163, 7
    %6184 = vmatpush.xpose.msra.mxu0 0.0
    %6185 = vmatpush.xpose.msra.mxu0 0.0
    %6186 = vmatpush.xpose.msra.mxu0 0.0
    %6187 = vmatpush.xpose.msra.mxu0 0.0
    %6188 = vmatpush.xpose.msra.mxu0 0.0
    %6189 = vmatpush.xpose.msra.mxu0 0.0
    %6190 = vmatpush.xpose.msra.mxu0 0.0
    %6191 = vmatpush.xpose.msra.mxu0 0.0
    %6192 = vmatpush.xpose.msra.mxu0 0.0
    %6193 = vmatpush.xpose.msra.mxu0 0.0
    %6194 = vmatpush.xpose.msra.mxu0 0.0
    %6195 = vmatpush.xpose.msra.mxu0 0.0
    %6196 = vmatpush.xpose.msra.mxu0 0.0
    %6197 = vmatpush.xpose.msra.mxu0 0.0
    %6198 = vmatpush.xpose.msra.mxu0 %v455
    %6199 = vmatpush.xpose.msra.mxu0 %v452
    %6200 = vmatmul.f32.gmra.mxu0 %v6163
    %v6201 = vpop.f32.mrf.mxu0
    %v6202 = vadd.f32 0.0, %v6201
    %6203 = vdwg.mxu0
    %6204 = vmatpush.xpose.msra.mxu0 0.0
    %6205 = vmatpush.xpose.msra.mxu0 0.0
    %6206 = vmatpush.xpose.msra.mxu0 0.0
    %6207 = vmatpush.xpose.msra.mxu0 0.0
    %6208 = vmatpush.xpose.msra.mxu0 0.0
    %6209 = vmatpush.xpose.msra.mxu0 0.0
    %6210 = vmatpush.xpose.msra.mxu0 0.0
    %6211 = vmatpush.xpose.msra.mxu0 0.0
    %6212 = vmatpush.xpose.msra.mxu0 0.0
    %6213 = vmatpush.xpose.msra.mxu0 0.0
    %6214 = vmatpush.xpose.msra.mxu0 0.0
    %6215 = vmatpush.xpose.msra.mxu0 0.0
    %6216 = vmatpush.xpose.msra.mxu0 0.0
    %6217 = vmatpush.xpose.msra.mxu0 0.0
    %6218 = vmatpush.xpose.msra.mxu0 %v461
    %6219 = vmatpush.xpose.msra.mxu0 %v458
    %6220 = vmatmul.f32.gmra.mxu0 %v6170
    %v6221 = vpop.f32.mrf.mxu0
    %v6222 = vadd.f32 0.0, %v6221
    %6223 = vdwg.mxu0
    %6224 = vmatpush.xpose.msra.mxu0 0.0
    %6225 = vmatpush.xpose.msra.mxu0 0.0
    %6226 = vmatpush.xpose.msra.mxu0 0.0
    %6227 = vmatpush.xpose.msra.mxu0 0.0
    %6228 = vmatpush.xpose.msra.mxu0 0.0
    %6229 = vmatpush.xpose.msra.mxu0 0.0
    %6230 = vmatpush.xpose.msra.mxu0 0.0
    %6231 = vmatpush.xpose.msra.mxu0 0.0
    %6232 = vmatpush.xpose.msra.mxu0 0.0
    %6233 = vmatpush.xpose.msra.mxu0 0.0
    %6234 = vmatpush.xpose.msra.mxu0 0.0
    %6235 = vmatpush.xpose.msra.mxu0 0.0
    %6236 = vmatpush.xpose.msra.mxu0 0.0
    %6237 = vmatpush.xpose.msra.mxu0 0.0
    %6238 = vmatpush.xpose.msra.mxu0 %v467
    %6239 = vmatpush.xpose.msra.mxu0 %v464
    %6240 = vmatmul.f32.gmra.mxu0 %v6171
    %v6241 = vpop.f32.mrf.mxu0
    %v6242 = vadd.f32 0.0, %v6241
    %6243 = vdwg.mxu0
    %6244 = vmatpush.xpose.msra.mxu0 0.0
    %6245 = vmatpush.xpose.msra.mxu0 0.0
    %6246 = vmatpush.xpose.msra.mxu0 0.0
    %6247 = vmatpush.xpose.msra.mxu0 0.0
    %6248 = vmatpush.xpose.msra.mxu0 0.0
    %6249 = vmatpush.xpose.msra.mxu0 0.0
    %6250 = vmatpush.xpose.msra.mxu0 0.0
    %6251 = vmatpush.xpose.msra.mxu0 0.0
    %6252 = vmatpush.xpose.msra.mxu0 0.0
    %6253 = vmatpush.xpose.msra.mxu0 0.0
    %6254 = vmatpush.xpose.msra.mxu0 0.0
    %6255 = vmatpush.xpose.msra.mxu0 0.0
    %6256 = vmatpush.xpose.msra.mxu0 0.0
    %6257 = vmatpush.xpose.msra.mxu0 0.0
    %6258 = vmatpush.xpose.msra.mxu0 %v473
    %6259 = vmatpush.xpose.msra.mxu0 %v470
    %6260 = vmatmul.f32.gmra.mxu0 %v6172
    %v6261 = vpop.f32.mrf.mxu0
    %v6262 = vadd.f32 0.0, %v6261
    %6263 = vdwg.mxu0
    %6264 = vmatpush.xpose.msra.mxu0 0.0
    %6265 = vmatpush.xpose.msra.mxu0 0.0
    %6266 = vmatpush.xpose.msra.mxu0 0.0
    %6267 = vmatpush.xpose.msra.mxu0 0.0
    %6268 = vmatpush.xpose.msra.mxu0 0.0
    %6269 = vmatpush.xpose.msra.mxu0 0.0
    %6270 = vmatpush.xpose.msra.mxu0 0.0
    %6271 = vmatpush.xpose.msra.mxu0 0.0
    %6272 = vmatpush.xpose.msra.mxu0 0.0
    %6273 = vmatpush.xpose.msra.mxu0 0.0
    %6274 = vmatpush.xpose.msra.mxu0 0.0
    %6275 = vmatpush.xpose.msra.mxu0 0.0
    %6276 = vmatpush.xpose.msra.mxu0 0.0
    %6277 = vmatpush.xpose.msra.mxu0 0.0
    %6278 = vmatpush.xpose.msra.mxu0 %v479
    %6279 = vmatpush.xpose.msra.mxu0 %v476
    %6280 = vmatmul.f32.gmra.mxu0 %v6173
    %v6281 = vpop.f32.mrf.mxu0
    %v6282 = vadd.f32 0.0, %v6281
    %6283 = vdwg.mxu0
    %6284 = vmatpush.xpose.msra.mxu0 0.0
    %6285 = vmatpush.xpose.msra.mxu0 0.0
    %6286 = vmatpush.xpose.msra.mxu0 0.0
    %6287 = vmatpush.xpose.msra.mxu0 0.0
    %6288 = vmatpush.xpose.msra.mxu0 0.0
    %6289 = vmatpush.xpose.msra.mxu0 0.0
    %6290 = vmatpush.xpose.msra.mxu0 0.0
    %6291 = vmatpush.xpose.msra.mxu0 0.0
    %6292 = vmatpush.xpose.msra.mxu0 0.0
    %6293 = vmatpush.xpose.msra.mxu0 0.0
    %6294 = vmatpush.xpose.msra.mxu0 0.0
    %6295 = vmatpush.xpose.msra.mxu0 0.0
    %6296 = vmatpush.xpose.msra.mxu0 0.0
    %6297 = vmatpush.xpose.msra.mxu0 0.0
    %6298 = vmatpush.xpose.msra.mxu0 %v485
    %6299 = vmatpush.xpose.msra.mxu0 %v482
    %6300 = vmatmul.f32.gmra.mxu0 %v6174
    %v6301 = vpop.f32.mrf.mxu0
    %v6302 = vadd.f32 0.0, %v6301
    %6303 = vdwg.mxu0
    %6304 = vmatpush.xpose.msra.mxu0 0.0
    %6305 = vmatpush.xpose.msra.mxu0 0.0
    %6306 = vmatpush.xpose.msra.mxu0 0.0
    %6307 = vmatpush.xpose.msra.mxu0 0.0
    %6308 = vmatpush.xpose.msra.mxu0 0.0
    %6309 = vmatpush.xpose.msra.mxu0 0.0
    %6310 = vmatpush.xpose.msra.mxu0 0.0
    %6311 = vmatpush.xpose.msra.mxu0 0.0
    %6312 = vmatpush.xpose.msra.mxu0 0.0
    %6313 = vmatpush.xpose.msra.mxu0 0.0
    %6314 = vmatpush.xpose.msra.mxu0 0.0
    %6315 = vmatpush.xpose.msra.mxu0 0.0
    %6316 = vmatpush.xpose.msra.mxu0 0.0
    %6317 = vmatpush.xpose.msra.mxu0 0.0
    %6318 = vmatpush.xpose.msra.mxu0 %v491
    %6319 = vmatpush.xpose.msra.mxu0 %v488
    %6320 = vmatmul.f32.gmra.mxu0 %v6175
    %v6321 = vpop.f32.mrf.mxu0
    %v6322 = vadd.f32 0.0, %v6321
    %6323 = vdwg.mxu0
    %6324 = vmatpush.xpose.msra.mxu0 0.0
    %6325 = vmatpush.xpose.msra.mxu0 0.0
    %6326 = vmatpush.xpose.msra.mxu0 0.0
    %6327 = vmatpush.xpose.msra.mxu0 0.0
    %6328 = vmatpush.xpose.msra.mxu0 0.0
    %6329 = vmatpush.xpose.msra.mxu0 0.0
    %6330 = vmatpush.xpose.msra.mxu0 0.0
    %6331 = vmatpush.xpose.msra.mxu0 0.0
    %6332 = vmatpush.xpose.msra.mxu0 0.0
    %6333 = vmatpush.xpose.msra.mxu0 0.0
    %6334 = vmatpush.xpose.msra.mxu0 0.0
    %6335 = vmatpush.xpose.msra.mxu0 0.0
    %6336 = vmatpush.xpose.msra.mxu0 0.0
    %6337 = vmatpush.xpose.msra.mxu0 0.0
    %6338 = vmatpush.xpose.msra.mxu0 %v497
    %6339 = vmatpush.xpose.msra.mxu0 %v494
    %6340 = vmatmul.f32.gmra.mxu0 %v6176
    %v6341 = vpop.f32.mrf.mxu0
    %v6342 = vadd.f32 0.0, %v6341
    %6343 = vdwg.mxu0
    %v6344 = vsel %vm814, %v6202, -inf
    %6345 = vmax.xlane.f32.xlu0 %v6344
    %v6346 = vpop.xlane.xlu0 %6345
    %v6347 = vsel %vm814, %v6222, -inf
    %6348 = vmax.xlane.f32.xlu0 %v6347
    %v6349 = vpop.xlane.xlu0 %6348
    %v6350 = vsel %vm814, %v6242, -inf
    %6351 = vmax.xlane.f32.xlu0 %v6350
    %v6352 = vpop.xlane.xlu0 %6351
    %v6353 = vsel %vm814, %v6262, -inf
    %6354 = vmax.xlane.f32.xlu0 %v6353
    %v6355 = vpop.xlane.xlu0 %6354
    %v6356 = vsel %vm814, %v6282, -inf
    %6357 = vmax.xlane.f32.xlu0 %v6356
    %v6358 = vpop.xlane.xlu0 %6357
    %v6359 = vsel %vm814, %v6302, -inf
    %6360 = vmax.xlane.f32.xlu0 %v6359
    %v6361 = vpop.xlane.xlu0 %6360
    %v6362 = vsel %vm814, %v6322, -inf
    %6363 = vmax.xlane.f32.xlu0 %v6362
    %v6364 = vpop.xlane.xlu0 %6363
    %v6365 = vsel %vm814, %v6342, -inf
    %6366 = vmax.xlane.f32.xlu0 %v6365
    %v6367 = vpop.xlane.xlu0 %6366
    %v6368 = vsub.f32 %v6202, %v6346
    %v6369 = vsub.f32 %v6222, %v6349
    %v6370 = vsub.f32 %v6242, %v6352
    %v6371 = vsub.f32 %v6262, %v6355
    %v6372 = vsub.f32 %v6282, %v6358
    %v6373 = vsub.f32 %v6302, %v6361
    %v6374 = vsub.f32 %v6322, %v6364
    %v6375 = vsub.f32 %v6342, %v6367
    %v6376 = vmul.f32 %v6368, 1.442695
    %v6377 = vpow.pop %v6376
    %v6378 = vmul.f32 %v6369, 1.442695
    %v6379 = vpow.pop %v6378
    %v6380 = vmul.f32 %v6370, 1.442695
    %v6381 = vpow.pop %v6380
    %v6382 = vmul.f32 %v6371, 1.442695
    %v6383 = vpow.pop %v6382
    %v6384 = vmul.f32 %v6372, 1.442695
    %v6385 = vpow.pop %v6384
    %v6386 = vmul.f32 %v6373, 1.442695
    %v6387 = vpow.pop %v6386
    %v6388 = vmul.f32 %v6374, 1.442695
    %v6389 = vpow.pop %v6388
    %v6390 = vmul.f32 %v6375, 1.442695
    %v6391 = vpow.pop %v6390
    %v6392 = vsel %vm814, %v6377, 0.0
    %6393 = vadd.xlane.f32.xlu0 %v6392
    %v6394 = vpop.xlane.xlu0 %6393
    %v6395 = vsel %vm814, %v6379, 0.0
    %6396 = vadd.xlane.f32.xlu0 %v6395
    %v6397 = vpop.xlane.xlu0 %6396
    %v6398 = vsel %vm814, %v6381, 0.0
    %6399 = vadd.xlane.f32.xlu0 %v6398
    %v6400 = vpop.xlane.xlu0 %6399
    %v6401 = vsel %vm814, %v6383, 0.0
    %6402 = vadd.xlane.f32.xlu0 %v6401
    %v6403 = vpop.xlane.xlu0 %6402
    %v6404 = vsel %vm814, %v6385, 0.0
    %6405 = vadd.xlane.f32.xlu0 %v6404
    %v6406 = vpop.xlane.xlu0 %6405
    %v6407 = vsel %vm814, %v6387, 0.0
    %6408 = vadd.xlane.f32.xlu0 %v6407
    %v6409 = vpop.xlane.xlu0 %6408
    %v6410 = vsel %vm814, %v6389, 0.0
    %6411 = vadd.xlane.f32.xlu0 %v6410
    %v6412 = vpop.xlane.xlu0 %6411
    %v6413 = vsel %vm814, %v6391, 0.0
    %6414 = vadd.xlane.f32.xlu0 %v6413
    %v6415 = vpop.xlane.xlu0 %6414
    %v6416 = vrcp.pop %v6394
    %v6417 = vrcp.pop %v6397
    %v6418 = vrcp.pop %v6400
    %v6419 = vrcp.pop %v6403
    %v6420 = vrcp.pop %v6406
    %v6421 = vrcp.pop %v6409
    %v6422 = vrcp.pop %v6412
    %v6423 = vrcp.pop %v6415
    %v6424 = vmul.f32 %v6377, %v6416
    %v6425 = vmul.f32 %v6379, %v6417
    %v6426 = vmul.f32 %v6381, %v6418
    %v6427 = vmul.f32 %v6383, %v6419
    %v6428 = vmul.f32 %v6385, %v6420
    %v6429 = vmul.f32 %v6387, %v6421
    %v6430 = vmul.f32 %v6389, %v6422
    %v6431 = vmul.f32 %v6391, %v6423
    %v6433 = vsel %vm903, %v6424, 0
    %6435 = vmatpush.msra.mxu0 0.0
    %6436 = vmatpush.msra.mxu0 0.0
    %6437 = vmatpush.msra.mxu0 0.0
    %6438 = vmatpush.msra.mxu0 0.0
    %6439 = vmatpush.msra.mxu0 0.0
    %6440 = vmatpush.msra.mxu0 0.0
    %6441 = vmatpush.msra.mxu0 0.0
    %6442 = vmatpush.msra.mxu0 0.0
    %6443 = vmatpush.msra.mxu0 0.0
    %6444 = vmatpush.msra.mxu0 0.0
    %6445 = vmatpush.msra.mxu0 0.0
    %6446 = vmatpush.msra.mxu0 0.0
    %6447 = vmatpush.msra.mxu0 0.0
    %6448 = vmatpush.msra.mxu0 0.0
    %6449 = vmatpush.msra.mxu0 %v112
    %6450 = vmatpush.msra.mxu0 %v111
    %6451 = vmatmul.f32.gmra.mxu0 %v6433
    %v6452 = vpop.f32.mrf.mxu0
    %v6453 = vadd.f32 0.0, %v6452
    %6454 = vdwg.mxu0
    %v6456 = vsel %vm903, %v6425, 0
    %6458 = vmatpush.msra.mxu0 0.0
    %6459 = vmatpush.msra.mxu0 0.0
    %6460 = vmatpush.msra.mxu0 0.0
    %6461 = vmatpush.msra.mxu0 0.0
    %6462 = vmatpush.msra.mxu0 0.0
    %6463 = vmatpush.msra.mxu0 0.0
    %6464 = vmatpush.msra.mxu0 0.0
    %6465 = vmatpush.msra.mxu0 0.0
    %6466 = vmatpush.msra.mxu0 0.0
    %6467 = vmatpush.msra.mxu0 0.0
    %6468 = vmatpush.msra.mxu0 0.0
    %6469 = vmatpush.msra.mxu0 0.0
    %6470 = vmatpush.msra.mxu0 0.0
    %6471 = vmatpush.msra.mxu0 0.0
    %6472 = vmatpush.msra.mxu0 %v114
    %6473 = vmatpush.msra.mxu0 %v113
    %6474 = vmatmul.f32.gmra.mxu0 %v6456
    %v6475 = vpop.f32.mrf.mxu0
    %v6476 = vadd.f32 0.0, %v6475
    %6477 = vdwg.mxu0
    %v6479 = vsel %vm903, %v6426, 0
    %6481 = vmatpush.msra.mxu0 0.0
    %6482 = vmatpush.msra.mxu0 0.0
    %6483 = vmatpush.msra.mxu0 0.0
    %6484 = vmatpush.msra.mxu0 0.0
    %6485 = vmatpush.msra.mxu0 0.0
    %6486 = vmatpush.msra.mxu0 0.0
    %6487 = vmatpush.msra.mxu0 0.0
    %6488 = vmatpush.msra.mxu0 0.0
    %6489 = vmatpush.msra.mxu0 0.0
    %6490 = vmatpush.msra.mxu0 0.0
    %6491 = vmatpush.msra.mxu0 0.0
    %6492 = vmatpush.msra.mxu0 0.0
    %6493 = vmatpush.msra.mxu0 0.0
    %6494 = vmatpush.msra.mxu0 0.0
    %6495 = vmatpush.msra.mxu0 %v116
    %6496 = vmatpush.msra.mxu0 %v115
    %6497 = vmatmul.f32.gmra.mxu0 %v6479
    %v6498 = vpop.f32.mrf.mxu0
    %v6499 = vadd.f32 0.0, %v6498
    %6500 = vdwg.mxu0
    %v6502 = vsel %vm903, %v6427, 0
    %6504 = vmatpush.msra.mxu0 0.0
    %6505 = vmatpush.msra.mxu0 0.0
    %6506 = vmatpush.msra.mxu0 0.0
    %6507 = vmatpush.msra.mxu0 0.0
    %6508 = vmatpush.msra.mxu0 0.0
    %6509 = vmatpush.msra.mxu0 0.0
    %6510 = vmatpush.msra.mxu0 0.0
    %6511 = vmatpush.msra.mxu0 0.0
    %6512 = vmatpush.msra.mxu0 0.0
    %6513 = vmatpush.msra.mxu0 0.0
    %6514 = vmatpush.msra.mxu0 0.0
    %6515 = vmatpush.msra.mxu0 0.0
    %6516 = vmatpush.msra.mxu0 0.0
    %6517 = vmatpush.msra.mxu0 0.0
    %6518 = vmatpush.msra.mxu0 %v118
    %6519 = vmatpush.msra.mxu0 %v117
    %6520 = vmatmul.f32.gmra.mxu0 %v6502
    %v6521 = vpop.f32.mrf.mxu0
    %v6522 = vadd.f32 0.0, %v6521
    %6523 = vdwg.mxu0
    %v6525 = vsel %vm903, %v6428, 0
    %6527 = vmatpush.msra.mxu0 0.0
    %6528 = vmatpush.msra.mxu0 0.0
    %6529 = vmatpush.msra.mxu0 0.0
    %6530 = vmatpush.msra.mxu0 0.0
    %6531 = vmatpush.msra.mxu0 0.0
    %6532 = vmatpush.msra.mxu0 0.0
    %6533 = vmatpush.msra.mxu0 0.0
    %6534 = vmatpush.msra.mxu0 0.0
    %6535 = vmatpush.msra.mxu0 0.0
    %6536 = vmatpush.msra.mxu0 0.0
    %6537 = vmatpush.msra.mxu0 0.0
    %6538 = vmatpush.msra.mxu0 0.0
    %6539 = vmatpush.msra.mxu0 0.0
    %6540 = vmatpush.msra.mxu0 0.0
    %6541 = vmatpush.msra.mxu0 %v120
    %6542 = vmatpush.msra.mxu0 %v119
    %6543 = vmatmul.f32.gmra.mxu0 %v6525
    %v6544 = vpop.f32.mrf.mxu0
    %v6545 = vadd.f32 0.0, %v6544
    %6546 = vdwg.mxu0
    %v6548 = vsel %vm903, %v6429, 0
    %6550 = vmatpush.msra.mxu0 0.0
    %6551 = vmatpush.msra.mxu0 0.0
    %6552 = vmatpush.msra.mxu0 0.0
    %6553 = vmatpush.msra.mxu0 0.0
    %6554 = vmatpush.msra.mxu0 0.0
    %6555 = vmatpush.msra.mxu0 0.0
    %6556 = vmatpush.msra.mxu0 0.0
    %6557 = vmatpush.msra.mxu0 0.0
    %6558 = vmatpush.msra.mxu0 0.0
    %6559 = vmatpush.msra.mxu0 0.0
    %6560 = vmatpush.msra.mxu0 0.0
    %6561 = vmatpush.msra.mxu0 0.0
    %6562 = vmatpush.msra.mxu0 0.0
    %6563 = vmatpush.msra.mxu0 0.0
    %6564 = vmatpush.msra.mxu0 %v122
    %6565 = vmatpush.msra.mxu0 %v121
    %6566 = vmatmul.f32.gmra.mxu0 %v6548
    %v6567 = vpop.f32.mrf.mxu0
    %v6568 = vadd.f32 0.0, %v6567
    %6569 = vdwg.mxu0
    %v6571 = vsel %vm903, %v6430, 0
    %6573 = vmatpush.msra.mxu0 0.0
    %6574 = vmatpush.msra.mxu0 0.0
    %6575 = vmatpush.msra.mxu0 0.0
    %6576 = vmatpush.msra.mxu0 0.0
    %6577 = vmatpush.msra.mxu0 0.0
    %6578 = vmatpush.msra.mxu0 0.0
    %6579 = vmatpush.msra.mxu0 0.0
    %6580 = vmatpush.msra.mxu0 0.0
    %6581 = vmatpush.msra.mxu0 0.0
    %6582 = vmatpush.msra.mxu0 0.0
    %6583 = vmatpush.msra.mxu0 0.0
    %6584 = vmatpush.msra.mxu0 0.0
    %6585 = vmatpush.msra.mxu0 0.0
    %6586 = vmatpush.msra.mxu0 0.0
    %6587 = vmatpush.msra.mxu0 %v124
    %6588 = vmatpush.msra.mxu0 %v123
    %6589 = vmatmul.f32.gmra.mxu0 %v6571
    %v6590 = vpop.f32.mrf.mxu0
    %v6591 = vadd.f32 0.0, %v6590
    %6592 = vdwg.mxu0
    %v6594 = vsel %vm903, %v6431, 0
    %6596 = vmatpush.msra.mxu0 0.0
    %6597 = vmatpush.msra.mxu0 0.0
    %6598 = vmatpush.msra.mxu0 0.0
    %6599 = vmatpush.msra.mxu0 0.0
    %6600 = vmatpush.msra.mxu0 0.0
    %6601 = vmatpush.msra.mxu0 0.0
    %6602 = vmatpush.msra.mxu0 0.0
    %6603 = vmatpush.msra.mxu0 0.0
    %6604 = vmatpush.msra.mxu0 0.0
    %6605 = vmatpush.msra.mxu0 0.0
    %6606 = vmatpush.msra.mxu0 0.0
    %6607 = vmatpush.msra.mxu0 0.0
    %6608 = vmatpush.msra.mxu0 0.0
    %6609 = vmatpush.msra.mxu0 0.0
    %6610 = vmatpush.msra.mxu0 %v126
    %6611 = vmatpush.msra.mxu0 %v125
    %6612 = vmatmul.f32.gmra.mxu0 %v6594
    %v6613 = vpop.f32.mrf.mxu0
    %v6614 = vadd.f32 0.0, %v6613
    %6615 = vdwg.mxu0
    %v6616 = vld [vmem:[#allocation5] sm:$0xff]
    %v6617 = vld [vmem:[#allocation5 + $0x8] sm:$0xff]
    %v6618 = vld [vmem:[#allocation5 + $0x10] sm:$0xff]
    %v6619 = vld [vmem:[#allocation5 + $0x18] sm:$0xff]
    %v6620 = vld [vmem:[#allocation5 + $0x20] sm:$0xff]
    %v6621 = vld [vmem:[#allocation5 + $0x28] sm:$0xff]
    %v6622 = vld [vmem:[#allocation5 + $0x30] sm:$0xff]
    %v6623 = vld [vmem:[#allocation5 + $0x38] sm:$0xff]
    %v6624 = vld [vmem:[#allocation5 + $0x40] sm:$0xff]
    %v6625 = vld [vmem:[#allocation5 + $0x48] sm:$0xff]
    %v6626 = vld [vmem:[#allocation5 + $0x50] sm:$0xff]
    %v6627 = vld [vmem:[#allocation5 + $0x58] sm:$0xff]
    %v6628 = vld [vmem:[#allocation5 + $0x60] sm:$0xff]
    %v6629 = vld [vmem:[#allocation5 + $0x68] sm:$0xff]
    %v6630 = vld [vmem:[#allocation5 + $0x70] sm:$0xff]
    %v6631 = vld [vmem:[#allocation5 + $0x78] sm:$0xff]
    %v6632 = vld [vmem:[#allocation10] sm:$0xff]
    %v6633 = vld [vmem:[#allocation10 + $0x8] sm:$0xff]
    %v6634 = vld [vmem:[#allocation10 + $0x10] sm:$0xff]
    %v6635 = vld [vmem:[#allocation10 + $0x18] sm:$0xff]
    %v6636 = vld [vmem:[#allocation10 + $0x20] sm:$0xff]
    %v6637 = vld [vmem:[#allocation10 + $0x28] sm:$0xff]
    %v6638 = vld [vmem:[#allocation10 + $0x30] sm:$0xff]
    %v6639 = vld [vmem:[#allocation10 + $0x38] sm:$0xff]
    %v6640 = vld [vmem:[#allocation10 + $0x40] sm:$0xff]
    %v6641 = vld [vmem:[#allocation10 + $0x48] sm:$0xff]
    %v6642 = vld [vmem:[#allocation10 + $0x50] sm:$0xff]
    %v6643 = vld [vmem:[#allocation10 + $0x58] sm:$0xff]
    %v6644 = vld [vmem:[#allocation10 + $0x60] sm:$0xff]
    %v6645 = vld [vmem:[#allocation10 + $0x68] sm:$0xff]
    %v6646 = vld [vmem:[#allocation10 + $0x70] sm:$0xff]
    %v6647 = vld [vmem:[#allocation10 + $0x78] sm:$0xff]
    %v6648 = vld [vmem:[#allocation10 + $0x80] sm:$0xff]
    %v6649 = vld [vmem:[#allocation10 + $0x88] sm:$0xff]
    %v6650 = vld [vmem:[#allocation10 + $0x90] sm:$0xff]
    %v6651 = vld [vmem:[#allocation10 + $0x98] sm:$0xff]
    %v6652 = vld [vmem:[#allocation10 + $0xa0] sm:$0xff]
    %v6653 = vld [vmem:[#allocation10 + $0xa8] sm:$0xff]
    %v6654 = vld [vmem:[#allocation10 + $0xb0] sm:$0xff]
    %v6655 = vld [vmem:[#allocation10 + $0xb8] sm:$0xff]
    %v6656 = vld [vmem:[#allocation10 + $0xc0] sm:$0xff]
    %v6657 = vld [vmem:[#allocation10 + $0xc8] sm:$0xff]
    %v6658 = vld [vmem:[#allocation10 + $0xd0] sm:$0xff]
    %v6659 = vld [vmem:[#allocation10 + $0xd8] sm:$0xff]
    %v6660 = vld [vmem:[#allocation10 + $0xe0] sm:$0xff]
    %v6661 = vld [vmem:[#allocation10 + $0xe8] sm:$0xff]
    %v6662 = vld [vmem:[#allocation10 + $0xf0] sm:$0xff]
    %v6663 = vld [vmem:[#allocation10 + $0xf8] sm:$0xff]
    %v6664 = vld [vmem:[#allocation10 + $0x100] sm:$0xff]
    %v6665 = vld [vmem:[#allocation10 + $0x108] sm:$0xff]
    %v6666 = vld [vmem:[#allocation10 + $0x110] sm:$0xff]
    %v6667 = vld [vmem:[#allocation10 + $0x118] sm:$0xff]
    %v6668 = vld [vmem:[#allocation10 + $0x120] sm:$0xff]
    %v6669 = vld [vmem:[#allocation10 + $0x128] sm:$0xff]
    %v6670 = vld [vmem:[#allocation10 + $0x130] sm:$0xff]
    %v6671 = vld [vmem:[#allocation10 + $0x138] sm:$0xff]
    %v6672 = vld [vmem:[#allocation10 + $0x140] sm:$0xff]
    %v6673 = vld [vmem:[#allocation10 + $0x148] sm:$0xff]
    %v6674 = vld [vmem:[#allocation10 + $0x150] sm:$0xff]
    %v6675 = vld [vmem:[#allocation10 + $0x158] sm:$0xff]
    %v6676 = vld [vmem:[#allocation10 + $0x160] sm:$0xff]
    %v6677 = vld [vmem:[#allocation10 + $0x168] sm:$0xff]
    %v6678 = vld [vmem:[#allocation10 + $0x170] sm:$0xff]
    %v6679 = vld [vmem:[#allocation10 + $0x178] sm:$0xff]
    %v6680 = vld [vmem:[#allocation10 + $0x180] sm:$0xff]
    %v6681 = vld [vmem:[#allocation10 + $0x188] sm:$0xff]
    %v6682 = vld [vmem:[#allocation10 + $0x190] sm:$0xff]
    %v6683 = vld [vmem:[#allocation10 + $0x198] sm:$0xff]
    %v6684 = vld [vmem:[#allocation10 + $0x1a0] sm:$0xff]
    %v6685 = vld [vmem:[#allocation10 + $0x1a8] sm:$0xff]
    %v6686 = vld [vmem:[#allocation10 + $0x1b0] sm:$0xff]
    %v6687 = vld [vmem:[#allocation10 + $0x1b8] sm:$0xff]
    %v6688 = vld [vmem:[#allocation10 + $0x1c0] sm:$0xff]
    %v6689 = vld [vmem:[#allocation10 + $0x1c8] sm:$0xff]
    %v6690 = vld [vmem:[#allocation10 + $0x1d0] sm:$0xff]
    %v6691 = vld [vmem:[#allocation10 + $0x1d8] sm:$0xff]
    %v6692 = vld [vmem:[#allocation10 + $0x1e0] sm:$0xff]
    %v6693 = vld [vmem:[#allocation10 + $0x1e8] sm:$0xff]
    %v6694 = vld [vmem:[#allocation10 + $0x1f0] sm:$0xff]
    %v6695 = vld [vmem:[#allocation10 + $0x1f8] sm:$0xff]
    %6696 = vmatpush.msra.mxu0 %v6692
    %6697 = vmatpush.msra.mxu0 %v6688
    %6698 = vmatpush.msra.mxu0 %v6684
    %6699 = vmatpush.msra.mxu0 %v6680
    %6700 = vmatpush.msra.mxu0 %v6676
    %6701 = vmatpush.msra.mxu0 %v6672
    %6702 = vmatpush.msra.mxu0 %v6668
    %6703 = vmatpush.msra.mxu0 %v6664
    %6704 = vmatpush.msra.mxu0 %v6660
    %6705 = vmatpush.msra.mxu0 %v6656
    %6706 = vmatpush.msra.mxu0 %v6652
    %6707 = vmatpush.msra.mxu0 %v6648
    %6708 = vmatpush.msra.mxu0 %v6644
    %6709 = vmatpush.msra.mxu0 %v6640
    %6710 = vmatpush.msra.mxu0 %v6636
    %6711 = vmatpush.msra.mxu0 %v6632
    %6712 = vmatmul.f32.gmra.mxu0 %v6163
    %v6713 = vpop.f32.mrf.mxu0
    %v6714 = vadd.f32 0.0, %v6713
    %6715 = vdwg.mxu0
    %6716 = vmatpush.msra.mxu0 %v6693
    %6717 = vmatpush.msra.mxu0 %v6689
    %6718 = vmatpush.msra.mxu0 %v6685
    %6719 = vmatpush.msra.mxu0 %v6681
    %6720 = vmatpush.msra.mxu0 %v6677
    %6721 = vmatpush.msra.mxu0 %v6673
    %6722 = vmatpush.msra.mxu0 %v6669
    %6723 = vmatpush.msra.mxu0 %v6665
    %6724 = vmatpush.msra.mxu0 %v6661
    %6725 = vmatpush.msra.mxu0 %v6657
    %6726 = vmatpush.msra.mxu0 %v6653
    %6727 = vmatpush.msra.mxu0 %v6649
    %6728 = vmatpush.msra.mxu0 %v6645
    %6729 = vmatpush.msra.mxu0 %v6641
    %6730 = vmatpush.msra.mxu0 %v6637
    %6731 = vmatpush.msra.mxu0 %v6633
    %6732 = vmatmul.f32.gmra.mxu0 %v6163
    %v6733 = vpop.f32.mrf.mxu0
    %v6734 = vadd.f32 0.0, %v6733
    %6735 = vdwg.mxu0
    %6736 = vmatpush.msra.mxu0 %v6694
    %6737 = vmatpush.msra.mxu0 %v6690
    %6738 = vmatpush.msra.mxu0 %v6686
    %6739 = vmatpush.msra.mxu0 %v6682
    %6740 = vmatpush.msra.mxu0 %v6678
    %6741 = vmatpush.msra.mxu0 %v6674
    %6742 = vmatpush.msra.mxu0 %v6670
    %6743 = vmatpush.msra.mxu0 %v6666
    %6744 = vmatpush.msra.mxu0 %v6662
    %6745 = vmatpush.msra.mxu0 %v6658
    %6746 = vmatpush.msra.mxu0 %v6654
    %6747 = vmatpush.msra.mxu0 %v6650
    %6748 = vmatpush.msra.mxu0 %v6646
    %6749 = vmatpush.msra.mxu0 %v6642
    %6750 = vmatpush.msra.mxu0 %v6638
    %6751 = vmatpush.msra.mxu0 %v6634
    %6752 = vmatmul.f32.gmra.mxu0 %v6163
    %v6753 = vpop.f32.mrf.mxu0
    %v6754 = vadd.f32 0.0, %v6753
    %6755 = vdwg.mxu0
    %6756 = vmatpush.msra.mxu0 %v6695
    %6757 = vmatpush.msra.mxu0 %v6691
    %6758 = vmatpush.msra.mxu0 %v6687
    %6759 = vmatpush.msra.mxu0 %v6683
    %6760 = vmatpush.msra.mxu0 %v6679
    %6761 = vmatpush.msra.mxu0 %v6675
    %6762 = vmatpush.msra.mxu0 %v6671
    %6763 = vmatpush.msra.mxu0 %v6667
    %6764 = vmatpush.msra.mxu0 %v6663
    %6765 = vmatpush.msra.mxu0 %v6659
    %6766 = vmatpush.msra.mxu0 %v6655
    %6767 = vmatpush.msra.mxu0 %v6651
    %6768 = vmatpush.msra.mxu0 %v6647
    %6769 = vmatpush.msra.mxu0 %v6643
    %6770 = vmatpush.msra.mxu0 %v6639
    %6771 = vmatpush.msra.mxu0 %v6635
    %6772 = vmatmul.f32.gmra.mxu0 %v6163
    %v6773 = vpop.f32.mrf.mxu0
    %v6774 = vadd.f32 0.0, %v6773
    %6775 = vdwg.mxu0
    %v6784 = vrot.slane %v6476, 7
    %v6785 = vsel %vm602, %v6784, %v6453
    %v6786 = vrot.slane %v6499, 6
    %v6787 = vsel %vm604, %v6786, %v6785
    %v6788 = vrot.slane %v6522, 5
    %v6789 = vsel %vm606, %v6788, %v6787
    %v6790 = vrot.slane %v6545, 4
    %v6791 = vsel %vm608, %v6790, %v6789
    %v6792 = vrot.slane %v6568, 3
    %v6793 = vsel %vm610, %v6792, %v6791
    %v6794 = vrot.slane %v6591, 2
    %v6795 = vsel %vm612, %v6794, %v6793
    %v6796 = vrot.slane %v6614, 1
    %v6797 = vsel %vm614, %v6796, %v6795
    %v6798 = vsel %vm161, %v6797, 0
    %6800 = vmatpush.msra.mxu0 0.0
    %6801 = vmatpush.msra.mxu0 0.0
    %6802 = vmatpush.msra.mxu0 0.0
    %6803 = vmatpush.msra.mxu0 0.0
    %6804 = vmatpush.msra.mxu0 0.0
    %6805 = vmatpush.msra.mxu0 0.0
    %6806 = vmatpush.msra.mxu0 0.0
    %6807 = vmatpush.msra.mxu0 0.0
    %6808 = vmatpush.msra.mxu0 0.0
    %6809 = vmatpush.msra.mxu0 0.0
    %6810 = vmatpush.msra.mxu0 0.0
    %6811 = vmatpush.msra.mxu0 0.0
    %6812 = vmatpush.msra.mxu0 %v6628
    %6813 = vmatpush.msra.mxu0 %v6624
    %6814 = vmatpush.msra.mxu0 %v6620
    %6815 = vmatpush.msra.mxu0 %v6616
    %6816 = vmatmul.f32.gmra.mxu0 %v6798
    %v6817 = vpop.f32.mrf.mxu0
    %v6818 = vadd.f32 %v6714, %v6817
    %6819 = vdwg.mxu0
    %6820 = vmatpush.msra.mxu0 0.0
    %6821 = vmatpush.msra.mxu0 0.0
    %6822 = vmatpush.msra.mxu0 0.0
    %6823 = vmatpush.msra.mxu0 0.0
    %6824 = vmatpush.msra.mxu0 0.0
    %6825 = vmatpush.msra.mxu0 0.0
    %6826 = vmatpush.msra.mxu0 0.0
    %6827 = vmatpush.msra.mxu0 0.0
    %6828 = vmatpush.msra.mxu0 0.0
    %6829 = vmatpush.msra.mxu0 0.0
    %6830 = vmatpush.msra.mxu0 0.0
    %6831 = vmatpush.msra.mxu0 0.0
    %6832 = vmatpush.msra.mxu0 %v6629
    %6833 = vmatpush.msra.mxu0 %v6625
    %6834 = vmatpush.msra.mxu0 %v6621
    %6835 = vmatpush.msra.mxu0 %v6617
    %6836 = vmatmul.f32.gmra.mxu0 %v6798
    %v6837 = vpop.f32.mrf.mxu0
    %v6838 = vadd.f32 %v6734, %v6837
    %6839 = vdwg.mxu0
    %6840 = vmatpush.msra.mxu0 0.0
    %6841 = vmatpush.msra.mxu0 0.0
    %6842 = vmatpush.msra.mxu0 0.0
    %6843 = vmatpush.msra.mxu0 0.0
    %6844 = vmatpush.msra.mxu0 0.0
    %6845 = vmatpush.msra.mxu0 0.0
    %6846 = vmatpush.msra.mxu0 0.0
    %6847 = vmatpush.msra.mxu0 0.0
    %6848 = vmatpush.msra.mxu0 0.0
    %6849 = vmatpush.msra.mxu0 0.0
    %6850 = vmatpush.msra.mxu0 0.0
    %6851 = vmatpush.msra.mxu0 0.0
    %6852 = vmatpush.msra.mxu0 %v6630
    %6853 = vmatpush.msra.mxu0 %v6626
    %6854 = vmatpush.msra.mxu0 %v6622
    %6855 = vmatpush.msra.mxu0 %v6618
    %6856 = vmatmul.f32.gmra.mxu0 %v6798
    %v6857 = vpop.f32.mrf.mxu0
    %v6858 = vadd.f32 %v6754, %v6857
    %6859 = vdwg.mxu0
    %6860 = vmatpush.msra.mxu0 0.0
    %6861 = vmatpush.msra.mxu0 0.0
    %6862 = vmatpush.msra.mxu0 0.0
    %6863 = vmatpush.msra.mxu0 0.0
    %6864 = vmatpush.msra.mxu0 0.0
    %6865 = vmatpush.msra.mxu0 0.0
    %6866 = vmatpush.msra.mxu0 0.0
    %6867 = vmatpush.msra.mxu0 0.0
    %6868 = vmatpush.msra.mxu0 0.0
    %6869 = vmatpush.msra.mxu0 0.0
    %6870 = vmatpush.msra.mxu0 0.0
    %6871 = vmatpush.msra.mxu0 0.0
    %6872 = vmatpush.msra.mxu0 %v6631
    %6873 = vmatpush.msra.mxu0 %v6627
    %6874 = vmatpush.msra.mxu0 %v6623
    %6875 = vmatpush.msra.mxu0 %v6619
    %6876 = vmatmul.f32.gmra.mxu0 %v6798
    %v6877 = vpop.f32.mrf.mxu0
    %v6878 = vadd.f32 %v6774, %v6877
    %6879 = vdwg.mxu0
    %s6880 = smul.u32 7, 4
    %s6881 = smul.addr %s6880, 8
    %s6882 = scalar_lea.vmem [#allocation2], %s6881
    %v6883 = vld [vmem:[%s6882] sm:$0xff]
    %v6884 = vld [vmem:[%s6882 + $0x8] sm:$0xff]
    %v6885 = vld [vmem:[%s6882 + $0x10] sm:$0xff]
    %v6886 = vld [vmem:[%s6882 + $0x18] sm:$0xff]
    %v6887 = vadd.f32 %v6818, %v6883
    %v6888 = vadd.f32 %v6838, %v6884
    %v6889 = vadd.f32 %v6858, %v6885
    %v6890 = vadd.f32 %v6878, %v6886
    %v6891 = vxor.u32 %v6887, 2147483648
    %v6892 = vmul.f32 %v6891, 1.442695
    %v6893 = vpow.pop %v6892
    %v6894 = vadd.f32 %v6893, 1.0
    %v6895 = vrcp.pop %v6894
    %v6896 = vmul.f32 %v6894, %v6895
    %v6897 = vsub.f32 1.0, %v6896
    %v6898 = vmul.f32 %v6895, %v6897
    %v6899 = vadd.f32 %v6895, %v6898
    %vm6900 = vweird.f32 %v6894
    %vm6901 = vweird.f32 %v6895
    %vm6902 = vmor %vm6900, %vm6901
    %v6903 = vsel %vm6902, %v6895, %v6899
    %v6904 = vand.u32 2147483647, %v6894
    %vm6905 = vcmp.eq.f32.partialorder %v6904, 8.507059e+37
    %v6906 = vand.u32 %v6894, 2147483648
    %v6907 = vor.u32 1.1754944e-38, %v6906
    %v6908 = vsel %vm6905, %v6907, %v6903
    %v6909 = vmul.f32 1.0, %v6908
    %v6910 = vxor.u32 %v6888, 2147483648
    %v6911 = vmul.f32 %v6910, 1.442695
    %v6912 = vpow.pop %v6911
    %v6913 = vadd.f32 %v6912, 1.0
    %v6914 = vrcp.pop %v6913
    %v6915 = vmul.f32 %v6913, %v6914
    %v6916 = vsub.f32 1.0, %v6915
    %v6917 = vmul.f32 %v6914, %v6916
    %v6918 = vadd.f32 %v6914, %v6917
    %vm6919 = vweird.f32 %v6913
    %vm6920 = vweird.f32 %v6914
    %vm6921 = vmor %vm6919, %vm6920
    %v6922 = vsel %vm6921, %v6914, %v6918
    %v6923 = vand.u32 2147483647, %v6913
    %vm6924 = vcmp.eq.f32.partialorder %v6923, 8.507059e+37
    %v6925 = vand.u32 %v6913, 2147483648
    %v6926 = vor.u32 1.1754944e-38, %v6925
    %v6927 = vsel %vm6924, %v6926, %v6922
    %v6928 = vmul.f32 1.0, %v6927
    %v6929 = vtanh.pop %v6889
    %v6930 = vxor.u32 %v6890, 2147483648
    %v6931 = vmul.f32 %v6930, 1.442695
    %v6932 = vpow.pop %v6931
    %v6933 = vadd.f32 %v6932, 1.0
    %v6934 = vrcp.pop %v6933
    %v6935 = vmul.f32 %v6933, %v6934
    %v6936 = vsub.f32 1.0, %v6935
    %v6937 = vmul.f32 %v6934, %v6936
    %v6938 = vadd.f32 %v6934, %v6937
    %vm6939 = vweird.f32 %v6933
    %vm6940 = vweird.f32 %v6934
    %vm6941 = vmor %vm6939, %vm6940
    %v6942 = vsel %vm6941, %v6934, %v6938
    %v6943 = vand.u32 2147483647, %v6933
    %vm6944 = vcmp.eq.f32.partialorder %v6943, 8.507059e+37
    %v6945 = vand.u32 %v6933, 2147483648
    %v6946 = vor.u32 1.1754944e-38, %v6945
    %v6947 = vsel %vm6944, %v6946, %v6942
    %v6948 = vmul.f32 1.0, %v6947
    %v6949 = vmul.f32 %v6928, %v6161
    %v6950 = vmul.f32 %v6909, %v6929
    %v6951 = vadd.f32 %v6949, %v6950
    %v6952 = vtanh.pop %v6951
    %v6953 = vmul.f32 %v6948, %v6952
    %s6954 = scalar_lea.vmem [#allocation3], 56
    %6955 = vst [vmem:[%s6954] sm:$0xff] %v6953
    %s6957 = scalar_lea.vmem [#allocation4], 56
    %6958 = vst.msk [vmem:[%s6957] sm:$0xff] %vm161, %v6797
    %v6959 = vld [vmem:[#allocation3] sm:$0xff]
    %v6960 = vld [vmem:[#allocation3 + $0x8] sm:$0xff]
    %v6961 = vld [vmem:[#allocation3 + $0x10] sm:$0xff]
    %v6962 = vld [vmem:[#allocation3 + $0x18] sm:$0xff]
    %v6963 = vld [vmem:[#allocation3 + $0x20] sm:$0xff]
    %v6964 = vld [vmem:[#allocation3 + $0x28] sm:$0xff]
    %v6965 = vld [vmem:[#allocation3 + $0x30] sm:$0xff]
    %v6966 = vld [vmem:[#allocation3 + $0x38] sm:$0xff]
    %v6967 = vld [vmem:[%s9] sm:$0xff]
    %v6968 = vld [vmem:[%s9 + $0x8] sm:$0xff]
    %v6969 = vld [vmem:[%s9 + $0x10] sm:$0xff]
    %v6970 = vld [vmem:[%s9 + $0x18] sm:$0xff]
    %v6971 = vld [vmem:[%s9 + $0x20] sm:$0xff]
    %v6972 = vld [vmem:[%s9 + $0x28] sm:$0xff]
    %v6973 = vld [vmem:[%s9 + $0x30] sm:$0xff]
    %v6974 = vld [vmem:[%s9 + $0x38] sm:$0xff]
    %v6975 = vld [vmem:[%s9 + $0x40] sm:$0xff]
    %v6976 = vld [vmem:[%s9 + $0x48] sm:$0xff]
    %v6977 = vld [vmem:[%s9 + $0x50] sm:$0xff]
    %v6978 = vld [vmem:[%s9 + $0x58] sm:$0xff]
    %v6979 = vld [vmem:[%s9 + $0x60] sm:$0xff]
    %v6980 = vld [vmem:[%s9 + $0x68] sm:$0xff]
    %v6981 = vld [vmem:[%s9 + $0x70] sm:$0xff]
    %v6982 = vld [vmem:[%s9 + $0x78] sm:$0xff]
    %v6983 = vld [vmem:[#allocation4] sm:$0xff]
    %v6984 = vld [vmem:[#allocation4 + $0x8] sm:$0xff]
    %v6985 = vld [vmem:[#allocation4 + $0x10] sm:$0xff]
    %v6986 = vld [vmem:[#allocation4 + $0x18] sm:$0xff]
    %v6987 = vld [vmem:[#allocation4 + $0x20] sm:$0xff]
    %v6988 = vld [vmem:[#allocation4 + $0x28] sm:$0xff]
    %v6989 = vld [vmem:[#allocation4 + $0x30] sm:$0xff]
    %v6990 = vld [vmem:[#allocation4 + $0x38] sm:$0xff]
    %v6991 = vld [vmem:[%s10] sm:$0xff]
    %v6992 = vld [vmem:[%s10 + $0x8] sm:$0xff]
    %v6993 = vld [vmem:[%s10 + $0x10] sm:$0xff]
    %v6994 = vld [vmem:[%s10 + $0x18] sm:$0xff]
    %v6996 = vsel %vm161, %v6983, 0
    %v6999 = vsel %vm161, %v6984, 0
    %v7002 = vsel %vm161, %v6985, 0
    %v7005 = vsel %vm161, %v6986, 0
    %v7008 = vsel %vm161, %v6987, 0
    %v7011 = vsel %vm161, %v6988, 0
    %v7014 = vsel %vm161, %v6989, 0
    %v7017 = vsel %vm161, %v6990, 0
    %7019 = vmatpush.msra.mxu0 0.0
    %7020 = vmatpush.msra.mxu0 0.0
    %7021 = vmatpush.msra.mxu0 0.0
    %7022 = vmatpush.msra.mxu0 0.0
    %7023 = vmatpush.msra.mxu0 0.0
    %7024 = vmatpush.msra.mxu0 0.0
    %7025 = vmatpush.msra.mxu0 0.0
    %7026 = vmatpush.msra.mxu0 0.0
    %7027 = vmatpush.msra.mxu0 0.0
    %7028 = vmatpush.msra.mxu0 0.0
    %7029 = vmatpush.msra.mxu0 0.0
    %7030 = vmatpush.msra.mxu0 0.0
    %7031 = vmatpush.msra.mxu0 %v6994
    %7032 = vmatpush.msra.mxu0 %v6993
    %7033 = vmatpush.msra.mxu0 %v6992
    %7034 = vmatpush.msra.mxu0 %v6991
    %7035 = vmatmul.f32.gmra.mxu0 %v6996
    %v7036 = vpop.f32.mrf.mxu0
    %v7037 = vadd.f32 0.0, %v7036
    %7038 = vmatmul.f32.gmra.mxu0 %v6999
    %v7039 = vpop.f32.mrf.mxu0
    %v7040 = vadd.f32 0.0, %v7039
    %7041 = vmatmul.f32.gmra.mxu0 %v7002
    %v7042 = vpop.f32.mrf.mxu0
    %v7043 = vadd.f32 0.0, %v7042
    %7044 = vmatmul.f32.gmra.mxu0 %v7005
    %v7045 = vpop.f32.mrf.mxu0
    %v7046 = vadd.f32 0.0, %v7045
    %7047 = vmatmul.f32.gmra.mxu0 %v7008
    %v7048 = vpop.f32.mrf.mxu0
    %v7049 = vadd.f32 0.0, %v7048
    %7050 = vmatmul.f32.gmra.mxu0 %v7011
    %v7051 = vpop.f32.mrf.mxu0
    %v7052 = vadd.f32 0.0, %v7051
    %7053 = vmatmul.f32.gmra.mxu0 %v7014
    %v7054 = vpop.f32.mrf.mxu0
    %v7055 = vadd.f32 0.0, %v7054
    %7056 = vmatmul.f32.gmra.mxu0 %v7017
    %v7057 = vpop.f32.mrf.mxu0
    %v7058 = vadd.f32 0.0, %v7057
    %7059 = vdwg.mxu0
    %7060 = vmatpush.msra.mxu0 %v6982
    %7061 = vmatpush.msra.mxu0 %v6981
    %7062 = vmatpush.msra.mxu0 %v6980
    %7063 = vmatpush.msra.mxu0 %v6979
    %7064 = vmatpush.msra.mxu0 %v6978
    %7065 = vmatpush.msra.mxu0 %v6977
    %7066 = vmatpush.msra.mxu0 %v6976
    %7067 = vmatpush.msra.mxu0 %v6975
    %7068 = vmatpush.msra.mxu0 %v6974
    %7069 = vmatpush.msra.mxu0 %v6973
    %7070 = vmatpush.msra.mxu0 %v6972
    %7071 = vmatpush.msra.mxu0 %v6971
    %7072 = vmatpush.msra.mxu0 %v6970
    %7073 = vmatpush.msra.mxu0 %v6969
    %7074 = vmatpush.msra.mxu0 %v6968
    %7075 = vmatpush.msra.mxu0 %v6967
    %7076 = vmatmul.f32.gmra.mxu0 %v6959
    %v7077 = vpop.f32.mrf.mxu0
    %v7078 = vadd.f32 %v7037, %v7077
    %7079 = vmatmul.f32.gmra.mxu0 %v6960
    %v7080 = vpop.f32.mrf.mxu0
    %v7081 = vadd.f32 %v7040, %v7080
    %7082 = vmatmul.f32.gmra.mxu0 %v6961
    %v7083 = vpop.f32.mrf.mxu0
    %v7084 = vadd.f32 %v7043, %v7083
    %7085 = vmatmul.f32.gmra.mxu0 %v6962
    %v7086 = vpop.f32.mrf.mxu0
    %v7087 = vadd.f32 %v7046, %v7086
    %7088 = vmatmul.f32.gmra.mxu0 %v6963
    %v7089 = vpop.f32.mrf.mxu0
    %v7090 = vadd.f32 %v7049, %v7089
    %7091 = vmatmul.f32.gmra.mxu0 %v6964
    %v7092 = vpop.f32.mrf.mxu0
    %v7093 = vadd.f32 %v7052, %v7092
    %7094 = vmatmul.f32.gmra.mxu0 %v6965
    %v7095 = vpop.f32.mrf.mxu0
    %v7096 = vadd.f32 %v7055, %v7095
    %7097 = vmatmul.f32.gmra.mxu0 %v6966
    %v7098 = vpop.f32.mrf.mxu0
    %v7099 = vadd.f32 %v7058, %v7098
    %7100 = vdwg.mxu0
    %v7101 = vadd.f32 %v7078, %v127
    %v7102 = vadd.f32 %v7081, %v128
    %v7103 = vadd.f32 %v7084, %v129
    %v7104 = vadd.f32 %v7087, %v130
    %v7105 = vadd.f32 %v7090, %v131
    %v7106 = vadd.f32 %v7093, %v132
    %v7107 = vadd.f32 %v7096, %v133
    %v7108 = vadd.f32 %v7099, %v134
    %v7109 = vld [vmem:[%s11] sm:$0x1]
    %v7111 = vperm.slane %v7109, 0
    %v7113 = vadd.f32 %v7101, %v7111
    %v7114 = vadd.f32 %v7102, %v7111
    %v7115 = vadd.f32 %v7103, %v7111
    %v7116 = vadd.f32 %v7104, %v7111
    %v7117 = vadd.f32 %v7105, %v7111
    %v7118 = vadd.f32 %v7106, %v7111
    %v7119 = vadd.f32 %v7107, %v7111
    %v7120 = vadd.f32 %v7108, %v7111
    %v7121 = vtanh.pop %v7113
    %v7122 = vtanh.pop %v7114
    %v7123 = vtanh.pop %v7115
    %v7124 = vtanh.pop %v7116
    %v7125 = vtanh.pop %v7117
    %v7126 = vtanh.pop %v7118
    %v7127 = vtanh.pop %v7119
    %v7128 = vtanh.pop %v7120
    %v7129 = vld [vmem:[#allocation11] sm:$0xff]
    %v7130 = vld [vmem:[#allocation11 + $0x8] sm:$0xff]
    %v7131 = vld [vmem:[#allocation11 + $0x10] sm:$0xff]
    %v7132 = vld [vmem:[#allocation11 + $0x18] sm:$0xff]
    %v7133 = vld [vmem:[%s13] sm:$0x1]
    %v7135 = vperm.slane %v7133, 0
    %v7138 = vsel %vm161, %v7121, 0
    %v7141 = vsel %vm161, %v7122, 0
    %v7144 = vsel %vm161, %v7123, 0
    %v7147 = vsel %vm161, %v7124, 0
    %v7150 = vsel %vm161, %v7125, 0
    %v7153 = vsel %vm161, %v7126, 0
    %v7156 = vsel %vm161, %v7127, 0
    %v7159 = vsel %vm161, %v7128, 0
    %7161 = vmatpush.msra.mxu0 0.0
    %7162 = vmatpush.msra.mxu0 0.0
    %7163 = vmatpush.msra.mxu0 0.0
    %7164 = vmatpush.msra.mxu0 0.0
    %7165 = vmatpush.msra.mxu0 0.0
    %7166 = vmatpush.msra.mxu0 0.0
    %7167 = vmatpush.msra.mxu0 0.0
    %7168 = vmatpush.msra.mxu0 0.0
    %7169 = vmatpush.msra.mxu0 0.0
    %7170 = vmatpush.msra.mxu0 0.0
    %7171 = vmatpush.msra.mxu0 0.0
    %7172 = vmatpush.msra.mxu0 0.0
    %7173 = vmatpush.msra.mxu0 %v7132
    %7174 = vmatpush.msra.mxu0 %v7131
    %7175 = vmatpush.msra.mxu0 %v7130
    %7176 = vmatpush.msra.mxu0 %v7129
    %7177 = vmatmul.f32.gmra.mxu0 %v7138
    %v7178 = vpop.f32.mrf.mxu0
    %v7179 = vadd.f32 %v7135, %v7178
    %7180 = vmatmul.f32.gmra.mxu0 %v7141
    %v7181 = vpop.f32.mrf.mxu0
    %v7182 = vadd.f32 %v7135, %v7181
    %7183 = vmatmul.f32.gmra.mxu0 %v7144
    %v7184 = vpop.f32.mrf.mxu0
    %v7185 = vadd.f32 %v7135, %v7184
    %7186 = vmatmul.f32.gmra.mxu0 %v7147
    %v7187 = vpop.f32.mrf.mxu0
    %v7188 = vadd.f32 %v7135, %v7187
    %7189 = vmatmul.f32.gmra.mxu0 %v7150
    %v7190 = vpop.f32.mrf.mxu0
    %v7191 = vadd.f32 %v7135, %v7190
    %7192 = vmatmul.f32.gmra.mxu0 %v7153
    %v7193 = vpop.f32.mrf.mxu0
    %v7194 = vadd.f32 %v7135, %v7193
    %7195 = vmatmul.f32.gmra.mxu0 %v7156
    %v7196 = vpop.f32.mrf.mxu0
    %v7197 = vadd.f32 %v7135, %v7196
    %7198 = vmatmul.f32.gmra.mxu0 %v7159
    %v7199 = vpop.f32.mrf.mxu0
    %v7200 = vadd.f32 %v7135, %v7199
    %7201 = vdwg.mxu0
    %7202 = vst [vmem:[#allocation13] sm:$0xff] %v7179
    %7203 = vst [vmem:[#allocation13 + $0x8] sm:$0xff] %v7182
    %7204 = vst [vmem:[#allocation13 + $0x10] sm:$0xff] %v7185
    %7205 = vst [vmem:[#allocation13 + $0x18] sm:$0xff] %v7188
    %7206 = vst [vmem:[#allocation13 + $0x20] sm:$0xff] %v7191
    %7207 = vst [vmem:[#allocation13 + $0x28] sm:$0xff] %v7194
    %7208 = vst [vmem:[#allocation13 + $0x30] sm:$0xff] %v7197
    %7209 = vst [vmem:[#allocation13 + $0x38] sm:$0xff] %v7200
    // Predicated region
    $region74: #{tpu_custom_call.1} parent=1 // pred_check
      _
    $region75: #{tpu_custom_call.1} parent=1 // pred_check_branch
      %7211 = sbr.rel (0) target = $region77
    $region76: #{tpu_custom_call.1} parent=1 // pred_region
      %7213 = vsyncadd [#allocation7], 0
      %s7214 = sshll.u32 [#allocation13], 4
      %s7215 = int_to_ptr.vmem [resolvable:$true] %s7214
      %s7216 = sshll.u32 %s14, 4
      %s7217 = int_to_ptr.hbm [resolvable:$true] %s7216
      %7222 = dma.vmem_to_hbm [thread:$0]  %s7215, 1024, %s7217, [#allocation7], 128, 128, 8
    $region77: #{tpu_custom_call.1} parent=1 // pred_fallthru
      _
    // Predicated region
    $region78: #{tpu_custom_call.1} parent=1 // pred_check
      _
    $region79: #{tpu_custom_call.1} parent=1 // pred_check_branch
      %7224 = sbr.rel (0) target = $region81
    $region80: #{tpu_custom_call.1} parent=1 // pred_region
      %7226 = dma.done [#allocation7], 1024
    $region81: #{tpu_custom_call.1} parent=1 // pred_fallthru
      _
    %7227 = vsyncpa [#allocation6], 1
    %7228 = vsyncpa [#allocation9], 1
    %7229 = vsyncpa [#allocation12], 1
    %7230 = vsyncpa [#allocation7], 1

</llo_original>
